<compile_context>
chip_gen: v6e
topology: v6e:2x2x1
jax: 0.10.0
libtpu: 0.0.40
codegen_flags: <defaults>
</compile_context>

<pallas_src>
import functools

import jax
import jax.numpy as jnp
from jax.experimental import pallas as pl
from jax.experimental.pallas import tpu as pltpu


# ----------------------------------------------------------------------------
# Fused SFE kernel (one grid step == one batch element)
# ----------------------------------------------------------------------------
def sfe_kernel(x_ref, mask_ref, w_ref, b_ref, out_ref, act_ref, *,
               num_res_blocks, res_scale, wp2):
    """Fully fused SFE forward for one batch element (channel-major layout).

    x_ref   : (1, C, P)     f32 zero-padded input plane (flattened (H+2,W+2))
    mask_ref: (1, P)        f32 interior mask (1 inside the image, 0 on the
                            padding ring and on the lane-padding tail)
    w_ref   : (L*9, C, C)   bf16 per-tap transposed weights W_t^T[co, ci]
    b_ref   : (L, C, 1)     f32 biases
    out_ref : (1, C, P)     f32 output plane (interior valid, border zeroed)
    act_ref : (2, C, P)     f32 scratch: slot 0 = running x/y, slot 1 = h
    """
    C, P = act_ref.shape[1], act_ref.shape[2]
    L = b_ref.shape[0]

    # Flat-index offsets of the 9 taps of a 3x3 "same" conv over the padded
    # (H+2, W+2) plane, realized as lane rolls of the flattened plane.  For
    # interior output positions the shifted index never wraps, so the circular
    # seam only pollutes border columns, which are masked away.
    shifts = [(-((ky - 1) * wp2 + (kx - 1))) % P
              for ky in range(3) for kx in range(3)]

    mask = mask_ref[...]                                    # (1, P) f32

    def conv(src_slot, layer):
        # 9 accumulated MXU matmuls: Y^T(C,P) = sum_t W_t^T(C,C) @ X_t(C,P).
        a = act_ref[src_slot]                               # (C, P) f32
        acc = None
        for t in range(9):
            xt = a if shifts[t] == 0 else pltpu.roll(a, shift=shifts[t], axis=1)
            d = jnp.dot(w_ref[layer * 9 + t], xt.astype(jnp.bfloat16),
                        preferred_element_type=jnp.float32)
            acc = d if acc is None else acc + d
        return acc + b_ref[layer]                           # (C, P) f32

    # head: x = relu(conv_head(x));  x1 = x kept in the resident out block.
    act_ref[0] = x_ref[0]
    y = jnp.maximum(conv(0, 0), 0.0) * mask
    act_ref[0] = y
    out_ref[0] = y

    # ResBlocks: x = conv2(relu(conv1(x))) * res_scale + x
    for i in range(num_res_blocks):
        act_ref[1] = jnp.maximum(conv(0, 1 + 2 * i), 0.0) * mask
        act_ref[0] = conv(1, 2 + 2 * i) * res_scale * mask + act_ref[0]

    # tail: out = conv_tail(x) + x1
    out_ref[0] = conv(0, L - 1) * mask + out_ref[0]


# ----------------------------------------------------------------------------
# Wrapper: layout prep + weight packing + pallas_call
# ----------------------------------------------------------------------------
def sfe_forward(x, params, res_scale=1.0):
    """x: (N, 3, H, W) float32 (NCHW, like the PyTorch module).
    Returns (N, n_feats, H, W) float32."""
    N, cin, H, W = x.shape
    C = params["head_w"].shape[-1]
    num_res_blocks = len(params["rbs"])
    L = 2 + 2 * num_res_blocks
    hp2, wp2 = H + 2, W + 2
    p_valid = hp2 * wp2
    P = ((p_valid + 127) // 128) * 128          # lane-dense flat plane length

    # Activations: pad channels 3->C (zeros) + 1-pixel spatial ring, flatten to
    # a channel-major (N, C, P) plane padded to a lane multiple.
    xp = jnp.pad(x.astype(jnp.float32),
                 ((0, 0), (0, C - cin), (1, 1), (1, 1)))    # (N, C, H+2, W+2)
    xp = xp.reshape(N, C, p_valid)
    xp = jnp.pad(xp, ((0, 0), (0, 0), (0, P - p_valid)))    # (N, C, P)

    # Interior mask over the flattened padded plane.
    pos = jnp.arange(P)
    r, q = pos // wp2, pos % wp2
    mask = ((pos < p_valid) & (r >= 1) & (r <= H) & (q >= 1) & (q <= W))
    mask = mask.astype(jnp.float32).reshape(1, P)

    # Weights: (9, cin, cout) -> per-tap transposed mats (9, C, C) [t, co, ci];
    # head Cin is zero-padded 3 -> C (exact, matching zero-padded channels).
    def prep_w(w):
        w = jnp.pad(w, ((0, 0), (0, C - w.shape[1]), (0, 0)))
        return jnp.transpose(w, (0, 2, 1))

    w_list, b_list = [prep_w(params["head_w"])], [params["head_b"]]
    for (w1, b1, w2, b2) in params["rbs"]:
        w_list += [prep_w(w1), prep_w(w2)]
        b_list += [b1, b2]
    w_list.append(prep_w(params["tail_w"]))
    b_list.append(params["tail_b"])

    w_all = jnp.stack(w_list).astype(jnp.bfloat16).reshape(L * 9, C, C)
    b_all = jnp.stack(b_list).astype(jnp.float32).reshape(L, C, 1)

    kernel = functools.partial(sfe_kernel, num_res_blocks=num_res_blocks,
                               res_scale=float(res_scale), wp2=wp2)

    out_flat = pl.pallas_call(
        kernel,
        out_shape=jax.ShapeDtypeStruct((N, C, P), jnp.float32),
        grid_spec=pltpu.PrefetchScalarGridSpec(
            num_scalar_prefetch=0,
            grid=(N,),
            in_specs=[
                pl.BlockSpec((1, C, P), lambda n: (n, 0, 0)),
                pl.BlockSpec((1, P), lambda n: (0, 0)),
                pl.BlockSpec((L * 9, C, C), lambda n: (0, 0, 0)),
                pl.BlockSpec((L, C, 1), lambda n: (0, 0, 0)),
            ],
            out_specs=pl.BlockSpec((1, C, P), lambda n: (n, 0, 0)),
            scratch_shapes=[
                pltpu.VMEM((2, C, P), jnp.float32),   # activation planes (x/y, h)
            ],
        ),
        compiler_params=pltpu.CompilerParams(
            dimension_semantics=("parallel",),
        ),
    )(xp, mask, w_all, b_all)

    # Drop the lane padding and the 1-pixel conv-padding ring.
    out = out_flat[:, :, :p_valid].reshape(N, C, hp2, wp2)
    return out[:, :, 1:H + 1, 1:W + 1]


# ----------------------------------------------------------------------------
# Deterministic parameter init + pure-JAX reference
# ----------------------------------------------------------------------------
def init_params(key, num_res_blocks, n_feats):
    def conv_params(k, cin, cout):
        kw, kb = jax.random.split(k)
        scale = 1.0 / jnp.sqrt(9.0 * cin)
        w = jax.random.normal(kw, (9, cin, cout), jnp.float32) * scale
        b = jax.random.normal(kb, (cout,), jnp.float32) * 0.01
        return w, b

    keys = jax.random.split(key, 2 + 2 * num_res_blocks)
    head_w, head_b = conv_params(keys[0], 3, n_feats)
    tail_w, tail_b = conv_params(keys[1], n_feats, n_feats)
    rbs = []
    for i in range(num_res_blocks):
        w1, b1 = conv_params(keys[2 + 2 * i], n_feats, n_feats)
        w2, b2 = conv_params(keys[3 + 2 * i], n_feats, n_feats)
        rbs.append((w1, b1, w2, b2))
    return {"head_w": head_w, "head_b": head_b,
            "tail_w": tail_w, "tail_b": tail_b, "rbs": rbs}


def _conv3x3_ref(x, w, b):
    # bf16 operands, f32 accumulation -- same numerics as the in-kernel MXU path.
    xb = x.astype(jnp.bfloat16).astype(jnp.float32)
    wb = w.astype(jnp.bfloat16).astype(jnp.float32)
    w4 = wb.reshape(3, 3, w.shape[1], w.shape[2])            # HWIO
    y = jax.lax.conv_general_dilated(
        xb, w4, window_strides=(1, 1), padding="SAME",
        dimension_numbers=("NCHW", "HWIO", "NCHW"))
    return y + b.reshape(1, -1, 1, 1)


def sfe_ref(x, params, res_scale=1.0):
    y = jax.nn.relu(_conv3x3_ref(x, params["head_w"], params["head_b"]))
    x1 = y
    for (w1, b1, w2, b2) in params["rbs"]:
        h = jax.nn.relu(_conv3x3_ref(y, w1, b1))
        y = _conv3x3_ref(h, w2, b2) * res_scale + y
    y = _conv3x3_ref(y, params["tail_w"], params["tail_b"]) + x1
    return y


if __name__ == "__main__":
    num_res_blocks = 2
    n_feats = 32
    res_scale = 1.0

    key = jax.random.PRNGKey(0)
    kx, kp = jax.random.split(key)
    # NCHW input, same layout the PyTorch module expects: (2, 3, 16, 16).
    x = jax.random.normal(kx, (2, 3, 16, 16), jnp.float32)
    params = init_params(kp, num_res_blocks, n_feats)

    out = jax.block_until_ready(sfe_forward(x, params, res_scale))
    ref = jax.block_until_ready(sfe_ref(x, params, res_scale))

    assert out.shape == (2, n_feats, 16, 16), out.shape
    err = float(jnp.max(jnp.abs(out - ref)))
    # bf16 matmul operands -> allow a little slack for rounding-boundary flips.
    assert err < 5e-3, err

    print("KERNEL_OK")
</pallas_src>

<mosaic_0001>
module attributes {stable_mosaic.version = 11 : i64} {
  func.func @sfe_kernel(%arg0: i32, %arg1: memref<1x32x384xf32, #tpu.memory_space<vmem>>, %arg2: memref<1x384xf32, #tpu.memory_space<vmem>>, %arg3: memref<54x32x32xbf16, #tpu.memory_space<vmem>>, %arg4: memref<6x32x1xf32, #tpu.memory_space<vmem>>, %arg5: memref<1x32x384xf32, #tpu.memory_space<vmem>>, %arg6: memref<2x32x384xf32, #tpu.memory_space<vmem>>) attributes {dimension_semantics = [#tpu.dimension_semantics<parallel>], iteration_bounds = array<i64: 2>, scalar_prefetch = 0 : i64, scratch_operands = 1 : i64, tpu.core_type = #tpu.core_type<tc>, window_params = [{transform_indices = @transform_0, window_bounds = array<i64: 1, 32, 384>}, {pipeline_mode = #tpu.pipeline_mode<synchronous>, transform_indices = @transform_1, window_bounds = array<i64: 1, 384>}, {pipeline_mode = #tpu.pipeline_mode<synchronous>, transform_indices = @transform_2, window_bounds = array<i64: 54, 32, 32>}, {pipeline_mode = #tpu.pipeline_mode<synchronous>, transform_indices = @transform_3, window_bounds = array<i64: 6, 32, 1>}, {transform_indices = @transform_4, window_bounds = array<i64: 1, 32, 384>}]} {
    %c0 = arith.constant 0 : index
    %c0_0 = arith.constant 0 : index
    %0 = vector.load %arg2[%c0, %c0_0] : memref<1x384xf32, #tpu.memory_space<vmem>>, vector<1x384xf32>
    %c0_1 = arith.constant 0 : index
    %c0_2 = arith.constant 0 : index
    %c0_3 = arith.constant 0 : index
    %1 = vector.load %arg1[%c0_1, %c0_2, %c0_3] : memref<1x32x384xf32, #tpu.memory_space<vmem>>, vector<1x32x384xf32>
    %2 = vector.shape_cast %1 : vector<1x32x384xf32> to vector<32x384xf32>
    %c0_4 = arith.constant 0 : index
    %c0_5 = arith.constant 0 : index
    %c0_6 = arith.constant 0 : index
    %3 = vector.load %arg6[%c0_4, %c0_5, %c0_6] : memref<2x32x384xf32, #tpu.memory_space<vmem>>, vector<1x32x384xf32>
    %4 = vector.shape_cast %3 : vector<1x32x384xf32> to vector<32x384xf32>
    %5 = vector.shape_cast %2 : vector<32x384xf32> to vector<1x32x384xf32>
    tpu.vector_store %arg6[%c0_4, %c0_5, %c0_6], %5 {strides = array<i32>} : memref<2x32x384xf32, #tpu.memory_space<vmem>>, vector<1x32x384xf32>,
    %c0_7 = arith.constant 0 : index
    %c0_8 = arith.constant 0 : index
    %c0_9 = arith.constant 0 : index
    %6 = vector.load %arg6[%c0_7, %c0_8, %c0_9] : memref<2x32x384xf32, #tpu.memory_space<vmem>>, vector<1x32x384xf32>
    %7 = vector.shape_cast %6 : vector<1x32x384xf32> to vector<32x384xf32>
    %c19_i32 = arith.constant 19 : i32
    %8 = tpu.dynamic_rotate %7 by %c19_i32 dim 1 : vector<32x384xf32>, i32 -> vector<32x384xf32>
    %c0_10 = arith.constant 0 : index
    %c0_11 = arith.constant 0 : index
    %c0_12 = arith.constant 0 : index
    %9 = vector.load %arg3[%c0_10, %c0_11, %c0_12] : memref<54x32x32xbf16, #tpu.memory_space<vmem>>, vector<1x32x32xbf16>
    %10 = vector.shape_cast %9 : vector<1x32x32xbf16> to vector<32x32xbf16>
    %11 = arith.truncf %8 : vector<32x384xf32> to vector<32x384xbf16>
    %cst = arith.constant dense<0.000000e+00> : vector<32x384xf32>
    %12 = tpu.matmul %10, %11, %cst {dimension_numbers = #tpu.dot_dimension_numbers<[1], [0], [0], [1], [0, 0, 1, 1], [], []>} : vector<32x32xbf16>, vector<32x384xbf16>, vector<32x384xf32> -> vector<32x384xf32>
    %c18_i32 = arith.constant 18 : i32
    %13 = tpu.dynamic_rotate %7 by %c18_i32 dim 1 : vector<32x384xf32>, i32 -> vector<32x384xf32>
    %c1 = arith.constant 1 : index
    %c0_13 = arith.constant 0 : index
    %c0_14 = arith.constant 0 : index
    %14 = vector.load %arg3[%c1, %c0_13, %c0_14] : memref<54x32x32xbf16, #tpu.memory_space<vmem>>, vector<1x32x32xbf16>
    %15 = vector.shape_cast %14 : vector<1x32x32xbf16> to vector<32x32xbf16>
    %16 = arith.truncf %13 : vector<32x384xf32> to vector<32x384xbf16>
    %cst_15 = arith.constant dense<0.000000e+00> : vector<32x384xf32>
    %17 = tpu.matmul %15, %16, %cst_15 {dimension_numbers = #tpu.dot_dimension_numbers<[1], [0], [0], [1], [0, 0, 1, 1], [], []>} : vector<32x32xbf16>, vector<32x384xbf16>, vector<32x384xf32> -> vector<32x384xf32>
    %18 = arith.addf %12, %17 : vector<32x384xf32>
    %c17_i32 = arith.constant 17 : i32
    %19 = tpu.dynamic_rotate %7 by %c17_i32 dim 1 : vector<32x384xf32>, i32 -> vector<32x384xf32>
    %c2 = arith.constant 2 : index
    %c0_16 = arith.constant 0 : index
    %c0_17 = arith.constant 0 : index
    %20 = vector.load %arg3[%c2, %c0_16, %c0_17] : memref<54x32x32xbf16, #tpu.memory_space<vmem>>, vector<1x32x32xbf16>
    %21 = vector.shape_cast %20 : vector<1x32x32xbf16> to vector<32x32xbf16>
    %22 = arith.truncf %19 : vector<32x384xf32> to vector<32x384xbf16>
    %cst_18 = arith.constant dense<0.000000e+00> : vector<32x384xf32>
    %23 = tpu.matmul %21, %22, %cst_18 {dimension_numbers = #tpu.dot_dimension_numbers<[1], [0], [0], [1], [0, 0, 1, 1], [], []>} : vector<32x32xbf16>, vector<32x384xbf16>, vector<32x384xf32> -> vector<32x384xf32>
    %24 = arith.addf %18, %23 : vector<32x384xf32>
    %c1_i32 = arith.constant 1 : i32
    %25 = tpu.dynamic_rotate %7 by %c1_i32 dim 1 : vector<32x384xf32>, i32 -> vector<32x384xf32>
    %c3 = arith.constant 3 : index
    %c0_19 = arith.constant 0 : index
    %c0_20 = arith.constant 0 : index
    %26 = vector.load %arg3[%c3, %c0_19, %c0_20] : memref<54x32x32xbf16, #tpu.memory_space<vmem>>, vector<1x32x32xbf16>
    %27 = vector.shape_cast %26 : vector<1x32x32xbf16> to vector<32x32xbf16>
    %28 = arith.truncf %25 : vector<32x384xf32> to vector<32x384xbf16>
    %cst_21 = arith.constant dense<0.000000e+00> : vector<32x384xf32>
    %29 = tpu.matmul %27, %28, %cst_21 {dimension_numbers = #tpu.dot_dimension_numbers<[1], [0], [0], [1], [0, 0, 1, 1], [], []>} : vector<32x32xbf16>, vector<32x384xbf16>, vector<32x384xf32> -> vector<32x384xf32>
    %30 = arith.addf %24, %29 : vector<32x384xf32>
    %c4 = arith.constant 4 : index
    %c0_22 = arith.constant 0 : index
    %c0_23 = arith.constant 0 : index
    %31 = vector.load %arg3[%c4, %c0_22, %c0_23] : memref<54x32x32xbf16, #tpu.memory_space<vmem>>, vector<1x32x32xbf16>
    %32 = vector.shape_cast %31 : vector<1x32x32xbf16> to vector<32x32xbf16>
    %33 = arith.truncf %7 : vector<32x384xf32> to vector<32x384xbf16>
    %cst_24 = arith.constant dense<0.000000e+00> : vector<32x384xf32>
    %34 = tpu.matmul %32, %33, %cst_24 {dimension_numbers = #tpu.dot_dimension_numbers<[1], [0], [0], [1], [0, 0, 1, 1], [], []>} : vector<32x32xbf16>, vector<32x384xbf16>, vector<32x384xf32> -> vector<32x384xf32>
    %35 = arith.addf %30, %34 : vector<32x384xf32>
    %c383_i32 = arith.constant 383 : i32
    %36 = tpu.dynamic_rotate %7 by %c383_i32 dim 1 : vector<32x384xf32>, i32 -> vector<32x384xf32>
    %c5 = arith.constant 5 : index
    %c0_25 = arith.constant 0 : index
    %c0_26 = arith.constant 0 : index
    %37 = vector.load %arg3[%c5, %c0_25, %c0_26] : memref<54x32x32xbf16, #tpu.memory_space<vmem>>, vector<1x32x32xbf16>
    %38 = vector.shape_cast %37 : vector<1x32x32xbf16> to vector<32x32xbf16>
    %39 = arith.truncf %36 : vector<32x384xf32> to vector<32x384xbf16>
    %cst_27 = arith.constant dense<0.000000e+00> : vector<32x384xf32>
    %40 = tpu.matmul %38, %39, %cst_27 {dimension_numbers = #tpu.dot_dimension_numbers<[1], [0], [0], [1], [0, 0, 1, 1], [], []>} : vector<32x32xbf16>, vector<32x384xbf16>, vector<32x384xf32> -> vector<32x384xf32>
    %41 = arith.addf %35, %40 : vector<32x384xf32>
    %c367_i32 = arith.constant 367 : i32
    %42 = tpu.dynamic_rotate %7 by %c367_i32 dim 1 : vector<32x384xf32>, i32 -> vector<32x384xf32>
    %c6 = arith.constant 6 : index
    %c0_28 = arith.constant 0 : index
    %c0_29 = arith.constant 0 : index
    %43 = vector.load %arg3[%c6, %c0_28, %c0_29] : memref<54x32x32xbf16, #tpu.memory_space<vmem>>, vector<1x32x32xbf16>
    %44 = vector.shape_cast %43 : vector<1x32x32xbf16> to vector<32x32xbf16>
    %45 = arith.truncf %42 : vector<32x384xf32> to vector<32x384xbf16>
    %cst_30 = arith.constant dense<0.000000e+00> : vector<32x384xf32>
    %46 = tpu.matmul %44, %45, %cst_30 {dimension_numbers = #tpu.dot_dimension_numbers<[1], [0], [0], [1], [0, 0, 1, 1], [], []>} : vector<32x32xbf16>, vector<32x384xbf16>, vector<32x384xf32> -> vector<32x384xf32>
    %47 = arith.addf %41, %46 : vector<32x384xf32>
    %c366_i32 = arith.constant 366 : i32
    %48 = tpu.dynamic_rotate %7 by %c366_i32 dim 1 : vector<32x384xf32>, i32 -> vector<32x384xf32>
    %c7 = arith.constant 7 : index
    %c0_31 = arith.constant 0 : index
    %c0_32 = arith.constant 0 : index
    %49 = vector.load %arg3[%c7, %c0_31, %c0_32] : memref<54x32x32xbf16, #tpu.memory_space<vmem>>, vector<1x32x32xbf16>
    %50 = vector.shape_cast %49 : vector<1x32x32xbf16> to vector<32x32xbf16>
    %51 = arith.truncf %48 : vector<32x384xf32> to vector<32x384xbf16>
    %cst_33 = arith.constant dense<0.000000e+00> : vector<32x384xf32>
    %52 = tpu.matmul %50, %51, %cst_33 {dimension_numbers = #tpu.dot_dimension_numbers<[1], [0], [0], [1], [0, 0, 1, 1], [], []>} : vector<32x32xbf16>, vector<32x384xbf16>, vector<32x384xf32> -> vector<32x384xf32>
    %53 = arith.addf %47, %52 : vector<32x384xf32>
    %c365_i32 = arith.constant 365 : i32
    %54 = tpu.dynamic_rotate %7 by %c365_i32 dim 1 : vector<32x384xf32>, i32 -> vector<32x384xf32>
    %c8 = arith.constant 8 : index
    %c0_34 = arith.constant 0 : index
    %c0_35 = arith.constant 0 : index
    %55 = vector.load %arg3[%c8, %c0_34, %c0_35] : memref<54x32x32xbf16, #tpu.memory_space<vmem>>, vector<1x32x32xbf16>
    %56 = vector.shape_cast %55 : vector<1x32x32xbf16> to vector<32x32xbf16>
    %57 = arith.truncf %54 : vector<32x384xf32> to vector<32x384xbf16>
    %cst_36 = arith.constant dense<0.000000e+00> : vector<32x384xf32>
    %58 = tpu.matmul %56, %57, %cst_36 {dimension_numbers = #tpu.dot_dimension_numbers<[1], [0], [0], [1], [0, 0, 1, 1], [], []>} : vector<32x32xbf16>, vector<32x384xbf16>, vector<32x384xf32> -> vector<32x384xf32>
    %59 = arith.addf %53, %58 : vector<32x384xf32>
    %c0_37 = arith.constant 0 : index
    %c0_38 = arith.constant 0 : index
    %c0_39 = arith.constant 0 : index
    %60 = vector.load %arg4[%c0_37, %c0_38, %c0_39] : memref<6x32x1xf32, #tpu.memory_space<vmem>>, vector<1x32x1xf32>
    %61 = vector.shape_cast %60 : vector<1x32x1xf32> to vector<32x1xf32>
    %62 = vector.broadcast %61 : vector<32x1xf32> to vector<32x384xf32>
    %63 = arith.addf %59, %62 : vector<32x384xf32>
    %cst_40 = arith.constant 0.000000e+00 : f32
    %64 = vector.broadcast %cst_40 : f32 to vector<32x384xf32>
    %65 = arith.maximumf %63, %64 : vector<32x384xf32>
    %66 = vector.broadcast %0 : vector<1x384xf32> to vector<32x384xf32>
    %67 = arith.mulf %65, %66 : vector<32x384xf32>
    %c0_41 = arith.constant 0 : index
    %c0_42 = arith.constant 0 : index
    %c0_43 = arith.constant 0 : index
    %68 = vector.load %arg6[%c0_41, %c0_42, %c0_43] : memref<2x32x384xf32, #tpu.memory_space<vmem>>, vector<1x32x384xf32>
    %69 = vector.shape_cast %68 : vector<1x32x384xf32> to vector<32x384xf32>
    %70 = vector.shape_cast %67 : vector<32x384xf32> to vector<1x32x384xf32>
    tpu.vector_store %arg6[%c0_41, %c0_42, %c0_43], %70 {strides = array<i32>} : memref<2x32x384xf32, #tpu.memory_space<vmem>>, vector<1x32x384xf32>,
    %c0_44 = arith.constant 0 : index
    %c0_45 = arith.constant 0 : index
    %c0_46 = arith.constant 0 : index
    %71 = vector.load %arg5[%c0_44, %c0_45, %c0_46] : memref<1x32x384xf32, #tpu.memory_space<vmem>>, vector<1x32x384xf32>
    %72 = vector.shape_cast %71 : vector<1x32x384xf32> to vector<32x384xf32>
    %73 = vector.shape_cast %67 : vector<32x384xf32> to vector<1x32x384xf32>
    tpu.vector_store %arg5[%c0_44, %c0_45, %c0_46], %73 {strides = array<i32>} : memref<1x32x384xf32, #tpu.memory_space<vmem>>, vector<1x32x384xf32>,
    %c0_47 = arith.constant 0 : index
    %c0_48 = arith.constant 0 : index
    %c0_49 = arith.constant 0 : index
    %74 = vector.load %arg6[%c0_47, %c0_48, %c0_49] : memref<2x32x384xf32, #tpu.memory_space<vmem>>, vector<1x32x384xf32>
    %75 = vector.shape_cast %74 : vector<1x32x384xf32> to vector<32x384xf32>
    %c19_i32_50 = arith.constant 19 : i32
    %76 = tpu.dynamic_rotate %75 by %c19_i32_50 dim 1 : vector<32x384xf32>, i32 -> vector<32x384xf32>
    %c9 = arith.constant 9 : index
    %c0_51 = arith.constant 0 : index
    %c0_52 = arith.constant 0 : index
    %77 = vector.load %arg3[%c9, %c0_51, %c0_52] : memref<54x32x32xbf16, #tpu.memory_space<vmem>>, vector<1x32x32xbf16>
    %78 = vector.shape_cast %77 : vector<1x32x32xbf16> to vector<32x32xbf16>
    %79 = arith.truncf %76 : vector<32x384xf32> to vector<32x384xbf16>
    %cst_53 = arith.constant dense<0.000000e+00> : vector<32x384xf32>
    %80 = tpu.matmul %78, %79, %cst_53 {dimension_numbers = #tpu.dot_dimension_numbers<[1], [0], [0], [1], [0, 0, 1, 1], [], []>} : vector<32x32xbf16>, vector<32x384xbf16>, vector<32x384xf32> -> vector<32x384xf32>
    %c18_i32_54 = arith.constant 18 : i32
    %81 = tpu.dynamic_rotate %75 by %c18_i32_54 dim 1 : vector<32x384xf32>, i32 -> vector<32x384xf32>
    %c10 = arith.constant 10 : index
    %c0_55 = arith.constant 0 : index
    %c0_56 = arith.constant 0 : index
    %82 = vector.load %arg3[%c10, %c0_55, %c0_56] : memref<54x32x32xbf16, #tpu.memory_space<vmem>>, vector<1x32x32xbf16>
    %83 = vector.shape_cast %82 : vector<1x32x32xbf16> to vector<32x32xbf16>
    %84 = arith.truncf %81 : vector<32x384xf32> to vector<32x384xbf16>
    %cst_57 = arith.constant dense<0.000000e+00> : vector<32x384xf32>
    %85 = tpu.matmul %83, %84, %cst_57 {dimension_numbers = #tpu.dot_dimension_numbers<[1], [0], [0], [1], [0, 0, 1, 1], [], []>} : vector<32x32xbf16>, vector<32x384xbf16>, vector<32x384xf32> -> vector<32x384xf32>
    %86 = arith.addf %80, %85 : vector<32x384xf32>
    %c17_i32_58 = arith.constant 17 : i32
    %87 = tpu.dynamic_rotate %75 by %c17_i32_58 dim 1 : vector<32x384xf32>, i32 -> vector<32x384xf32>
    %c11 = arith.constant 11 : index
    %c0_59 = arith.constant 0 : index
    %c0_60 = arith.constant 0 : index
    %88 = vector.load %arg3[%c11, %c0_59, %c0_60] : memref<54x32x32xbf16, #tpu.memory_space<vmem>>, vector<1x32x32xbf16>
    %89 = vector.shape_cast %88 : vector<1x32x32xbf16> to vector<32x32xbf16>
    %90 = arith.truncf %87 : vector<32x384xf32> to vector<32x384xbf16>
    %cst_61 = arith.constant dense<0.000000e+00> : vector<32x384xf32>
    %91 = tpu.matmul %89, %90, %cst_61 {dimension_numbers = #tpu.dot_dimension_numbers<[1], [0], [0], [1], [0, 0, 1, 1], [], []>} : vector<32x32xbf16>, vector<32x384xbf16>, vector<32x384xf32> -> vector<32x384xf32>
    %92 = arith.addf %86, %91 : vector<32x384xf32>
    %c1_i32_62 = arith.constant 1 : i32
    %93 = tpu.dynamic_rotate %75 by %c1_i32_62 dim 1 : vector<32x384xf32>, i32 -> vector<32x384xf32>
    %c12 = arith.constant 12 : index
    %c0_63 = arith.constant 0 : index
    %c0_64 = arith.constant 0 : index
    %94 = vector.load %arg3[%c12, %c0_63, %c0_64] : memref<54x32x32xbf16, #tpu.memory_space<vmem>>, vector<1x32x32xbf16>
    %95 = vector.shape_cast %94 : vector<1x32x32xbf16> to vector<32x32xbf16>
    %96 = arith.truncf %93 : vector<32x384xf32> to vector<32x384xbf16>
    %cst_65 = arith.constant dense<0.000000e+00> : vector<32x384xf32>
    %97 = tpu.matmul %95, %96, %cst_65 {dimension_numbers = #tpu.dot_dimension_numbers<[1], [0], [0], [1], [0, 0, 1, 1], [], []>} : vector<32x32xbf16>, vector<32x384xbf16>, vector<32x384xf32> -> vector<32x384xf32>
    %98 = arith.addf %92, %97 : vector<32x384xf32>
    %c13 = arith.constant 13 : index
    %c0_66 = arith.constant 0 : index
    %c0_67 = arith.constant 0 : index
    %99 = vector.load %arg3[%c13, %c0_66, %c0_67] : memref<54x32x32xbf16, #tpu.memory_space<vmem>>, vector<1x32x32xbf16>
    %100 = vector.shape_cast %99 : vector<1x32x32xbf16> to vector<32x32xbf16>
    %101 = arith.truncf %75 : vector<32x384xf32> to vector<32x384xbf16>
    %cst_68 = arith.constant dense<0.000000e+00> : vector<32x384xf32>
    %102 = tpu.matmul %100, %101, %cst_68 {dimension_numbers = #tpu.dot_dimension_numbers<[1], [0], [0], [1], [0, 0, 1, 1], [], []>} : vector<32x32xbf16>, vector<32x384xbf16>, vector<32x384xf32> -> vector<32x384xf32>
    %103 = arith.addf %98, %102 : vector<32x384xf32>
    %c383_i32_69 = arith.constant 383 : i32
    %104 = tpu.dynamic_rotate %75 by %c383_i32_69 dim 1 : vector<32x384xf32>, i32 -> vector<32x384xf32>
    %c14 = arith.constant 14 : index
    %c0_70 = arith.constant 0 : index
    %c0_71 = arith.constant 0 : index
    %105 = vector.load %arg3[%c14, %c0_70, %c0_71] : memref<54x32x32xbf16, #tpu.memory_space<vmem>>, vector<1x32x32xbf16>
    %106 = vector.shape_cast %105 : vector<1x32x32xbf16> to vector<32x32xbf16>
    %107 = arith.truncf %104 : vector<32x384xf32> to vector<32x384xbf16>
    %cst_72 = arith.constant dense<0.000000e+00> : vector<32x384xf32>
    %108 = tpu.matmul %106, %107, %cst_72 {dimension_numbers = #tpu.dot_dimension_numbers<[1], [0], [0], [1], [0, 0, 1, 1], [], []>} : vector<32x32xbf16>, vector<32x384xbf16>, vector<32x384xf32> -> vector<32x384xf32>
    %109 = arith.addf %103, %108 : vector<32x384xf32>
    %c367_i32_73 = arith.constant 367 : i32
    %110 = tpu.dynamic_rotate %75 by %c367_i32_73 dim 1 : vector<32x384xf32>, i32 -> vector<32x384xf32>
    %c15 = arith.constant 15 : index
    %c0_74 = arith.constant 0 : index
    %c0_75 = arith.constant 0 : index
    %111 = vector.load %arg3[%c15, %c0_74, %c0_75] : memref<54x32x32xbf16, #tpu.memory_space<vmem>>, vector<1x32x32xbf16>
    %112 = vector.shape_cast %111 : vector<1x32x32xbf16> to vector<32x32xbf16>
    %113 = arith.truncf %110 : vector<32x384xf32> to vector<32x384xbf16>
    %cst_76 = arith.constant dense<0.000000e+00> : vector<32x384xf32>
    %114 = tpu.matmul %112, %113, %cst_76 {dimension_numbers = #tpu.dot_dimension_numbers<[1], [0], [0], [1], [0, 0, 1, 1], [], []>} : vector<32x32xbf16>, vector<32x384xbf16>, vector<32x384xf32> -> vector<32x384xf32>
    %115 = arith.addf %109, %114 : vector<32x384xf32>
    %c366_i32_77 = arith.constant 366 : i32
    %116 = tpu.dynamic_rotate %75 by %c366_i32_77 dim 1 : vector<32x384xf32>, i32 -> vector<32x384xf32>
    %c16 = arith.constant 16 : index
    %c0_78 = arith.constant 0 : index
    %c0_79 = arith.constant 0 : index
    %117 = vector.load %arg3[%c16, %c0_78, %c0_79] : memref<54x32x32xbf16, #tpu.memory_space<vmem>>, vector<1x32x32xbf16>
    %118 = vector.shape_cast %117 : vector<1x32x32xbf16> to vector<32x32xbf16>
    %119 = arith.truncf %116 : vector<32x384xf32> to vector<32x384xbf16>
    %cst_80 = arith.constant dense<0.000000e+00> : vector<32x384xf32>
    %120 = tpu.matmul %118, %119, %cst_80 {dimension_numbers = #tpu.dot_dimension_numbers<[1], [0], [0], [1], [0, 0, 1, 1], [], []>} : vector<32x32xbf16>, vector<32x384xbf16>, vector<32x384xf32> -> vector<32x384xf32>
    %121 = arith.addf %115, %120 : vector<32x384xf32>
    %c365_i32_81 = arith.constant 365 : i32
    %122 = tpu.dynamic_rotate %75 by %c365_i32_81 dim 1 : vector<32x384xf32>, i32 -> vector<32x384xf32>
    %c17 = arith.constant 17 : index
    %c0_82 = arith.constant 0 : index
    %c0_83 = arith.constant 0 : index
    %123 = vector.load %arg3[%c17, %c0_82, %c0_83] : memref<54x32x32xbf16, #tpu.memory_space<vmem>>, vector<1x32x32xbf16>
    %124 = vector.shape_cast %123 : vector<1x32x32xbf16> to vector<32x32xbf16>
    %125 = arith.truncf %122 : vector<32x384xf32> to vector<32x384xbf16>
    %cst_84 = arith.constant dense<0.000000e+00> : vector<32x384xf32>
    %126 = tpu.matmul %124, %125, %cst_84 {dimension_numbers = #tpu.dot_dimension_numbers<[1], [0], [0], [1], [0, 0, 1, 1], [], []>} : vector<32x32xbf16>, vector<32x384xbf16>, vector<32x384xf32> -> vector<32x384xf32>
    %127 = arith.addf %121, %126 : vector<32x384xf32>
    %c1_85 = arith.constant 1 : index
    %c0_86 = arith.constant 0 : index
    %c0_87 = arith.constant 0 : index
    %128 = vector.load %arg4[%c1_85, %c0_86, %c0_87] : memref<6x32x1xf32, #tpu.memory_space<vmem>>, vector<1x32x1xf32>
    %129 = vector.shape_cast %128 : vector<1x32x1xf32> to vector<32x1xf32>
    %130 = vector.broadcast %129 : vector<32x1xf32> to vector<32x384xf32>
    %131 = arith.addf %127, %130 : vector<32x384xf32>
    %cst_88 = arith.constant 0.000000e+00 : f32
    %132 = vector.broadcast %cst_88 : f32 to vector<32x384xf32>
    %133 = arith.maximumf %131, %132 : vector<32x384xf32>
    %134 = vector.broadcast %0 : vector<1x384xf32> to vector<32x384xf32>
    %135 = arith.mulf %133, %134 : vector<32x384xf32>
    %c1_89 = arith.constant 1 : index
    %c0_90 = arith.constant 0 : index
    %c0_91 = arith.constant 0 : index
    %136 = vector.load %arg6[%c1_89, %c0_90, %c0_91] : memref<2x32x384xf32, #tpu.memory_space<vmem>>, vector<1x32x384xf32>
    %137 = vector.shape_cast %136 : vector<1x32x384xf32> to vector<32x384xf32>
    %138 = vector.shape_cast %135 : vector<32x384xf32> to vector<1x32x384xf32>
    tpu.vector_store %arg6[%c1_89, %c0_90, %c0_91], %138 {strides = array<i32>} : memref<2x32x384xf32, #tpu.memory_space<vmem>>, vector<1x32x384xf32>,
    %c1_92 = arith.constant 1 : index
    %c0_93 = arith.constant 0 : index
    %c0_94 = arith.constant 0 : index
    %139 = vector.load %arg6[%c1_92, %c0_93, %c0_94] : memref<2x32x384xf32, #tpu.memory_space<vmem>>, vector<1x32x384xf32>
    %140 = vector.shape_cast %139 : vector<1x32x384xf32> to vector<32x384xf32>
    %c19_i32_95 = arith.constant 19 : i32
    %141 = tpu.dynamic_rotate %140 by %c19_i32_95 dim 1 : vector<32x384xf32>, i32 -> vector<32x384xf32>
    %c18 = arith.constant 18 : index
    %c0_96 = arith.constant 0 : index
    %c0_97 = arith.constant 0 : index
    %142 = vector.load %arg3[%c18, %c0_96, %c0_97] : memref<54x32x32xbf16, #tpu.memory_space<vmem>>, vector<1x32x32xbf16>
    %143 = vector.shape_cast %142 : vector<1x32x32xbf16> to vector<32x32xbf16>
    %144 = arith.truncf %141 : vector<32x384xf32> to vector<32x384xbf16>
    %cst_98 = arith.constant dense<0.000000e+00> : vector<32x384xf32>
    %145 = tpu.matmul %143, %144, %cst_98 {dimension_numbers = #tpu.dot_dimension_numbers<[1], [0], [0], [1], [0, 0, 1, 1], [], []>} : vector<32x32xbf16>, vector<32x384xbf16>, vector<32x384xf32> -> vector<32x384xf32>
    %c18_i32_99 = arith.constant 18 : i32
    %146 = tpu.dynamic_rotate %140 by %c18_i32_99 dim 1 : vector<32x384xf32>, i32 -> vector<32x384xf32>
    %c19 = arith.constant 19 : index
    %c0_100 = arith.constant 0 : index
    %c0_101 = arith.constant 0 : index
    %147 = vector.load %arg3[%c19, %c0_100, %c0_101] : memref<54x32x32xbf16, #tpu.memory_space<vmem>>, vector<1x32x32xbf16>
    %148 = vector.shape_cast %147 : vector<1x32x32xbf16> to vector<32x32xbf16>
    %149 = arith.truncf %146 : vector<32x384xf32> to vector<32x384xbf16>
    %cst_102 = arith.constant dense<0.000000e+00> : vector<32x384xf32>
    %150 = tpu.matmul %148, %149, %cst_102 {dimension_numbers = #tpu.dot_dimension_numbers<[1], [0], [0], [1], [0, 0, 1, 1], [], []>} : vector<32x32xbf16>, vector<32x384xbf16>, vector<32x384xf32> -> vector<32x384xf32>
    %151 = arith.addf %145, %150 : vector<32x384xf32>
    %c17_i32_103 = arith.constant 17 : i32
    %152 = tpu.dynamic_rotate %140 by %c17_i32_103 dim 1 : vector<32x384xf32>, i32 -> vector<32x384xf32>
    %c20 = arith.constant 20 : index
    %c0_104 = arith.constant 0 : index
    %c0_105 = arith.constant 0 : index
    %153 = vector.load %arg3[%c20, %c0_104, %c0_105] : memref<54x32x32xbf16, #tpu.memory_space<vmem>>, vector<1x32x32xbf16>
    %154 = vector.shape_cast %153 : vector<1x32x32xbf16> to vector<32x32xbf16>
    %155 = arith.truncf %152 : vector<32x384xf32> to vector<32x384xbf16>
    %cst_106 = arith.constant dense<0.000000e+00> : vector<32x384xf32>
    %156 = tpu.matmul %154, %155, %cst_106 {dimension_numbers = #tpu.dot_dimension_numbers<[1], [0], [0], [1], [0, 0, 1, 1], [], []>} : vector<32x32xbf16>, vector<32x384xbf16>, vector<32x384xf32> -> vector<32x384xf32>
    %157 = arith.addf %151, %156 : vector<32x384xf32>
    %c1_i32_107 = arith.constant 1 : i32
    %158 = tpu.dynamic_rotate %140 by %c1_i32_107 dim 1 : vector<32x384xf32>, i32 -> vector<32x384xf32>
    %c21 = arith.constant 21 : index
    %c0_108 = arith.constant 0 : index
    %c0_109 = arith.constant 0 : index
    %159 = vector.load %arg3[%c21, %c0_108, %c0_109] : memref<54x32x32xbf16, #tpu.memory_space<vmem>>, vector<1x32x32xbf16>
    %160 = vector.shape_cast %159 : vector<1x32x32xbf16> to vector<32x32xbf16>
    %161 = arith.truncf %158 : vector<32x384xf32> to vector<32x384xbf16>
    %cst_110 = arith.constant dense<0.000000e+00> : vector<32x384xf32>
    %162 = tpu.matmul %160, %161, %cst_110 {dimension_numbers = #tpu.dot_dimension_numbers<[1], [0], [0], [1], [0, 0, 1, 1], [], []>} : vector<32x32xbf16>, vector<32x384xbf16>, vector<32x384xf32> -> vector<32x384xf32>
    %163 = arith.addf %157, %162 : vector<32x384xf32>
    %c22 = arith.constant 22 : index
    %c0_111 = arith.constant 0 : index
    %c0_112 = arith.constant 0 : index
    %164 = vector.load %arg3[%c22, %c0_111, %c0_112] : memref<54x32x32xbf16, #tpu.memory_space<vmem>>, vector<1x32x32xbf16>
    %165 = vector.shape_cast %164 : vector<1x32x32xbf16> to vector<32x32xbf16>
    %166 = arith.truncf %140 : vector<32x384xf32> to vector<32x384xbf16>
    %cst_113 = arith.constant dense<0.000000e+00> : vector<32x384xf32>
    %167 = tpu.matmul %165, %166, %cst_113 {dimension_numbers = #tpu.dot_dimension_numbers<[1], [0], [0], [1], [0, 0, 1, 1], [], []>} : vector<32x32xbf16>, vector<32x384xbf16>, vector<32x384xf32> -> vector<32x384xf32>
    %168 = arith.addf %163, %167 : vector<32x384xf32>
    %c383_i32_114 = arith.constant 383 : i32
    %169 = tpu.dynamic_rotate %140 by %c383_i32_114 dim 1 : vector<32x384xf32>, i32 -> vector<32x384xf32>
    %c23 = arith.constant 23 : index
    %c0_115 = arith.constant 0 : index
    %c0_116 = arith.constant 0 : index
    %170 = vector.load %arg3[%c23, %c0_115, %c0_116] : memref<54x32x32xbf16, #tpu.memory_space<vmem>>, vector<1x32x32xbf16>
    %171 = vector.shape_cast %170 : vector<1x32x32xbf16> to vector<32x32xbf16>
    %172 = arith.truncf %169 : vector<32x384xf32> to vector<32x384xbf16>
    %cst_117 = arith.constant dense<0.000000e+00> : vector<32x384xf32>
    %173 = tpu.matmul %171, %172, %cst_117 {dimension_numbers = #tpu.dot_dimension_numbers<[1], [0], [0], [1], [0, 0, 1, 1], [], []>} : vector<32x32xbf16>, vector<32x384xbf16>, vector<32x384xf32> -> vector<32x384xf32>
    %174 = arith.addf %168, %173 : vector<32x384xf32>
    %c367_i32_118 = arith.constant 367 : i32
    %175 = tpu.dynamic_rotate %140 by %c367_i32_118 dim 1 : vector<32x384xf32>, i32 -> vector<32x384xf32>
    %c24 = arith.constant 24 : index
    %c0_119 = arith.constant 0 : index
    %c0_120 = arith.constant 0 : index
    %176 = vector.load %arg3[%c24, %c0_119, %c0_120] : memref<54x32x32xbf16, #tpu.memory_space<vmem>>, vector<1x32x32xbf16>
    %177 = vector.shape_cast %176 : vector<1x32x32xbf16> to vector<32x32xbf16>
    %178 = arith.truncf %175 : vector<32x384xf32> to vector<32x384xbf16>
    %cst_121 = arith.constant dense<0.000000e+00> : vector<32x384xf32>
    %179 = tpu.matmul %177, %178, %cst_121 {dimension_numbers = #tpu.dot_dimension_numbers<[1], [0], [0], [1], [0, 0, 1, 1], [], []>} : vector<32x32xbf16>, vector<32x384xbf16>, vector<32x384xf32> -> vector<32x384xf32>
    %180 = arith.addf %174, %179 : vector<32x384xf32>
    %c366_i32_122 = arith.constant 366 : i32
    %181 = tpu.dynamic_rotate %140 by %c366_i32_122 dim 1 : vector<32x384xf32>, i32 -> vector<32x384xf32>
    %c25 = arith.constant 25 : index
    %c0_123 = arith.constant 0 : index
    %c0_124 = arith.constant 0 : index
    %182 = vector.load %arg3[%c25, %c0_123, %c0_124] : memref<54x32x32xbf16, #tpu.memory_space<vmem>>, vector<1x32x32xbf16>
    %183 = vector.shape_cast %182 : vector<1x32x32xbf16> to vector<32x32xbf16>
    %184 = arith.truncf %181 : vector<32x384xf32> to vector<32x384xbf16>
    %cst_125 = arith.constant dense<0.000000e+00> : vector<32x384xf32>
    %185 = tpu.matmul %183, %184, %cst_125 {dimension_numbers = #tpu.dot_dimension_numbers<[1], [0], [0], [1], [0, 0, 1, 1], [], []>} : vector<32x32xbf16>, vector<32x384xbf16>, vector<32x384xf32> -> vector<32x384xf32>
    %186 = arith.addf %180, %185 : vector<32x384xf32>
    %c365_i32_126 = arith.constant 365 : i32
    %187 = tpu.dynamic_rotate %140 by %c365_i32_126 dim 1 : vector<32x384xf32>, i32 -> vector<32x384xf32>
    %c26 = arith.constant 26 : index
    %c0_127 = arith.constant 0 : index
    %c0_128 = arith.constant 0 : index
    %188 = vector.load %arg3[%c26, %c0_127, %c0_128] : memref<54x32x32xbf16, #tpu.memory_space<vmem>>, vector<1x32x32xbf16>
    %189 = vector.shape_cast %188 : vector<1x32x32xbf16> to vector<32x32xbf16>
    %190 = arith.truncf %187 : vector<32x384xf32> to vector<32x384xbf16>
    %cst_129 = arith.constant dense<0.000000e+00> : vector<32x384xf32>
    %191 = tpu.matmul %189, %190, %cst_129 {dimension_numbers = #tpu.dot_dimension_numbers<[1], [0], [0], [1], [0, 0, 1, 1], [], []>} : vector<32x32xbf16>, vector<32x384xbf16>, vector<32x384xf32> -> vector<32x384xf32>
    %192 = arith.addf %186, %191 : vector<32x384xf32>
    %c2_130 = arith.constant 2 : index
    %c0_131 = arith.constant 0 : index
    %c0_132 = arith.constant 0 : index
    %193 = vector.load %arg4[%c2_130, %c0_131, %c0_132] : memref<6x32x1xf32, #tpu.memory_space<vmem>>, vector<1x32x1xf32>
    %194 = vector.shape_cast %193 : vector<1x32x1xf32> to vector<32x1xf32>
    %195 = vector.broadcast %194 : vector<32x1xf32> to vector<32x384xf32>
    %196 = arith.addf %192, %195 : vector<32x384xf32>
    %cst_133 = arith.constant 1.000000e+00 : f32
    %197 = vector.broadcast %cst_133 : f32 to vector<32x384xf32>
    %198 = arith.mulf %196, %197 : vector<32x384xf32>
    %199 = vector.broadcast %0 : vector<1x384xf32> to vector<32x384xf32>
    %200 = arith.mulf %198, %199 : vector<32x384xf32>
    %c0_134 = arith.constant 0 : index
    %c0_135 = arith.constant 0 : index
    %c0_136 = arith.constant 0 : index
    %201 = vector.load %arg6[%c0_134, %c0_135, %c0_136] : memref<2x32x384xf32, #tpu.memory_space<vmem>>, vector<1x32x384xf32>
    %202 = vector.shape_cast %201 : vector<1x32x384xf32> to vector<32x384xf32>
    %203 = arith.addf %200, %202 : vector<32x384xf32>
    %c0_137 = arith.constant 0 : index
    %c0_138 = arith.constant 0 : index
    %c0_139 = arith.constant 0 : index
    %204 = vector.load %arg6[%c0_137, %c0_138, %c0_139] : memref<2x32x384xf32, #tpu.memory_space<vmem>>, vector<1x32x384xf32>
    %205 = vector.shape_cast %204 : vector<1x32x384xf32> to vector<32x384xf32>
    %206 = vector.shape_cast %203 : vector<32x384xf32> to vector<1x32x384xf32>
    tpu.vector_store %arg6[%c0_137, %c0_138, %c0_139], %206 {strides = array<i32>} : memref<2x32x384xf32, #tpu.memory_space<vmem>>, vector<1x32x384xf32>,
    %c0_140 = arith.constant 0 : index
    %c0_141 = arith.constant 0 : index
    %c0_142 = arith.constant 0 : index
    %207 = vector.load %arg6[%c0_140, %c0_141, %c0_142] : memref<2x32x384xf32, #tpu.memory_space<vmem>>, vector<1x32x384xf32>
    %208 = vector.shape_cast %207 : vector<1x32x384xf32> to vector<32x384xf32>
    %c19_i32_143 = arith.constant 19 : i32
    %209 = tpu.dynamic_rotate %208 by %c19_i32_143 dim 1 : vector<32x384xf32>, i32 -> vector<32x384xf32>
    %c27 = arith.constant 27 : index
    %c0_144 = arith.constant 0 : index
    %c0_145 = arith.constant 0 : index
    %210 = vector.load %arg3[%c27, %c0_144, %c0_145] : memref<54x32x32xbf16, #tpu.memory_space<vmem>>, vector<1x32x32xbf16>
    %211 = vector.shape_cast %210 : vector<1x32x32xbf16> to vector<32x32xbf16>
    %212 = arith.truncf %209 : vector<32x384xf32> to vector<32x384xbf16>
    %cst_146 = arith.constant dense<0.000000e+00> : vector<32x384xf32>
    %213 = tpu.matmul %211, %212, %cst_146 {dimension_numbers = #tpu.dot_dimension_numbers<[1], [0], [0], [1], [0, 0, 1, 1], [], []>} : vector<32x32xbf16>, vector<32x384xbf16>, vector<32x384xf32> -> vector<32x384xf32>
    %c18_i32_147 = arith.constant 18 : i32
    %214 = tpu.dynamic_rotate %208 by %c18_i32_147 dim 1 : vector<32x384xf32>, i32 -> vector<32x384xf32>
    %c28 = arith.constant 28 : index
    %c0_148 = arith.constant 0 : index
    %c0_149 = arith.constant 0 : index
    %215 = vector.load %arg3[%c28, %c0_148, %c0_149] : memref<54x32x32xbf16, #tpu.memory_space<vmem>>, vector<1x32x32xbf16>
    %216 = vector.shape_cast %215 : vector<1x32x32xbf16> to vector<32x32xbf16>
    %217 = arith.truncf %214 : vector<32x384xf32> to vector<32x384xbf16>
    %cst_150 = arith.constant dense<0.000000e+00> : vector<32x384xf32>
    %218 = tpu.matmul %216, %217, %cst_150 {dimension_numbers = #tpu.dot_dimension_numbers<[1], [0], [0], [1], [0, 0, 1, 1], [], []>} : vector<32x32xbf16>, vector<32x384xbf16>, vector<32x384xf32> -> vector<32x384xf32>
    %219 = arith.addf %213, %218 : vector<32x384xf32>
    %c17_i32_151 = arith.constant 17 : i32
    %220 = tpu.dynamic_rotate %208 by %c17_i32_151 dim 1 : vector<32x384xf32>, i32 -> vector<32x384xf32>
    %c29 = arith.constant 29 : index
    %c0_152 = arith.constant 0 : index
    %c0_153 = arith.constant 0 : index
    %221 = vector.load %arg3[%c29, %c0_152, %c0_153] : memref<54x32x32xbf16, #tpu.memory_space<vmem>>, vector<1x32x32xbf16>
    %222 = vector.shape_cast %221 : vector<1x32x32xbf16> to vector<32x32xbf16>
    %223 = arith.truncf %220 : vector<32x384xf32> to vector<32x384xbf16>
    %cst_154 = arith.constant dense<0.000000e+00> : vector<32x384xf32>
    %224 = tpu.matmul %222, %223, %cst_154 {dimension_numbers = #tpu.dot_dimension_numbers<[1], [0], [0], [1], [0, 0, 1, 1], [], []>} : vector<32x32xbf16>, vector<32x384xbf16>, vector<32x384xf32> -> vector<32x384xf32>
    %225 = arith.addf %219, %224 : vector<32x384xf32>
    %c1_i32_155 = arith.constant 1 : i32
    %226 = tpu.dynamic_rotate %208 by %c1_i32_155 dim 1 : vector<32x384xf32>, i32 -> vector<32x384xf32>
    %c30 = arith.constant 30 : index
    %c0_156 = arith.constant 0 : index
    %c0_157 = arith.constant 0 : index
    %227 = vector.load %arg3[%c30, %c0_156, %c0_157] : memref<54x32x32xbf16, #tpu.memory_space<vmem>>, vector<1x32x32xbf16>
    %228 = vector.shape_cast %227 : vector<1x32x32xbf16> to vector<32x32xbf16>
    %229 = arith.truncf %226 : vector<32x384xf32> to vector<32x384xbf16>
    %cst_158 = arith.constant dense<0.000000e+00> : vector<32x384xf32>
    %230 = tpu.matmul %228, %229, %cst_158 {dimension_numbers = #tpu.dot_dimension_numbers<[1], [0], [0], [1], [0, 0, 1, 1], [], []>} : vector<32x32xbf16>, vector<32x384xbf16>, vector<32x384xf32> -> vector<32x384xf32>
    %231 = arith.addf %225, %230 : vector<32x384xf32>
    %c31 = arith.constant 31 : index
    %c0_159 = arith.constant 0 : index
    %c0_160 = arith.constant 0 : index
    %232 = vector.load %arg3[%c31, %c0_159, %c0_160] : memref<54x32x32xbf16, #tpu.memory_space<vmem>>, vector<1x32x32xbf16>
    %233 = vector.shape_cast %232 : vector<1x32x32xbf16> to vector<32x32xbf16>
    %234 = arith.truncf %208 : vector<32x384xf32> to vector<32x384xbf16>
    %cst_161 = arith.constant dense<0.000000e+00> : vector<32x384xf32>
    %235 = tpu.matmul %233, %234, %cst_161 {dimension_numbers = #tpu.dot_dimension_numbers<[1], [0], [0], [1], [0, 0, 1, 1], [], []>} : vector<32x32xbf16>, vector<32x384xbf16>, vector<32x384xf32> -> vector<32x384xf32>
    %236 = arith.addf %231, %235 : vector<32x384xf32>
    %c383_i32_162 = arith.constant 383 : i32
    %237 = tpu.dynamic_rotate %208 by %c383_i32_162 dim 1 : vector<32x384xf32>, i32 -> vector<32x384xf32>
    %c32 = arith.constant 32 : index
    %c0_163 = arith.constant 0 : index
    %c0_164 = arith.constant 0 : index
    %238 = vector.load %arg3[%c32, %c0_163, %c0_164] : memref<54x32x32xbf16, #tpu.memory_space<vmem>>, vector<1x32x32xbf16>
    %239 = vector.shape_cast %238 : vector<1x32x32xbf16> to vector<32x32xbf16>
    %240 = arith.truncf %237 : vector<32x384xf32> to vector<32x384xbf16>
    %cst_165 = arith.constant dense<0.000000e+00> : vector<32x384xf32>
    %241 = tpu.matmul %239, %240, %cst_165 {dimension_numbers = #tpu.dot_dimension_numbers<[1], [0], [0], [1], [0, 0, 1, 1], [], []>} : vector<32x32xbf16>, vector<32x384xbf16>, vector<32x384xf32> -> vector<32x384xf32>
    %242 = arith.addf %236, %241 : vector<32x384xf32>
    %c367_i32_166 = arith.constant 367 : i32
    %243 = tpu.dynamic_rotate %208 by %c367_i32_166 dim 1 : vector<32x384xf32>, i32 -> vector<32x384xf32>
    %c33 = arith.constant 33 : index
    %c0_167 = arith.constant 0 : index
    %c0_168 = arith.constant 0 : index
    %244 = vector.load %arg3[%c33, %c0_167, %c0_168] : memref<54x32x32xbf16, #tpu.memory_space<vmem>>, vector<1x32x32xbf16>
    %245 = vector.shape_cast %244 : vector<1x32x32xbf16> to vector<32x32xbf16>
    %246 = arith.truncf %243 : vector<32x384xf32> to vector<32x384xbf16>
    %cst_169 = arith.constant dense<0.000000e+00> : vector<32x384xf32>
    %247 = tpu.matmul %245, %246, %cst_169 {dimension_numbers = #tpu.dot_dimension_numbers<[1], [0], [0], [1], [0, 0, 1, 1], [], []>} : vector<32x32xbf16>, vector<32x384xbf16>, vector<32x384xf32> -> vector<32x384xf32>
    %248 = arith.addf %242, %247 : vector<32x384xf32>
    %c366_i32_170 = arith.constant 366 : i32
    %249 = tpu.dynamic_rotate %208 by %c366_i32_170 dim 1 : vector<32x384xf32>, i32 -> vector<32x384xf32>
    %c34 = arith.constant 34 : index
    %c0_171 = arith.constant 0 : index
    %c0_172 = arith.constant 0 : index
    %250 = vector.load %arg3[%c34, %c0_171, %c0_172] : memref<54x32x32xbf16, #tpu.memory_space<vmem>>, vector<1x32x32xbf16>
    %251 = vector.shape_cast %250 : vector<1x32x32xbf16> to vector<32x32xbf16>
    %252 = arith.truncf %249 : vector<32x384xf32> to vector<32x384xbf16>
    %cst_173 = arith.constant dense<0.000000e+00> : vector<32x384xf32>
    %253 = tpu.matmul %251, %252, %cst_173 {dimension_numbers = #tpu.dot_dimension_numbers<[1], [0], [0], [1], [0, 0, 1, 1], [], []>} : vector<32x32xbf16>, vector<32x384xbf16>, vector<32x384xf32> -> vector<32x384xf32>
    %254 = arith.addf %248, %253 : vector<32x384xf32>
    %c365_i32_174 = arith.constant 365 : i32
    %255 = tpu.dynamic_rotate %208 by %c365_i32_174 dim 1 : vector<32x384xf32>, i32 -> vector<32x384xf32>
    %c35 = arith.constant 35 : index
    %c0_175 = arith.constant 0 : index
    %c0_176 = arith.constant 0 : index
    %256 = vector.load %arg3[%c35, %c0_175, %c0_176] : memref<54x32x32xbf16, #tpu.memory_space<vmem>>, vector<1x32x32xbf16>
    %257 = vector.shape_cast %256 : vector<1x32x32xbf16> to vector<32x32xbf16>
    %258 = arith.truncf %255 : vector<32x384xf32> to vector<32x384xbf16>
    %cst_177 = arith.constant dense<0.000000e+00> : vector<32x384xf32>
    %259 = tpu.matmul %257, %258, %cst_177 {dimension_numbers = #tpu.dot_dimension_numbers<[1], [0], [0], [1], [0, 0, 1, 1], [], []>} : vector<32x32xbf16>, vector<32x384xbf16>, vector<32x384xf32> -> vector<32x384xf32>
    %260 = arith.addf %254, %259 : vector<32x384xf32>
    %c3_178 = arith.constant 3 : index
    %c0_179 = arith.constant 0 : index
    %c0_180 = arith.constant 0 : index
    %261 = vector.load %arg4[%c3_178, %c0_179, %c0_180] : memref<6x32x1xf32, #tpu.memory_space<vmem>>, vector<1x32x1xf32>
    %262 = vector.shape_cast %261 : vector<1x32x1xf32> to vector<32x1xf32>
    %263 = vector.broadcast %262 : vector<32x1xf32> to vector<32x384xf32>
    %264 = arith.addf %260, %263 : vector<32x384xf32>
    %cst_181 = arith.constant 0.000000e+00 : f32
    %265 = vector.broadcast %cst_181 : f32 to vector<32x384xf32>
    %266 = arith.maximumf %264, %265 : vector<32x384xf32>
    %267 = vector.broadcast %0 : vector<1x384xf32> to vector<32x384xf32>
    %268 = arith.mulf %266, %267 : vector<32x384xf32>
    %c1_182 = arith.constant 1 : index
    %c0_183 = arith.constant 0 : index
    %c0_184 = arith.constant 0 : index
    %269 = vector.load %arg6[%c1_182, %c0_183, %c0_184] : memref<2x32x384xf32, #tpu.memory_space<vmem>>, vector<1x32x384xf32>
    %270 = vector.shape_cast %269 : vector<1x32x384xf32> to vector<32x384xf32>
    %271 = vector.shape_cast %268 : vector<32x384xf32> to vector<1x32x384xf32>
    tpu.vector_store %arg6[%c1_182, %c0_183, %c0_184], %271 {strides = array<i32>} : memref<2x32x384xf32, #tpu.memory_space<vmem>>, vector<1x32x384xf32>,
    %c1_185 = arith.constant 1 : index
    %c0_186 = arith.constant 0 : index
    %c0_187 = arith.constant 0 : index
    %272 = vector.load %arg6[%c1_185, %c0_186, %c0_187] : memref<2x32x384xf32, #tpu.memory_space<vmem>>, vector<1x32x384xf32>
    %273 = vector.shape_cast %272 : vector<1x32x384xf32> to vector<32x384xf32>
    %c19_i32_188 = arith.constant 19 : i32
    %274 = tpu.dynamic_rotate %273 by %c19_i32_188 dim 1 : vector<32x384xf32>, i32 -> vector<32x384xf32>
    %c36 = arith.constant 36 : index
    %c0_189 = arith.constant 0 : index
    %c0_190 = arith.constant 0 : index
    %275 = vector.load %arg3[%c36, %c0_189, %c0_190] : memref<54x32x32xbf16, #tpu.memory_space<vmem>>, vector<1x32x32xbf16>
    %276 = vector.shape_cast %275 : vector<1x32x32xbf16> to vector<32x32xbf16>
    %277 = arith.truncf %274 : vector<32x384xf32> to vector<32x384xbf16>
    %cst_191 = arith.constant dense<0.000000e+00> : vector<32x384xf32>
    %278 = tpu.matmul %276, %277, %cst_191 {dimension_numbers = #tpu.dot_dimension_numbers<[1], [0], [0], [1], [0, 0, 1, 1], [], []>} : vector<32x32xbf16>, vector<32x384xbf16>, vector<32x384xf32> -> vector<32x384xf32>
    %c18_i32_192 = arith.constant 18 : i32
    %279 = tpu.dynamic_rotate %273 by %c18_i32_192 dim 1 : vector<32x384xf32>, i32 -> vector<32x384xf32>
    %c37 = arith.constant 37 : index
    %c0_193 = arith.constant 0 : index
    %c0_194 = arith.constant 0 : index
    %280 = vector.load %arg3[%c37, %c0_193, %c0_194] : memref<54x32x32xbf16, #tpu.memory_space<vmem>>, vector<1x32x32xbf16>
    %281 = vector.shape_cast %280 : vector<1x32x32xbf16> to vector<32x32xbf16>
    %282 = arith.truncf %279 : vector<32x384xf32> to vector<32x384xbf16>
    %cst_195 = arith.constant dense<0.000000e+00> : vector<32x384xf32>
    %283 = tpu.matmul %281, %282, %cst_195 {dimension_numbers = #tpu.dot_dimension_numbers<[1], [0], [0], [1], [0, 0, 1, 1], [], []>} : vector<32x32xbf16>, vector<32x384xbf16>, vector<32x384xf32> -> vector<32x384xf32>
    %284 = arith.addf %278, %283 : vector<32x384xf32>
    %c17_i32_196 = arith.constant 17 : i32
    %285 = tpu.dynamic_rotate %273 by %c17_i32_196 dim 1 : vector<32x384xf32>, i32 -> vector<32x384xf32>
    %c38 = arith.constant 38 : index
    %c0_197 = arith.constant 0 : index
    %c0_198 = arith.constant 0 : index
    %286 = vector.load %arg3[%c38, %c0_197, %c0_198] : memref<54x32x32xbf16, #tpu.memory_space<vmem>>, vector<1x32x32xbf16>
    %287 = vector.shape_cast %286 : vector<1x32x32xbf16> to vector<32x32xbf16>
    %288 = arith.truncf %285 : vector<32x384xf32> to vector<32x384xbf16>
    %cst_199 = arith.constant dense<0.000000e+00> : vector<32x384xf32>
    %289 = tpu.matmul %287, %288, %cst_199 {dimension_numbers = #tpu.dot_dimension_numbers<[1], [0], [0], [1], [0, 0, 1, 1], [], []>} : vector<32x32xbf16>, vector<32x384xbf16>, vector<32x384xf32> -> vector<32x384xf32>
    %290 = arith.addf %284, %289 : vector<32x384xf32>
    %c1_i32_200 = arith.constant 1 : i32
    %291 = tpu.dynamic_rotate %273 by %c1_i32_200 dim 1 : vector<32x384xf32>, i32 -> vector<32x384xf32>
    %c39 = arith.constant 39 : index
    %c0_201 = arith.constant 0 : index
    %c0_202 = arith.constant 0 : index
    %292 = vector.load %arg3[%c39, %c0_201, %c0_202] : memref<54x32x32xbf16, #tpu.memory_space<vmem>>, vector<1x32x32xbf16>
    %293 = vector.shape_cast %292 : vector<1x32x32xbf16> to vector<32x32xbf16>
    %294 = arith.truncf %291 : vector<32x384xf32> to vector<32x384xbf16>
    %cst_203 = arith.constant dense<0.000000e+00> : vector<32x384xf32>
    %295 = tpu.matmul %293, %294, %cst_203 {dimension_numbers = #tpu.dot_dimension_numbers<[1], [0], [0], [1], [0, 0, 1, 1], [], []>} : vector<32x32xbf16>, vector<32x384xbf16>, vector<32x384xf32> -> vector<32x384xf32>
    %296 = arith.addf %290, %295 : vector<32x384xf32>
    %c40 = arith.constant 40 : index
    %c0_204 = arith.constant 0 : index
    %c0_205 = arith.constant 0 : index
    %297 = vector.load %arg3[%c40, %c0_204, %c0_205] : memref<54x32x32xbf16, #tpu.memory_space<vmem>>, vector<1x32x32xbf16>
    %298 = vector.shape_cast %297 : vector<1x32x32xbf16> to vector<32x32xbf16>
    %299 = arith.truncf %273 : vector<32x384xf32> to vector<32x384xbf16>
    %cst_206 = arith.constant dense<0.000000e+00> : vector<32x384xf32>
    %300 = tpu.matmul %298, %299, %cst_206 {dimension_numbers = #tpu.dot_dimension_numbers<[1], [0], [0], [1], [0, 0, 1, 1], [], []>} : vector<32x32xbf16>, vector<32x384xbf16>, vector<32x384xf32> -> vector<32x384xf32>
    %301 = arith.addf %296, %300 : vector<32x384xf32>
    %c383_i32_207 = arith.constant 383 : i32
    %302 = tpu.dynamic_rotate %273 by %c383_i32_207 dim 1 : vector<32x384xf32>, i32 -> vector<32x384xf32>
    %c41 = arith.constant 41 : index
    %c0_208 = arith.constant 0 : index
    %c0_209 = arith.constant 0 : index
    %303 = vector.load %arg3[%c41, %c0_208, %c0_209] : memref<54x32x32xbf16, #tpu.memory_space<vmem>>, vector<1x32x32xbf16>
    %304 = vector.shape_cast %303 : vector<1x32x32xbf16> to vector<32x32xbf16>
    %305 = arith.truncf %302 : vector<32x384xf32> to vector<32x384xbf16>
    %cst_210 = arith.constant dense<0.000000e+00> : vector<32x384xf32>
    %306 = tpu.matmul %304, %305, %cst_210 {dimension_numbers = #tpu.dot_dimension_numbers<[1], [0], [0], [1], [0, 0, 1, 1], [], []>} : vector<32x32xbf16>, vector<32x384xbf16>, vector<32x384xf32> -> vector<32x384xf32>
    %307 = arith.addf %301, %306 : vector<32x384xf32>
    %c367_i32_211 = arith.constant 367 : i32
    %308 = tpu.dynamic_rotate %273 by %c367_i32_211 dim 1 : vector<32x384xf32>, i32 -> vector<32x384xf32>
    %c42 = arith.constant 42 : index
    %c0_212 = arith.constant 0 : index
    %c0_213 = arith.constant 0 : index
    %309 = vector.load %arg3[%c42, %c0_212, %c0_213] : memref<54x32x32xbf16, #tpu.memory_space<vmem>>, vector<1x32x32xbf16>
    %310 = vector.shape_cast %309 : vector<1x32x32xbf16> to vector<32x32xbf16>
    %311 = arith.truncf %308 : vector<32x384xf32> to vector<32x384xbf16>
    %cst_214 = arith.constant dense<0.000000e+00> : vector<32x384xf32>
    %312 = tpu.matmul %310, %311, %cst_214 {dimension_numbers = #tpu.dot_dimension_numbers<[1], [0], [0], [1], [0, 0, 1, 1], [], []>} : vector<32x32xbf16>, vector<32x384xbf16>, vector<32x384xf32> -> vector<32x384xf32>
    %313 = arith.addf %307, %312 : vector<32x384xf32>
    %c366_i32_215 = arith.constant 366 : i32
    %314 = tpu.dynamic_rotate %273 by %c366_i32_215 dim 1 : vector<32x384xf32>, i32 -> vector<32x384xf32>
    %c43 = arith.constant 43 : index
    %c0_216 = arith.constant 0 : index
    %c0_217 = arith.constant 0 : index
    %315 = vector.load %arg3[%c43, %c0_216, %c0_217] : memref<54x32x32xbf16, #tpu.memory_space<vmem>>, vector<1x32x32xbf16>
    %316 = vector.shape_cast %315 : vector<1x32x32xbf16> to vector<32x32xbf16>
    %317 = arith.truncf %314 : vector<32x384xf32> to vector<32x384xbf16>
    %cst_218 = arith.constant dense<0.000000e+00> : vector<32x384xf32>
    %318 = tpu.matmul %316, %317, %cst_218 {dimension_numbers = #tpu.dot_dimension_numbers<[1], [0], [0], [1], [0, 0, 1, 1], [], []>} : vector<32x32xbf16>, vector<32x384xbf16>, vector<32x384xf32> -> vector<32x384xf32>
    %319 = arith.addf %313, %318 : vector<32x384xf32>
    %c365_i32_219 = arith.constant 365 : i32
    %320 = tpu.dynamic_rotate %273 by %c365_i32_219 dim 1 : vector<32x384xf32>, i32 -> vector<32x384xf32>
    %c44 = arith.constant 44 : index
    %c0_220 = arith.constant 0 : index
    %c0_221 = arith.constant 0 : index
    %321 = vector.load %arg3[%c44, %c0_220, %c0_221] : memref<54x32x32xbf16, #tpu.memory_space<vmem>>, vector<1x32x32xbf16>
    %322 = vector.shape_cast %321 : vector<1x32x32xbf16> to vector<32x32xbf16>
    %323 = arith.truncf %320 : vector<32x384xf32> to vector<32x384xbf16>
    %cst_222 = arith.constant dense<0.000000e+00> : vector<32x384xf32>
    %324 = tpu.matmul %322, %323, %cst_222 {dimension_numbers = #tpu.dot_dimension_numbers<[1], [0], [0], [1], [0, 0, 1, 1], [], []>} : vector<32x32xbf16>, vector<32x384xbf16>, vector<32x384xf32> -> vector<32x384xf32>
    %325 = arith.addf %319, %324 : vector<32x384xf32>
    %c4_223 = arith.constant 4 : index
    %c0_224 = arith.constant 0 : index
    %c0_225 = arith.constant 0 : index
    %326 = vector.load %arg4[%c4_223, %c0_224, %c0_225] : memref<6x32x1xf32, #tpu.memory_space<vmem>>, vector<1x32x1xf32>
    %327 = vector.shape_cast %326 : vector<1x32x1xf32> to vector<32x1xf32>
    %328 = vector.broadcast %327 : vector<32x1xf32> to vector<32x384xf32>
    %329 = arith.addf %325, %328 : vector<32x384xf32>
    %cst_226 = arith.constant 1.000000e+00 : f32
    %330 = vector.broadcast %cst_226 : f32 to vector<32x384xf32>
    %331 = arith.mulf %329, %330 : vector<32x384xf32>
    %332 = vector.broadcast %0 : vector<1x384xf32> to vector<32x384xf32>
    %333 = arith.mulf %331, %332 : vector<32x384xf32>
    %c0_227 = arith.constant 0 : index
    %c0_228 = arith.constant 0 : index
    %c0_229 = arith.constant 0 : index
    %334 = vector.load %arg6[%c0_227, %c0_228, %c0_229] : memref<2x32x384xf32, #tpu.memory_space<vmem>>, vector<1x32x384xf32>
    %335 = vector.shape_cast %334 : vector<1x32x384xf32> to vector<32x384xf32>
    %336 = arith.addf %333, %335 : vector<32x384xf32>
    %c0_230 = arith.constant 0 : index
    %c0_231 = arith.constant 0 : index
    %c0_232 = arith.constant 0 : index
    %337 = vector.load %arg6[%c0_230, %c0_231, %c0_232] : memref<2x32x384xf32, #tpu.memory_space<vmem>>, vector<1x32x384xf32>
    %338 = vector.shape_cast %337 : vector<1x32x384xf32> to vector<32x384xf32>
    %339 = vector.shape_cast %336 : vector<32x384xf32> to vector<1x32x384xf32>
    tpu.vector_store %arg6[%c0_230, %c0_231, %c0_232], %339 {strides = array<i32>} : memref<2x32x384xf32, #tpu.memory_space<vmem>>, vector<1x32x384xf32>,
    %c0_233 = arith.constant 0 : index
    %c0_234 = arith.constant 0 : index
    %c0_235 = arith.constant 0 : index
    %340 = vector.load %arg6[%c0_233, %c0_234, %c0_235] : memref<2x32x384xf32, #tpu.memory_space<vmem>>, vector<1x32x384xf32>
    %341 = vector.shape_cast %340 : vector<1x32x384xf32> to vector<32x384xf32>
    %c19_i32_236 = arith.constant 19 : i32
    %342 = tpu.dynamic_rotate %341 by %c19_i32_236 dim 1 : vector<32x384xf32>, i32 -> vector<32x384xf32>
    %c45 = arith.constant 45 : index
    %c0_237 = arith.constant 0 : index
    %c0_238 = arith.constant 0 : index
    %343 = vector.load %arg3[%c45, %c0_237, %c0_238] : memref<54x32x32xbf16, #tpu.memory_space<vmem>>, vector<1x32x32xbf16>
    %344 = vector.shape_cast %343 : vector<1x32x32xbf16> to vector<32x32xbf16>
    %345 = arith.truncf %342 : vector<32x384xf32> to vector<32x384xbf16>
    %cst_239 = arith.constant dense<0.000000e+00> : vector<32x384xf32>
    %346 = tpu.matmul %344, %345, %cst_239 {dimension_numbers = #tpu.dot_dimension_numbers<[1], [0], [0], [1], [0, 0, 1, 1], [], []>} : vector<32x32xbf16>, vector<32x384xbf16>, vector<32x384xf32> -> vector<32x384xf32>
    %c18_i32_240 = arith.constant 18 : i32
    %347 = tpu.dynamic_rotate %341 by %c18_i32_240 dim 1 : vector<32x384xf32>, i32 -> vector<32x384xf32>
    %c46 = arith.constant 46 : index
    %c0_241 = arith.constant 0 : index
    %c0_242 = arith.constant 0 : index
    %348 = vector.load %arg3[%c46, %c0_241, %c0_242] : memref<54x32x32xbf16, #tpu.memory_space<vmem>>, vector<1x32x32xbf16>
    %349 = vector.shape_cast %348 : vector<1x32x32xbf16> to vector<32x32xbf16>
    %350 = arith.truncf %347 : vector<32x384xf32> to vector<32x384xbf16>
    %cst_243 = arith.constant dense<0.000000e+00> : vector<32x384xf32>
    %351 = tpu.matmul %349, %350, %cst_243 {dimension_numbers = #tpu.dot_dimension_numbers<[1], [0], [0], [1], [0, 0, 1, 1], [], []>} : vector<32x32xbf16>, vector<32x384xbf16>, vector<32x384xf32> -> vector<32x384xf32>
    %352 = arith.addf %346, %351 : vector<32x384xf32>
    %c17_i32_244 = arith.constant 17 : i32
    %353 = tpu.dynamic_rotate %341 by %c17_i32_244 dim 1 : vector<32x384xf32>, i32 -> vector<32x384xf32>
    %c47 = arith.constant 47 : index
    %c0_245 = arith.constant 0 : index
    %c0_246 = arith.constant 0 : index
    %354 = vector.load %arg3[%c47, %c0_245, %c0_246] : memref<54x32x32xbf16, #tpu.memory_space<vmem>>, vector<1x32x32xbf16>
    %355 = vector.shape_cast %354 : vector<1x32x32xbf16> to vector<32x32xbf16>
    %356 = arith.truncf %353 : vector<32x384xf32> to vector<32x384xbf16>
    %cst_247 = arith.constant dense<0.000000e+00> : vector<32x384xf32>
    %357 = tpu.matmul %355, %356, %cst_247 {dimension_numbers = #tpu.dot_dimension_numbers<[1], [0], [0], [1], [0, 0, 1, 1], [], []>} : vector<32x32xbf16>, vector<32x384xbf16>, vector<32x384xf32> -> vector<32x384xf32>
    %358 = arith.addf %352, %357 : vector<32x384xf32>
    %c1_i32_248 = arith.constant 1 : i32
    %359 = tpu.dynamic_rotate %341 by %c1_i32_248 dim 1 : vector<32x384xf32>, i32 -> vector<32x384xf32>
    %c48 = arith.constant 48 : index
    %c0_249 = arith.constant 0 : index
    %c0_250 = arith.constant 0 : index
    %360 = vector.load %arg3[%c48, %c0_249, %c0_250] : memref<54x32x32xbf16, #tpu.memory_space<vmem>>, vector<1x32x32xbf16>
    %361 = vector.shape_cast %360 : vector<1x32x32xbf16> to vector<32x32xbf16>
    %362 = arith.truncf %359 : vector<32x384xf32> to vector<32x384xbf16>
    %cst_251 = arith.constant dense<0.000000e+00> : vector<32x384xf32>
    %363 = tpu.matmul %361, %362, %cst_251 {dimension_numbers = #tpu.dot_dimension_numbers<[1], [0], [0], [1], [0, 0, 1, 1], [], []>} : vector<32x32xbf16>, vector<32x384xbf16>, vector<32x384xf32> -> vector<32x384xf32>
    %364 = arith.addf %358, %363 : vector<32x384xf32>
    %c49 = arith.constant 49 : index
    %c0_252 = arith.constant 0 : index
    %c0_253 = arith.constant 0 : index
    %365 = vector.load %arg3[%c49, %c0_252, %c0_253] : memref<54x32x32xbf16, #tpu.memory_space<vmem>>, vector<1x32x32xbf16>
    %366 = vector.shape_cast %365 : vector<1x32x32xbf16> to vector<32x32xbf16>
    %367 = arith.truncf %341 : vector<32x384xf32> to vector<32x384xbf16>
    %cst_254 = arith.constant dense<0.000000e+00> : vector<32x384xf32>
    %368 = tpu.matmul %366, %367, %cst_254 {dimension_numbers = #tpu.dot_dimension_numbers<[1], [0], [0], [1], [0, 0, 1, 1], [], []>} : vector<32x32xbf16>, vector<32x384xbf16>, vector<32x384xf32> -> vector<32x384xf32>
    %369 = arith.addf %364, %368 : vector<32x384xf32>
    %c383_i32_255 = arith.constant 383 : i32
    %370 = tpu.dynamic_rotate %341 by %c383_i32_255 dim 1 : vector<32x384xf32>, i32 -> vector<32x384xf32>
    %c50 = arith.constant 50 : index
    %c0_256 = arith.constant 0 : index
    %c0_257 = arith.constant 0 : index
    %371 = vector.load %arg3[%c50, %c0_256, %c0_257] : memref<54x32x32xbf16, #tpu.memory_space<vmem>>, vector<1x32x32xbf16>
    %372 = vector.shape_cast %371 : vector<1x32x32xbf16> to vector<32x32xbf16>
    %373 = arith.truncf %370 : vector<32x384xf32> to vector<32x384xbf16>
    %cst_258 = arith.constant dense<0.000000e+00> : vector<32x384xf32>
    %374 = tpu.matmul %372, %373, %cst_258 {dimension_numbers = #tpu.dot_dimension_numbers<[1], [0], [0], [1], [0, 0, 1, 1], [], []>} : vector<32x32xbf16>, vector<32x384xbf16>, vector<32x384xf32> -> vector<32x384xf32>
    %375 = arith.addf %369, %374 : vector<32x384xf32>
    %c367_i32_259 = arith.constant 367 : i32
    %376 = tpu.dynamic_rotate %341 by %c367_i32_259 dim 1 : vector<32x384xf32>, i32 -> vector<32x384xf32>
    %c51 = arith.constant 51 : index
    %c0_260 = arith.constant 0 : index
    %c0_261 = arith.constant 0 : index
    %377 = vector.load %arg3[%c51, %c0_260, %c0_261] : memref<54x32x32xbf16, #tpu.memory_space<vmem>>, vector<1x32x32xbf16>
    %378 = vector.shape_cast %377 : vector<1x32x32xbf16> to vector<32x32xbf16>
    %379 = arith.truncf %376 : vector<32x384xf32> to vector<32x384xbf16>
    %cst_262 = arith.constant dense<0.000000e+00> : vector<32x384xf32>
    %380 = tpu.matmul %378, %379, %cst_262 {dimension_numbers = #tpu.dot_dimension_numbers<[1], [0], [0], [1], [0, 0, 1, 1], [], []>} : vector<32x32xbf16>, vector<32x384xbf16>, vector<32x384xf32> -> vector<32x384xf32>
    %381 = arith.addf %375, %380 : vector<32x384xf32>
    %c366_i32_263 = arith.constant 366 : i32
    %382 = tpu.dynamic_rotate %341 by %c366_i32_263 dim 1 : vector<32x384xf32>, i32 -> vector<32x384xf32>
    %c52 = arith.constant 52 : index
    %c0_264 = arith.constant 0 : index
    %c0_265 = arith.constant 0 : index
    %383 = vector.load %arg3[%c52, %c0_264, %c0_265] : memref<54x32x32xbf16, #tpu.memory_space<vmem>>, vector<1x32x32xbf16>
    %384 = vector.shape_cast %383 : vector<1x32x32xbf16> to vector<32x32xbf16>
    %385 = arith.truncf %382 : vector<32x384xf32> to vector<32x384xbf16>
    %cst_266 = arith.constant dense<0.000000e+00> : vector<32x384xf32>
    %386 = tpu.matmul %384, %385, %cst_266 {dimension_numbers = #tpu.dot_dimension_numbers<[1], [0], [0], [1], [0, 0, 1, 1], [], []>} : vector<32x32xbf16>, vector<32x384xbf16>, vector<32x384xf32> -> vector<32x384xf32>
    %387 = arith.addf %381, %386 : vector<32x384xf32>
    %c365_i32_267 = arith.constant 365 : i32
    %388 = tpu.dynamic_rotate %341 by %c365_i32_267 dim 1 : vector<32x384xf32>, i32 -> vector<32x384xf32>
    %c53 = arith.constant 53 : index
    %c0_268 = arith.constant 0 : index
    %c0_269 = arith.constant 0 : index
    %389 = vector.load %arg3[%c53, %c0_268, %c0_269] : memref<54x32x32xbf16, #tpu.memory_space<vmem>>, vector<1x32x32xbf16>
    %390 = vector.shape_cast %389 : vector<1x32x32xbf16> to vector<32x32xbf16>
    %391 = arith.truncf %388 : vector<32x384xf32> to vector<32x384xbf16>
    %cst_270 = arith.constant dense<0.000000e+00> : vector<32x384xf32>
    %392 = tpu.matmul %390, %391, %cst_270 {dimension_numbers = #tpu.dot_dimension_numbers<[1], [0], [0], [1], [0, 0, 1, 1], [], []>} : vector<32x32xbf16>, vector<32x384xbf16>, vector<32x384xf32> -> vector<32x384xf32>
    %393 = arith.addf %387, %392 : vector<32x384xf32>
    %c5_271 = arith.constant 5 : index
    %c0_272 = arith.constant 0 : index
    %c0_273 = arith.constant 0 : index
    %394 = vector.load %arg4[%c5_271, %c0_272, %c0_273] : memref<6x32x1xf32, #tpu.memory_space<vmem>>, vector<1x32x1xf32>
    %395 = vector.shape_cast %394 : vector<1x32x1xf32> to vector<32x1xf32>
    %396 = vector.broadcast %395 : vector<32x1xf32> to vector<32x384xf32>
    %397 = arith.addf %393, %396 : vector<32x384xf32>
    %398 = vector.broadcast %0 : vector<1x384xf32> to vector<32x384xf32>
    %399 = arith.mulf %397, %398 : vector<32x384xf32>
    %c0_274 = arith.constant 0 : index
    %c0_275 = arith.constant 0 : index
    %c0_276 = arith.constant 0 : index
    %400 = vector.load %arg5[%c0_274, %c0_275, %c0_276] : memref<1x32x384xf32, #tpu.memory_space<vmem>>, vector<1x32x384xf32>
    %401 = vector.shape_cast %400 : vector<1x32x384xf32> to vector<32x384xf32>
    %402 = arith.addf %399, %401 : vector<32x384xf32>
    %c0_277 = arith.constant 0 : index
    %c0_278 = arith.constant 0 : index
    %c0_279 = arith.constant 0 : index
    %403 = vector.load %arg5[%c0_277, %c0_278, %c0_279] : memref<1x32x384xf32, #tpu.memory_space<vmem>>, vector<1x32x384xf32>
    %404 = vector.shape_cast %403 : vector<1x32x384xf32> to vector<32x384xf32>
    %405 = vector.shape_cast %402 : vector<32x384xf32> to vector<1x32x384xf32>
    tpu.vector_store %arg5[%c0_277, %c0_278, %c0_279], %405 {strides = array<i32>} : memref<1x32x384xf32, #tpu.memory_space<vmem>>, vector<1x32x384xf32>,
    return
  }
  func.func @transform_0(%arg0: i32) -> (i32, i32, i32) {
    %c0_i32 = arith.constant 0 : i32
    %c0_i32_0 = arith.constant 0 : i32
    %c0_i32_1 = arith.constant 0 : i32
    return %arg0, %c0_i32, %c0_i32_0 : i32, i32, i32
  }
  func.func @transform_1(%arg0: i32) -> (i32, i32) {
    %c0_i32 = arith.constant 0 : i32
    %c0_i32_0 = arith.constant 0 : i32
    %c0_i32_1 = arith.constant 0 : i32
    return %c0_i32, %c0_i32_0 : i32, i32
  }
  func.func @transform_2(%arg0: i32) -> (i32, i32, i32) {
    %c0_i32 = arith.constant 0 : i32
    %c0_i32_0 = arith.constant 0 : i32
    %c0_i32_1 = arith.constant 0 : i32
    %c0_i32_2 = arith.constant 0 : i32
    return %c0_i32, %c0_i32_0, %c0_i32_1 : i32, i32, i32
  }
  func.func @transform_3(%arg0: i32) -> (i32, i32, i32) {
    %c0_i32 = arith.constant 0 : i32
    %c0_i32_0 = arith.constant 0 : i32
    %c0_i32_1 = arith.constant 0 : i32
    %c0_i32_2 = arith.constant 0 : i32
    return %c0_i32, %c0_i32_0, %c0_i32_1 : i32, i32, i32
  }
  func.func @transform_4(%arg0: i32) -> (i32, i32, i32) {
    %c0_i32 = arith.constant 0 : i32
    %c0_i32_0 = arith.constant 0 : i32
    %c0_i32_1 = arith.constant 0 : i32
    return %arg0, %c0_i32, %c0_i32_0 : i32, i32, i32
  }
}

</mosaic_0001>

<llo_original>
// kernel: tpu_custom_call.1
$region0: #{tpu_custom_call.1}
  #allocation0 [shape = 'u32[]', space=smem, size = 0x4, offset = 0x4, fixed_abs, tag = 'smem constant byte address 0x4 - core index']
  #allocation1 [shape = 'u32[144,128]{1,0:T(1,128)}', space=vmem, size = 0x12000, scoped, tag = 'internal scratch']
  #allocation2 [shape = 'f32[2,32,384]{2,1,0:T(8,128)}', space=vmem, size = 0x18000, scoped, tag = 'scratch operand']
  %s0 = inlined_call_operand.vmem [shape: f32[2,32,384], index: 0, kind: input, shape index: {}]
  %s1 = inlined_call_operand.vmem [shape: f32[1,384], index: 1, kind: input, shape index: {}]
  %s2 = inlined_call_operand.vmem [shape: bf16[54,32,32], index: 2, kind: input, shape index: {}]
  %s3 = inlined_call_operand.vmem [shape: f32[6,32,1], index: 3, kind: input, shape index: {}]
  %s4 = inlined_call_operand.hbm [shape: f32[2,32,384], index: 4, kind: output, shape index: {}]
  %s5 = sld [smem:[#allocation0]]
  $region49: #{tpu_custom_call.1} parent=0
    _
  %s7 = ssub.s32 1, %s5
  %s8 = scalar_select 0, %s7, %s5
  $region1: #{tpu_custom_call.1} parent=0
    #allocation3 [shape = 'u8[98304]{0}', space=vmem, size = 0x18000, scoped, tag = 'output window, operand 0']
    #allocation4 [shape = 's32[2]{0}', space=sflag, size = 0x8, scoped, tag = 'scoped memory for tpu_custom_call.1']
    %9 = vsyncpa [#allocation4], 0
    %s10 = scalar_lea.sflag [#allocation4], 1
    %11 = vsyncpa %s10, 0
    loop: start=0, step=1, limit=4
    $region2: #{tpu_custom_call.1} parent=1 // loop_pre_header
      _
    $region3: #{tpu_custom_call.1} parent=1 // loop_header
      %s13 = sphi 0, %s17
      %p14 = scmp.ge.s32.totalorder %s13, 4
      %s23 = sphi 0, %s25
      %s26 = sphi 0, %s23
      %s27 = sphi 0, %s26
      %s43 = sphi 0, %s27
      %s47 = sphi 0, %s47
      %s49 = sphi 0, %s47
      %s50 = sphi 0, %s49
      %s64 = sphi 0, %s50
      %s68 = sphi 0, %s68
      %s70 = sphi 0, %s68
      %s71 = sphi 0, %s70
      %s85 = sphi 0, %s71
      %s89 = sphi 0, %s89
      %s91 = sphi 0, %s89
      %s92 = sphi 0, %s91
      %s106 = sphi 0, %s92
      %s112 = sphi 0, %s114
      %s115 = sphi 0, %s112
      %s116 = sphi 0, %s115
      %s132 = sphi 0, %s116
    $region4: #{tpu_custom_call.1} parent=1 // loop_header_branch
      %16 = sbr.rel (%p14) target = $region8
    $region5: #{tpu_custom_call.1} parent=1 // loop_body
      %s18 = ssub.s32 %s13, 1
      %s19 = ssub.s32 %s13, 2
      %s20 = sadd.s32 %s13, 1
      %s21 = ssub.s32 %s13, %s20
      %p22 = scmp.eq.s32.totalorder %s21, 0
      %s24 = sadd.s32 %s23, 1
      %s25 = scalar_select %p22, %s23, %s24
      %p28 = pneg %p22
      %p29 = scmp.eq.s32.totalorder %s13, 1
      %p30 = por %p28, %p29
      %p31 = scmp.ne.s32.totalorder %s23, %s26
      %p32 = scmp.eq.s32.totalorder %s13, 0
      %p33 = por %p31, %p32
      %p34 = scmp.ne.s32.totalorder %s23, %s26
      %p35 = scmp.eq.s32.totalorder %s18, 1
      %p36 = por %p34, %p35
      %p37 = scmp.ne.s32.totalorder %s26, %s27
      %p38 = scmp.eq.s32.totalorder %s18, 0
      %p39 = por %p37, %p38
      %p40 = scmp.ne.s32.totalorder %s26, %s27
      %p41 = scmp.eq.s32.totalorder %s19, 1
      %p42 = por %p40, %p41
      %p44 = scmp.ne.s32.totalorder %s27, %s43
      %p45 = scmp.eq.s32.totalorder %s19, 0
      %p46 = por %p44, %p45
      %s48 = sadd.s32 %s47, 1
      %p51 = scmp.eq.s32.totalorder %s13, 1
      %p52 = scmp.ne.s32.totalorder %s47, %s49
      %p53 = scmp.eq.s32.totalorder %s13, 0
      %p54 = por %p52, %p53
      %p55 = scmp.ne.s32.totalorder %s47, %s49
      %p56 = scmp.eq.s32.totalorder %s18, 1
      %p57 = por %p55, %p56
      %p58 = scmp.ne.s32.totalorder %s49, %s50
      %p59 = scmp.eq.s32.totalorder %s18, 0
      %p60 = por %p58, %p59
      %p61 = scmp.ne.s32.totalorder %s49, %s50
      %p62 = scmp.eq.s32.totalorder %s19, 1
      %p63 = por %p61, %p62
      %p65 = scmp.ne.s32.totalorder %s50, %s64
      %p66 = scmp.eq.s32.totalorder %s19, 0
      %p67 = por %p65, %p66
      %s69 = sadd.s32 %s68, 1
      %p72 = scmp.eq.s32.totalorder %s13, 1
      %p73 = scmp.ne.s32.totalorder %s68, %s70
      %p74 = scmp.eq.s32.totalorder %s13, 0
      %p75 = por %p73, %p74
      %p76 = scmp.ne.s32.totalorder %s68, %s70
      %p77 = scmp.eq.s32.totalorder %s18, 1
      %p78 = por %p76, %p77
      %p79 = scmp.ne.s32.totalorder %s70, %s71
      %p80 = scmp.eq.s32.totalorder %s18, 0
      %p81 = por %p79, %p80
      %p82 = scmp.ne.s32.totalorder %s70, %s71
      %p83 = scmp.eq.s32.totalorder %s19, 1
      %p84 = por %p82, %p83
      %p86 = scmp.ne.s32.totalorder %s71, %s85
      %p87 = scmp.eq.s32.totalorder %s19, 0
      %p88 = por %p86, %p87
      %s90 = sadd.s32 %s89, 1
      %p93 = scmp.eq.s32.totalorder %s13, 1
      %p94 = scmp.ne.s32.totalorder %s89, %s91
      %p95 = scmp.eq.s32.totalorder %s13, 0
      %p96 = por %p94, %p95
      %p97 = scmp.ne.s32.totalorder %s89, %s91
      %p98 = scmp.eq.s32.totalorder %s18, 1
      %p99 = por %p97, %p98
      %p100 = scmp.ne.s32.totalorder %s91, %s92
      %p101 = scmp.eq.s32.totalorder %s18, 0
      %p102 = por %p100, %p101
      %p103 = scmp.ne.s32.totalorder %s91, %s92
      %p104 = scmp.eq.s32.totalorder %s19, 1
      %p105 = por %p103, %p104
      %p107 = scmp.ne.s32.totalorder %s92, %s106
      %p108 = scmp.eq.s32.totalorder %s19, 0
      %p109 = por %p107, %p108
      %s110 = ssub.s32 %s13, %s20
      %p111 = scmp.eq.s32.totalorder %s110, 0
      %s113 = sadd.s32 %s112, 1
      %s114 = scalar_select %p111, %s112, %s113
      %p117 = pneg %p111
      %p118 = scmp.eq.s32.totalorder %s13, 1
      %p119 = por %p117, %p118
      %p120 = scmp.ne.s32.totalorder %s112, %s115
      %p121 = scmp.eq.s32.totalorder %s13, 0
      %p122 = por %p120, %p121
      %p123 = scmp.ne.s32.totalorder %s112, %s115
      %p124 = scmp.eq.s32.totalorder %s18, 1
      %p125 = por %p123, %p124
      %p126 = scmp.ne.s32.totalorder %s115, %s116
      %p127 = scmp.eq.s32.totalorder %s18, 0
      %p128 = por %p126, %p127
      %p129 = scmp.ne.s32.totalorder %s115, %s116
      %p130 = scmp.eq.s32.totalorder %s19, 1
      %p131 = por %p129, %p130
      %p133 = scmp.ne.s32.totalorder %s116, %s132
      %p134 = scmp.eq.s32.totalorder %s19, 0
      %p135 = por %p133, %p134
      %p136 = scmp.le.s32.totalorder 1, %s13
      %p137 = scmp.lt.s32.totalorder %s13, 3
      %p138 = pnand %p136, %p137
      %p139 = pneg %p138
      // Predicated region
      $region9: #{tpu_custom_call.1} parent=5 // pred_check
        _
      $region10: #{tpu_custom_call.1} parent=5 // pred_check_branch
        %141 = sbr.rel (%p138) target = $region12
      $region11: #{tpu_custom_call.1} parent=5 // pred_region
        %s142 = ssub.s32 %s13, 1
        // Predicated region
        $region13: #{tpu_custom_call.1} parent=11 // pred_check
          %p143 = pneg %p60
        $region14: #{tpu_custom_call.1} parent=11 // pred_check_branch
          %145 = sbr.rel (%p143) target = $region16
        $region15: #{tpu_custom_call.1} parent=11 // pred_region
          _
        $region16: #{tpu_custom_call.1} parent=11 // pred_fallthru
          _
        // Predicated region
        $region17: #{tpu_custom_call.1} parent=11 // pred_check
          %p146 = pneg %p81
        $region18: #{tpu_custom_call.1} parent=11 // pred_check_branch
          %148 = sbr.rel (%p146) target = $region20
        $region19: #{tpu_custom_call.1} parent=11 // pred_region
          _
        $region20: #{tpu_custom_call.1} parent=11 // pred_fallthru
          _
        // Predicated region
        $region21: #{tpu_custom_call.1} parent=11 // pred_check
          %p149 = pneg %p102
        $region22: #{tpu_custom_call.1} parent=11 // pred_check_branch
          %151 = sbr.rel (%p149) target = $region24
        $region23: #{tpu_custom_call.1} parent=11 // pred_region
          _
        $region24: #{tpu_custom_call.1} parent=11 // pred_fallthru
          _
      $region12: #{tpu_custom_call.1} parent=5 // pred_fallthru
        _
      %p152 = scmp.lt.s32.totalorder %s13, 2
      // Predicated region
      $region25: #{tpu_custom_call.1} parent=5 // pred_check
        %p153 = pneg %p152
      $region26: #{tpu_custom_call.1} parent=5 // pred_check_branch
        %155 = sbr.rel (%p153) target = $region28
      $region27: #{tpu_custom_call.1} parent=5 // pred_region
        // Predicated region
        $region29: #{tpu_custom_call.1} parent=27 // pred_check
          %p156 = pneg %p33
        $region30: #{tpu_custom_call.1} parent=27 // pred_check_branch
          %158 = sbr.rel (%p156) target = $region32
        $region31: #{tpu_custom_call.1} parent=27 // pred_region
          %p159 = scmp.lt.s32.totalorder %s13, 1
          %s160 = scalar_select %p159, %s13, 1
          %s161 = smul.addr %s160, 12
          %s162 = smul.addr %s161, 8
          %s163 = scalar_lea.vmem %s0, %s162
        $region32: #{tpu_custom_call.1} parent=27 // pred_fallthru
          _
      $region28: #{tpu_custom_call.1} parent=5 // pred_fallthru
        _
      %p164 = scmp.le.s32.totalorder 1, %s13
      %p165 = scmp.lt.s32.totalorder %s13, 3
      %p166 = pnand %p164, %p165
      %p167 = pneg %p166
      // Predicated region
      $region33: #{tpu_custom_call.1} parent=5 // pred_check
        _
      $region34: #{tpu_custom_call.1} parent=5 // pred_check_branch
        %169 = sbr.rel (%p166) target = $region36
      $region35: #{tpu_custom_call.1} parent=5 // pred_region
        %s170 = ssub.s32 %s13, 1
        %p171 = scmp.lt.s32.totalorder %s18, 1
        %s172 = scalar_select %p171, %s18, 1
        %s173 = smul.addr %s172, 12
        %s174 = smul.addr %s173, 8
        %s175 = scalar_lea.vmem %s0, %s174
        %p176 = pneg %p39
        %p177 = pneg %p36
        %p178 = pneg %p60
        %p179 = pneg %p57
        %p180 = pneg %p81
        %p181 = pneg %p78
        %p182 = pneg %p102
        %p183 = pneg %p99
        %p184 = pneg %p128
        %p185 = pneg %p125
        %s186 = sand.u32 %s115, 1
        %s187 = scalar_lea.sflag [#allocation4], %s186
        %s188 = sand.u32 %s115, 1
        %s189 = smul.addr %s188, 96
        %s190 = scalar_lea.vmem [#allocation3], %s189
        %p191 = scmp.lt.s32.totalorder %s18, 1
        %s192 = scalar_select %p191, %s18, 1
        %s193 = smul.addr %s192, 12
        %s194 = smul.addr %s193, 8
        %s195 = scalar_lea.vmem %s0, %s194
        %v197 = vld [vmem:[%s1] sm:$0x7]
        %v198 = vld [vmem:[%s195] sm:$0xff]
        %v199 = vld [vmem:[%s195 + $0x8] sm:$0xff]
        %v200 = vld [vmem:[%s195 + $0x10] sm:$0xff]
        %v201 = vld [vmem:[%s195 + $0x18] sm:$0xff]
        %v202 = vld [vmem:[%s195 + $0x20] sm:$0xff]
        %v203 = vld [vmem:[%s195 + $0x28] sm:$0xff]
        %v204 = vld [vmem:[%s195 + $0x30] sm:$0xff]
        %v205 = vld [vmem:[%s195 + $0x38] sm:$0xff]
        %v206 = vld [vmem:[%s195 + $0x40] sm:$0xff]
        %v207 = vld [vmem:[%s195 + $0x48] sm:$0xff]
        %v208 = vld [vmem:[%s195 + $0x50] sm:$0xff]
        %v209 = vld [vmem:[%s195 + $0x58] sm:$0xff]
        %210 = vst [vmem:[#allocation2] sm:$0xff] %v198
        %211 = vst [vmem:[#allocation2 + $0x8] sm:$0xff] %v199
        %212 = vst [vmem:[#allocation2 + $0x10] sm:$0xff] %v200
        %213 = vst [vmem:[#allocation2 + $0x18] sm:$0xff] %v201
        %214 = vst [vmem:[#allocation2 + $0x20] sm:$0xff] %v202
        %215 = vst [vmem:[#allocation2 + $0x28] sm:$0xff] %v203
        %216 = vst [vmem:[#allocation2 + $0x30] sm:$0xff] %v204
        %217 = vst [vmem:[#allocation2 + $0x38] sm:$0xff] %v205
        %218 = vst [vmem:[#allocation2 + $0x40] sm:$0xff] %v206
        %219 = vst [vmem:[#allocation2 + $0x48] sm:$0xff] %v207
        %220 = vst [vmem:[#allocation2 + $0x50] sm:$0xff] %v208
        %221 = vst [vmem:[#allocation2 + $0x58] sm:$0xff] %v209
        %v222 = vld [vmem:[#allocation2] sm:$0xff]
        %v223 = vld [vmem:[#allocation2 + $0x8] sm:$0xff]
        %v224 = vld [vmem:[#allocation2 + $0x10] sm:$0xff]
        %v225 = vld [vmem:[#allocation2 + $0x18] sm:$0xff]
        %v226 = vld [vmem:[#allocation2 + $0x20] sm:$0xff]
        %v227 = vld [vmem:[#allocation2 + $0x28] sm:$0xff]
        %v228 = vld [vmem:[#allocation2 + $0x30] sm:$0xff]
        %v229 = vld [vmem:[#allocation2 + $0x38] sm:$0xff]
        %v230 = vld [vmem:[#allocation2 + $0x40] sm:$0xff]
        %v231 = vld [vmem:[#allocation2 + $0x48] sm:$0xff]
        %v232 = vld [vmem:[#allocation2 + $0x50] sm:$0xff]
        %v233 = vld [vmem:[#allocation2 + $0x58] sm:$0xff]
        %234 = vrot.lane.b32.xlu0 %v222, 19
        %v235 = vpop.permute.xlu0 %234
        %236 = vrot.lane.b32.xlu0 %v225, 19
        %v237 = vpop.permute.xlu0 %236
        %238 = vrot.lane.b32.xlu0 %v228, 19
        %v239 = vpop.permute.xlu0 %238
        %240 = vrot.lane.b32.xlu0 %v231, 19
        %v241 = vpop.permute.xlu0 %240
        %242 = vrot.lane.b32.xlu0 %v223, 19
        %v243 = vpop.permute.xlu0 %242
        %244 = vrot.lane.b32.xlu0 %v226, 19
        %v245 = vpop.permute.xlu0 %244
        %246 = vrot.lane.b32.xlu0 %v229, 19
        %v247 = vpop.permute.xlu0 %246
        %248 = vrot.lane.b32.xlu0 %v232, 19
        %v249 = vpop.permute.xlu0 %248
        %250 = vrot.lane.b32.xlu0 %v224, 19
        %v251 = vpop.permute.xlu0 %250
        %252 = vrot.lane.b32.xlu0 %v227, 19
        %v253 = vpop.permute.xlu0 %252
        %254 = vrot.lane.b32.xlu0 %v230, 19
        %v255 = vpop.permute.xlu0 %254
        %256 = vrot.lane.b32.xlu0 %v233, 19
        %v257 = vpop.permute.xlu0 %256
        %v258 = vlaneseq
        %v259 = vand.u32 %v258, 127
        %vm260 = vcmp.lt.s32.totalorder %v259, 19
        %v261 = vsel %vm260, %v243, %v251
        %v262 = vsel %vm260, %v245, %v253
        %v263 = vsel %vm260, %v247, %v255
        %v264 = vsel %vm260, %v249, %v257
        %v265 = vsel %vm260, %v235, %v243
        %v266 = vsel %vm260, %v237, %v245
        %v267 = vsel %vm260, %v239, %v247
        %v268 = vsel %vm260, %v241, %v249
        %v269 = vsel %vm260, %v251, %v235
        %v270 = vsel %vm260, %v253, %v237
        %v271 = vsel %vm260, %v255, %v239
        %v272 = vsel %vm260, %v257, %v241
        %v273 = vld [vmem:[%s2] sm:$0xf]
        %v274 = vld [vmem:[%s2 + $0x4] sm:$0xf]
        %v275 = vld [vmem:[%s2 + $0x8] sm:$0xf]
        %v276 = vld [vmem:[%s2 + $0xc] sm:$0xf]
        %v277 = vpack.c.bf16 %v270, %v269
        %v278 = vpack.c.bf16 %v266, %v265
        %v279 = vpack.c.bf16 %v262, %v261
        %v280 = vpack.c.bf16 %v272, %v271
        %v281 = vpack.c.bf16 %v268, %v267
        %v282 = vpack.c.bf16 %v264, %v263
        %283 = vrot.lane.b32.xlu0 %v222, 18
        %v284 = vpop.permute.xlu0 %283
        %285 = vrot.lane.b32.xlu0 %v225, 18
        %v286 = vpop.permute.xlu0 %285
        %287 = vrot.lane.b32.xlu0 %v228, 18
        %v288 = vpop.permute.xlu0 %287
        %289 = vrot.lane.b32.xlu0 %v231, 18
        %v290 = vpop.permute.xlu0 %289
        %291 = vrot.lane.b32.xlu0 %v223, 18
        %v292 = vpop.permute.xlu0 %291
        %293 = vrot.lane.b32.xlu0 %v226, 18
        %v294 = vpop.permute.xlu0 %293
        %295 = vrot.lane.b32.xlu0 %v229, 18
        %v296 = vpop.permute.xlu0 %295
        %297 = vrot.lane.b32.xlu0 %v232, 18
        %v298 = vpop.permute.xlu0 %297
        %299 = vrot.lane.b32.xlu0 %v224, 18
        %v300 = vpop.permute.xlu0 %299
        %301 = vrot.lane.b32.xlu0 %v227, 18
        %v302 = vpop.permute.xlu0 %301
        %303 = vrot.lane.b32.xlu0 %v230, 18
        %v304 = vpop.permute.xlu0 %303
        %305 = vrot.lane.b32.xlu0 %v233, 18
        %v306 = vpop.permute.xlu0 %305
        %vm307 = vcmp.lt.s32.totalorder %v259, 18
        %v308 = vsel %vm307, %v292, %v300
        %v309 = vsel %vm307, %v294, %v302
        %v310 = vsel %vm307, %v296, %v304
        %v311 = vsel %vm307, %v298, %v306
        %v312 = vsel %vm307, %v284, %v292
        %v313 = vsel %vm307, %v286, %v294
        %v314 = vsel %vm307, %v288, %v296
        %v315 = vsel %vm307, %v290, %v298
        %v316 = vsel %vm307, %v300, %v284
        %v317 = vsel %vm307, %v302, %v286
        %v318 = vsel %vm307, %v304, %v288
        %v319 = vsel %vm307, %v306, %v290
        %s320 = scalar_lea.vmem %s2, 16
        %v321 = vld [vmem:[%s320] sm:$0xf]
        %v322 = vld [vmem:[%s320 + $0x4] sm:$0xf]
        %v323 = vld [vmem:[%s320 + $0x8] sm:$0xf]
        %v324 = vld [vmem:[%s320 + $0xc] sm:$0xf]
        %v325 = vpack.c.bf16 %v317, %v316
        %v326 = vpack.c.bf16 %v313, %v312
        %v327 = vpack.c.bf16 %v309, %v308
        %v328 = vpack.c.bf16 %v319, %v318
        %v329 = vpack.c.bf16 %v315, %v314
        %v330 = vpack.c.bf16 %v311, %v310
        %v335 = vunpack.c.l.b16 %v321
        %v336 = vunpack.c.l.b16 %v322
        %v337 = vunpack.c.l.b16 %v323
        %v338 = vunpack.c.l.b16 %v324
        %v339 = vpack.c.b16 %v336, %v335
        %v340 = vpack.c.b16 %v338, %v337
        %vm341 = vcmask 261120
        %v343 = vsel %vm341, %v339, 0
        %v346 = vsel %vm341, %v340, 0
        %348 = vmatprep.subr.bf16.mxu0 0
        %349 = vmatpush1.bf16.msra.mxu0 0
        %350 = vmatprep.subr.bf16.mxu0 0
        %351 = vmatpush1.bf16.msra.mxu0 0
        %352 = vmatprep.subr.bf16.mxu0 0
        %353 = vmatpush1.bf16.msra.mxu0 0
        %354 = vmatprep.subr.bf16.mxu0 0
        %355 = vmatpush1.bf16.msra.mxu0 0
        %356 = vmatprep.subr.bf16.mxu0 0
        %357 = vmatpush1.bf16.msra.mxu0 0
        %358 = vmatprep.subr.bf16.mxu0 0
        %359 = vmatpush1.bf16.msra.mxu0 0
        %360 = vmatprep.subr.bf16.mxu0 %v329
        %361 = vmatpush1.bf16.msra.mxu0 %v328
        %362 = vmatprep.subr.bf16.mxu0 %v326
        %363 = vmatpush1.bf16.msra.mxu0 %v325
        %364 = vmatprep.subr.bf16.mxu0 0
        %365 = vmatpush2.bf16.msra.mxu0 0
        %366 = vmatprep.subr.bf16.mxu0 0
        %367 = vmatpush2.bf16.msra.mxu0 0
        %368 = vmatprep.subr.bf16.mxu0 0
        %369 = vmatpush2.bf16.msra.mxu0 0
        %370 = vmatprep.subr.bf16.mxu0 0
        %371 = vmatpush2.bf16.msra.mxu0 0
        %372 = vmatprep.subr.bf16.mxu0 0
        %373 = vmatpush2.bf16.msra.mxu0 0
        %374 = vmatprep.subr.bf16.mxu0 0
        %375 = vmatpush2.bf16.msra.mxu0 0
        %376 = vmatprep.subr.bf16.mxu0 0
        %377 = vmatpush2.bf16.msra.mxu0 0
        %378 = vmatprep.subr.bf16.mxu0 0
        %379 = vmatpush2.bf16.msra.mxu0 0
        %380 = vmatprep.mubr.bf16.mxu0 0
        %381 = vmatmul.mubr.bf16.gmra.mxu0 %v343
        %v382 = vpop.f32.mrf.mxu0
        %v383 = vadd.f32 0.0, %v382
        %v384 = vpop.f32.mrf.mxu0
        %v385 = vadd.f32 0.0, %v384
        %v386 = vpop.f32.mrf.mxu0
        %v387 = vadd.f32 0.0, %v386
        %v388 = vpop.f32.mrf.mxu0
        %v389 = vadd.f32 0.0, %v388
        %390 = vmatprep.mubr.bf16.mxu0 0
        %391 = vmatmul.mubr.bf16.gmra.mxu0 %v346
        %v392 = vpop.f32.mrf.mxu0
        %v393 = vadd.f32 0.0, %v392
        %v394 = vpop.f32.mrf.mxu0
        %v395 = vadd.f32 0.0, %v394
        %v396 = vpop.f32.mrf.mxu0
        %v397 = vadd.f32 0.0, %v396
        %v398 = vpop.f32.mrf.mxu0
        %v399 = vadd.f32 0.0, %v398
        %400 = vdwg.mxu0
        %401 = vmatprep.subr.bf16.mxu0 0
        %402 = vmatpush1.bf16.msra.mxu0 0
        %403 = vmatprep.subr.bf16.mxu0 0
        %404 = vmatpush1.bf16.msra.mxu0 0
        %405 = vmatprep.subr.bf16.mxu0 0
        %406 = vmatpush1.bf16.msra.mxu0 0
        %407 = vmatprep.subr.bf16.mxu0 0
        %408 = vmatpush1.bf16.msra.mxu0 0
        %409 = vmatprep.subr.bf16.mxu0 0
        %410 = vmatpush1.bf16.msra.mxu0 0
        %411 = vmatprep.subr.bf16.mxu0 0
        %412 = vmatpush1.bf16.msra.mxu0 0
        %413 = vmatprep.subr.bf16.mxu0 0
        %414 = vmatpush1.bf16.msra.mxu0 %v330
        %415 = vmatprep.subr.bf16.mxu0 0
        %416 = vmatpush1.bf16.msra.mxu0 %v327
        %417 = vmatprep.subr.bf16.mxu0 0
        %418 = vmatpush2.bf16.msra.mxu0 0
        %419 = vmatprep.subr.bf16.mxu0 0
        %420 = vmatpush2.bf16.msra.mxu0 0
        %421 = vmatprep.subr.bf16.mxu0 0
        %422 = vmatpush2.bf16.msra.mxu0 0
        %423 = vmatprep.subr.bf16.mxu0 0
        %424 = vmatpush2.bf16.msra.mxu0 0
        %425 = vmatprep.subr.bf16.mxu0 0
        %426 = vmatpush2.bf16.msra.mxu0 0
        %427 = vmatprep.subr.bf16.mxu0 0
        %428 = vmatpush2.bf16.msra.mxu0 0
        %429 = vmatprep.subr.bf16.mxu0 0
        %430 = vmatpush2.bf16.msra.mxu0 0
        %431 = vmatprep.subr.bf16.mxu0 0
        %432 = vmatpush2.bf16.msra.mxu0 0
        %433 = vmatprep.mubr.bf16.mxu0 0
        %434 = vmatmul.mubr.bf16.gmra.mxu0 %v343
        %v435 = vpop.f32.mrf.mxu0
        %v436 = vadd.f32 0.0, %v435
        %v437 = vpop.f32.mrf.mxu0
        %v438 = vpop.f32.mrf.mxu0
        %v439 = vadd.f32 0.0, %v438
        %v440 = vpop.f32.mrf.mxu0
        %441 = vmatprep.mubr.bf16.mxu0 0
        %442 = vmatmul.mubr.bf16.gmra.mxu0 %v346
        %v443 = vpop.f32.mrf.mxu0
        %v444 = vadd.f32 0.0, %v443
        %v445 = vpop.f32.mrf.mxu0
        %v446 = vpop.f32.mrf.mxu0
        %v447 = vadd.f32 0.0, %v446
        %v448 = vpop.f32.mrf.mxu0
        %449 = vdwg.mxu0
        %v454 = vunpack.c.l.b16 %v273
        %v455 = vunpack.c.l.b16 %v274
        %v456 = vunpack.c.l.b16 %v275
        %v457 = vunpack.c.l.b16 %v276
        %v458 = vpack.c.b16 %v455, %v454
        %v459 = vpack.c.b16 %v457, %v456
        %v461 = vsel %vm341, %v458, 0
        %v464 = vsel %vm341, %v459, 0
        %466 = vmatprep.subr.bf16.mxu0 0
        %467 = vmatpush1.bf16.msra.mxu0 0
        %468 = vmatprep.subr.bf16.mxu0 0
        %469 = vmatpush1.bf16.msra.mxu0 0
        %470 = vmatprep.subr.bf16.mxu0 0
        %471 = vmatpush1.bf16.msra.mxu0 0
        %472 = vmatprep.subr.bf16.mxu0 0
        %473 = vmatpush1.bf16.msra.mxu0 0
        %474 = vmatprep.subr.bf16.mxu0 0
        %475 = vmatpush1.bf16.msra.mxu0 0
        %476 = vmatprep.subr.bf16.mxu0 0
        %477 = vmatpush1.bf16.msra.mxu0 0
        %478 = vmatprep.subr.bf16.mxu0 %v281
        %479 = vmatpush1.bf16.msra.mxu0 %v280
        %480 = vmatprep.subr.bf16.mxu0 %v278
        %481 = vmatpush1.bf16.msra.mxu0 %v277
        %482 = vmatprep.subr.bf16.mxu0 0
        %483 = vmatpush2.bf16.msra.mxu0 0
        %484 = vmatprep.subr.bf16.mxu0 0
        %485 = vmatpush2.bf16.msra.mxu0 0
        %486 = vmatprep.subr.bf16.mxu0 0
        %487 = vmatpush2.bf16.msra.mxu0 0
        %488 = vmatprep.subr.bf16.mxu0 0
        %489 = vmatpush2.bf16.msra.mxu0 0
        %490 = vmatprep.subr.bf16.mxu0 0
        %491 = vmatpush2.bf16.msra.mxu0 0
        %492 = vmatprep.subr.bf16.mxu0 0
        %493 = vmatpush2.bf16.msra.mxu0 0
        %494 = vmatprep.subr.bf16.mxu0 0
        %495 = vmatpush2.bf16.msra.mxu0 0
        %496 = vmatprep.subr.bf16.mxu0 0
        %497 = vmatpush2.bf16.msra.mxu0 0
        %498 = vmatprep.mubr.bf16.mxu0 0
        %499 = vmatmul.mubr.bf16.gmra.mxu0 %v461
        %v500 = vpop.f32.mrf.mxu0
        %v501 = vadd.f32 %v383, %v500
        %v502 = vpop.f32.mrf.mxu0
        %v503 = vadd.f32 %v385, %v502
        %v504 = vpop.f32.mrf.mxu0
        %v505 = vadd.f32 %v387, %v504
        %v506 = vpop.f32.mrf.mxu0
        %v507 = vadd.f32 %v389, %v506
        %508 = vmatprep.mubr.bf16.mxu0 0
        %509 = vmatmul.mubr.bf16.gmra.mxu0 %v464
        %v510 = vpop.f32.mrf.mxu0
        %v511 = vadd.f32 %v393, %v510
        %v512 = vpop.f32.mrf.mxu0
        %v513 = vadd.f32 %v395, %v512
        %v514 = vpop.f32.mrf.mxu0
        %v515 = vadd.f32 %v397, %v514
        %v516 = vpop.f32.mrf.mxu0
        %v517 = vadd.f32 %v399, %v516
        %518 = vdwg.mxu0
        %519 = vmatprep.subr.bf16.mxu0 0
        %520 = vmatpush1.bf16.msra.mxu0 0
        %521 = vmatprep.subr.bf16.mxu0 0
        %522 = vmatpush1.bf16.msra.mxu0 0
        %523 = vmatprep.subr.bf16.mxu0 0
        %524 = vmatpush1.bf16.msra.mxu0 0
        %525 = vmatprep.subr.bf16.mxu0 0
        %526 = vmatpush1.bf16.msra.mxu0 0
        %527 = vmatprep.subr.bf16.mxu0 0
        %528 = vmatpush1.bf16.msra.mxu0 0
        %529 = vmatprep.subr.bf16.mxu0 0
        %530 = vmatpush1.bf16.msra.mxu0 0
        %531 = vmatprep.subr.bf16.mxu0 0
        %532 = vmatpush1.bf16.msra.mxu0 %v282
        %533 = vmatprep.subr.bf16.mxu0 0
        %534 = vmatpush1.bf16.msra.mxu0 %v279
        %535 = vmatprep.subr.bf16.mxu0 0
        %536 = vmatpush2.bf16.msra.mxu0 0
        %537 = vmatprep.subr.bf16.mxu0 0
        %538 = vmatpush2.bf16.msra.mxu0 0
        %539 = vmatprep.subr.bf16.mxu0 0
        %540 = vmatpush2.bf16.msra.mxu0 0
        %541 = vmatprep.subr.bf16.mxu0 0
        %542 = vmatpush2.bf16.msra.mxu0 0
        %543 = vmatprep.subr.bf16.mxu0 0
        %544 = vmatpush2.bf16.msra.mxu0 0
        %545 = vmatprep.subr.bf16.mxu0 0
        %546 = vmatpush2.bf16.msra.mxu0 0
        %547 = vmatprep.subr.bf16.mxu0 0
        %548 = vmatpush2.bf16.msra.mxu0 0
        %549 = vmatprep.subr.bf16.mxu0 0
        %550 = vmatpush2.bf16.msra.mxu0 0
        %551 = vmatprep.mubr.bf16.mxu0 0
        %552 = vmatmul.mubr.bf16.gmra.mxu0 %v461
        %v553 = vpop.f32.mrf.mxu0
        %v554 = vadd.f32 %v436, %v553
        %v555 = vpop.f32.mrf.mxu0
        %v556 = vpop.f32.mrf.mxu0
        %v557 = vadd.f32 %v439, %v556
        %v558 = vpop.f32.mrf.mxu0
        %559 = vmatprep.mubr.bf16.mxu0 0
        %560 = vmatmul.mubr.bf16.gmra.mxu0 %v464
        %v561 = vpop.f32.mrf.mxu0
        %v562 = vadd.f32 %v444, %v561
        %v563 = vpop.f32.mrf.mxu0
        %v564 = vpop.f32.mrf.mxu0
        %v565 = vadd.f32 %v447, %v564
        %v566 = vpop.f32.mrf.mxu0
        %567 = vdwg.mxu0
        %568 = vrot.lane.b32.xlu0 %v222, 17
        %v569 = vpop.permute.xlu0 %568
        %570 = vrot.lane.b32.xlu0 %v225, 17
        %v571 = vpop.permute.xlu0 %570
        %572 = vrot.lane.b32.xlu0 %v228, 17
        %v573 = vpop.permute.xlu0 %572
        %574 = vrot.lane.b32.xlu0 %v231, 17
        %v575 = vpop.permute.xlu0 %574
        %576 = vrot.lane.b32.xlu0 %v223, 17
        %v577 = vpop.permute.xlu0 %576
        %578 = vrot.lane.b32.xlu0 %v226, 17
        %v579 = vpop.permute.xlu0 %578
        %580 = vrot.lane.b32.xlu0 %v229, 17
        %v581 = vpop.permute.xlu0 %580
        %582 = vrot.lane.b32.xlu0 %v232, 17
        %v583 = vpop.permute.xlu0 %582
        %584 = vrot.lane.b32.xlu0 %v224, 17
        %v585 = vpop.permute.xlu0 %584
        %586 = vrot.lane.b32.xlu0 %v227, 17
        %v587 = vpop.permute.xlu0 %586
        %588 = vrot.lane.b32.xlu0 %v230, 17
        %v589 = vpop.permute.xlu0 %588
        %590 = vrot.lane.b32.xlu0 %v233, 17
        %v591 = vpop.permute.xlu0 %590
        %vm592 = vcmp.lt.s32.totalorder %v259, 17
        %v593 = vsel %vm592, %v577, %v585
        %v594 = vsel %vm592, %v579, %v587
        %v595 = vsel %vm592, %v581, %v589
        %v596 = vsel %vm592, %v583, %v591
        %v597 = vsel %vm592, %v569, %v577
        %v598 = vsel %vm592, %v571, %v579
        %v599 = vsel %vm592, %v573, %v581
        %v600 = vsel %vm592, %v575, %v583
        %v601 = vsel %vm592, %v585, %v569
        %v602 = vsel %vm592, %v587, %v571
        %v603 = vsel %vm592, %v589, %v573
        %v604 = vsel %vm592, %v591, %v575
        %s605 = scalar_lea.vmem %s2, 32
        %v606 = vld [vmem:[%s605] sm:$0xf]
        %v607 = vld [vmem:[%s605 + $0x4] sm:$0xf]
        %v608 = vld [vmem:[%s605 + $0x8] sm:$0xf]
        %v609 = vld [vmem:[%s605 + $0xc] sm:$0xf]
        %v610 = vpack.c.bf16 %v602, %v601
        %v611 = vpack.c.bf16 %v598, %v597
        %v612 = vpack.c.bf16 %v594, %v593
        %v613 = vpack.c.bf16 %v604, %v603
        %v614 = vpack.c.bf16 %v600, %v599
        %v615 = vpack.c.bf16 %v596, %v595
        %v620 = vunpack.c.l.b16 %v606
        %v621 = vunpack.c.l.b16 %v607
        %v622 = vunpack.c.l.b16 %v608
        %v623 = vunpack.c.l.b16 %v609
        %v624 = vpack.c.b16 %v621, %v620
        %v625 = vpack.c.b16 %v623, %v622
        %v627 = vsel %vm341, %v624, 0
        %v630 = vsel %vm341, %v625, 0
        %632 = vmatprep.subr.bf16.mxu0 0
        %633 = vmatpush1.bf16.msra.mxu0 0
        %634 = vmatprep.subr.bf16.mxu0 0
        %635 = vmatpush1.bf16.msra.mxu0 0
        %636 = vmatprep.subr.bf16.mxu0 0
        %637 = vmatpush1.bf16.msra.mxu0 0
        %638 = vmatprep.subr.bf16.mxu0 0
        %639 = vmatpush1.bf16.msra.mxu0 0
        %640 = vmatprep.subr.bf16.mxu0 0
        %641 = vmatpush1.bf16.msra.mxu0 0
        %642 = vmatprep.subr.bf16.mxu0 0
        %643 = vmatpush1.bf16.msra.mxu0 0
        %644 = vmatprep.subr.bf16.mxu0 %v614
        %645 = vmatpush1.bf16.msra.mxu0 %v613
        %646 = vmatprep.subr.bf16.mxu0 %v611
        %647 = vmatpush1.bf16.msra.mxu0 %v610
        %648 = vmatprep.subr.bf16.mxu0 0
        %649 = vmatpush2.bf16.msra.mxu0 0
        %650 = vmatprep.subr.bf16.mxu0 0
        %651 = vmatpush2.bf16.msra.mxu0 0
        %652 = vmatprep.subr.bf16.mxu0 0
        %653 = vmatpush2.bf16.msra.mxu0 0
        %654 = vmatprep.subr.bf16.mxu0 0
        %655 = vmatpush2.bf16.msra.mxu0 0
        %656 = vmatprep.subr.bf16.mxu0 0
        %657 = vmatpush2.bf16.msra.mxu0 0
        %658 = vmatprep.subr.bf16.mxu0 0
        %659 = vmatpush2.bf16.msra.mxu0 0
        %660 = vmatprep.subr.bf16.mxu0 0
        %661 = vmatpush2.bf16.msra.mxu0 0
        %662 = vmatprep.subr.bf16.mxu0 0
        %663 = vmatpush2.bf16.msra.mxu0 0
        %664 = vmatprep.mubr.bf16.mxu0 0
        %665 = vmatmul.mubr.bf16.gmra.mxu0 %v627
        %v666 = vpop.f32.mrf.mxu0
        %v667 = vadd.f32 0.0, %v666
        %v668 = vpop.f32.mrf.mxu0
        %v669 = vadd.f32 0.0, %v668
        %v670 = vpop.f32.mrf.mxu0
        %v671 = vadd.f32 0.0, %v670
        %v672 = vpop.f32.mrf.mxu0
        %v673 = vadd.f32 0.0, %v672
        %674 = vmatprep.mubr.bf16.mxu0 0
        %675 = vmatmul.mubr.bf16.gmra.mxu0 %v630
        %v676 = vpop.f32.mrf.mxu0
        %v677 = vadd.f32 0.0, %v676
        %v678 = vpop.f32.mrf.mxu0
        %v679 = vadd.f32 0.0, %v678
        %v680 = vpop.f32.mrf.mxu0
        %v681 = vadd.f32 0.0, %v680
        %v682 = vpop.f32.mrf.mxu0
        %v683 = vadd.f32 0.0, %v682
        %684 = vdwg.mxu0
        %685 = vmatprep.subr.bf16.mxu0 0
        %686 = vmatpush1.bf16.msra.mxu0 0
        %687 = vmatprep.subr.bf16.mxu0 0
        %688 = vmatpush1.bf16.msra.mxu0 0
        %689 = vmatprep.subr.bf16.mxu0 0
        %690 = vmatpush1.bf16.msra.mxu0 0
        %691 = vmatprep.subr.bf16.mxu0 0
        %692 = vmatpush1.bf16.msra.mxu0 0
        %693 = vmatprep.subr.bf16.mxu0 0
        %694 = vmatpush1.bf16.msra.mxu0 0
        %695 = vmatprep.subr.bf16.mxu0 0
        %696 = vmatpush1.bf16.msra.mxu0 0
        %697 = vmatprep.subr.bf16.mxu0 0
        %698 = vmatpush1.bf16.msra.mxu0 %v615
        %699 = vmatprep.subr.bf16.mxu0 0
        %700 = vmatpush1.bf16.msra.mxu0 %v612
        %701 = vmatprep.subr.bf16.mxu0 0
        %702 = vmatpush2.bf16.msra.mxu0 0
        %703 = vmatprep.subr.bf16.mxu0 0
        %704 = vmatpush2.bf16.msra.mxu0 0
        %705 = vmatprep.subr.bf16.mxu0 0
        %706 = vmatpush2.bf16.msra.mxu0 0
        %707 = vmatprep.subr.bf16.mxu0 0
        %708 = vmatpush2.bf16.msra.mxu0 0
        %709 = vmatprep.subr.bf16.mxu0 0
        %710 = vmatpush2.bf16.msra.mxu0 0
        %711 = vmatprep.subr.bf16.mxu0 0
        %712 = vmatpush2.bf16.msra.mxu0 0
        %713 = vmatprep.subr.bf16.mxu0 0
        %714 = vmatpush2.bf16.msra.mxu0 0
        %715 = vmatprep.subr.bf16.mxu0 0
        %716 = vmatpush2.bf16.msra.mxu0 0
        %717 = vmatprep.mubr.bf16.mxu0 0
        %718 = vmatmul.mubr.bf16.gmra.mxu0 %v627
        %v719 = vpop.f32.mrf.mxu0
        %v720 = vadd.f32 0.0, %v719
        %v721 = vpop.f32.mrf.mxu0
        %v722 = vpop.f32.mrf.mxu0
        %v723 = vadd.f32 0.0, %v722
        %v724 = vpop.f32.mrf.mxu0
        %725 = vmatprep.mubr.bf16.mxu0 0
        %726 = vmatmul.mubr.bf16.gmra.mxu0 %v630
        %v727 = vpop.f32.mrf.mxu0
        %v728 = vadd.f32 0.0, %v727
        %v729 = vpop.f32.mrf.mxu0
        %v730 = vpop.f32.mrf.mxu0
        %v731 = vadd.f32 0.0, %v730
        %v732 = vpop.f32.mrf.mxu0
        %733 = vdwg.mxu0
        %v734 = vadd.f32 %v501, %v667
        %v735 = vadd.f32 %v503, %v669
        %v736 = vadd.f32 %v554, %v720
        %v737 = vadd.f32 %v505, %v671
        %v738 = vadd.f32 %v507, %v673
        %v739 = vadd.f32 %v557, %v723
        %v740 = vadd.f32 %v511, %v677
        %v741 = vadd.f32 %v513, %v679
        %v742 = vadd.f32 %v562, %v728
        %v743 = vadd.f32 %v515, %v681
        %v744 = vadd.f32 %v517, %v683
        %v745 = vadd.f32 %v565, %v731
        %746 = vrot.lane.b32.xlu0 %v222, 1
        %v747 = vpop.permute.xlu0 %746
        %748 = vrot.lane.b32.xlu0 %v225, 1
        %v749 = vpop.permute.xlu0 %748
        %750 = vrot.lane.b32.xlu0 %v228, 1
        %v751 = vpop.permute.xlu0 %750
        %752 = vrot.lane.b32.xlu0 %v231, 1
        %v753 = vpop.permute.xlu0 %752
        %754 = vrot.lane.b32.xlu0 %v223, 1
        %v755 = vpop.permute.xlu0 %754
        %756 = vrot.lane.b32.xlu0 %v226, 1
        %v757 = vpop.permute.xlu0 %756
        %758 = vrot.lane.b32.xlu0 %v229, 1
        %v759 = vpop.permute.xlu0 %758
        %760 = vrot.lane.b32.xlu0 %v232, 1
        %v761 = vpop.permute.xlu0 %760
        %762 = vrot.lane.b32.xlu0 %v224, 1
        %v763 = vpop.permute.xlu0 %762
        %764 = vrot.lane.b32.xlu0 %v227, 1
        %v765 = vpop.permute.xlu0 %764
        %766 = vrot.lane.b32.xlu0 %v230, 1
        %v767 = vpop.permute.xlu0 %766
        %768 = vrot.lane.b32.xlu0 %v233, 1
        %v769 = vpop.permute.xlu0 %768
        %vm770 = vcmp.lt.s32.totalorder %v259, 1
        %v771 = vsel %vm770, %v755, %v763
        %v772 = vsel %vm770, %v757, %v765
        %v773 = vsel %vm770, %v759, %v767
        %v774 = vsel %vm770, %v761, %v769
        %v775 = vsel %vm770, %v747, %v755
        %v776 = vsel %vm770, %v749, %v757
        %v777 = vsel %vm770, %v751, %v759
        %v778 = vsel %vm770, %v753, %v761
        %v779 = vsel %vm770, %v763, %v747
        %v780 = vsel %vm770, %v765, %v749
        %v781 = vsel %vm770, %v767, %v751
        %v782 = vsel %vm770, %v769, %v753
        %s783 = scalar_lea.vmem %s2, 48
        %v784 = vld [vmem:[%s783] sm:$0xf]
        %v785 = vld [vmem:[%s783 + $0x4] sm:$0xf]
        %v786 = vld [vmem:[%s783 + $0x8] sm:$0xf]
        %v787 = vld [vmem:[%s783 + $0xc] sm:$0xf]
        %v788 = vpack.c.bf16 %v780, %v779
        %v789 = vpack.c.bf16 %v776, %v775
        %v790 = vpack.c.bf16 %v772, %v771
        %v791 = vpack.c.bf16 %v782, %v781
        %v792 = vpack.c.bf16 %v778, %v777
        %v793 = vpack.c.bf16 %v774, %v773
        %v798 = vunpack.c.l.b16 %v784
        %v799 = vunpack.c.l.b16 %v785
        %v800 = vunpack.c.l.b16 %v786
        %v801 = vunpack.c.l.b16 %v787
        %v802 = vpack.c.b16 %v799, %v798
        %v803 = vpack.c.b16 %v801, %v800
        %v805 = vsel %vm341, %v802, 0
        %v808 = vsel %vm341, %v803, 0
        %810 = vmatprep.subr.bf16.mxu0 0
        %811 = vmatpush1.bf16.msra.mxu0 0
        %812 = vmatprep.subr.bf16.mxu0 0
        %813 = vmatpush1.bf16.msra.mxu0 0
        %814 = vmatprep.subr.bf16.mxu0 0
        %815 = vmatpush1.bf16.msra.mxu0 0
        %816 = vmatprep.subr.bf16.mxu0 0
        %817 = vmatpush1.bf16.msra.mxu0 0
        %818 = vmatprep.subr.bf16.mxu0 0
        %819 = vmatpush1.bf16.msra.mxu0 0
        %820 = vmatprep.subr.bf16.mxu0 0
        %821 = vmatpush1.bf16.msra.mxu0 0
        %822 = vmatprep.subr.bf16.mxu0 %v792
        %823 = vmatpush1.bf16.msra.mxu0 %v791
        %824 = vmatprep.subr.bf16.mxu0 %v789
        %825 = vmatpush1.bf16.msra.mxu0 %v788
        %826 = vmatprep.subr.bf16.mxu0 0
        %827 = vmatpush2.bf16.msra.mxu0 0
        %828 = vmatprep.subr.bf16.mxu0 0
        %829 = vmatpush2.bf16.msra.mxu0 0
        %830 = vmatprep.subr.bf16.mxu0 0
        %831 = vmatpush2.bf16.msra.mxu0 0
        %832 = vmatprep.subr.bf16.mxu0 0
        %833 = vmatpush2.bf16.msra.mxu0 0
        %834 = vmatprep.subr.bf16.mxu0 0
        %835 = vmatpush2.bf16.msra.mxu0 0
        %836 = vmatprep.subr.bf16.mxu0 0
        %837 = vmatpush2.bf16.msra.mxu0 0
        %838 = vmatprep.subr.bf16.mxu0 0
        %839 = vmatpush2.bf16.msra.mxu0 0
        %840 = vmatprep.subr.bf16.mxu0 0
        %841 = vmatpush2.bf16.msra.mxu0 0
        %842 = vmatprep.mubr.bf16.mxu0 0
        %843 = vmatmul.mubr.bf16.gmra.mxu0 %v805
        %v844 = vpop.f32.mrf.mxu0
        %v845 = vadd.f32 0.0, %v844
        %v846 = vpop.f32.mrf.mxu0
        %v847 = vadd.f32 0.0, %v846
        %v848 = vpop.f32.mrf.mxu0
        %v849 = vadd.f32 0.0, %v848
        %v850 = vpop.f32.mrf.mxu0
        %v851 = vadd.f32 0.0, %v850
        %852 = vmatprep.mubr.bf16.mxu0 0
        %853 = vmatmul.mubr.bf16.gmra.mxu0 %v808
        %v854 = vpop.f32.mrf.mxu0
        %v855 = vadd.f32 0.0, %v854
        %v856 = vpop.f32.mrf.mxu0
        %v857 = vadd.f32 0.0, %v856
        %v858 = vpop.f32.mrf.mxu0
        %v859 = vadd.f32 0.0, %v858
        %v860 = vpop.f32.mrf.mxu0
        %v861 = vadd.f32 0.0, %v860
        %862 = vdwg.mxu0
        %863 = vmatprep.subr.bf16.mxu0 0
        %864 = vmatpush1.bf16.msra.mxu0 0
        %865 = vmatprep.subr.bf16.mxu0 0
        %866 = vmatpush1.bf16.msra.mxu0 0
        %867 = vmatprep.subr.bf16.mxu0 0
        %868 = vmatpush1.bf16.msra.mxu0 0
        %869 = vmatprep.subr.bf16.mxu0 0
        %870 = vmatpush1.bf16.msra.mxu0 0
        %871 = vmatprep.subr.bf16.mxu0 0
        %872 = vmatpush1.bf16.msra.mxu0 0
        %873 = vmatprep.subr.bf16.mxu0 0
        %874 = vmatpush1.bf16.msra.mxu0 0
        %875 = vmatprep.subr.bf16.mxu0 0
        %876 = vmatpush1.bf16.msra.mxu0 %v793
        %877 = vmatprep.subr.bf16.mxu0 0
        %878 = vmatpush1.bf16.msra.mxu0 %v790
        %879 = vmatprep.subr.bf16.mxu0 0
        %880 = vmatpush2.bf16.msra.mxu0 0
        %881 = vmatprep.subr.bf16.mxu0 0
        %882 = vmatpush2.bf16.msra.mxu0 0
        %883 = vmatprep.subr.bf16.mxu0 0
        %884 = vmatpush2.bf16.msra.mxu0 0
        %885 = vmatprep.subr.bf16.mxu0 0
        %886 = vmatpush2.bf16.msra.mxu0 0
        %887 = vmatprep.subr.bf16.mxu0 0
        %888 = vmatpush2.bf16.msra.mxu0 0
        %889 = vmatprep.subr.bf16.mxu0 0
        %890 = vmatpush2.bf16.msra.mxu0 0
        %891 = vmatprep.subr.bf16.mxu0 0
        %892 = vmatpush2.bf16.msra.mxu0 0
        %893 = vmatprep.subr.bf16.mxu0 0
        %894 = vmatpush2.bf16.msra.mxu0 0
        %895 = vmatprep.mubr.bf16.mxu0 0
        %896 = vmatmul.mubr.bf16.gmra.mxu0 %v805
        %v897 = vpop.f32.mrf.mxu0
        %v898 = vadd.f32 0.0, %v897
        %v899 = vpop.f32.mrf.mxu0
        %v900 = vpop.f32.mrf.mxu0
        %v901 = vadd.f32 0.0, %v900
        %v902 = vpop.f32.mrf.mxu0
        %903 = vmatprep.mubr.bf16.mxu0 0
        %904 = vmatmul.mubr.bf16.gmra.mxu0 %v808
        %v905 = vpop.f32.mrf.mxu0
        %v906 = vadd.f32 0.0, %v905
        %v907 = vpop.f32.mrf.mxu0
        %v908 = vpop.f32.mrf.mxu0
        %v909 = vadd.f32 0.0, %v908
        %v910 = vpop.f32.mrf.mxu0
        %911 = vdwg.mxu0
        %v912 = vadd.f32 %v734, %v845
        %v913 = vadd.f32 %v735, %v847
        %v914 = vadd.f32 %v736, %v898
        %v915 = vadd.f32 %v737, %v849
        %v916 = vadd.f32 %v738, %v851
        %v917 = vadd.f32 %v739, %v901
        %v918 = vadd.f32 %v740, %v855
        %v919 = vadd.f32 %v741, %v857
        %v920 = vadd.f32 %v742, %v906
        %v921 = vadd.f32 %v743, %v859
        %v922 = vadd.f32 %v744, %v861
        %v923 = vadd.f32 %v745, %v909
        %s924 = scalar_lea.vmem %s2, 64
        %v925 = vld [vmem:[%s924] sm:$0xf]
        %v926 = vld [vmem:[%s924 + $0x4] sm:$0xf]
        %v927 = vld [vmem:[%s924 + $0x8] sm:$0xf]
        %v928 = vld [vmem:[%s924 + $0xc] sm:$0xf]
        %v929 = vpack.c.bf16 %v225, %v222
        %v930 = vpack.c.bf16 %v226, %v223
        %v931 = vpack.c.bf16 %v227, %v224
        %v932 = vpack.c.bf16 %v231, %v228
        %v933 = vpack.c.bf16 %v232, %v229
        %v934 = vpack.c.bf16 %v233, %v230
        %v939 = vunpack.c.l.b16 %v925
        %v940 = vunpack.c.l.b16 %v926
        %v941 = vunpack.c.l.b16 %v927
        %v942 = vunpack.c.l.b16 %v928
        %v943 = vpack.c.b16 %v940, %v939
        %v944 = vpack.c.b16 %v942, %v941
        %v946 = vsel %vm341, %v943, 0
        %v949 = vsel %vm341, %v944, 0
        %951 = vmatprep.subr.bf16.mxu0 0
        %952 = vmatpush1.bf16.msra.mxu0 0
        %953 = vmatprep.subr.bf16.mxu0 0
        %954 = vmatpush1.bf16.msra.mxu0 0
        %955 = vmatprep.subr.bf16.mxu0 0
        %956 = vmatpush1.bf16.msra.mxu0 0
        %957 = vmatprep.subr.bf16.mxu0 0
        %958 = vmatpush1.bf16.msra.mxu0 0
        %959 = vmatprep.subr.bf16.mxu0 0
        %960 = vmatpush1.bf16.msra.mxu0 0
        %961 = vmatprep.subr.bf16.mxu0 0
        %962 = vmatpush1.bf16.msra.mxu0 0
        %963 = vmatprep.subr.bf16.mxu0 %v933
        %964 = vmatpush1.bf16.msra.mxu0 %v932
        %965 = vmatprep.subr.bf16.mxu0 %v930
        %966 = vmatpush1.bf16.msra.mxu0 %v929
        %967 = vmatprep.subr.bf16.mxu0 0
        %968 = vmatpush2.bf16.msra.mxu0 0
        %969 = vmatprep.subr.bf16.mxu0 0
        %970 = vmatpush2.bf16.msra.mxu0 0
        %971 = vmatprep.subr.bf16.mxu0 0
        %972 = vmatpush2.bf16.msra.mxu0 0
        %973 = vmatprep.subr.bf16.mxu0 0
        %974 = vmatpush2.bf16.msra.mxu0 0
        %975 = vmatprep.subr.bf16.mxu0 0
        %976 = vmatpush2.bf16.msra.mxu0 0
        %977 = vmatprep.subr.bf16.mxu0 0
        %978 = vmatpush2.bf16.msra.mxu0 0
        %979 = vmatprep.subr.bf16.mxu0 0
        %980 = vmatpush2.bf16.msra.mxu0 0
        %981 = vmatprep.subr.bf16.mxu0 0
        %982 = vmatpush2.bf16.msra.mxu0 0
        %983 = vmatprep.mubr.bf16.mxu0 0
        %984 = vmatmul.mubr.bf16.gmra.mxu0 %v946
        %v985 = vpop.f32.mrf.mxu0
        %v986 = vadd.f32 0.0, %v985
        %v987 = vpop.f32.mrf.mxu0
        %v988 = vadd.f32 0.0, %v987
        %v989 = vpop.f32.mrf.mxu0
        %v990 = vadd.f32 0.0, %v989
        %v991 = vpop.f32.mrf.mxu0
        %v992 = vadd.f32 0.0, %v991
        %993 = vmatprep.mubr.bf16.mxu0 0
        %994 = vmatmul.mubr.bf16.gmra.mxu0 %v949
        %v995 = vpop.f32.mrf.mxu0
        %v996 = vadd.f32 0.0, %v995
        %v997 = vpop.f32.mrf.mxu0
        %v998 = vadd.f32 0.0, %v997
        %v999 = vpop.f32.mrf.mxu0
        %v1000 = vadd.f32 0.0, %v999
        %v1001 = vpop.f32.mrf.mxu0
        %v1002 = vadd.f32 0.0, %v1001
        %1003 = vdwg.mxu0
        %1004 = vmatprep.subr.bf16.mxu0 0
        %1005 = vmatpush1.bf16.msra.mxu0 0
        %1006 = vmatprep.subr.bf16.mxu0 0
        %1007 = vmatpush1.bf16.msra.mxu0 0
        %1008 = vmatprep.subr.bf16.mxu0 0
        %1009 = vmatpush1.bf16.msra.mxu0 0
        %1010 = vmatprep.subr.bf16.mxu0 0
        %1011 = vmatpush1.bf16.msra.mxu0 0
        %1012 = vmatprep.subr.bf16.mxu0 0
        %1013 = vmatpush1.bf16.msra.mxu0 0
        %1014 = vmatprep.subr.bf16.mxu0 0
        %1015 = vmatpush1.bf16.msra.mxu0 0
        %1016 = vmatprep.subr.bf16.mxu0 0
        %1017 = vmatpush1.bf16.msra.mxu0 %v934
        %1018 = vmatprep.subr.bf16.mxu0 0
        %1019 = vmatpush1.bf16.msra.mxu0 %v931
        %1020 = vmatprep.subr.bf16.mxu0 0
        %1021 = vmatpush2.bf16.msra.mxu0 0
        %1022 = vmatprep.subr.bf16.mxu0 0
        %1023 = vmatpush2.bf16.msra.mxu0 0
        %1024 = vmatprep.subr.bf16.mxu0 0
        %1025 = vmatpush2.bf16.msra.mxu0 0
        %1026 = vmatprep.subr.bf16.mxu0 0
        %1027 = vmatpush2.bf16.msra.mxu0 0
        %1028 = vmatprep.subr.bf16.mxu0 0
        %1029 = vmatpush2.bf16.msra.mxu0 0
        %1030 = vmatprep.subr.bf16.mxu0 0
        %1031 = vmatpush2.bf16.msra.mxu0 0
        %1032 = vmatprep.subr.bf16.mxu0 0
        %1033 = vmatpush2.bf16.msra.mxu0 0
        %1034 = vmatprep.subr.bf16.mxu0 0
        %1035 = vmatpush2.bf16.msra.mxu0 0
        %1036 = vmatprep.mubr.bf16.mxu0 0
        %1037 = vmatmul.mubr.bf16.gmra.mxu0 %v946
        %v1038 = vpop.f32.mrf.mxu0
        %v1039 = vadd.f32 0.0, %v1038
        %v1040 = vpop.f32.mrf.mxu0
        %v1041 = vpop.f32.mrf.mxu0
        %v1042 = vadd.f32 0.0, %v1041
        %v1043 = vpop.f32.mrf.mxu0
        %1044 = vmatprep.mubr.bf16.mxu0 0
        %1045 = vmatmul.mubr.bf16.gmra.mxu0 %v949
        %v1046 = vpop.f32.mrf.mxu0
        %v1047 = vadd.f32 0.0, %v1046
        %v1048 = vpop.f32.mrf.mxu0
        %v1049 = vpop.f32.mrf.mxu0
        %v1050 = vadd.f32 0.0, %v1049
        %v1051 = vpop.f32.mrf.mxu0
        %1052 = vdwg.mxu0
        %v1053 = vadd.f32 %v912, %v986
        %v1054 = vadd.f32 %v913, %v988
        %v1055 = vadd.f32 %v914, %v1039
        %v1056 = vadd.f32 %v915, %v990
        %v1057 = vadd.f32 %v916, %v992
        %v1058 = vadd.f32 %v917, %v1042
        %v1059 = vadd.f32 %v918, %v996
        %v1060 = vadd.f32 %v919, %v998
        %v1061 = vadd.f32 %v920, %v1047
        %v1062 = vadd.f32 %v921, %v1000
        %v1063 = vadd.f32 %v922, %v1002
        %v1064 = vadd.f32 %v923, %v1050
        %1065 = vrot.lane.b32.xlu0 %v222, 127
        %v1066 = vpop.permute.xlu0 %1065
        %1067 = vrot.lane.b32.xlu0 %v225, 127
        %v1068 = vpop.permute.xlu0 %1067
        %1069 = vrot.lane.b32.xlu0 %v228, 127
        %v1070 = vpop.permute.xlu0 %1069
        %1071 = vrot.lane.b32.xlu0 %v231, 127
        %v1072 = vpop.permute.xlu0 %1071
        %1073 = vrot.lane.b32.xlu0 %v223, 127
        %v1074 = vpop.permute.xlu0 %1073
        %1075 = vrot.lane.b32.xlu0 %v226, 127
        %v1076 = vpop.permute.xlu0 %1075
        %1077 = vrot.lane.b32.xlu0 %v229, 127
        %v1078 = vpop.permute.xlu0 %1077
        %1079 = vrot.lane.b32.xlu0 %v232, 127
        %v1080 = vpop.permute.xlu0 %1079
        %1081 = vrot.lane.b32.xlu0 %v224, 127
        %v1082 = vpop.permute.xlu0 %1081
        %1083 = vrot.lane.b32.xlu0 %v227, 127
        %v1084 = vpop.permute.xlu0 %1083
        %1085 = vrot.lane.b32.xlu0 %v230, 127
        %v1086 = vpop.permute.xlu0 %1085
        %1087 = vrot.lane.b32.xlu0 %v233, 127
        %v1088 = vpop.permute.xlu0 %1087
        %vm1089 = vcmp.lt.s32.totalorder %v259, 127
        %v1090 = vsel %vm1089, %v1074, %v1082
        %v1091 = vsel %vm1089, %v1076, %v1084
        %v1092 = vsel %vm1089, %v1078, %v1086
        %v1093 = vsel %vm1089, %v1080, %v1088
        %v1094 = vsel %vm1089, %v1066, %v1074
        %v1095 = vsel %vm1089, %v1068, %v1076
        %v1096 = vsel %vm1089, %v1070, %v1078
        %v1097 = vsel %vm1089, %v1072, %v1080
        %v1098 = vsel %vm1089, %v1082, %v1066
        %v1099 = vsel %vm1089, %v1084, %v1068
        %v1100 = vsel %vm1089, %v1086, %v1070
        %v1101 = vsel %vm1089, %v1088, %v1072
        %s1102 = scalar_lea.vmem %s2, 80
        %v1103 = vld [vmem:[%s1102] sm:$0xf]
        %v1104 = vld [vmem:[%s1102 + $0x4] sm:$0xf]
        %v1105 = vld [vmem:[%s1102 + $0x8] sm:$0xf]
        %v1106 = vld [vmem:[%s1102 + $0xc] sm:$0xf]
        %v1107 = vpack.c.bf16 %v1095, %v1094
        %v1108 = vpack.c.bf16 %v1091, %v1090
        %v1109 = vpack.c.bf16 %v1099, %v1098
        %v1110 = vpack.c.bf16 %v1097, %v1096
        %v1111 = vpack.c.bf16 %v1093, %v1092
        %v1112 = vpack.c.bf16 %v1101, %v1100
        %v1117 = vunpack.c.l.b16 %v1103
        %v1118 = vunpack.c.l.b16 %v1104
        %v1119 = vunpack.c.l.b16 %v1105
        %v1120 = vunpack.c.l.b16 %v1106
        %v1121 = vpack.c.b16 %v1118, %v1117
        %v1122 = vpack.c.b16 %v1120, %v1119
        %v1124 = vsel %vm341, %v1121, 0
        %v1127 = vsel %vm341, %v1122, 0
        %1129 = vmatprep.subr.bf16.mxu0 0
        %1130 = vmatpush1.bf16.msra.mxu0 0
        %1131 = vmatprep.subr.bf16.mxu0 0
        %1132 = vmatpush1.bf16.msra.mxu0 0
        %1133 = vmatprep.subr.bf16.mxu0 0
        %1134 = vmatpush1.bf16.msra.mxu0 0
        %1135 = vmatprep.subr.bf16.mxu0 0
        %1136 = vmatpush1.bf16.msra.mxu0 0
        %1137 = vmatprep.subr.bf16.mxu0 0
        %1138 = vmatpush1.bf16.msra.mxu0 0
        %1139 = vmatprep.subr.bf16.mxu0 0
        %1140 = vmatpush1.bf16.msra.mxu0 0
        %1141 = vmatprep.subr.bf16.mxu0 %v1111
        %1142 = vmatpush1.bf16.msra.mxu0 %v1110
        %1143 = vmatprep.subr.bf16.mxu0 %v1108
        %1144 = vmatpush1.bf16.msra.mxu0 %v1107
        %1145 = vmatprep.subr.bf16.mxu0 0
        %1146 = vmatpush2.bf16.msra.mxu0 0
        %1147 = vmatprep.subr.bf16.mxu0 0
        %1148 = vmatpush2.bf16.msra.mxu0 0
        %1149 = vmatprep.subr.bf16.mxu0 0
        %1150 = vmatpush2.bf16.msra.mxu0 0
        %1151 = vmatprep.subr.bf16.mxu0 0
        %1152 = vmatpush2.bf16.msra.mxu0 0
        %1153 = vmatprep.subr.bf16.mxu0 0
        %1154 = vmatpush2.bf16.msra.mxu0 0
        %1155 = vmatprep.subr.bf16.mxu0 0
        %1156 = vmatpush2.bf16.msra.mxu0 0
        %1157 = vmatprep.subr.bf16.mxu0 0
        %1158 = vmatpush2.bf16.msra.mxu0 0
        %1159 = vmatprep.subr.bf16.mxu0 0
        %1160 = vmatpush2.bf16.msra.mxu0 0
        %1161 = vmatprep.mubr.bf16.mxu0 0
        %1162 = vmatmul.mubr.bf16.gmra.mxu0 %v1124
        %v1163 = vpop.f32.mrf.mxu0
        %v1164 = vadd.f32 0.0, %v1163
        %v1165 = vpop.f32.mrf.mxu0
        %v1166 = vadd.f32 0.0, %v1165
        %v1167 = vpop.f32.mrf.mxu0
        %v1168 = vadd.f32 0.0, %v1167
        %v1169 = vpop.f32.mrf.mxu0
        %v1170 = vadd.f32 0.0, %v1169
        %1171 = vmatprep.mubr.bf16.mxu0 0
        %1172 = vmatmul.mubr.bf16.gmra.mxu0 %v1127
        %v1173 = vpop.f32.mrf.mxu0
        %v1174 = vadd.f32 0.0, %v1173
        %v1175 = vpop.f32.mrf.mxu0
        %v1176 = vadd.f32 0.0, %v1175
        %v1177 = vpop.f32.mrf.mxu0
        %v1178 = vadd.f32 0.0, %v1177
        %v1179 = vpop.f32.mrf.mxu0
        %v1180 = vadd.f32 0.0, %v1179
        %1181 = vdwg.mxu0
        %1182 = vmatprep.subr.bf16.mxu0 0
        %1183 = vmatpush1.bf16.msra.mxu0 0
        %1184 = vmatprep.subr.bf16.mxu0 0
        %1185 = vmatpush1.bf16.msra.mxu0 0
        %1186 = vmatprep.subr.bf16.mxu0 0
        %1187 = vmatpush1.bf16.msra.mxu0 0
        %1188 = vmatprep.subr.bf16.mxu0 0
        %1189 = vmatpush1.bf16.msra.mxu0 0
        %1190 = vmatprep.subr.bf16.mxu0 0
        %1191 = vmatpush1.bf16.msra.mxu0 0
        %1192 = vmatprep.subr.bf16.mxu0 0
        %1193 = vmatpush1.bf16.msra.mxu0 0
        %1194 = vmatprep.subr.bf16.mxu0 0
        %1195 = vmatpush1.bf16.msra.mxu0 %v1112
        %1196 = vmatprep.subr.bf16.mxu0 0
        %1197 = vmatpush1.bf16.msra.mxu0 %v1109
        %1198 = vmatprep.subr.bf16.mxu0 0
        %1199 = vmatpush2.bf16.msra.mxu0 0
        %1200 = vmatprep.subr.bf16.mxu0 0
        %1201 = vmatpush2.bf16.msra.mxu0 0
        %1202 = vmatprep.subr.bf16.mxu0 0
        %1203 = vmatpush2.bf16.msra.mxu0 0
        %1204 = vmatprep.subr.bf16.mxu0 0
        %1205 = vmatpush2.bf16.msra.mxu0 0
        %1206 = vmatprep.subr.bf16.mxu0 0
        %1207 = vmatpush2.bf16.msra.mxu0 0
        %1208 = vmatprep.subr.bf16.mxu0 0
        %1209 = vmatpush2.bf16.msra.mxu0 0
        %1210 = vmatprep.subr.bf16.mxu0 0
        %1211 = vmatpush2.bf16.msra.mxu0 0
        %1212 = vmatprep.subr.bf16.mxu0 0
        %1213 = vmatpush2.bf16.msra.mxu0 0
        %1214 = vmatprep.mubr.bf16.mxu0 0
        %1215 = vmatmul.mubr.bf16.gmra.mxu0 %v1124
        %v1216 = vpop.f32.mrf.mxu0
        %v1217 = vadd.f32 0.0, %v1216
        %v1218 = vpop.f32.mrf.mxu0
        %v1219 = vpop.f32.mrf.mxu0
        %v1220 = vadd.f32 0.0, %v1219
        %v1221 = vpop.f32.mrf.mxu0
        %1222 = vmatprep.mubr.bf16.mxu0 0
        %1223 = vmatmul.mubr.bf16.gmra.mxu0 %v1127
        %v1224 = vpop.f32.mrf.mxu0
        %v1225 = vadd.f32 0.0, %v1224
        %v1226 = vpop.f32.mrf.mxu0
        %v1227 = vpop.f32.mrf.mxu0
        %v1228 = vadd.f32 0.0, %v1227
        %v1229 = vpop.f32.mrf.mxu0
        %1230 = vdwg.mxu0
        %v1231 = vadd.f32 %v1053, %v1164
        %v1232 = vadd.f32 %v1054, %v1166
        %v1233 = vadd.f32 %v1055, %v1217
        %v1234 = vadd.f32 %v1056, %v1168
        %v1235 = vadd.f32 %v1057, %v1170
        %v1236 = vadd.f32 %v1058, %v1220
        %v1237 = vadd.f32 %v1059, %v1174
        %v1238 = vadd.f32 %v1060, %v1176
        %v1239 = vadd.f32 %v1061, %v1225
        %v1240 = vadd.f32 %v1062, %v1178
        %v1241 = vadd.f32 %v1063, %v1180
        %v1242 = vadd.f32 %v1064, %v1228
        %1243 = vrot.lane.b32.xlu0 %v222, 111
        %v1244 = vpop.permute.xlu0 %1243
        %1245 = vrot.lane.b32.xlu0 %v225, 111
        %v1246 = vpop.permute.xlu0 %1245
        %1247 = vrot.lane.b32.xlu0 %v228, 111
        %v1248 = vpop.permute.xlu0 %1247
        %1249 = vrot.lane.b32.xlu0 %v231, 111
        %v1250 = vpop.permute.xlu0 %1249
        %1251 = vrot.lane.b32.xlu0 %v223, 111
        %v1252 = vpop.permute.xlu0 %1251
        %1253 = vrot.lane.b32.xlu0 %v226, 111
        %v1254 = vpop.permute.xlu0 %1253
        %1255 = vrot.lane.b32.xlu0 %v229, 111
        %v1256 = vpop.permute.xlu0 %1255
        %1257 = vrot.lane.b32.xlu0 %v232, 111
        %v1258 = vpop.permute.xlu0 %1257
        %1259 = vrot.lane.b32.xlu0 %v224, 111
        %v1260 = vpop.permute.xlu0 %1259
        %1261 = vrot.lane.b32.xlu0 %v227, 111
        %v1262 = vpop.permute.xlu0 %1261
        %1263 = vrot.lane.b32.xlu0 %v230, 111
        %v1264 = vpop.permute.xlu0 %1263
        %1265 = vrot.lane.b32.xlu0 %v233, 111
        %v1266 = vpop.permute.xlu0 %1265
        %vm1267 = vcmp.lt.s32.totalorder %v259, 111
        %v1268 = vsel %vm1267, %v1252, %v1260
        %v1269 = vsel %vm1267, %v1254, %v1262
        %v1270 = vsel %vm1267, %v1256, %v1264
        %v1271 = vsel %vm1267, %v1258, %v1266
        %v1272 = vsel %vm1267, %v1244, %v1252
        %v1273 = vsel %vm1267, %v1246, %v1254
        %v1274 = vsel %vm1267, %v1248, %v1256
        %v1275 = vsel %vm1267, %v1250, %v1258
        %v1276 = vsel %vm1267, %v1260, %v1244
        %v1277 = vsel %vm1267, %v1262, %v1246
        %v1278 = vsel %vm1267, %v1264, %v1248
        %v1279 = vsel %vm1267, %v1266, %v1250
        %s1280 = scalar_lea.vmem %s2, 96
        %v1281 = vld [vmem:[%s1280] sm:$0xf]
        %v1282 = vld [vmem:[%s1280 + $0x4] sm:$0xf]
        %v1283 = vld [vmem:[%s1280 + $0x8] sm:$0xf]
        %v1284 = vld [vmem:[%s1280 + $0xc] sm:$0xf]
        %v1285 = vpack.c.bf16 %v1273, %v1272
        %v1286 = vpack.c.bf16 %v1269, %v1268
        %v1287 = vpack.c.bf16 %v1277, %v1276
        %v1288 = vpack.c.bf16 %v1275, %v1274
        %v1289 = vpack.c.bf16 %v1271, %v1270
        %v1290 = vpack.c.bf16 %v1279, %v1278
        %v1295 = vunpack.c.l.b16 %v1281
        %v1296 = vunpack.c.l.b16 %v1282
        %v1297 = vunpack.c.l.b16 %v1283
        %v1298 = vunpack.c.l.b16 %v1284
        %v1299 = vpack.c.b16 %v1296, %v1295
        %v1300 = vpack.c.b16 %v1298, %v1297
        %v1302 = vsel %vm341, %v1299, 0
        %v1305 = vsel %vm341, %v1300, 0
        %1307 = vmatprep.subr.bf16.mxu0 0
        %1308 = vmatpush1.bf16.msra.mxu0 0
        %1309 = vmatprep.subr.bf16.mxu0 0
        %1310 = vmatpush1.bf16.msra.mxu0 0
        %1311 = vmatprep.subr.bf16.mxu0 0
        %1312 = vmatpush1.bf16.msra.mxu0 0
        %1313 = vmatprep.subr.bf16.mxu0 0
        %1314 = vmatpush1.bf16.msra.mxu0 0
        %1315 = vmatprep.subr.bf16.mxu0 0
        %1316 = vmatpush1.bf16.msra.mxu0 0
        %1317 = vmatprep.subr.bf16.mxu0 0
        %1318 = vmatpush1.bf16.msra.mxu0 0
        %1319 = vmatprep.subr.bf16.mxu0 %v1289
        %1320 = vmatpush1.bf16.msra.mxu0 %v1288
        %1321 = vmatprep.subr.bf16.mxu0 %v1286
        %1322 = vmatpush1.bf16.msra.mxu0 %v1285
        %1323 = vmatprep.subr.bf16.mxu0 0
        %1324 = vmatpush2.bf16.msra.mxu0 0
        %1325 = vmatprep.subr.bf16.mxu0 0
        %1326 = vmatpush2.bf16.msra.mxu0 0
        %1327 = vmatprep.subr.bf16.mxu0 0
        %1328 = vmatpush2.bf16.msra.mxu0 0
        %1329 = vmatprep.subr.bf16.mxu0 0
        %1330 = vmatpush2.bf16.msra.mxu0 0
        %1331 = vmatprep.subr.bf16.mxu0 0
        %1332 = vmatpush2.bf16.msra.mxu0 0
        %1333 = vmatprep.subr.bf16.mxu0 0
        %1334 = vmatpush2.bf16.msra.mxu0 0
        %1335 = vmatprep.subr.bf16.mxu0 0
        %1336 = vmatpush2.bf16.msra.mxu0 0
        %1337 = vmatprep.subr.bf16.mxu0 0
        %1338 = vmatpush2.bf16.msra.mxu0 0
        %1339 = vmatprep.mubr.bf16.mxu0 0
        %1340 = vmatmul.mubr.bf16.gmra.mxu0 %v1302
        %v1341 = vpop.f32.mrf.mxu0
        %v1342 = vadd.f32 0.0, %v1341
        %v1343 = vpop.f32.mrf.mxu0
        %v1344 = vadd.f32 0.0, %v1343
        %v1345 = vpop.f32.mrf.mxu0
        %v1346 = vadd.f32 0.0, %v1345
        %v1347 = vpop.f32.mrf.mxu0
        %v1348 = vadd.f32 0.0, %v1347
        %1349 = vmatprep.mubr.bf16.mxu0 0
        %1350 = vmatmul.mubr.bf16.gmra.mxu0 %v1305
        %v1351 = vpop.f32.mrf.mxu0
        %v1352 = vadd.f32 0.0, %v1351
        %v1353 = vpop.f32.mrf.mxu0
        %v1354 = vadd.f32 0.0, %v1353
        %v1355 = vpop.f32.mrf.mxu0
        %v1356 = vadd.f32 0.0, %v1355
        %v1357 = vpop.f32.mrf.mxu0
        %v1358 = vadd.f32 0.0, %v1357
        %1359 = vdwg.mxu0
        %1360 = vmatprep.subr.bf16.mxu0 0
        %1361 = vmatpush1.bf16.msra.mxu0 0
        %1362 = vmatprep.subr.bf16.mxu0 0
        %1363 = vmatpush1.bf16.msra.mxu0 0
        %1364 = vmatprep.subr.bf16.mxu0 0
        %1365 = vmatpush1.bf16.msra.mxu0 0
        %1366 = vmatprep.subr.bf16.mxu0 0
        %1367 = vmatpush1.bf16.msra.mxu0 0
        %1368 = vmatprep.subr.bf16.mxu0 0
        %1369 = vmatpush1.bf16.msra.mxu0 0
        %1370 = vmatprep.subr.bf16.mxu0 0
        %1371 = vmatpush1.bf16.msra.mxu0 0
        %1372 = vmatprep.subr.bf16.mxu0 0
        %1373 = vmatpush1.bf16.msra.mxu0 %v1290
        %1374 = vmatprep.subr.bf16.mxu0 0
        %1375 = vmatpush1.bf16.msra.mxu0 %v1287
        %1376 = vmatprep.subr.bf16.mxu0 0
        %1377 = vmatpush2.bf16.msra.mxu0 0
        %1378 = vmatprep.subr.bf16.mxu0 0
        %1379 = vmatpush2.bf16.msra.mxu0 0
        %1380 = vmatprep.subr.bf16.mxu0 0
        %1381 = vmatpush2.bf16.msra.mxu0 0
        %1382 = vmatprep.subr.bf16.mxu0 0
        %1383 = vmatpush2.bf16.msra.mxu0 0
        %1384 = vmatprep.subr.bf16.mxu0 0
        %1385 = vmatpush2.bf16.msra.mxu0 0
        %1386 = vmatprep.subr.bf16.mxu0 0
        %1387 = vmatpush2.bf16.msra.mxu0 0
        %1388 = vmatprep.subr.bf16.mxu0 0
        %1389 = vmatpush2.bf16.msra.mxu0 0
        %1390 = vmatprep.subr.bf16.mxu0 0
        %1391 = vmatpush2.bf16.msra.mxu0 0
        %1392 = vmatprep.mubr.bf16.mxu0 0
        %1393 = vmatmul.mubr.bf16.gmra.mxu0 %v1302
        %v1394 = vpop.f32.mrf.mxu0
        %v1395 = vadd.f32 0.0, %v1394
        %v1396 = vpop.f32.mrf.mxu0
        %v1397 = vpop.f32.mrf.mxu0
        %v1398 = vadd.f32 0.0, %v1397
        %v1399 = vpop.f32.mrf.mxu0
        %1400 = vmatprep.mubr.bf16.mxu0 0
        %1401 = vmatmul.mubr.bf16.gmra.mxu0 %v1305
        %v1402 = vpop.f32.mrf.mxu0
        %v1403 = vadd.f32 0.0, %v1402
        %v1404 = vpop.f32.mrf.mxu0
        %v1405 = vpop.f32.mrf.mxu0
        %v1406 = vadd.f32 0.0, %v1405
        %v1407 = vpop.f32.mrf.mxu0
        %1408 = vdwg.mxu0
        %v1409 = vadd.f32 %v1231, %v1342
        %v1410 = vadd.f32 %v1232, %v1344
        %v1411 = vadd.f32 %v1233, %v1395
        %v1412 = vadd.f32 %v1234, %v1346
        %v1413 = vadd.f32 %v1235, %v1348
        %v1414 = vadd.f32 %v1236, %v1398
        %v1415 = vadd.f32 %v1237, %v1352
        %v1416 = vadd.f32 %v1238, %v1354
        %v1417 = vadd.f32 %v1239, %v1403
        %v1418 = vadd.f32 %v1240, %v1356
        %v1419 = vadd.f32 %v1241, %v1358
        %v1420 = vadd.f32 %v1242, %v1406
        %1421 = vrot.lane.b32.xlu0 %v222, 110
        %v1422 = vpop.permute.xlu0 %1421
        %1423 = vrot.lane.b32.xlu0 %v225, 110
        %v1424 = vpop.permute.xlu0 %1423
        %1425 = vrot.lane.b32.xlu0 %v228, 110
        %v1426 = vpop.permute.xlu0 %1425
        %1427 = vrot.lane.b32.xlu0 %v231, 110
        %v1428 = vpop.permute.xlu0 %1427
        %1429 = vrot.lane.b32.xlu0 %v223, 110
        %v1430 = vpop.permute.xlu0 %1429
        %1431 = vrot.lane.b32.xlu0 %v226, 110
        %v1432 = vpop.permute.xlu0 %1431
        %1433 = vrot.lane.b32.xlu0 %v229, 110
        %v1434 = vpop.permute.xlu0 %1433
        %1435 = vrot.lane.b32.xlu0 %v232, 110
        %v1436 = vpop.permute.xlu0 %1435
        %1437 = vrot.lane.b32.xlu0 %v224, 110
        %v1438 = vpop.permute.xlu0 %1437
        %1439 = vrot.lane.b32.xlu0 %v227, 110
        %v1440 = vpop.permute.xlu0 %1439
        %1441 = vrot.lane.b32.xlu0 %v230, 110
        %v1442 = vpop.permute.xlu0 %1441
        %1443 = vrot.lane.b32.xlu0 %v233, 110
        %v1444 = vpop.permute.xlu0 %1443
        %vm1445 = vcmp.lt.s32.totalorder %v259, 110
        %v1446 = vsel %vm1445, %v1430, %v1438
        %v1447 = vsel %vm1445, %v1432, %v1440
        %v1448 = vsel %vm1445, %v1434, %v1442
        %v1449 = vsel %vm1445, %v1436, %v1444
        %v1450 = vsel %vm1445, %v1422, %v1430
        %v1451 = vsel %vm1445, %v1424, %v1432
        %v1452 = vsel %vm1445, %v1426, %v1434
        %v1453 = vsel %vm1445, %v1428, %v1436
        %v1454 = vsel %vm1445, %v1438, %v1422
        %v1455 = vsel %vm1445, %v1440, %v1424
        %v1456 = vsel %vm1445, %v1442, %v1426
        %v1457 = vsel %vm1445, %v1444, %v1428
        %s1458 = scalar_lea.vmem %s2, 112
        %v1459 = vld [vmem:[%s1458] sm:$0xf]
        %v1460 = vld [vmem:[%s1458 + $0x4] sm:$0xf]
        %v1461 = vld [vmem:[%s1458 + $0x8] sm:$0xf]
        %v1462 = vld [vmem:[%s1458 + $0xc] sm:$0xf]
        %v1463 = vpack.c.bf16 %v1451, %v1450
        %v1464 = vpack.c.bf16 %v1447, %v1446
        %v1465 = vpack.c.bf16 %v1455, %v1454
        %v1466 = vpack.c.bf16 %v1453, %v1452
        %v1467 = vpack.c.bf16 %v1449, %v1448
        %v1468 = vpack.c.bf16 %v1457, %v1456
        %v1473 = vunpack.c.l.b16 %v1459
        %v1474 = vunpack.c.l.b16 %v1460
        %v1475 = vunpack.c.l.b16 %v1461
        %v1476 = vunpack.c.l.b16 %v1462
        %v1477 = vpack.c.b16 %v1474, %v1473
        %v1478 = vpack.c.b16 %v1476, %v1475
        %v1480 = vsel %vm341, %v1477, 0
        %v1483 = vsel %vm341, %v1478, 0
        %1485 = vmatprep.subr.bf16.mxu0 0
        %1486 = vmatpush1.bf16.msra.mxu0 0
        %1487 = vmatprep.subr.bf16.mxu0 0
        %1488 = vmatpush1.bf16.msra.mxu0 0
        %1489 = vmatprep.subr.bf16.mxu0 0
        %1490 = vmatpush1.bf16.msra.mxu0 0
        %1491 = vmatprep.subr.bf16.mxu0 0
        %1492 = vmatpush1.bf16.msra.mxu0 0
        %1493 = vmatprep.subr.bf16.mxu0 0
        %1494 = vmatpush1.bf16.msra.mxu0 0
        %1495 = vmatprep.subr.bf16.mxu0 0
        %1496 = vmatpush1.bf16.msra.mxu0 0
        %1497 = vmatprep.subr.bf16.mxu0 %v1467
        %1498 = vmatpush1.bf16.msra.mxu0 %v1466
        %1499 = vmatprep.subr.bf16.mxu0 %v1464
        %1500 = vmatpush1.bf16.msra.mxu0 %v1463
        %1501 = vmatprep.subr.bf16.mxu0 0
        %1502 = vmatpush2.bf16.msra.mxu0 0
        %1503 = vmatprep.subr.bf16.mxu0 0
        %1504 = vmatpush2.bf16.msra.mxu0 0
        %1505 = vmatprep.subr.bf16.mxu0 0
        %1506 = vmatpush2.bf16.msra.mxu0 0
        %1507 = vmatprep.subr.bf16.mxu0 0
        %1508 = vmatpush2.bf16.msra.mxu0 0
        %1509 = vmatprep.subr.bf16.mxu0 0
        %1510 = vmatpush2.bf16.msra.mxu0 0
        %1511 = vmatprep.subr.bf16.mxu0 0
        %1512 = vmatpush2.bf16.msra.mxu0 0
        %1513 = vmatprep.subr.bf16.mxu0 0
        %1514 = vmatpush2.bf16.msra.mxu0 0
        %1515 = vmatprep.subr.bf16.mxu0 0
        %1516 = vmatpush2.bf16.msra.mxu0 0
        %1517 = vmatprep.mubr.bf16.mxu0 0
        %1518 = vmatmul.mubr.bf16.gmra.mxu0 %v1480
        %v1519 = vpop.f32.mrf.mxu0
        %v1520 = vadd.f32 0.0, %v1519
        %v1521 = vpop.f32.mrf.mxu0
        %v1522 = vadd.f32 0.0, %v1521
        %v1523 = vpop.f32.mrf.mxu0
        %v1524 = vadd.f32 0.0, %v1523
        %v1525 = vpop.f32.mrf.mxu0
        %v1526 = vadd.f32 0.0, %v1525
        %1527 = vmatprep.mubr.bf16.mxu0 0
        %1528 = vmatmul.mubr.bf16.gmra.mxu0 %v1483
        %v1529 = vpop.f32.mrf.mxu0
        %v1530 = vadd.f32 0.0, %v1529
        %v1531 = vpop.f32.mrf.mxu0
        %v1532 = vadd.f32 0.0, %v1531
        %v1533 = vpop.f32.mrf.mxu0
        %v1534 = vadd.f32 0.0, %v1533
        %v1535 = vpop.f32.mrf.mxu0
        %v1536 = vadd.f32 0.0, %v1535
        %1537 = vdwg.mxu0
        %1538 = vmatprep.subr.bf16.mxu0 0
        %1539 = vmatpush1.bf16.msra.mxu0 0
        %1540 = vmatprep.subr.bf16.mxu0 0
        %1541 = vmatpush1.bf16.msra.mxu0 0
        %1542 = vmatprep.subr.bf16.mxu0 0
        %1543 = vmatpush1.bf16.msra.mxu0 0
        %1544 = vmatprep.subr.bf16.mxu0 0
        %1545 = vmatpush1.bf16.msra.mxu0 0
        %1546 = vmatprep.subr.bf16.mxu0 0
        %1547 = vmatpush1.bf16.msra.mxu0 0
        %1548 = vmatprep.subr.bf16.mxu0 0
        %1549 = vmatpush1.bf16.msra.mxu0 0
        %1550 = vmatprep.subr.bf16.mxu0 0
        %1551 = vmatpush1.bf16.msra.mxu0 %v1468
        %1552 = vmatprep.subr.bf16.mxu0 0
        %1553 = vmatpush1.bf16.msra.mxu0 %v1465
        %1554 = vmatprep.subr.bf16.mxu0 0
        %1555 = vmatpush2.bf16.msra.mxu0 0
        %1556 = vmatprep.subr.bf16.mxu0 0
        %1557 = vmatpush2.bf16.msra.mxu0 0
        %1558 = vmatprep.subr.bf16.mxu0 0
        %1559 = vmatpush2.bf16.msra.mxu0 0
        %1560 = vmatprep.subr.bf16.mxu0 0
        %1561 = vmatpush2.bf16.msra.mxu0 0
        %1562 = vmatprep.subr.bf16.mxu0 0
        %1563 = vmatpush2.bf16.msra.mxu0 0
        %1564 = vmatprep.subr.bf16.mxu0 0
        %1565 = vmatpush2.bf16.msra.mxu0 0
        %1566 = vmatprep.subr.bf16.mxu0 0
        %1567 = vmatpush2.bf16.msra.mxu0 0
        %1568 = vmatprep.subr.bf16.mxu0 0
        %1569 = vmatpush2.bf16.msra.mxu0 0
        %1570 = vmatprep.mubr.bf16.mxu0 0
        %1571 = vmatmul.mubr.bf16.gmra.mxu0 %v1480
        %v1572 = vpop.f32.mrf.mxu0
        %v1573 = vadd.f32 0.0, %v1572
        %v1574 = vpop.f32.mrf.mxu0
        %v1575 = vpop.f32.mrf.mxu0
        %v1576 = vadd.f32 0.0, %v1575
        %v1577 = vpop.f32.mrf.mxu0
        %1578 = vmatprep.mubr.bf16.mxu0 0
        %1579 = vmatmul.mubr.bf16.gmra.mxu0 %v1483
        %v1580 = vpop.f32.mrf.mxu0
        %v1581 = vadd.f32 0.0, %v1580
        %v1582 = vpop.f32.mrf.mxu0
        %v1583 = vpop.f32.mrf.mxu0
        %v1584 = vadd.f32 0.0, %v1583
        %v1585 = vpop.f32.mrf.mxu0
        %1586 = vdwg.mxu0
        %v1587 = vadd.f32 %v1409, %v1520
        %v1588 = vadd.f32 %v1410, %v1522
        %v1589 = vadd.f32 %v1411, %v1573
        %v1590 = vadd.f32 %v1412, %v1524
        %v1591 = vadd.f32 %v1413, %v1526
        %v1592 = vadd.f32 %v1414, %v1576
        %v1593 = vadd.f32 %v1415, %v1530
        %v1594 = vadd.f32 %v1416, %v1532
        %v1595 = vadd.f32 %v1417, %v1581
        %v1596 = vadd.f32 %v1418, %v1534
        %v1597 = vadd.f32 %v1419, %v1536
        %v1598 = vadd.f32 %v1420, %v1584
        %1599 = vrot.lane.b32.xlu0 %v222, 109
        %v1600 = vpop.permute.xlu0 %1599
        %1601 = vrot.lane.b32.xlu0 %v225, 109
        %v1602 = vpop.permute.xlu0 %1601
        %1603 = vrot.lane.b32.xlu0 %v228, 109
        %v1604 = vpop.permute.xlu0 %1603
        %1605 = vrot.lane.b32.xlu0 %v231, 109
        %v1606 = vpop.permute.xlu0 %1605
        %1607 = vrot.lane.b32.xlu0 %v223, 109
        %v1608 = vpop.permute.xlu0 %1607
        %1609 = vrot.lane.b32.xlu0 %v226, 109
        %v1610 = vpop.permute.xlu0 %1609
        %1611 = vrot.lane.b32.xlu0 %v229, 109
        %v1612 = vpop.permute.xlu0 %1611
        %1613 = vrot.lane.b32.xlu0 %v232, 109
        %v1614 = vpop.permute.xlu0 %1613
        %1615 = vrot.lane.b32.xlu0 %v224, 109
        %v1616 = vpop.permute.xlu0 %1615
        %1617 = vrot.lane.b32.xlu0 %v227, 109
        %v1618 = vpop.permute.xlu0 %1617
        %1619 = vrot.lane.b32.xlu0 %v230, 109
        %v1620 = vpop.permute.xlu0 %1619
        %1621 = vrot.lane.b32.xlu0 %v233, 109
        %v1622 = vpop.permute.xlu0 %1621
        %vm1623 = vcmp.lt.s32.totalorder %v259, 109
        %v1624 = vsel %vm1623, %v1608, %v1616
        %v1625 = vsel %vm1623, %v1610, %v1618
        %v1626 = vsel %vm1623, %v1612, %v1620
        %v1627 = vsel %vm1623, %v1614, %v1622
        %v1628 = vsel %vm1623, %v1600, %v1608
        %v1629 = vsel %vm1623, %v1602, %v1610
        %v1630 = vsel %vm1623, %v1604, %v1612
        %v1631 = vsel %vm1623, %v1606, %v1614
        %v1632 = vsel %vm1623, %v1616, %v1600
        %v1633 = vsel %vm1623, %v1618, %v1602
        %v1634 = vsel %vm1623, %v1620, %v1604
        %v1635 = vsel %vm1623, %v1622, %v1606
        %s1636 = scalar_lea.vmem %s2, 128
        %v1637 = vld [vmem:[%s1636] sm:$0xf]
        %v1638 = vld [vmem:[%s1636 + $0x4] sm:$0xf]
        %v1639 = vld [vmem:[%s1636 + $0x8] sm:$0xf]
        %v1640 = vld [vmem:[%s1636 + $0xc] sm:$0xf]
        %v1641 = vpack.c.bf16 %v1629, %v1628
        %v1642 = vpack.c.bf16 %v1625, %v1624
        %v1643 = vpack.c.bf16 %v1633, %v1632
        %v1644 = vpack.c.bf16 %v1631, %v1630
        %v1645 = vpack.c.bf16 %v1627, %v1626
        %v1646 = vpack.c.bf16 %v1635, %v1634
        %v1651 = vunpack.c.l.b16 %v1637
        %v1652 = vunpack.c.l.b16 %v1638
        %v1653 = vunpack.c.l.b16 %v1639
        %v1654 = vunpack.c.l.b16 %v1640
        %v1655 = vpack.c.b16 %v1652, %v1651
        %v1656 = vpack.c.b16 %v1654, %v1653
        %v1658 = vsel %vm341, %v1655, 0
        %v1661 = vsel %vm341, %v1656, 0
        %1663 = vmatprep.subr.bf16.mxu0 0
        %1664 = vmatpush1.bf16.msra.mxu0 0
        %1665 = vmatprep.subr.bf16.mxu0 0
        %1666 = vmatpush1.bf16.msra.mxu0 0
        %1667 = vmatprep.subr.bf16.mxu0 0
        %1668 = vmatpush1.bf16.msra.mxu0 0
        %1669 = vmatprep.subr.bf16.mxu0 0
        %1670 = vmatpush1.bf16.msra.mxu0 0
        %1671 = vmatprep.subr.bf16.mxu0 0
        %1672 = vmatpush1.bf16.msra.mxu0 0
        %1673 = vmatprep.subr.bf16.mxu0 0
        %1674 = vmatpush1.bf16.msra.mxu0 0
        %1675 = vmatprep.subr.bf16.mxu0 %v1645
        %1676 = vmatpush1.bf16.msra.mxu0 %v1644
        %1677 = vmatprep.subr.bf16.mxu0 %v1642
        %1678 = vmatpush1.bf16.msra.mxu0 %v1641
        %1679 = vmatprep.subr.bf16.mxu0 0
        %1680 = vmatpush2.bf16.msra.mxu0 0
        %1681 = vmatprep.subr.bf16.mxu0 0
        %1682 = vmatpush2.bf16.msra.mxu0 0
        %1683 = vmatprep.subr.bf16.mxu0 0
        %1684 = vmatpush2.bf16.msra.mxu0 0
        %1685 = vmatprep.subr.bf16.mxu0 0
        %1686 = vmatpush2.bf16.msra.mxu0 0
        %1687 = vmatprep.subr.bf16.mxu0 0
        %1688 = vmatpush2.bf16.msra.mxu0 0
        %1689 = vmatprep.subr.bf16.mxu0 0
        %1690 = vmatpush2.bf16.msra.mxu0 0
        %1691 = vmatprep.subr.bf16.mxu0 0
        %1692 = vmatpush2.bf16.msra.mxu0 0
        %1693 = vmatprep.subr.bf16.mxu0 0
        %1694 = vmatpush2.bf16.msra.mxu0 0
        %1695 = vmatprep.mubr.bf16.mxu0 0
        %1696 = vmatmul.mubr.bf16.gmra.mxu0 %v1658
        %v1697 = vpop.f32.mrf.mxu0
        %v1698 = vadd.f32 0.0, %v1697
        %v1699 = vpop.f32.mrf.mxu0
        %v1700 = vadd.f32 0.0, %v1699
        %v1701 = vpop.f32.mrf.mxu0
        %v1702 = vadd.f32 0.0, %v1701
        %v1703 = vpop.f32.mrf.mxu0
        %v1704 = vadd.f32 0.0, %v1703
        %1705 = vmatprep.mubr.bf16.mxu0 0
        %1706 = vmatmul.mubr.bf16.gmra.mxu0 %v1661
        %v1707 = vpop.f32.mrf.mxu0
        %v1708 = vadd.f32 0.0, %v1707
        %v1709 = vpop.f32.mrf.mxu0
        %v1710 = vadd.f32 0.0, %v1709
        %v1711 = vpop.f32.mrf.mxu0
        %v1712 = vadd.f32 0.0, %v1711
        %v1713 = vpop.f32.mrf.mxu0
        %v1714 = vadd.f32 0.0, %v1713
        %1715 = vdwg.mxu0
        %1716 = vmatprep.subr.bf16.mxu0 0
        %1717 = vmatpush1.bf16.msra.mxu0 0
        %1718 = vmatprep.subr.bf16.mxu0 0
        %1719 = vmatpush1.bf16.msra.mxu0 0
        %1720 = vmatprep.subr.bf16.mxu0 0
        %1721 = vmatpush1.bf16.msra.mxu0 0
        %1722 = vmatprep.subr.bf16.mxu0 0
        %1723 = vmatpush1.bf16.msra.mxu0 0
        %1724 = vmatprep.subr.bf16.mxu0 0
        %1725 = vmatpush1.bf16.msra.mxu0 0
        %1726 = vmatprep.subr.bf16.mxu0 0
        %1727 = vmatpush1.bf16.msra.mxu0 0
        %1728 = vmatprep.subr.bf16.mxu0 0
        %1729 = vmatpush1.bf16.msra.mxu0 %v1646
        %1730 = vmatprep.subr.bf16.mxu0 0
        %1731 = vmatpush1.bf16.msra.mxu0 %v1643
        %1732 = vmatprep.subr.bf16.mxu0 0
        %1733 = vmatpush2.bf16.msra.mxu0 0
        %1734 = vmatprep.subr.bf16.mxu0 0
        %1735 = vmatpush2.bf16.msra.mxu0 0
        %1736 = vmatprep.subr.bf16.mxu0 0
        %1737 = vmatpush2.bf16.msra.mxu0 0
        %1738 = vmatprep.subr.bf16.mxu0 0
        %1739 = vmatpush2.bf16.msra.mxu0 0
        %1740 = vmatprep.subr.bf16.mxu0 0
        %1741 = vmatpush2.bf16.msra.mxu0 0
        %1742 = vmatprep.subr.bf16.mxu0 0
        %1743 = vmatpush2.bf16.msra.mxu0 0
        %1744 = vmatprep.subr.bf16.mxu0 0
        %1745 = vmatpush2.bf16.msra.mxu0 0
        %1746 = vmatprep.subr.bf16.mxu0 0
        %1747 = vmatpush2.bf16.msra.mxu0 0
        %1748 = vmatprep.mubr.bf16.mxu0 0
        %1749 = vmatmul.mubr.bf16.gmra.mxu0 %v1658
        %v1750 = vpop.f32.mrf.mxu0
        %v1751 = vadd.f32 0.0, %v1750
        %v1752 = vpop.f32.mrf.mxu0
        %v1753 = vpop.f32.mrf.mxu0
        %v1754 = vadd.f32 0.0, %v1753
        %v1755 = vpop.f32.mrf.mxu0
        %1756 = vmatprep.mubr.bf16.mxu0 0
        %1757 = vmatmul.mubr.bf16.gmra.mxu0 %v1661
        %v1758 = vpop.f32.mrf.mxu0
        %v1759 = vadd.f32 0.0, %v1758
        %v1760 = vpop.f32.mrf.mxu0
        %v1761 = vpop.f32.mrf.mxu0
        %v1762 = vadd.f32 0.0, %v1761
        %v1763 = vpop.f32.mrf.mxu0
        %1764 = vdwg.mxu0
        %v1765 = vadd.f32 %v1587, %v1698
        %v1766 = vadd.f32 %v1588, %v1700
        %v1767 = vadd.f32 %v1589, %v1751
        %v1768 = vadd.f32 %v1590, %v1702
        %v1769 = vadd.f32 %v1591, %v1704
        %v1770 = vadd.f32 %v1592, %v1754
        %v1771 = vadd.f32 %v1593, %v1708
        %v1772 = vadd.f32 %v1594, %v1710
        %v1773 = vadd.f32 %v1595, %v1759
        %v1774 = vadd.f32 %v1596, %v1712
        %v1775 = vadd.f32 %v1597, %v1714
        %v1776 = vadd.f32 %v1598, %v1762
        %v1777 = vld [vmem:[%s3] sm:$0xff]
        %v1778 = vld [vmem:[%s3 + $0x8] sm:$0xff]
        %v1779 = vld [vmem:[%s3 + $0x10] sm:$0xff]
        %v1780 = vld [vmem:[%s3 + $0x18] sm:$0xff]
        %1782 = vset.pattern.permute.xlu0 0
        %1783 = vperm.xlu0 %1782, %v1777
        %v1784 = vpop.permute.xlu0 %1783
        %1787 = vset.pattern.permute.xlu0 0
        %1788 = vperm.xlu0 %1787, %v1778
        %v1789 = vpop.permute.xlu0 %1788
        %1792 = vset.pattern.permute.xlu0 0
        %1793 = vperm.xlu0 %1792, %v1779
        %v1794 = vpop.permute.xlu0 %1793
        %1797 = vset.pattern.permute.xlu0 0
        %1798 = vperm.xlu0 %1797, %v1780
        %v1799 = vpop.permute.xlu0 %1798
        %v1801 = vadd.f32 %v1765, %v1784
        %v1802 = vadd.f32 %v1766, %v1784
        %v1803 = vadd.f32 %v1767, %v1784
        %v1804 = vadd.f32 %v1768, %v1789
        %v1805 = vadd.f32 %v1769, %v1789
        %v1806 = vadd.f32 %v1770, %v1789
        %v1807 = vadd.f32 %v1771, %v1794
        %v1808 = vadd.f32 %v1772, %v1794
        %v1809 = vadd.f32 %v1773, %v1794
        %v1810 = vadd.f32 %v1774, %v1799
        %v1811 = vadd.f32 %v1775, %v1799
        %v1812 = vadd.f32 %v1776, %v1799
        %v1813 = vmax.f32 %v1801, 0.0
        %v1814 = vmax.f32 %v1802, 0.0
        %v1815 = vmax.f32 %v1803, 0.0
        %v1816 = vmax.f32 %v1804, 0.0
        %v1817 = vmax.f32 %v1805, 0.0
        %v1818 = vmax.f32 %v1806, 0.0
        %v1819 = vmax.f32 %v1807, 0.0
        %v1820 = vmax.f32 %v1808, 0.0
        %v1821 = vmax.f32 %v1809, 0.0
        %v1822 = vmax.f32 %v1810, 0.0
        %v1823 = vmax.f32 %v1811, 0.0
        %v1824 = vmax.f32 %v1812, 0.0
        %v1826 = vlaneseq
        %v1827 = vshrl.u32 %v1826, 7
        %v1828 = vsub.s32 0, %v1827
        %v1829 = vrot.slane %v197, %v1828
        %v1830 = vlaneseq
        %v1831 = vshrl.u32 %v1830, 7
        %v1832 = vsub.s32 1, %v1831
        %v1833 = vrot.slane %v197, %v1832
        %v1834 = vlaneseq
        %v1835 = vshrl.u32 %v1834, 7
        %v1836 = vsub.s32 2, %v1835
        %v1837 = vrot.slane %v197, %v1836
        %v1841 = vmul.f32 %v1813, %v1829
        %v1842 = vmul.f32 %v1814, %v1833
        %v1843 = vmul.f32 %v1815, %v1837
        %v1844 = vmul.f32 %v1816, %v1829
        %v1845 = vmul.f32 %v1817, %v1833
        %v1846 = vmul.f32 %v1818, %v1837
        %v1847 = vmul.f32 %v1819, %v1829
        %v1848 = vmul.f32 %v1820, %v1833
        %v1849 = vmul.f32 %v1821, %v1837
        %v1850 = vmul.f32 %v1822, %v1829
        %v1851 = vmul.f32 %v1823, %v1833
        %v1852 = vmul.f32 %v1824, %v1837
        %1853 = vst [vmem:[#allocation2] sm:$0xff] %v1841
        %1854 = vst [vmem:[#allocation2 + $0x8] sm:$0xff] %v1842
        %1855 = vst [vmem:[#allocation2 + $0x10] sm:$0xff] %v1843
        %1856 = vst [vmem:[#allocation2 + $0x18] sm:$0xff] %v1844
        %1857 = vst [vmem:[#allocation2 + $0x20] sm:$0xff] %v1845
        %1858 = vst [vmem:[#allocation2 + $0x28] sm:$0xff] %v1846
        %1859 = vst [vmem:[#allocation2 + $0x30] sm:$0xff] %v1847
        %1860 = vst [vmem:[#allocation2 + $0x38] sm:$0xff] %v1848
        %1861 = vst [vmem:[#allocation2 + $0x40] sm:$0xff] %v1849
        %1862 = vst [vmem:[#allocation2 + $0x48] sm:$0xff] %v1850
        %1863 = vst [vmem:[#allocation2 + $0x50] sm:$0xff] %v1851
        %1864 = vst [vmem:[#allocation2 + $0x58] sm:$0xff] %v1852
        %1865 = vst [vmem:[%s190] sm:$0xff] %v1841
        %1866 = vst [vmem:[%s190 + $0x8] sm:$0xff] %v1842
        %1867 = vst [vmem:[%s190 + $0x10] sm:$0xff] %v1843
        %1868 = vst [vmem:[%s190 + $0x18] sm:$0xff] %v1844
        %1869 = vst [vmem:[%s190 + $0x20] sm:$0xff] %v1845
        %1870 = vst [vmem:[%s190 + $0x28] sm:$0xff] %v1846
        %1871 = vst [vmem:[%s190 + $0x30] sm:$0xff] %v1847
        %1872 = vst [vmem:[%s190 + $0x38] sm:$0xff] %v1848
        %1873 = vst [vmem:[%s190 + $0x40] sm:$0xff] %v1849
        %1874 = vst [vmem:[%s190 + $0x48] sm:$0xff] %v1850
        %1875 = vst [vmem:[%s190 + $0x50] sm:$0xff] %v1851
        %1876 = vst [vmem:[%s190 + $0x58] sm:$0xff] %v1852
        %v1877 = vld [vmem:[#allocation2] sm:$0xff]
        %v1878 = vld [vmem:[#allocation2 + $0x8] sm:$0xff]
        %v1879 = vld [vmem:[#allocation2 + $0x10] sm:$0xff]
        %v1880 = vld [vmem:[#allocation2 + $0x18] sm:$0xff]
        %v1881 = vld [vmem:[#allocation2 + $0x20] sm:$0xff]
        %v1882 = vld [vmem:[#allocation2 + $0x28] sm:$0xff]
        %v1883 = vld [vmem:[#allocation2 + $0x30] sm:$0xff]
        %v1884 = vld [vmem:[#allocation2 + $0x38] sm:$0xff]
        %v1885 = vld [vmem:[#allocation2 + $0x40] sm:$0xff]
        %v1886 = vld [vmem:[#allocation2 + $0x48] sm:$0xff]
        %v1887 = vld [vmem:[#allocation2 + $0x50] sm:$0xff]
        %v1888 = vld [vmem:[#allocation2 + $0x58] sm:$0xff]
        %1889 = vrot.lane.b32.xlu0 %v1877, 19
        %v1890 = vpop.permute.xlu0 %1889
        %1891 = vrot.lane.b32.xlu0 %v1880, 19
        %v1892 = vpop.permute.xlu0 %1891
        %1893 = vrot.lane.b32.xlu0 %v1883, 19
        %v1894 = vpop.permute.xlu0 %1893
        %1895 = vrot.lane.b32.xlu0 %v1886, 19
        %v1896 = vpop.permute.xlu0 %1895
        %1897 = vrot.lane.b32.xlu0 %v1878, 19
        %v1898 = vpop.permute.xlu0 %1897
        %1899 = vrot.lane.b32.xlu0 %v1881, 19
        %v1900 = vpop.permute.xlu0 %1899
        %1901 = vrot.lane.b32.xlu0 %v1884, 19
        %v1902 = vpop.permute.xlu0 %1901
        %1903 = vrot.lane.b32.xlu0 %v1887, 19
        %v1904 = vpop.permute.xlu0 %1903
        %1905 = vrot.lane.b32.xlu0 %v1879, 19
        %v1906 = vpop.permute.xlu0 %1905
        %1907 = vrot.lane.b32.xlu0 %v1882, 19
        %v1908 = vpop.permute.xlu0 %1907
        %1909 = vrot.lane.b32.xlu0 %v1885, 19
        %v1910 = vpop.permute.xlu0 %1909
        %1911 = vrot.lane.b32.xlu0 %v1888, 19
        %v1912 = vpop.permute.xlu0 %1911
        %v1913 = vsel %vm260, %v1898, %v1906
        %v1914 = vsel %vm260, %v1900, %v1908
        %v1915 = vsel %vm260, %v1902, %v1910
        %v1916 = vsel %vm260, %v1904, %v1912
        %v1917 = vsel %vm260, %v1890, %v1898
        %v1918 = vsel %vm260, %v1892, %v1900
        %v1919 = vsel %vm260, %v1894, %v1902
        %v1920 = vsel %vm260, %v1896, %v1904
        %v1921 = vsel %vm260, %v1906, %v1890
        %v1922 = vsel %vm260, %v1908, %v1892
        %v1923 = vsel %vm260, %v1910, %v1894
        %v1924 = vsel %vm260, %v1912, %v1896
        %s1925 = scalar_lea.vmem %s2, 144
        %v1926 = vld [vmem:[%s1925] sm:$0xf]
        %v1927 = vld [vmem:[%s1925 + $0x4] sm:$0xf]
        %v1928 = vld [vmem:[%s1925 + $0x8] sm:$0xf]
        %v1929 = vld [vmem:[%s1925 + $0xc] sm:$0xf]
        %v1930 = vpack.c.bf16 %v1922, %v1921
        %v1931 = vpack.c.bf16 %v1918, %v1917
        %v1932 = vpack.c.bf16 %v1914, %v1913
        %v1933 = vpack.c.bf16 %v1924, %v1923
        %v1934 = vpack.c.bf16 %v1920, %v1919
        %v1935 = vpack.c.bf16 %v1916, %v1915
        %1936 = vrot.lane.b32.xlu0 %v1877, 18
        %v1937 = vpop.permute.xlu0 %1936
        %1938 = vrot.lane.b32.xlu0 %v1880, 18
        %v1939 = vpop.permute.xlu0 %1938
        %1940 = vrot.lane.b32.xlu0 %v1883, 18
        %v1941 = vpop.permute.xlu0 %1940
        %1942 = vrot.lane.b32.xlu0 %v1886, 18
        %v1943 = vpop.permute.xlu0 %1942
        %1944 = vrot.lane.b32.xlu0 %v1878, 18
        %v1945 = vpop.permute.xlu0 %1944
        %1946 = vrot.lane.b32.xlu0 %v1881, 18
        %v1947 = vpop.permute.xlu0 %1946
        %1948 = vrot.lane.b32.xlu0 %v1884, 18
        %v1949 = vpop.permute.xlu0 %1948
        %1950 = vrot.lane.b32.xlu0 %v1887, 18
        %v1951 = vpop.permute.xlu0 %1950
        %1952 = vrot.lane.b32.xlu0 %v1879, 18
        %v1953 = vpop.permute.xlu0 %1952
        %1954 = vrot.lane.b32.xlu0 %v1882, 18
        %v1955 = vpop.permute.xlu0 %1954
        %1956 = vrot.lane.b32.xlu0 %v1885, 18
        %v1957 = vpop.permute.xlu0 %1956
        %1958 = vrot.lane.b32.xlu0 %v1888, 18
        %v1959 = vpop.permute.xlu0 %1958
        %v1960 = vsel %vm307, %v1945, %v1953
        %v1961 = vsel %vm307, %v1947, %v1955
        %v1962 = vsel %vm307, %v1949, %v1957
        %v1963 = vsel %vm307, %v1951, %v1959
        %v1964 = vsel %vm307, %v1937, %v1945
        %v1965 = vsel %vm307, %v1939, %v1947
        %v1966 = vsel %vm307, %v1941, %v1949
        %v1967 = vsel %vm307, %v1943, %v1951
        %v1968 = vsel %vm307, %v1953, %v1937
        %v1969 = vsel %vm307, %v1955, %v1939
        %v1970 = vsel %vm307, %v1957, %v1941
        %v1971 = vsel %vm307, %v1959, %v1943
        %s1972 = scalar_lea.vmem %s2, 160
        %v1973 = vld [vmem:[%s1972] sm:$0xf]
        %v1974 = vld [vmem:[%s1972 + $0x4] sm:$0xf]
        %v1975 = vld [vmem:[%s1972 + $0x8] sm:$0xf]
        %v1976 = vld [vmem:[%s1972 + $0xc] sm:$0xf]
        %v1977 = vpack.c.bf16 %v1969, %v1968
        %v1978 = vpack.c.bf16 %v1965, %v1964
        %v1979 = vpack.c.bf16 %v1961, %v1960
        %v1980 = vpack.c.bf16 %v1971, %v1970
        %v1981 = vpack.c.bf16 %v1967, %v1966
        %v1982 = vpack.c.bf16 %v1963, %v1962
        %v1987 = vunpack.c.l.b16 %v1973
        %v1988 = vunpack.c.l.b16 %v1974
        %v1989 = vunpack.c.l.b16 %v1975
        %v1990 = vunpack.c.l.b16 %v1976
        %v1991 = vpack.c.b16 %v1988, %v1987
        %v1992 = vpack.c.b16 %v1990, %v1989
        %v1994 = vsel %vm341, %v1991, 0
        %v1997 = vsel %vm341, %v1992, 0
        %1999 = vmatprep.subr.bf16.mxu0 0
        %2000 = vmatpush1.bf16.msra.mxu0 0
        %2001 = vmatprep.subr.bf16.mxu0 0
        %2002 = vmatpush1.bf16.msra.mxu0 0
        %2003 = vmatprep.subr.bf16.mxu0 0
        %2004 = vmatpush1.bf16.msra.mxu0 0
        %2005 = vmatprep.subr.bf16.mxu0 0
        %2006 = vmatpush1.bf16.msra.mxu0 0
        %2007 = vmatprep.subr.bf16.mxu0 0
        %2008 = vmatpush1.bf16.msra.mxu0 0
        %2009 = vmatprep.subr.bf16.mxu0 0
        %2010 = vmatpush1.bf16.msra.mxu0 0
        %2011 = vmatprep.subr.bf16.mxu0 %v1981
        %2012 = vmatpush1.bf16.msra.mxu0 %v1980
        %2013 = vmatprep.subr.bf16.mxu0 %v1978
        %2014 = vmatpush1.bf16.msra.mxu0 %v1977
        %2015 = vmatprep.subr.bf16.mxu0 0
        %2016 = vmatpush2.bf16.msra.mxu0 0
        %2017 = vmatprep.subr.bf16.mxu0 0
        %2018 = vmatpush2.bf16.msra.mxu0 0
        %2019 = vmatprep.subr.bf16.mxu0 0
        %2020 = vmatpush2.bf16.msra.mxu0 0
        %2021 = vmatprep.subr.bf16.mxu0 0
        %2022 = vmatpush2.bf16.msra.mxu0 0
        %2023 = vmatprep.subr.bf16.mxu0 0
        %2024 = vmatpush2.bf16.msra.mxu0 0
        %2025 = vmatprep.subr.bf16.mxu0 0
        %2026 = vmatpush2.bf16.msra.mxu0 0
        %2027 = vmatprep.subr.bf16.mxu0 0
        %2028 = vmatpush2.bf16.msra.mxu0 0
        %2029 = vmatprep.subr.bf16.mxu0 0
        %2030 = vmatpush2.bf16.msra.mxu0 0
        %2031 = vmatprep.mubr.bf16.mxu0 0
        %2032 = vmatmul.mubr.bf16.gmra.mxu0 %v1994
        %v2033 = vpop.f32.mrf.mxu0
        %v2034 = vadd.f32 0.0, %v2033
        %v2035 = vpop.f32.mrf.mxu0
        %v2036 = vadd.f32 0.0, %v2035
        %v2037 = vpop.f32.mrf.mxu0
        %v2038 = vadd.f32 0.0, %v2037
        %v2039 = vpop.f32.mrf.mxu0
        %v2040 = vadd.f32 0.0, %v2039
        %2041 = vmatprep.mubr.bf16.mxu0 0
        %2042 = vmatmul.mubr.bf16.gmra.mxu0 %v1997
        %v2043 = vpop.f32.mrf.mxu0
        %v2044 = vadd.f32 0.0, %v2043
        %v2045 = vpop.f32.mrf.mxu0
        %v2046 = vadd.f32 0.0, %v2045
        %v2047 = vpop.f32.mrf.mxu0
        %v2048 = vadd.f32 0.0, %v2047
        %v2049 = vpop.f32.mrf.mxu0
        %v2050 = vadd.f32 0.0, %v2049
        %2051 = vdwg.mxu0
        %2052 = vmatprep.subr.bf16.mxu0 0
        %2053 = vmatpush1.bf16.msra.mxu0 0
        %2054 = vmatprep.subr.bf16.mxu0 0
        %2055 = vmatpush1.bf16.msra.mxu0 0
        %2056 = vmatprep.subr.bf16.mxu0 0
        %2057 = vmatpush1.bf16.msra.mxu0 0
        %2058 = vmatprep.subr.bf16.mxu0 0
        %2059 = vmatpush1.bf16.msra.mxu0 0
        %2060 = vmatprep.subr.bf16.mxu0 0
        %2061 = vmatpush1.bf16.msra.mxu0 0
        %2062 = vmatprep.subr.bf16.mxu0 0
        %2063 = vmatpush1.bf16.msra.mxu0 0
        %2064 = vmatprep.subr.bf16.mxu0 0
        %2065 = vmatpush1.bf16.msra.mxu0 %v1982
        %2066 = vmatprep.subr.bf16.mxu0 0
        %2067 = vmatpush1.bf16.msra.mxu0 %v1979
        %2068 = vmatprep.subr.bf16.mxu0 0
        %2069 = vmatpush2.bf16.msra.mxu0 0
        %2070 = vmatprep.subr.bf16.mxu0 0
        %2071 = vmatpush2.bf16.msra.mxu0 0
        %2072 = vmatprep.subr.bf16.mxu0 0
        %2073 = vmatpush2.bf16.msra.mxu0 0
        %2074 = vmatprep.subr.bf16.mxu0 0
        %2075 = vmatpush2.bf16.msra.mxu0 0
        %2076 = vmatprep.subr.bf16.mxu0 0
        %2077 = vmatpush2.bf16.msra.mxu0 0
        %2078 = vmatprep.subr.bf16.mxu0 0
        %2079 = vmatpush2.bf16.msra.mxu0 0
        %2080 = vmatprep.subr.bf16.mxu0 0
        %2081 = vmatpush2.bf16.msra.mxu0 0
        %2082 = vmatprep.subr.bf16.mxu0 0
        %2083 = vmatpush2.bf16.msra.mxu0 0
        %2084 = vmatprep.mubr.bf16.mxu0 0
        %2085 = vmatmul.mubr.bf16.gmra.mxu0 %v1994
        %v2086 = vpop.f32.mrf.mxu0
        %v2087 = vadd.f32 0.0, %v2086
        %v2088 = vpop.f32.mrf.mxu0
        %v2089 = vpop.f32.mrf.mxu0
        %v2090 = vadd.f32 0.0, %v2089
        %v2091 = vpop.f32.mrf.mxu0
        %2092 = vmatprep.mubr.bf16.mxu0 0
        %2093 = vmatmul.mubr.bf16.gmra.mxu0 %v1997
        %v2094 = vpop.f32.mrf.mxu0
        %v2095 = vadd.f32 0.0, %v2094
        %v2096 = vpop.f32.mrf.mxu0
        %v2097 = vpop.f32.mrf.mxu0
        %v2098 = vadd.f32 0.0, %v2097
        %v2099 = vpop.f32.mrf.mxu0
        %2100 = vdwg.mxu0
        %v2105 = vunpack.c.l.b16 %v1926
        %v2106 = vunpack.c.l.b16 %v1927
        %v2107 = vunpack.c.l.b16 %v1928
        %v2108 = vunpack.c.l.b16 %v1929
        %v2109 = vpack.c.b16 %v2106, %v2105
        %v2110 = vpack.c.b16 %v2108, %v2107
        %v2112 = vsel %vm341, %v2109, 0
        %v2115 = vsel %vm341, %v2110, 0
        %2117 = vmatprep.subr.bf16.mxu0 0
        %2118 = vmatpush1.bf16.msra.mxu0 0
        %2119 = vmatprep.subr.bf16.mxu0 0
        %2120 = vmatpush1.bf16.msra.mxu0 0
        %2121 = vmatprep.subr.bf16.mxu0 0
        %2122 = vmatpush1.bf16.msra.mxu0 0
        %2123 = vmatprep.subr.bf16.mxu0 0
        %2124 = vmatpush1.bf16.msra.mxu0 0
        %2125 = vmatprep.subr.bf16.mxu0 0
        %2126 = vmatpush1.bf16.msra.mxu0 0
        %2127 = vmatprep.subr.bf16.mxu0 0
        %2128 = vmatpush1.bf16.msra.mxu0 0
        %2129 = vmatprep.subr.bf16.mxu0 %v1934
        %2130 = vmatpush1.bf16.msra.mxu0 %v1933
        %2131 = vmatprep.subr.bf16.mxu0 %v1931
        %2132 = vmatpush1.bf16.msra.mxu0 %v1930
        %2133 = vmatprep.subr.bf16.mxu0 0
        %2134 = vmatpush2.bf16.msra.mxu0 0
        %2135 = vmatprep.subr.bf16.mxu0 0
        %2136 = vmatpush2.bf16.msra.mxu0 0
        %2137 = vmatprep.subr.bf16.mxu0 0
        %2138 = vmatpush2.bf16.msra.mxu0 0
        %2139 = vmatprep.subr.bf16.mxu0 0
        %2140 = vmatpush2.bf16.msra.mxu0 0
        %2141 = vmatprep.subr.bf16.mxu0 0
        %2142 = vmatpush2.bf16.msra.mxu0 0
        %2143 = vmatprep.subr.bf16.mxu0 0
        %2144 = vmatpush2.bf16.msra.mxu0 0
        %2145 = vmatprep.subr.bf16.mxu0 0
        %2146 = vmatpush2.bf16.msra.mxu0 0
        %2147 = vmatprep.subr.bf16.mxu0 0
        %2148 = vmatpush2.bf16.msra.mxu0 0
        %2149 = vmatprep.mubr.bf16.mxu0 0
        %2150 = vmatmul.mubr.bf16.gmra.mxu0 %v2112
        %v2151 = vpop.f32.mrf.mxu0
        %v2152 = vadd.f32 %v2034, %v2151
        %v2153 = vpop.f32.mrf.mxu0
        %v2154 = vadd.f32 %v2036, %v2153
        %v2155 = vpop.f32.mrf.mxu0
        %v2156 = vadd.f32 %v2038, %v2155
        %v2157 = vpop.f32.mrf.mxu0
        %v2158 = vadd.f32 %v2040, %v2157
        %2159 = vmatprep.mubr.bf16.mxu0 0
        %2160 = vmatmul.mubr.bf16.gmra.mxu0 %v2115
        %v2161 = vpop.f32.mrf.mxu0
        %v2162 = vadd.f32 %v2044, %v2161
        %v2163 = vpop.f32.mrf.mxu0
        %v2164 = vadd.f32 %v2046, %v2163
        %v2165 = vpop.f32.mrf.mxu0
        %v2166 = vadd.f32 %v2048, %v2165
        %v2167 = vpop.f32.mrf.mxu0
        %v2168 = vadd.f32 %v2050, %v2167
        %2169 = vdwg.mxu0
        %2170 = vmatprep.subr.bf16.mxu0 0
        %2171 = vmatpush1.bf16.msra.mxu0 0
        %2172 = vmatprep.subr.bf16.mxu0 0
        %2173 = vmatpush1.bf16.msra.mxu0 0
        %2174 = vmatprep.subr.bf16.mxu0 0
        %2175 = vmatpush1.bf16.msra.mxu0 0
        %2176 = vmatprep.subr.bf16.mxu0 0
        %2177 = vmatpush1.bf16.msra.mxu0 0
        %2178 = vmatprep.subr.bf16.mxu0 0
        %2179 = vmatpush1.bf16.msra.mxu0 0
        %2180 = vmatprep.subr.bf16.mxu0 0
        %2181 = vmatpush1.bf16.msra.mxu0 0
        %2182 = vmatprep.subr.bf16.mxu0 0
        %2183 = vmatpush1.bf16.msra.mxu0 %v1935
        %2184 = vmatprep.subr.bf16.mxu0 0
        %2185 = vmatpush1.bf16.msra.mxu0 %v1932
        %2186 = vmatprep.subr.bf16.mxu0 0
        %2187 = vmatpush2.bf16.msra.mxu0 0
        %2188 = vmatprep.subr.bf16.mxu0 0
        %2189 = vmatpush2.bf16.msra.mxu0 0
        %2190 = vmatprep.subr.bf16.mxu0 0
        %2191 = vmatpush2.bf16.msra.mxu0 0
        %2192 = vmatprep.subr.bf16.mxu0 0
        %2193 = vmatpush2.bf16.msra.mxu0 0
        %2194 = vmatprep.subr.bf16.mxu0 0
        %2195 = vmatpush2.bf16.msra.mxu0 0
        %2196 = vmatprep.subr.bf16.mxu0 0
        %2197 = vmatpush2.bf16.msra.mxu0 0
        %2198 = vmatprep.subr.bf16.mxu0 0
        %2199 = vmatpush2.bf16.msra.mxu0 0
        %2200 = vmatprep.subr.bf16.mxu0 0
        %2201 = vmatpush2.bf16.msra.mxu0 0
        %2202 = vmatprep.mubr.bf16.mxu0 0
        %2203 = vmatmul.mubr.bf16.gmra.mxu0 %v2112
        %v2204 = vpop.f32.mrf.mxu0
        %v2205 = vadd.f32 %v2087, %v2204
        %v2206 = vpop.f32.mrf.mxu0
        %v2207 = vpop.f32.mrf.mxu0
        %v2208 = vadd.f32 %v2090, %v2207
        %v2209 = vpop.f32.mrf.mxu0
        %2210 = vmatprep.mubr.bf16.mxu0 0
        %2211 = vmatmul.mubr.bf16.gmra.mxu0 %v2115
        %v2212 = vpop.f32.mrf.mxu0
        %v2213 = vadd.f32 %v2095, %v2212
        %v2214 = vpop.f32.mrf.mxu0
        %v2215 = vpop.f32.mrf.mxu0
        %v2216 = vadd.f32 %v2098, %v2215
        %v2217 = vpop.f32.mrf.mxu0
        %2218 = vdwg.mxu0
        %2219 = vrot.lane.b32.xlu0 %v1877, 17
        %v2220 = vpop.permute.xlu0 %2219
        %2221 = vrot.lane.b32.xlu0 %v1880, 17
        %v2222 = vpop.permute.xlu0 %2221
        %2223 = vrot.lane.b32.xlu0 %v1883, 17
        %v2224 = vpop.permute.xlu0 %2223
        %2225 = vrot.lane.b32.xlu0 %v1886, 17
        %v2226 = vpop.permute.xlu0 %2225
        %2227 = vrot.lane.b32.xlu0 %v1878, 17
        %v2228 = vpop.permute.xlu0 %2227
        %2229 = vrot.lane.b32.xlu0 %v1881, 17
        %v2230 = vpop.permute.xlu0 %2229
        %2231 = vrot.lane.b32.xlu0 %v1884, 17
        %v2232 = vpop.permute.xlu0 %2231
        %2233 = vrot.lane.b32.xlu0 %v1887, 17
        %v2234 = vpop.permute.xlu0 %2233
        %2235 = vrot.lane.b32.xlu0 %v1879, 17
        %v2236 = vpop.permute.xlu0 %2235
        %2237 = vrot.lane.b32.xlu0 %v1882, 17
        %v2238 = vpop.permute.xlu0 %2237
        %2239 = vrot.lane.b32.xlu0 %v1885, 17
        %v2240 = vpop.permute.xlu0 %2239
        %2241 = vrot.lane.b32.xlu0 %v1888, 17
        %v2242 = vpop.permute.xlu0 %2241
        %v2243 = vsel %vm592, %v2228, %v2236
        %v2244 = vsel %vm592, %v2230, %v2238
        %v2245 = vsel %vm592, %v2232, %v2240
        %v2246 = vsel %vm592, %v2234, %v2242
        %v2247 = vsel %vm592, %v2220, %v2228
        %v2248 = vsel %vm592, %v2222, %v2230
        %v2249 = vsel %vm592, %v2224, %v2232
        %v2250 = vsel %vm592, %v2226, %v2234
        %v2251 = vsel %vm592, %v2236, %v2220
        %v2252 = vsel %vm592, %v2238, %v2222
        %v2253 = vsel %vm592, %v2240, %v2224
        %v2254 = vsel %vm592, %v2242, %v2226
        %s2255 = scalar_lea.vmem %s2, 176
        %v2256 = vld [vmem:[%s2255] sm:$0xf]
        %v2257 = vld [vmem:[%s2255 + $0x4] sm:$0xf]
        %v2258 = vld [vmem:[%s2255 + $0x8] sm:$0xf]
        %v2259 = vld [vmem:[%s2255 + $0xc] sm:$0xf]
        %v2260 = vpack.c.bf16 %v2252, %v2251
        %v2261 = vpack.c.bf16 %v2248, %v2247
        %v2262 = vpack.c.bf16 %v2244, %v2243
        %v2263 = vpack.c.bf16 %v2254, %v2253
        %v2264 = vpack.c.bf16 %v2250, %v2249
        %v2265 = vpack.c.bf16 %v2246, %v2245
        %v2270 = vunpack.c.l.b16 %v2256
        %v2271 = vunpack.c.l.b16 %v2257
        %v2272 = vunpack.c.l.b16 %v2258
        %v2273 = vunpack.c.l.b16 %v2259
        %v2274 = vpack.c.b16 %v2271, %v2270
        %v2275 = vpack.c.b16 %v2273, %v2272
        %v2277 = vsel %vm341, %v2274, 0
        %v2280 = vsel %vm341, %v2275, 0
        %2282 = vmatprep.subr.bf16.mxu0 0
        %2283 = vmatpush1.bf16.msra.mxu0 0
        %2284 = vmatprep.subr.bf16.mxu0 0
        %2285 = vmatpush1.bf16.msra.mxu0 0
        %2286 = vmatprep.subr.bf16.mxu0 0
        %2287 = vmatpush1.bf16.msra.mxu0 0
        %2288 = vmatprep.subr.bf16.mxu0 0
        %2289 = vmatpush1.bf16.msra.mxu0 0
        %2290 = vmatprep.subr.bf16.mxu0 0
        %2291 = vmatpush1.bf16.msra.mxu0 0
        %2292 = vmatprep.subr.bf16.mxu0 0
        %2293 = vmatpush1.bf16.msra.mxu0 0
        %2294 = vmatprep.subr.bf16.mxu0 %v2264
        %2295 = vmatpush1.bf16.msra.mxu0 %v2263
        %2296 = vmatprep.subr.bf16.mxu0 %v2261
        %2297 = vmatpush1.bf16.msra.mxu0 %v2260
        %2298 = vmatprep.subr.bf16.mxu0 0
        %2299 = vmatpush2.bf16.msra.mxu0 0
        %2300 = vmatprep.subr.bf16.mxu0 0
        %2301 = vmatpush2.bf16.msra.mxu0 0
        %2302 = vmatprep.subr.bf16.mxu0 0
        %2303 = vmatpush2.bf16.msra.mxu0 0
        %2304 = vmatprep.subr.bf16.mxu0 0
        %2305 = vmatpush2.bf16.msra.mxu0 0
        %2306 = vmatprep.subr.bf16.mxu0 0
        %2307 = vmatpush2.bf16.msra.mxu0 0
        %2308 = vmatprep.subr.bf16.mxu0 0
        %2309 = vmatpush2.bf16.msra.mxu0 0
        %2310 = vmatprep.subr.bf16.mxu0 0
        %2311 = vmatpush2.bf16.msra.mxu0 0
        %2312 = vmatprep.subr.bf16.mxu0 0
        %2313 = vmatpush2.bf16.msra.mxu0 0
        %2314 = vmatprep.mubr.bf16.mxu0 0
        %2315 = vmatmul.mubr.bf16.gmra.mxu0 %v2277
        %v2316 = vpop.f32.mrf.mxu0
        %v2317 = vadd.f32 0.0, %v2316
        %v2318 = vpop.f32.mrf.mxu0
        %v2319 = vadd.f32 0.0, %v2318
        %v2320 = vpop.f32.mrf.mxu0
        %v2321 = vadd.f32 0.0, %v2320
        %v2322 = vpop.f32.mrf.mxu0
        %v2323 = vadd.f32 0.0, %v2322
        %2324 = vmatprep.mubr.bf16.mxu0 0
        %2325 = vmatmul.mubr.bf16.gmra.mxu0 %v2280
        %v2326 = vpop.f32.mrf.mxu0
        %v2327 = vadd.f32 0.0, %v2326
        %v2328 = vpop.f32.mrf.mxu0
        %v2329 = vadd.f32 0.0, %v2328
        %v2330 = vpop.f32.mrf.mxu0
        %v2331 = vadd.f32 0.0, %v2330
        %v2332 = vpop.f32.mrf.mxu0
        %v2333 = vadd.f32 0.0, %v2332
        %2334 = vdwg.mxu0
        %2335 = vmatprep.subr.bf16.mxu0 0
        %2336 = vmatpush1.bf16.msra.mxu0 0
        %2337 = vmatprep.subr.bf16.mxu0 0
        %2338 = vmatpush1.bf16.msra.mxu0 0
        %2339 = vmatprep.subr.bf16.mxu0 0
        %2340 = vmatpush1.bf16.msra.mxu0 0
        %2341 = vmatprep.subr.bf16.mxu0 0
        %2342 = vmatpush1.bf16.msra.mxu0 0
        %2343 = vmatprep.subr.bf16.mxu0 0
        %2344 = vmatpush1.bf16.msra.mxu0 0
        %2345 = vmatprep.subr.bf16.mxu0 0
        %2346 = vmatpush1.bf16.msra.mxu0 0
        %2347 = vmatprep.subr.bf16.mxu0 0
        %2348 = vmatpush1.bf16.msra.mxu0 %v2265
        %2349 = vmatprep.subr.bf16.mxu0 0
        %2350 = vmatpush1.bf16.msra.mxu0 %v2262
        %2351 = vmatprep.subr.bf16.mxu0 0
        %2352 = vmatpush2.bf16.msra.mxu0 0
        %2353 = vmatprep.subr.bf16.mxu0 0
        %2354 = vmatpush2.bf16.msra.mxu0 0
        %2355 = vmatprep.subr.bf16.mxu0 0
        %2356 = vmatpush2.bf16.msra.mxu0 0
        %2357 = vmatprep.subr.bf16.mxu0 0
        %2358 = vmatpush2.bf16.msra.mxu0 0
        %2359 = vmatprep.subr.bf16.mxu0 0
        %2360 = vmatpush2.bf16.msra.mxu0 0
        %2361 = vmatprep.subr.bf16.mxu0 0
        %2362 = vmatpush2.bf16.msra.mxu0 0
        %2363 = vmatprep.subr.bf16.mxu0 0
        %2364 = vmatpush2.bf16.msra.mxu0 0
        %2365 = vmatprep.subr.bf16.mxu0 0
        %2366 = vmatpush2.bf16.msra.mxu0 0
        %2367 = vmatprep.mubr.bf16.mxu0 0
        %2368 = vmatmul.mubr.bf16.gmra.mxu0 %v2277
        %v2369 = vpop.f32.mrf.mxu0
        %v2370 = vadd.f32 0.0, %v2369
        %v2371 = vpop.f32.mrf.mxu0
        %v2372 = vpop.f32.mrf.mxu0
        %v2373 = vadd.f32 0.0, %v2372
        %v2374 = vpop.f32.mrf.mxu0
        %2375 = vmatprep.mubr.bf16.mxu0 0
        %2376 = vmatmul.mubr.bf16.gmra.mxu0 %v2280
        %v2377 = vpop.f32.mrf.mxu0
        %v2378 = vadd.f32 0.0, %v2377
        %v2379 = vpop.f32.mrf.mxu0
        %v2380 = vpop.f32.mrf.mxu0
        %v2381 = vadd.f32 0.0, %v2380
        %v2382 = vpop.f32.mrf.mxu0
        %2383 = vdwg.mxu0
        %v2384 = vadd.f32 %v2152, %v2317
        %v2385 = vadd.f32 %v2154, %v2319
        %v2386 = vadd.f32 %v2205, %v2370
        %v2387 = vadd.f32 %v2156, %v2321
        %v2388 = vadd.f32 %v2158, %v2323
        %v2389 = vadd.f32 %v2208, %v2373
        %v2390 = vadd.f32 %v2162, %v2327
        %v2391 = vadd.f32 %v2164, %v2329
        %v2392 = vadd.f32 %v2213, %v2378
        %v2393 = vadd.f32 %v2166, %v2331
        %v2394 = vadd.f32 %v2168, %v2333
        %v2395 = vadd.f32 %v2216, %v2381
        %2396 = vrot.lane.b32.xlu0 %v1877, 1
        %v2397 = vpop.permute.xlu0 %2396
        %2398 = vrot.lane.b32.xlu0 %v1880, 1
        %v2399 = vpop.permute.xlu0 %2398
        %2400 = vrot.lane.b32.xlu0 %v1883, 1
        %v2401 = vpop.permute.xlu0 %2400
        %2402 = vrot.lane.b32.xlu0 %v1886, 1
        %v2403 = vpop.permute.xlu0 %2402
        %2404 = vrot.lane.b32.xlu0 %v1878, 1
        %v2405 = vpop.permute.xlu0 %2404
        %2406 = vrot.lane.b32.xlu0 %v1881, 1
        %v2407 = vpop.permute.xlu0 %2406
        %2408 = vrot.lane.b32.xlu0 %v1884, 1
        %v2409 = vpop.permute.xlu0 %2408
        %2410 = vrot.lane.b32.xlu0 %v1887, 1
        %v2411 = vpop.permute.xlu0 %2410
        %2412 = vrot.lane.b32.xlu0 %v1879, 1
        %v2413 = vpop.permute.xlu0 %2412
        %2414 = vrot.lane.b32.xlu0 %v1882, 1
        %v2415 = vpop.permute.xlu0 %2414
        %2416 = vrot.lane.b32.xlu0 %v1885, 1
        %v2417 = vpop.permute.xlu0 %2416
        %2418 = vrot.lane.b32.xlu0 %v1888, 1
        %v2419 = vpop.permute.xlu0 %2418
        %v2420 = vsel %vm770, %v2405, %v2413
        %v2421 = vsel %vm770, %v2407, %v2415
        %v2422 = vsel %vm770, %v2409, %v2417
        %v2423 = vsel %vm770, %v2411, %v2419
        %v2424 = vsel %vm770, %v2397, %v2405
        %v2425 = vsel %vm770, %v2399, %v2407
        %v2426 = vsel %vm770, %v2401, %v2409
        %v2427 = vsel %vm770, %v2403, %v2411
        %v2428 = vsel %vm770, %v2413, %v2397
        %v2429 = vsel %vm770, %v2415, %v2399
        %v2430 = vsel %vm770, %v2417, %v2401
        %v2431 = vsel %vm770, %v2419, %v2403
        %s2432 = scalar_lea.vmem %s2, 192
        %v2433 = vld [vmem:[%s2432] sm:$0xf]
        %v2434 = vld [vmem:[%s2432 + $0x4] sm:$0xf]
        %v2435 = vld [vmem:[%s2432 + $0x8] sm:$0xf]
        %v2436 = vld [vmem:[%s2432 + $0xc] sm:$0xf]
        %v2437 = vpack.c.bf16 %v2429, %v2428
        %v2438 = vpack.c.bf16 %v2425, %v2424
        %v2439 = vpack.c.bf16 %v2421, %v2420
        %v2440 = vpack.c.bf16 %v2431, %v2430
        %v2441 = vpack.c.bf16 %v2427, %v2426
        %v2442 = vpack.c.bf16 %v2423, %v2422
        %v2447 = vunpack.c.l.b16 %v2433
        %v2448 = vunpack.c.l.b16 %v2434
        %v2449 = vunpack.c.l.b16 %v2435
        %v2450 = vunpack.c.l.b16 %v2436
        %v2451 = vpack.c.b16 %v2448, %v2447
        %v2452 = vpack.c.b16 %v2450, %v2449
        %v2454 = vsel %vm341, %v2451, 0
        %v2457 = vsel %vm341, %v2452, 0
        %2459 = vmatprep.subr.bf16.mxu0 0
        %2460 = vmatpush1.bf16.msra.mxu0 0
        %2461 = vmatprep.subr.bf16.mxu0 0
        %2462 = vmatpush1.bf16.msra.mxu0 0
        %2463 = vmatprep.subr.bf16.mxu0 0
        %2464 = vmatpush1.bf16.msra.mxu0 0
        %2465 = vmatprep.subr.bf16.mxu0 0
        %2466 = vmatpush1.bf16.msra.mxu0 0
        %2467 = vmatprep.subr.bf16.mxu0 0
        %2468 = vmatpush1.bf16.msra.mxu0 0
        %2469 = vmatprep.subr.bf16.mxu0 0
        %2470 = vmatpush1.bf16.msra.mxu0 0
        %2471 = vmatprep.subr.bf16.mxu0 %v2441
        %2472 = vmatpush1.bf16.msra.mxu0 %v2440
        %2473 = vmatprep.subr.bf16.mxu0 %v2438
        %2474 = vmatpush1.bf16.msra.mxu0 %v2437
        %2475 = vmatprep.subr.bf16.mxu0 0
        %2476 = vmatpush2.bf16.msra.mxu0 0
        %2477 = vmatprep.subr.bf16.mxu0 0
        %2478 = vmatpush2.bf16.msra.mxu0 0
        %2479 = vmatprep.subr.bf16.mxu0 0
        %2480 = vmatpush2.bf16.msra.mxu0 0
        %2481 = vmatprep.subr.bf16.mxu0 0
        %2482 = vmatpush2.bf16.msra.mxu0 0
        %2483 = vmatprep.subr.bf16.mxu0 0
        %2484 = vmatpush2.bf16.msra.mxu0 0
        %2485 = vmatprep.subr.bf16.mxu0 0
        %2486 = vmatpush2.bf16.msra.mxu0 0
        %2487 = vmatprep.subr.bf16.mxu0 0
        %2488 = vmatpush2.bf16.msra.mxu0 0
        %2489 = vmatprep.subr.bf16.mxu0 0
        %2490 = vmatpush2.bf16.msra.mxu0 0
        %2491 = vmatprep.mubr.bf16.mxu0 0
        %2492 = vmatmul.mubr.bf16.gmra.mxu0 %v2454
        %v2493 = vpop.f32.mrf.mxu0
        %v2494 = vadd.f32 0.0, %v2493
        %v2495 = vpop.f32.mrf.mxu0
        %v2496 = vadd.f32 0.0, %v2495
        %v2497 = vpop.f32.mrf.mxu0
        %v2498 = vadd.f32 0.0, %v2497
        %v2499 = vpop.f32.mrf.mxu0
        %v2500 = vadd.f32 0.0, %v2499
        %2501 = vmatprep.mubr.bf16.mxu0 0
        %2502 = vmatmul.mubr.bf16.gmra.mxu0 %v2457
        %v2503 = vpop.f32.mrf.mxu0
        %v2504 = vadd.f32 0.0, %v2503
        %v2505 = vpop.f32.mrf.mxu0
        %v2506 = vadd.f32 0.0, %v2505
        %v2507 = vpop.f32.mrf.mxu0
        %v2508 = vadd.f32 0.0, %v2507
        %v2509 = vpop.f32.mrf.mxu0
        %v2510 = vadd.f32 0.0, %v2509
        %2511 = vdwg.mxu0
        %2512 = vmatprep.subr.bf16.mxu0 0
        %2513 = vmatpush1.bf16.msra.mxu0 0
        %2514 = vmatprep.subr.bf16.mxu0 0
        %2515 = vmatpush1.bf16.msra.mxu0 0
        %2516 = vmatprep.subr.bf16.mxu0 0
        %2517 = vmatpush1.bf16.msra.mxu0 0
        %2518 = vmatprep.subr.bf16.mxu0 0
        %2519 = vmatpush1.bf16.msra.mxu0 0
        %2520 = vmatprep.subr.bf16.mxu0 0
        %2521 = vmatpush1.bf16.msra.mxu0 0
        %2522 = vmatprep.subr.bf16.mxu0 0
        %2523 = vmatpush1.bf16.msra.mxu0 0
        %2524 = vmatprep.subr.bf16.mxu0 0
        %2525 = vmatpush1.bf16.msra.mxu0 %v2442
        %2526 = vmatprep.subr.bf16.mxu0 0
        %2527 = vmatpush1.bf16.msra.mxu0 %v2439
        %2528 = vmatprep.subr.bf16.mxu0 0
        %2529 = vmatpush2.bf16.msra.mxu0 0
        %2530 = vmatprep.subr.bf16.mxu0 0
        %2531 = vmatpush2.bf16.msra.mxu0 0
        %2532 = vmatprep.subr.bf16.mxu0 0
        %2533 = vmatpush2.bf16.msra.mxu0 0
        %2534 = vmatprep.subr.bf16.mxu0 0
        %2535 = vmatpush2.bf16.msra.mxu0 0
        %2536 = vmatprep.subr.bf16.mxu0 0
        %2537 = vmatpush2.bf16.msra.mxu0 0
        %2538 = vmatprep.subr.bf16.mxu0 0
        %2539 = vmatpush2.bf16.msra.mxu0 0
        %2540 = vmatprep.subr.bf16.mxu0 0
        %2541 = vmatpush2.bf16.msra.mxu0 0
        %2542 = vmatprep.subr.bf16.mxu0 0
        %2543 = vmatpush2.bf16.msra.mxu0 0
        %2544 = vmatprep.mubr.bf16.mxu0 0
        %2545 = vmatmul.mubr.bf16.gmra.mxu0 %v2454
        %v2546 = vpop.f32.mrf.mxu0
        %v2547 = vadd.f32 0.0, %v2546
        %v2548 = vpop.f32.mrf.mxu0
        %v2549 = vpop.f32.mrf.mxu0
        %v2550 = vadd.f32 0.0, %v2549
        %v2551 = vpop.f32.mrf.mxu0
        %2552 = vmatprep.mubr.bf16.mxu0 0
        %2553 = vmatmul.mubr.bf16.gmra.mxu0 %v2457
        %v2554 = vpop.f32.mrf.mxu0
        %v2555 = vadd.f32 0.0, %v2554
        %v2556 = vpop.f32.mrf.mxu0
        %v2557 = vpop.f32.mrf.mxu0
        %v2558 = vadd.f32 0.0, %v2557
        %v2559 = vpop.f32.mrf.mxu0
        %2560 = vdwg.mxu0
        %v2561 = vadd.f32 %v2384, %v2494
        %v2562 = vadd.f32 %v2385, %v2496
        %v2563 = vadd.f32 %v2386, %v2547
        %v2564 = vadd.f32 %v2387, %v2498
        %v2565 = vadd.f32 %v2388, %v2500
        %v2566 = vadd.f32 %v2389, %v2550
        %v2567 = vadd.f32 %v2390, %v2504
        %v2568 = vadd.f32 %v2391, %v2506
        %v2569 = vadd.f32 %v2392, %v2555
        %v2570 = vadd.f32 %v2393, %v2508
        %v2571 = vadd.f32 %v2394, %v2510
        %v2572 = vadd.f32 %v2395, %v2558
        %s2573 = scalar_lea.vmem %s2, 208
        %v2574 = vld [vmem:[%s2573] sm:$0xf]
        %v2575 = vld [vmem:[%s2573 + $0x4] sm:$0xf]
        %v2576 = vld [vmem:[%s2573 + $0x8] sm:$0xf]
        %v2577 = vld [vmem:[%s2573 + $0xc] sm:$0xf]
        %v2578 = vpack.c.bf16 %v1880, %v1877
        %v2579 = vpack.c.bf16 %v1881, %v1878
        %v2580 = vpack.c.bf16 %v1882, %v1879
        %v2581 = vpack.c.bf16 %v1886, %v1883
        %v2582 = vpack.c.bf16 %v1887, %v1884
        %v2583 = vpack.c.bf16 %v1888, %v1885
        %v2588 = vunpack.c.l.b16 %v2574
        %v2589 = vunpack.c.l.b16 %v2575
        %v2590 = vunpack.c.l.b16 %v2576
        %v2591 = vunpack.c.l.b16 %v2577
        %v2592 = vpack.c.b16 %v2589, %v2588
        %v2593 = vpack.c.b16 %v2591, %v2590
        %v2595 = vsel %vm341, %v2592, 0
        %v2598 = vsel %vm341, %v2593, 0
        %2600 = vmatprep.subr.bf16.mxu0 0
        %2601 = vmatpush1.bf16.msra.mxu0 0
        %2602 = vmatprep.subr.bf16.mxu0 0
        %2603 = vmatpush1.bf16.msra.mxu0 0
        %2604 = vmatprep.subr.bf16.mxu0 0
        %2605 = vmatpush1.bf16.msra.mxu0 0
        %2606 = vmatprep.subr.bf16.mxu0 0
        %2607 = vmatpush1.bf16.msra.mxu0 0
        %2608 = vmatprep.subr.bf16.mxu0 0
        %2609 = vmatpush1.bf16.msra.mxu0 0
        %2610 = vmatprep.subr.bf16.mxu0 0
        %2611 = vmatpush1.bf16.msra.mxu0 0
        %2612 = vmatprep.subr.bf16.mxu0 %v2582
        %2613 = vmatpush1.bf16.msra.mxu0 %v2581
        %2614 = vmatprep.subr.bf16.mxu0 %v2579
        %2615 = vmatpush1.bf16.msra.mxu0 %v2578
        %2616 = vmatprep.subr.bf16.mxu0 0
        %2617 = vmatpush2.bf16.msra.mxu0 0
        %2618 = vmatprep.subr.bf16.mxu0 0
        %2619 = vmatpush2.bf16.msra.mxu0 0
        %2620 = vmatprep.subr.bf16.mxu0 0
        %2621 = vmatpush2.bf16.msra.mxu0 0
        %2622 = vmatprep.subr.bf16.mxu0 0
        %2623 = vmatpush2.bf16.msra.mxu0 0
        %2624 = vmatprep.subr.bf16.mxu0 0
        %2625 = vmatpush2.bf16.msra.mxu0 0
        %2626 = vmatprep.subr.bf16.mxu0 0
        %2627 = vmatpush2.bf16.msra.mxu0 0
        %2628 = vmatprep.subr.bf16.mxu0 0
        %2629 = vmatpush2.bf16.msra.mxu0 0
        %2630 = vmatprep.subr.bf16.mxu0 0
        %2631 = vmatpush2.bf16.msra.mxu0 0
        %2632 = vmatprep.mubr.bf16.mxu0 0
        %2633 = vmatmul.mubr.bf16.gmra.mxu0 %v2595
        %v2634 = vpop.f32.mrf.mxu0
        %v2635 = vadd.f32 0.0, %v2634
        %v2636 = vpop.f32.mrf.mxu0
        %v2637 = vadd.f32 0.0, %v2636
        %v2638 = vpop.f32.mrf.mxu0
        %v2639 = vadd.f32 0.0, %v2638
        %v2640 = vpop.f32.mrf.mxu0
        %v2641 = vadd.f32 0.0, %v2640
        %2642 = vmatprep.mubr.bf16.mxu0 0
        %2643 = vmatmul.mubr.bf16.gmra.mxu0 %v2598
        %v2644 = vpop.f32.mrf.mxu0
        %v2645 = vadd.f32 0.0, %v2644
        %v2646 = vpop.f32.mrf.mxu0
        %v2647 = vadd.f32 0.0, %v2646
        %v2648 = vpop.f32.mrf.mxu0
        %v2649 = vadd.f32 0.0, %v2648
        %v2650 = vpop.f32.mrf.mxu0
        %v2651 = vadd.f32 0.0, %v2650
        %2652 = vdwg.mxu0
        %2653 = vmatprep.subr.bf16.mxu0 0
        %2654 = vmatpush1.bf16.msra.mxu0 0
        %2655 = vmatprep.subr.bf16.mxu0 0
        %2656 = vmatpush1.bf16.msra.mxu0 0
        %2657 = vmatprep.subr.bf16.mxu0 0
        %2658 = vmatpush1.bf16.msra.mxu0 0
        %2659 = vmatprep.subr.bf16.mxu0 0
        %2660 = vmatpush1.bf16.msra.mxu0 0
        %2661 = vmatprep.subr.bf16.mxu0 0
        %2662 = vmatpush1.bf16.msra.mxu0 0
        %2663 = vmatprep.subr.bf16.mxu0 0
        %2664 = vmatpush1.bf16.msra.mxu0 0
        %2665 = vmatprep.subr.bf16.mxu0 0
        %2666 = vmatpush1.bf16.msra.mxu0 %v2583
        %2667 = vmatprep.subr.bf16.mxu0 0
        %2668 = vmatpush1.bf16.msra.mxu0 %v2580
        %2669 = vmatprep.subr.bf16.mxu0 0
        %2670 = vmatpush2.bf16.msra.mxu0 0
        %2671 = vmatprep.subr.bf16.mxu0 0
        %2672 = vmatpush2.bf16.msra.mxu0 0
        %2673 = vmatprep.subr.bf16.mxu0 0
        %2674 = vmatpush2.bf16.msra.mxu0 0
        %2675 = vmatprep.subr.bf16.mxu0 0
        %2676 = vmatpush2.bf16.msra.mxu0 0
        %2677 = vmatprep.subr.bf16.mxu0 0
        %2678 = vmatpush2.bf16.msra.mxu0 0
        %2679 = vmatprep.subr.bf16.mxu0 0
        %2680 = vmatpush2.bf16.msra.mxu0 0
        %2681 = vmatprep.subr.bf16.mxu0 0
        %2682 = vmatpush2.bf16.msra.mxu0 0
        %2683 = vmatprep.subr.bf16.mxu0 0
        %2684 = vmatpush2.bf16.msra.mxu0 0
        %2685 = vmatprep.mubr.bf16.mxu0 0
        %2686 = vmatmul.mubr.bf16.gmra.mxu0 %v2595
        %v2687 = vpop.f32.mrf.mxu0
        %v2688 = vadd.f32 0.0, %v2687
        %v2689 = vpop.f32.mrf.mxu0
        %v2690 = vpop.f32.mrf.mxu0
        %v2691 = vadd.f32 0.0, %v2690
        %v2692 = vpop.f32.mrf.mxu0
        %2693 = vmatprep.mubr.bf16.mxu0 0
        %2694 = vmatmul.mubr.bf16.gmra.mxu0 %v2598
        %v2695 = vpop.f32.mrf.mxu0
        %v2696 = vadd.f32 0.0, %v2695
        %v2697 = vpop.f32.mrf.mxu0
        %v2698 = vpop.f32.mrf.mxu0
        %v2699 = vadd.f32 0.0, %v2698
        %v2700 = vpop.f32.mrf.mxu0
        %2701 = vdwg.mxu0
        %v2702 = vadd.f32 %v2561, %v2635
        %v2703 = vadd.f32 %v2562, %v2637
        %v2704 = vadd.f32 %v2563, %v2688
        %v2705 = vadd.f32 %v2564, %v2639
        %v2706 = vadd.f32 %v2565, %v2641
        %v2707 = vadd.f32 %v2566, %v2691
        %v2708 = vadd.f32 %v2567, %v2645
        %v2709 = vadd.f32 %v2568, %v2647
        %v2710 = vadd.f32 %v2569, %v2696
        %v2711 = vadd.f32 %v2570, %v2649
        %v2712 = vadd.f32 %v2571, %v2651
        %v2713 = vadd.f32 %v2572, %v2699
        %2714 = vrot.lane.b32.xlu0 %v1877, 127
        %v2715 = vpop.permute.xlu0 %2714
        %2716 = vrot.lane.b32.xlu0 %v1880, 127
        %v2717 = vpop.permute.xlu0 %2716
        %2718 = vrot.lane.b32.xlu0 %v1883, 127
        %v2719 = vpop.permute.xlu0 %2718
        %2720 = vrot.lane.b32.xlu0 %v1886, 127
        %v2721 = vpop.permute.xlu0 %2720
        %2722 = vrot.lane.b32.xlu0 %v1878, 127
        %v2723 = vpop.permute.xlu0 %2722
        %2724 = vrot.lane.b32.xlu0 %v1881, 127
        %v2725 = vpop.permute.xlu0 %2724
        %2726 = vrot.lane.b32.xlu0 %v1884, 127
        %v2727 = vpop.permute.xlu0 %2726
        %2728 = vrot.lane.b32.xlu0 %v1887, 127
        %v2729 = vpop.permute.xlu0 %2728
        %2730 = vrot.lane.b32.xlu0 %v1879, 127
        %v2731 = vpop.permute.xlu0 %2730
        %2732 = vrot.lane.b32.xlu0 %v1882, 127
        %v2733 = vpop.permute.xlu0 %2732
        %2734 = vrot.lane.b32.xlu0 %v1885, 127
        %v2735 = vpop.permute.xlu0 %2734
        %2736 = vrot.lane.b32.xlu0 %v1888, 127
        %v2737 = vpop.permute.xlu0 %2736
        %v2738 = vsel %vm1089, %v2723, %v2731
        %v2739 = vsel %vm1089, %v2725, %v2733
        %v2740 = vsel %vm1089, %v2727, %v2735
        %v2741 = vsel %vm1089, %v2729, %v2737
        %v2742 = vsel %vm1089, %v2715, %v2723
        %v2743 = vsel %vm1089, %v2717, %v2725
        %v2744 = vsel %vm1089, %v2719, %v2727
        %v2745 = vsel %vm1089, %v2721, %v2729
        %v2746 = vsel %vm1089, %v2731, %v2715
        %v2747 = vsel %vm1089, %v2733, %v2717
        %v2748 = vsel %vm1089, %v2735, %v2719
        %v2749 = vsel %vm1089, %v2737, %v2721
        %s2750 = scalar_lea.vmem %s2, 224
        %v2751 = vld [vmem:[%s2750] sm:$0xf]
        %v2752 = vld [vmem:[%s2750 + $0x4] sm:$0xf]
        %v2753 = vld [vmem:[%s2750 + $0x8] sm:$0xf]
        %v2754 = vld [vmem:[%s2750 + $0xc] sm:$0xf]
        %v2755 = vpack.c.bf16 %v2743, %v2742
        %v2756 = vpack.c.bf16 %v2739, %v2738
        %v2757 = vpack.c.bf16 %v2747, %v2746
        %v2758 = vpack.c.bf16 %v2745, %v2744
        %v2759 = vpack.c.bf16 %v2741, %v2740
        %v2760 = vpack.c.bf16 %v2749, %v2748
        %v2765 = vunpack.c.l.b16 %v2751
        %v2766 = vunpack.c.l.b16 %v2752
        %v2767 = vunpack.c.l.b16 %v2753
        %v2768 = vunpack.c.l.b16 %v2754
        %v2769 = vpack.c.b16 %v2766, %v2765
        %v2770 = vpack.c.b16 %v2768, %v2767
        %v2772 = vsel %vm341, %v2769, 0
        %v2775 = vsel %vm341, %v2770, 0
        %2777 = vmatprep.subr.bf16.mxu0 0
        %2778 = vmatpush1.bf16.msra.mxu0 0
        %2779 = vmatprep.subr.bf16.mxu0 0
        %2780 = vmatpush1.bf16.msra.mxu0 0
        %2781 = vmatprep.subr.bf16.mxu0 0
        %2782 = vmatpush1.bf16.msra.mxu0 0
        %2783 = vmatprep.subr.bf16.mxu0 0
        %2784 = vmatpush1.bf16.msra.mxu0 0
        %2785 = vmatprep.subr.bf16.mxu0 0
        %2786 = vmatpush1.bf16.msra.mxu0 0
        %2787 = vmatprep.subr.bf16.mxu0 0
        %2788 = vmatpush1.bf16.msra.mxu0 0
        %2789 = vmatprep.subr.bf16.mxu0 %v2759
        %2790 = vmatpush1.bf16.msra.mxu0 %v2758
        %2791 = vmatprep.subr.bf16.mxu0 %v2756
        %2792 = vmatpush1.bf16.msra.mxu0 %v2755
        %2793 = vmatprep.subr.bf16.mxu0 0
        %2794 = vmatpush2.bf16.msra.mxu0 0
        %2795 = vmatprep.subr.bf16.mxu0 0
        %2796 = vmatpush2.bf16.msra.mxu0 0
        %2797 = vmatprep.subr.bf16.mxu0 0
        %2798 = vmatpush2.bf16.msra.mxu0 0
        %2799 = vmatprep.subr.bf16.mxu0 0
        %2800 = vmatpush2.bf16.msra.mxu0 0
        %2801 = vmatprep.subr.bf16.mxu0 0
        %2802 = vmatpush2.bf16.msra.mxu0 0
        %2803 = vmatprep.subr.bf16.mxu0 0
        %2804 = vmatpush2.bf16.msra.mxu0 0
        %2805 = vmatprep.subr.bf16.mxu0 0
        %2806 = vmatpush2.bf16.msra.mxu0 0
        %2807 = vmatprep.subr.bf16.mxu0 0
        %2808 = vmatpush2.bf16.msra.mxu0 0
        %2809 = vmatprep.mubr.bf16.mxu0 0
        %2810 = vmatmul.mubr.bf16.gmra.mxu0 %v2772
        %v2811 = vpop.f32.mrf.mxu0
        %v2812 = vadd.f32 0.0, %v2811
        %v2813 = vpop.f32.mrf.mxu0
        %v2814 = vadd.f32 0.0, %v2813
        %v2815 = vpop.f32.mrf.mxu0
        %v2816 = vadd.f32 0.0, %v2815
        %v2817 = vpop.f32.mrf.mxu0
        %v2818 = vadd.f32 0.0, %v2817
        %2819 = vmatprep.mubr.bf16.mxu0 0
        %2820 = vmatmul.mubr.bf16.gmra.mxu0 %v2775
        %v2821 = vpop.f32.mrf.mxu0
        %v2822 = vadd.f32 0.0, %v2821
        %v2823 = vpop.f32.mrf.mxu0
        %v2824 = vadd.f32 0.0, %v2823
        %v2825 = vpop.f32.mrf.mxu0
        %v2826 = vadd.f32 0.0, %v2825
        %v2827 = vpop.f32.mrf.mxu0
        %v2828 = vadd.f32 0.0, %v2827
        %2829 = vdwg.mxu0
        %2830 = vmatprep.subr.bf16.mxu0 0
        %2831 = vmatpush1.bf16.msra.mxu0 0
        %2832 = vmatprep.subr.bf16.mxu0 0
        %2833 = vmatpush1.bf16.msra.mxu0 0
        %2834 = vmatprep.subr.bf16.mxu0 0
        %2835 = vmatpush1.bf16.msra.mxu0 0
        %2836 = vmatprep.subr.bf16.mxu0 0
        %2837 = vmatpush1.bf16.msra.mxu0 0
        %2838 = vmatprep.subr.bf16.mxu0 0
        %2839 = vmatpush1.bf16.msra.mxu0 0
        %2840 = vmatprep.subr.bf16.mxu0 0
        %2841 = vmatpush1.bf16.msra.mxu0 0
        %2842 = vmatprep.subr.bf16.mxu0 0
        %2843 = vmatpush1.bf16.msra.mxu0 %v2760
        %2844 = vmatprep.subr.bf16.mxu0 0
        %2845 = vmatpush1.bf16.msra.mxu0 %v2757
        %2846 = vmatprep.subr.bf16.mxu0 0
        %2847 = vmatpush2.bf16.msra.mxu0 0
        %2848 = vmatprep.subr.bf16.mxu0 0
        %2849 = vmatpush2.bf16.msra.mxu0 0
        %2850 = vmatprep.subr.bf16.mxu0 0
        %2851 = vmatpush2.bf16.msra.mxu0 0
        %2852 = vmatprep.subr.bf16.mxu0 0
        %2853 = vmatpush2.bf16.msra.mxu0 0
        %2854 = vmatprep.subr.bf16.mxu0 0
        %2855 = vmatpush2.bf16.msra.mxu0 0
        %2856 = vmatprep.subr.bf16.mxu0 0
        %2857 = vmatpush2.bf16.msra.mxu0 0
        %2858 = vmatprep.subr.bf16.mxu0 0
        %2859 = vmatpush2.bf16.msra.mxu0 0
        %2860 = vmatprep.subr.bf16.mxu0 0
        %2861 = vmatpush2.bf16.msra.mxu0 0
        %2862 = vmatprep.mubr.bf16.mxu0 0
        %2863 = vmatmul.mubr.bf16.gmra.mxu0 %v2772
        %v2864 = vpop.f32.mrf.mxu0
        %v2865 = vadd.f32 0.0, %v2864
        %v2866 = vpop.f32.mrf.mxu0
        %v2867 = vpop.f32.mrf.mxu0
        %v2868 = vadd.f32 0.0, %v2867
        %v2869 = vpop.f32.mrf.mxu0
        %2870 = vmatprep.mubr.bf16.mxu0 0
        %2871 = vmatmul.mubr.bf16.gmra.mxu0 %v2775
        %v2872 = vpop.f32.mrf.mxu0
        %v2873 = vadd.f32 0.0, %v2872
        %v2874 = vpop.f32.mrf.mxu0
        %v2875 = vpop.f32.mrf.mxu0
        %v2876 = vadd.f32 0.0, %v2875
        %v2877 = vpop.f32.mrf.mxu0
        %2878 = vdwg.mxu0
        %v2879 = vadd.f32 %v2702, %v2812
        %v2880 = vadd.f32 %v2703, %v2814
        %v2881 = vadd.f32 %v2704, %v2865
        %v2882 = vadd.f32 %v2705, %v2816
        %v2883 = vadd.f32 %v2706, %v2818
        %v2884 = vadd.f32 %v2707, %v2868
        %v2885 = vadd.f32 %v2708, %v2822
        %v2886 = vadd.f32 %v2709, %v2824
        %v2887 = vadd.f32 %v2710, %v2873
        %v2888 = vadd.f32 %v2711, %v2826
        %v2889 = vadd.f32 %v2712, %v2828
        %v2890 = vadd.f32 %v2713, %v2876
        %2891 = vrot.lane.b32.xlu0 %v1877, 111
        %v2892 = vpop.permute.xlu0 %2891
        %2893 = vrot.lane.b32.xlu0 %v1880, 111
        %v2894 = vpop.permute.xlu0 %2893
        %2895 = vrot.lane.b32.xlu0 %v1883, 111
        %v2896 = vpop.permute.xlu0 %2895
        %2897 = vrot.lane.b32.xlu0 %v1886, 111
        %v2898 = vpop.permute.xlu0 %2897
        %2899 = vrot.lane.b32.xlu0 %v1878, 111
        %v2900 = vpop.permute.xlu0 %2899
        %2901 = vrot.lane.b32.xlu0 %v1881, 111
        %v2902 = vpop.permute.xlu0 %2901
        %2903 = vrot.lane.b32.xlu0 %v1884, 111
        %v2904 = vpop.permute.xlu0 %2903
        %2905 = vrot.lane.b32.xlu0 %v1887, 111
        %v2906 = vpop.permute.xlu0 %2905
        %2907 = vrot.lane.b32.xlu0 %v1879, 111
        %v2908 = vpop.permute.xlu0 %2907
        %2909 = vrot.lane.b32.xlu0 %v1882, 111
        %v2910 = vpop.permute.xlu0 %2909
        %2911 = vrot.lane.b32.xlu0 %v1885, 111
        %v2912 = vpop.permute.xlu0 %2911
        %2913 = vrot.lane.b32.xlu0 %v1888, 111
        %v2914 = vpop.permute.xlu0 %2913
        %v2915 = vsel %vm1267, %v2900, %v2908
        %v2916 = vsel %vm1267, %v2902, %v2910
        %v2917 = vsel %vm1267, %v2904, %v2912
        %v2918 = vsel %vm1267, %v2906, %v2914
        %v2919 = vsel %vm1267, %v2892, %v2900
        %v2920 = vsel %vm1267, %v2894, %v2902
        %v2921 = vsel %vm1267, %v2896, %v2904
        %v2922 = vsel %vm1267, %v2898, %v2906
        %v2923 = vsel %vm1267, %v2908, %v2892
        %v2924 = vsel %vm1267, %v2910, %v2894
        %v2925 = vsel %vm1267, %v2912, %v2896
        %v2926 = vsel %vm1267, %v2914, %v2898
        %s2927 = scalar_lea.vmem %s2, 240
        %v2928 = vld [vmem:[%s2927] sm:$0xf]
        %v2929 = vld [vmem:[%s2927 + $0x4] sm:$0xf]
        %v2930 = vld [vmem:[%s2927 + $0x8] sm:$0xf]
        %v2931 = vld [vmem:[%s2927 + $0xc] sm:$0xf]
        %v2932 = vpack.c.bf16 %v2920, %v2919
        %v2933 = vpack.c.bf16 %v2916, %v2915
        %v2934 = vpack.c.bf16 %v2924, %v2923
        %v2935 = vpack.c.bf16 %v2922, %v2921
        %v2936 = vpack.c.bf16 %v2918, %v2917
        %v2937 = vpack.c.bf16 %v2926, %v2925
        %v2942 = vunpack.c.l.b16 %v2928
        %v2943 = vunpack.c.l.b16 %v2929
        %v2944 = vunpack.c.l.b16 %v2930
        %v2945 = vunpack.c.l.b16 %v2931
        %v2946 = vpack.c.b16 %v2943, %v2942
        %v2947 = vpack.c.b16 %v2945, %v2944
        %v2949 = vsel %vm341, %v2946, 0
        %v2952 = vsel %vm341, %v2947, 0
        %2954 = vmatprep.subr.bf16.mxu0 0
        %2955 = vmatpush1.bf16.msra.mxu0 0
        %2956 = vmatprep.subr.bf16.mxu0 0
        %2957 = vmatpush1.bf16.msra.mxu0 0
        %2958 = vmatprep.subr.bf16.mxu0 0
        %2959 = vmatpush1.bf16.msra.mxu0 0
        %2960 = vmatprep.subr.bf16.mxu0 0
        %2961 = vmatpush1.bf16.msra.mxu0 0
        %2962 = vmatprep.subr.bf16.mxu0 0
        %2963 = vmatpush1.bf16.msra.mxu0 0
        %2964 = vmatprep.subr.bf16.mxu0 0
        %2965 = vmatpush1.bf16.msra.mxu0 0
        %2966 = vmatprep.subr.bf16.mxu0 %v2936
        %2967 = vmatpush1.bf16.msra.mxu0 %v2935
        %2968 = vmatprep.subr.bf16.mxu0 %v2933
        %2969 = vmatpush1.bf16.msra.mxu0 %v2932
        %2970 = vmatprep.subr.bf16.mxu0 0
        %2971 = vmatpush2.bf16.msra.mxu0 0
        %2972 = vmatprep.subr.bf16.mxu0 0
        %2973 = vmatpush2.bf16.msra.mxu0 0
        %2974 = vmatprep.subr.bf16.mxu0 0
        %2975 = vmatpush2.bf16.msra.mxu0 0
        %2976 = vmatprep.subr.bf16.mxu0 0
        %2977 = vmatpush2.bf16.msra.mxu0 0
        %2978 = vmatprep.subr.bf16.mxu0 0
        %2979 = vmatpush2.bf16.msra.mxu0 0
        %2980 = vmatprep.subr.bf16.mxu0 0
        %2981 = vmatpush2.bf16.msra.mxu0 0
        %2982 = vmatprep.subr.bf16.mxu0 0
        %2983 = vmatpush2.bf16.msra.mxu0 0
        %2984 = vmatprep.subr.bf16.mxu0 0
        %2985 = vmatpush2.bf16.msra.mxu0 0
        %2986 = vmatprep.mubr.bf16.mxu0 0
        %2987 = vmatmul.mubr.bf16.gmra.mxu0 %v2949
        %v2988 = vpop.f32.mrf.mxu0
        %v2989 = vadd.f32 0.0, %v2988
        %v2990 = vpop.f32.mrf.mxu0
        %v2991 = vadd.f32 0.0, %v2990
        %v2992 = vpop.f32.mrf.mxu0
        %v2993 = vadd.f32 0.0, %v2992
        %v2994 = vpop.f32.mrf.mxu0
        %v2995 = vadd.f32 0.0, %v2994
        %2996 = vmatprep.mubr.bf16.mxu0 0
        %2997 = vmatmul.mubr.bf16.gmra.mxu0 %v2952
        %v2998 = vpop.f32.mrf.mxu0
        %v2999 = vadd.f32 0.0, %v2998
        %v3000 = vpop.f32.mrf.mxu0
        %v3001 = vadd.f32 0.0, %v3000
        %v3002 = vpop.f32.mrf.mxu0
        %v3003 = vadd.f32 0.0, %v3002
        %v3004 = vpop.f32.mrf.mxu0
        %v3005 = vadd.f32 0.0, %v3004
        %3006 = vdwg.mxu0
        %3007 = vmatprep.subr.bf16.mxu0 0
        %3008 = vmatpush1.bf16.msra.mxu0 0
        %3009 = vmatprep.subr.bf16.mxu0 0
        %3010 = vmatpush1.bf16.msra.mxu0 0
        %3011 = vmatprep.subr.bf16.mxu0 0
        %3012 = vmatpush1.bf16.msra.mxu0 0
        %3013 = vmatprep.subr.bf16.mxu0 0
        %3014 = vmatpush1.bf16.msra.mxu0 0
        %3015 = vmatprep.subr.bf16.mxu0 0
        %3016 = vmatpush1.bf16.msra.mxu0 0
        %3017 = vmatprep.subr.bf16.mxu0 0
        %3018 = vmatpush1.bf16.msra.mxu0 0
        %3019 = vmatprep.subr.bf16.mxu0 0
        %3020 = vmatpush1.bf16.msra.mxu0 %v2937
        %3021 = vmatprep.subr.bf16.mxu0 0
        %3022 = vmatpush1.bf16.msra.mxu0 %v2934
        %3023 = vmatprep.subr.bf16.mxu0 0
        %3024 = vmatpush2.bf16.msra.mxu0 0
        %3025 = vmatprep.subr.bf16.mxu0 0
        %3026 = vmatpush2.bf16.msra.mxu0 0
        %3027 = vmatprep.subr.bf16.mxu0 0
        %3028 = vmatpush2.bf16.msra.mxu0 0
        %3029 = vmatprep.subr.bf16.mxu0 0
        %3030 = vmatpush2.bf16.msra.mxu0 0
        %3031 = vmatprep.subr.bf16.mxu0 0
        %3032 = vmatpush2.bf16.msra.mxu0 0
        %3033 = vmatprep.subr.bf16.mxu0 0
        %3034 = vmatpush2.bf16.msra.mxu0 0
        %3035 = vmatprep.subr.bf16.mxu0 0
        %3036 = vmatpush2.bf16.msra.mxu0 0
        %3037 = vmatprep.subr.bf16.mxu0 0
        %3038 = vmatpush2.bf16.msra.mxu0 0
        %3039 = vmatprep.mubr.bf16.mxu0 0
        %3040 = vmatmul.mubr.bf16.gmra.mxu0 %v2949
        %v3041 = vpop.f32.mrf.mxu0
        %v3042 = vadd.f32 0.0, %v3041
        %v3043 = vpop.f32.mrf.mxu0
        %v3044 = vpop.f32.mrf.mxu0
        %v3045 = vadd.f32 0.0, %v3044
        %v3046 = vpop.f32.mrf.mxu0
        %3047 = vmatprep.mubr.bf16.mxu0 0
        %3048 = vmatmul.mubr.bf16.gmra.mxu0 %v2952
        %v3049 = vpop.f32.mrf.mxu0
        %v3050 = vadd.f32 0.0, %v3049
        %v3051 = vpop.f32.mrf.mxu0
        %v3052 = vpop.f32.mrf.mxu0
        %v3053 = vadd.f32 0.0, %v3052
        %v3054 = vpop.f32.mrf.mxu0
        %3055 = vdwg.mxu0
        %v3056 = vadd.f32 %v2879, %v2989
        %v3057 = vadd.f32 %v2880, %v2991
        %v3058 = vadd.f32 %v2881, %v3042
        %v3059 = vadd.f32 %v2882, %v2993
        %v3060 = vadd.f32 %v2883, %v2995
        %v3061 = vadd.f32 %v2884, %v3045
        %v3062 = vadd.f32 %v2885, %v2999
        %v3063 = vadd.f32 %v2886, %v3001
        %v3064 = vadd.f32 %v2887, %v3050
        %v3065 = vadd.f32 %v2888, %v3003
        %v3066 = vadd.f32 %v2889, %v3005
        %v3067 = vadd.f32 %v2890, %v3053
        %3068 = vrot.lane.b32.xlu0 %v1877, 110
        %v3069 = vpop.permute.xlu0 %3068
        %3070 = vrot.lane.b32.xlu0 %v1880, 110
        %v3071 = vpop.permute.xlu0 %3070
        %3072 = vrot.lane.b32.xlu0 %v1883, 110
        %v3073 = vpop.permute.xlu0 %3072
        %3074 = vrot.lane.b32.xlu0 %v1886, 110
        %v3075 = vpop.permute.xlu0 %3074
        %3076 = vrot.lane.b32.xlu0 %v1878, 110
        %v3077 = vpop.permute.xlu0 %3076
        %3078 = vrot.lane.b32.xlu0 %v1881, 110
        %v3079 = vpop.permute.xlu0 %3078
        %3080 = vrot.lane.b32.xlu0 %v1884, 110
        %v3081 = vpop.permute.xlu0 %3080
        %3082 = vrot.lane.b32.xlu0 %v1887, 110
        %v3083 = vpop.permute.xlu0 %3082
        %3084 = vrot.lane.b32.xlu0 %v1879, 110
        %v3085 = vpop.permute.xlu0 %3084
        %3086 = vrot.lane.b32.xlu0 %v1882, 110
        %v3087 = vpop.permute.xlu0 %3086
        %3088 = vrot.lane.b32.xlu0 %v1885, 110
        %v3089 = vpop.permute.xlu0 %3088
        %3090 = vrot.lane.b32.xlu0 %v1888, 110
        %v3091 = vpop.permute.xlu0 %3090
        %v3092 = vsel %vm1445, %v3077, %v3085
        %v3093 = vsel %vm1445, %v3079, %v3087
        %v3094 = vsel %vm1445, %v3081, %v3089
        %v3095 = vsel %vm1445, %v3083, %v3091
        %v3096 = vsel %vm1445, %v3069, %v3077
        %v3097 = vsel %vm1445, %v3071, %v3079
        %v3098 = vsel %vm1445, %v3073, %v3081
        %v3099 = vsel %vm1445, %v3075, %v3083
        %v3100 = vsel %vm1445, %v3085, %v3069
        %v3101 = vsel %vm1445, %v3087, %v3071
        %v3102 = vsel %vm1445, %v3089, %v3073
        %v3103 = vsel %vm1445, %v3091, %v3075
        %s3104 = scalar_lea.vmem %s2, 256
        %v3105 = vld [vmem:[%s3104] sm:$0xf]
        %v3106 = vld [vmem:[%s3104 + $0x4] sm:$0xf]
        %v3107 = vld [vmem:[%s3104 + $0x8] sm:$0xf]
        %v3108 = vld [vmem:[%s3104 + $0xc] sm:$0xf]
        %v3109 = vpack.c.bf16 %v3097, %v3096
        %v3110 = vpack.c.bf16 %v3093, %v3092
        %v3111 = vpack.c.bf16 %v3101, %v3100
        %v3112 = vpack.c.bf16 %v3099, %v3098
        %v3113 = vpack.c.bf16 %v3095, %v3094
        %v3114 = vpack.c.bf16 %v3103, %v3102
        %v3119 = vunpack.c.l.b16 %v3105
        %v3120 = vunpack.c.l.b16 %v3106
        %v3121 = vunpack.c.l.b16 %v3107
        %v3122 = vunpack.c.l.b16 %v3108
        %v3123 = vpack.c.b16 %v3120, %v3119
        %v3124 = vpack.c.b16 %v3122, %v3121
        %v3126 = vsel %vm341, %v3123, 0
        %v3129 = vsel %vm341, %v3124, 0
        %3131 = vmatprep.subr.bf16.mxu0 0
        %3132 = vmatpush1.bf16.msra.mxu0 0
        %3133 = vmatprep.subr.bf16.mxu0 0
        %3134 = vmatpush1.bf16.msra.mxu0 0
        %3135 = vmatprep.subr.bf16.mxu0 0
        %3136 = vmatpush1.bf16.msra.mxu0 0
        %3137 = vmatprep.subr.bf16.mxu0 0
        %3138 = vmatpush1.bf16.msra.mxu0 0
        %3139 = vmatprep.subr.bf16.mxu0 0
        %3140 = vmatpush1.bf16.msra.mxu0 0
        %3141 = vmatprep.subr.bf16.mxu0 0
        %3142 = vmatpush1.bf16.msra.mxu0 0
        %3143 = vmatprep.subr.bf16.mxu0 %v3113
        %3144 = vmatpush1.bf16.msra.mxu0 %v3112
        %3145 = vmatprep.subr.bf16.mxu0 %v3110
        %3146 = vmatpush1.bf16.msra.mxu0 %v3109
        %3147 = vmatprep.subr.bf16.mxu0 0
        %3148 = vmatpush2.bf16.msra.mxu0 0
        %3149 = vmatprep.subr.bf16.mxu0 0
        %3150 = vmatpush2.bf16.msra.mxu0 0
        %3151 = vmatprep.subr.bf16.mxu0 0
        %3152 = vmatpush2.bf16.msra.mxu0 0
        %3153 = vmatprep.subr.bf16.mxu0 0
        %3154 = vmatpush2.bf16.msra.mxu0 0
        %3155 = vmatprep.subr.bf16.mxu0 0
        %3156 = vmatpush2.bf16.msra.mxu0 0
        %3157 = vmatprep.subr.bf16.mxu0 0
        %3158 = vmatpush2.bf16.msra.mxu0 0
        %3159 = vmatprep.subr.bf16.mxu0 0
        %3160 = vmatpush2.bf16.msra.mxu0 0
        %3161 = vmatprep.subr.bf16.mxu0 0
        %3162 = vmatpush2.bf16.msra.mxu0 0
        %3163 = vmatprep.mubr.bf16.mxu0 0
        %3164 = vmatmul.mubr.bf16.gmra.mxu0 %v3126
        %v3165 = vpop.f32.mrf.mxu0
        %v3166 = vadd.f32 0.0, %v3165
        %v3167 = vpop.f32.mrf.mxu0
        %v3168 = vadd.f32 0.0, %v3167
        %v3169 = vpop.f32.mrf.mxu0
        %v3170 = vadd.f32 0.0, %v3169
        %v3171 = vpop.f32.mrf.mxu0
        %v3172 = vadd.f32 0.0, %v3171
        %3173 = vmatprep.mubr.bf16.mxu0 0
        %3174 = vmatmul.mubr.bf16.gmra.mxu0 %v3129
        %v3175 = vpop.f32.mrf.mxu0
        %v3176 = vadd.f32 0.0, %v3175
        %v3177 = vpop.f32.mrf.mxu0
        %v3178 = vadd.f32 0.0, %v3177
        %v3179 = vpop.f32.mrf.mxu0
        %v3180 = vadd.f32 0.0, %v3179
        %v3181 = vpop.f32.mrf.mxu0
        %v3182 = vadd.f32 0.0, %v3181
        %3183 = vdwg.mxu0
        %3184 = vmatprep.subr.bf16.mxu0 0
        %3185 = vmatpush1.bf16.msra.mxu0 0
        %3186 = vmatprep.subr.bf16.mxu0 0
        %3187 = vmatpush1.bf16.msra.mxu0 0
        %3188 = vmatprep.subr.bf16.mxu0 0
        %3189 = vmatpush1.bf16.msra.mxu0 0
        %3190 = vmatprep.subr.bf16.mxu0 0
        %3191 = vmatpush1.bf16.msra.mxu0 0
        %3192 = vmatprep.subr.bf16.mxu0 0
        %3193 = vmatpush1.bf16.msra.mxu0 0
        %3194 = vmatprep.subr.bf16.mxu0 0
        %3195 = vmatpush1.bf16.msra.mxu0 0
        %3196 = vmatprep.subr.bf16.mxu0 0
        %3197 = vmatpush1.bf16.msra.mxu0 %v3114
        %3198 = vmatprep.subr.bf16.mxu0 0
        %3199 = vmatpush1.bf16.msra.mxu0 %v3111
        %3200 = vmatprep.subr.bf16.mxu0 0
        %3201 = vmatpush2.bf16.msra.mxu0 0
        %3202 = vmatprep.subr.bf16.mxu0 0
        %3203 = vmatpush2.bf16.msra.mxu0 0
        %3204 = vmatprep.subr.bf16.mxu0 0
        %3205 = vmatpush2.bf16.msra.mxu0 0
        %3206 = vmatprep.subr.bf16.mxu0 0
        %3207 = vmatpush2.bf16.msra.mxu0 0
        %3208 = vmatprep.subr.bf16.mxu0 0
        %3209 = vmatpush2.bf16.msra.mxu0 0
        %3210 = vmatprep.subr.bf16.mxu0 0
        %3211 = vmatpush2.bf16.msra.mxu0 0
        %3212 = vmatprep.subr.bf16.mxu0 0
        %3213 = vmatpush2.bf16.msra.mxu0 0
        %3214 = vmatprep.subr.bf16.mxu0 0
        %3215 = vmatpush2.bf16.msra.mxu0 0
        %3216 = vmatprep.mubr.bf16.mxu0 0
        %3217 = vmatmul.mubr.bf16.gmra.mxu0 %v3126
        %v3218 = vpop.f32.mrf.mxu0
        %v3219 = vadd.f32 0.0, %v3218
        %v3220 = vpop.f32.mrf.mxu0
        %v3221 = vpop.f32.mrf.mxu0
        %v3222 = vadd.f32 0.0, %v3221
        %v3223 = vpop.f32.mrf.mxu0
        %3224 = vmatprep.mubr.bf16.mxu0 0
        %3225 = vmatmul.mubr.bf16.gmra.mxu0 %v3129
        %v3226 = vpop.f32.mrf.mxu0
        %v3227 = vadd.f32 0.0, %v3226
        %v3228 = vpop.f32.mrf.mxu0
        %v3229 = vpop.f32.mrf.mxu0
        %v3230 = vadd.f32 0.0, %v3229
        %v3231 = vpop.f32.mrf.mxu0
        %3232 = vdwg.mxu0
        %v3233 = vadd.f32 %v3056, %v3166
        %v3234 = vadd.f32 %v3057, %v3168
        %v3235 = vadd.f32 %v3058, %v3219
        %v3236 = vadd.f32 %v3059, %v3170
        %v3237 = vadd.f32 %v3060, %v3172
        %v3238 = vadd.f32 %v3061, %v3222
        %v3239 = vadd.f32 %v3062, %v3176
        %v3240 = vadd.f32 %v3063, %v3178
        %v3241 = vadd.f32 %v3064, %v3227
        %v3242 = vadd.f32 %v3065, %v3180
        %v3243 = vadd.f32 %v3066, %v3182
        %v3244 = vadd.f32 %v3067, %v3230
        %3245 = vrot.lane.b32.xlu0 %v1877, 109
        %v3246 = vpop.permute.xlu0 %3245
        %3247 = vrot.lane.b32.xlu0 %v1880, 109
        %v3248 = vpop.permute.xlu0 %3247
        %3249 = vrot.lane.b32.xlu0 %v1883, 109
        %v3250 = vpop.permute.xlu0 %3249
        %3251 = vrot.lane.b32.xlu0 %v1886, 109
        %v3252 = vpop.permute.xlu0 %3251
        %3253 = vrot.lane.b32.xlu0 %v1878, 109
        %v3254 = vpop.permute.xlu0 %3253
        %3255 = vrot.lane.b32.xlu0 %v1881, 109
        %v3256 = vpop.permute.xlu0 %3255
        %3257 = vrot.lane.b32.xlu0 %v1884, 109
        %v3258 = vpop.permute.xlu0 %3257
        %3259 = vrot.lane.b32.xlu0 %v1887, 109
        %v3260 = vpop.permute.xlu0 %3259
        %3261 = vrot.lane.b32.xlu0 %v1879, 109
        %v3262 = vpop.permute.xlu0 %3261
        %3263 = vrot.lane.b32.xlu0 %v1882, 109
        %v3264 = vpop.permute.xlu0 %3263
        %3265 = vrot.lane.b32.xlu0 %v1885, 109
        %v3266 = vpop.permute.xlu0 %3265
        %3267 = vrot.lane.b32.xlu0 %v1888, 109
        %v3268 = vpop.permute.xlu0 %3267
        %v3269 = vsel %vm1623, %v3254, %v3262
        %v3270 = vsel %vm1623, %v3256, %v3264
        %v3271 = vsel %vm1623, %v3258, %v3266
        %v3272 = vsel %vm1623, %v3260, %v3268
        %v3273 = vsel %vm1623, %v3246, %v3254
        %v3274 = vsel %vm1623, %v3248, %v3256
        %v3275 = vsel %vm1623, %v3250, %v3258
        %v3276 = vsel %vm1623, %v3252, %v3260
        %v3277 = vsel %vm1623, %v3262, %v3246
        %v3278 = vsel %vm1623, %v3264, %v3248
        %v3279 = vsel %vm1623, %v3266, %v3250
        %v3280 = vsel %vm1623, %v3268, %v3252
        %s3281 = scalar_lea.vmem %s2, 272
        %v3282 = vld [vmem:[%s3281] sm:$0xf]
        %v3283 = vld [vmem:[%s3281 + $0x4] sm:$0xf]
        %v3284 = vld [vmem:[%s3281 + $0x8] sm:$0xf]
        %v3285 = vld [vmem:[%s3281 + $0xc] sm:$0xf]
        %v3286 = vpack.c.bf16 %v3274, %v3273
        %v3287 = vpack.c.bf16 %v3270, %v3269
        %v3288 = vpack.c.bf16 %v3278, %v3277
        %v3289 = vpack.c.bf16 %v3276, %v3275
        %v3290 = vpack.c.bf16 %v3272, %v3271
        %v3291 = vpack.c.bf16 %v3280, %v3279
        %v3296 = vunpack.c.l.b16 %v3282
        %v3297 = vunpack.c.l.b16 %v3283
        %v3298 = vunpack.c.l.b16 %v3284
        %v3299 = vunpack.c.l.b16 %v3285
        %v3300 = vpack.c.b16 %v3297, %v3296
        %v3301 = vpack.c.b16 %v3299, %v3298
        %v3303 = vsel %vm341, %v3300, 0
        %v3306 = vsel %vm341, %v3301, 0
        %3308 = vmatprep.subr.bf16.mxu0 0
        %3309 = vmatpush1.bf16.msra.mxu0 0
        %3310 = vmatprep.subr.bf16.mxu0 0
        %3311 = vmatpush1.bf16.msra.mxu0 0
        %3312 = vmatprep.subr.bf16.mxu0 0
        %3313 = vmatpush1.bf16.msra.mxu0 0
        %3314 = vmatprep.subr.bf16.mxu0 0
        %3315 = vmatpush1.bf16.msra.mxu0 0
        %3316 = vmatprep.subr.bf16.mxu0 0
        %3317 = vmatpush1.bf16.msra.mxu0 0
        %3318 = vmatprep.subr.bf16.mxu0 0
        %3319 = vmatpush1.bf16.msra.mxu0 0
        %3320 = vmatprep.subr.bf16.mxu0 %v3290
        %3321 = vmatpush1.bf16.msra.mxu0 %v3289
        %3322 = vmatprep.subr.bf16.mxu0 %v3287
        %3323 = vmatpush1.bf16.msra.mxu0 %v3286
        %3324 = vmatprep.subr.bf16.mxu0 0
        %3325 = vmatpush2.bf16.msra.mxu0 0
        %3326 = vmatprep.subr.bf16.mxu0 0
        %3327 = vmatpush2.bf16.msra.mxu0 0
        %3328 = vmatprep.subr.bf16.mxu0 0
        %3329 = vmatpush2.bf16.msra.mxu0 0
        %3330 = vmatprep.subr.bf16.mxu0 0
        %3331 = vmatpush2.bf16.msra.mxu0 0
        %3332 = vmatprep.subr.bf16.mxu0 0
        %3333 = vmatpush2.bf16.msra.mxu0 0
        %3334 = vmatprep.subr.bf16.mxu0 0
        %3335 = vmatpush2.bf16.msra.mxu0 0
        %3336 = vmatprep.subr.bf16.mxu0 0
        %3337 = vmatpush2.bf16.msra.mxu0 0
        %3338 = vmatprep.subr.bf16.mxu0 0
        %3339 = vmatpush2.bf16.msra.mxu0 0
        %3340 = vmatprep.mubr.bf16.mxu0 0
        %3341 = vmatmul.mubr.bf16.gmra.mxu0 %v3303
        %v3342 = vpop.f32.mrf.mxu0
        %v3343 = vadd.f32 0.0, %v3342
        %v3344 = vpop.f32.mrf.mxu0
        %v3345 = vadd.f32 0.0, %v3344
        %v3346 = vpop.f32.mrf.mxu0
        %v3347 = vadd.f32 0.0, %v3346
        %v3348 = vpop.f32.mrf.mxu0
        %v3349 = vadd.f32 0.0, %v3348
        %3350 = vmatprep.mubr.bf16.mxu0 0
        %3351 = vmatmul.mubr.bf16.gmra.mxu0 %v3306
        %v3352 = vpop.f32.mrf.mxu0
        %v3353 = vadd.f32 0.0, %v3352
        %v3354 = vpop.f32.mrf.mxu0
        %v3355 = vadd.f32 0.0, %v3354
        %v3356 = vpop.f32.mrf.mxu0
        %v3357 = vadd.f32 0.0, %v3356
        %v3358 = vpop.f32.mrf.mxu0
        %v3359 = vadd.f32 0.0, %v3358
        %3360 = vdwg.mxu0
        %3361 = vmatprep.subr.bf16.mxu0 0
        %3362 = vmatpush1.bf16.msra.mxu0 0
        %3363 = vmatprep.subr.bf16.mxu0 0
        %3364 = vmatpush1.bf16.msra.mxu0 0
        %3365 = vmatprep.subr.bf16.mxu0 0
        %3366 = vmatpush1.bf16.msra.mxu0 0
        %3367 = vmatprep.subr.bf16.mxu0 0
        %3368 = vmatpush1.bf16.msra.mxu0 0
        %3369 = vmatprep.subr.bf16.mxu0 0
        %3370 = vmatpush1.bf16.msra.mxu0 0
        %3371 = vmatprep.subr.bf16.mxu0 0
        %3372 = vmatpush1.bf16.msra.mxu0 0
        %3373 = vmatprep.subr.bf16.mxu0 0
        %3374 = vmatpush1.bf16.msra.mxu0 %v3291
        %3375 = vmatprep.subr.bf16.mxu0 0
        %3376 = vmatpush1.bf16.msra.mxu0 %v3288
        %3377 = vmatprep.subr.bf16.mxu0 0
        %3378 = vmatpush2.bf16.msra.mxu0 0
        %3379 = vmatprep.subr.bf16.mxu0 0
        %3380 = vmatpush2.bf16.msra.mxu0 0
        %3381 = vmatprep.subr.bf16.mxu0 0
        %3382 = vmatpush2.bf16.msra.mxu0 0
        %3383 = vmatprep.subr.bf16.mxu0 0
        %3384 = vmatpush2.bf16.msra.mxu0 0
        %3385 = vmatprep.subr.bf16.mxu0 0
        %3386 = vmatpush2.bf16.msra.mxu0 0
        %3387 = vmatprep.subr.bf16.mxu0 0
        %3388 = vmatpush2.bf16.msra.mxu0 0
        %3389 = vmatprep.subr.bf16.mxu0 0
        %3390 = vmatpush2.bf16.msra.mxu0 0
        %3391 = vmatprep.subr.bf16.mxu0 0
        %3392 = vmatpush2.bf16.msra.mxu0 0
        %3393 = vmatprep.mubr.bf16.mxu0 0
        %3394 = vmatmul.mubr.bf16.gmra.mxu0 %v3303
        %v3395 = vpop.f32.mrf.mxu0
        %v3396 = vadd.f32 0.0, %v3395
        %v3397 = vpop.f32.mrf.mxu0
        %v3398 = vpop.f32.mrf.mxu0
        %v3399 = vadd.f32 0.0, %v3398
        %v3400 = vpop.f32.mrf.mxu0
        %3401 = vmatprep.mubr.bf16.mxu0 0
        %3402 = vmatmul.mubr.bf16.gmra.mxu0 %v3306
        %v3403 = vpop.f32.mrf.mxu0
        %v3404 = vadd.f32 0.0, %v3403
        %v3405 = vpop.f32.mrf.mxu0
        %v3406 = vpop.f32.mrf.mxu0
        %v3407 = vadd.f32 0.0, %v3406
        %v3408 = vpop.f32.mrf.mxu0
        %3409 = vdwg.mxu0
        %v3410 = vadd.f32 %v3233, %v3343
        %v3411 = vadd.f32 %v3234, %v3345
        %v3412 = vadd.f32 %v3235, %v3396
        %v3413 = vadd.f32 %v3236, %v3347
        %v3414 = vadd.f32 %v3237, %v3349
        %v3415 = vadd.f32 %v3238, %v3399
        %v3416 = vadd.f32 %v3239, %v3353
        %v3417 = vadd.f32 %v3240, %v3355
        %v3418 = vadd.f32 %v3241, %v3404
        %v3419 = vadd.f32 %v3242, %v3357
        %v3420 = vadd.f32 %v3243, %v3359
        %v3421 = vadd.f32 %v3244, %v3407
        %s3422 = scalar_lea.vmem %s3, 32
        %v3423 = vld [vmem:[%s3422] sm:$0xff]
        %v3424 = vld [vmem:[%s3422 + $0x8] sm:$0xff]
        %v3425 = vld [vmem:[%s3422 + $0x10] sm:$0xff]
        %v3426 = vld [vmem:[%s3422 + $0x18] sm:$0xff]
        %3428 = vset.pattern.permute.xlu0 0
        %3429 = vperm.xlu0 %3428, %v3423
        %v3430 = vpop.permute.xlu0 %3429
        %3433 = vset.pattern.permute.xlu0 0
        %3434 = vperm.xlu0 %3433, %v3424
        %v3435 = vpop.permute.xlu0 %3434
        %3438 = vset.pattern.permute.xlu0 0
        %3439 = vperm.xlu0 %3438, %v3425
        %v3440 = vpop.permute.xlu0 %3439
        %3443 = vset.pattern.permute.xlu0 0
        %3444 = vperm.xlu0 %3443, %v3426
        %v3445 = vpop.permute.xlu0 %3444
        %v3447 = vadd.f32 %v3410, %v3430
        %v3448 = vadd.f32 %v3411, %v3430
        %v3449 = vadd.f32 %v3412, %v3430
        %v3450 = vadd.f32 %v3413, %v3435
        %v3451 = vadd.f32 %v3414, %v3435
        %v3452 = vadd.f32 %v3415, %v3435
        %v3453 = vadd.f32 %v3416, %v3440
        %v3454 = vadd.f32 %v3417, %v3440
        %v3455 = vadd.f32 %v3418, %v3440
        %v3456 = vadd.f32 %v3419, %v3445
        %v3457 = vadd.f32 %v3420, %v3445
        %v3458 = vadd.f32 %v3421, %v3445
        %v3459 = vmax.f32 %v3447, 0.0
        %v3460 = vmax.f32 %v3448, 0.0
        %v3461 = vmax.f32 %v3449, 0.0
        %v3462 = vmax.f32 %v3450, 0.0
        %v3463 = vmax.f32 %v3451, 0.0
        %v3464 = vmax.f32 %v3452, 0.0
        %v3465 = vmax.f32 %v3453, 0.0
        %v3466 = vmax.f32 %v3454, 0.0
        %v3467 = vmax.f32 %v3455, 0.0
        %v3468 = vmax.f32 %v3456, 0.0
        %v3469 = vmax.f32 %v3457, 0.0
        %v3470 = vmax.f32 %v3458, 0.0
        %v3471 = vmul.f32 %v3459, %v1829
        %v3472 = vmul.f32 %v3460, %v1833
        %v3473 = vmul.f32 %v3461, %v1837
        %v3474 = vmul.f32 %v3462, %v1829
        %v3475 = vmul.f32 %v3463, %v1833
        %v3476 = vmul.f32 %v3464, %v1837
        %v3477 = vmul.f32 %v3465, %v1829
        %v3478 = vmul.f32 %v3466, %v1833
        %v3479 = vmul.f32 %v3467, %v1837
        %v3480 = vmul.f32 %v3468, %v1829
        %v3481 = vmul.f32 %v3469, %v1833
        %v3482 = vmul.f32 %v3470, %v1837
        %s3483 = scalar_lea.vmem [#allocation2], 96
        %3484 = vst [vmem:[%s3483] sm:$0xff] %v3471
        %3485 = vst [vmem:[%s3483 + $0x8] sm:$0xff] %v3472
        %3486 = vst [vmem:[%s3483 + $0x10] sm:$0xff] %v3473
        %3487 = vst [vmem:[%s3483 + $0x18] sm:$0xff] %v3474
        %3488 = vst [vmem:[%s3483 + $0x20] sm:$0xff] %v3475
        %3489 = vst [vmem:[%s3483 + $0x28] sm:$0xff] %v3476
        %3490 = vst [vmem:[%s3483 + $0x30] sm:$0xff] %v3477
        %3491 = vst [vmem:[%s3483 + $0x38] sm:$0xff] %v3478
        %3492 = vst [vmem:[%s3483 + $0x40] sm:$0xff] %v3479
        %3493 = vst [vmem:[%s3483 + $0x48] sm:$0xff] %v3480
        %3494 = vst [vmem:[%s3483 + $0x50] sm:$0xff] %v3481
        %3495 = vst [vmem:[%s3483 + $0x58] sm:$0xff] %v3482
        %v3496 = vld [vmem:[%s3483] sm:$0xff]
        %v3497 = vld [vmem:[%s3483 + $0x8] sm:$0xff]
        %v3498 = vld [vmem:[%s3483 + $0x10] sm:$0xff]
        %v3499 = vld [vmem:[%s3483 + $0x18] sm:$0xff]
        %v3500 = vld [vmem:[%s3483 + $0x20] sm:$0xff]
        %v3501 = vld [vmem:[%s3483 + $0x28] sm:$0xff]
        %v3502 = vld [vmem:[%s3483 + $0x30] sm:$0xff]
        %v3503 = vld [vmem:[%s3483 + $0x38] sm:$0xff]
        %v3504 = vld [vmem:[%s3483 + $0x40] sm:$0xff]
        %v3505 = vld [vmem:[%s3483 + $0x48] sm:$0xff]
        %v3506 = vld [vmem:[%s3483 + $0x50] sm:$0xff]
        %v3507 = vld [vmem:[%s3483 + $0x58] sm:$0xff]
        %3508 = vrot.lane.b32.xlu0 %v3496, 19
        %v3509 = vpop.permute.xlu0 %3508
        %3510 = vrot.lane.b32.xlu0 %v3499, 19
        %v3511 = vpop.permute.xlu0 %3510
        %3512 = vrot.lane.b32.xlu0 %v3502, 19
        %v3513 = vpop.permute.xlu0 %3512
        %3514 = vrot.lane.b32.xlu0 %v3505, 19
        %v3515 = vpop.permute.xlu0 %3514
        %3516 = vrot.lane.b32.xlu0 %v3497, 19
        %v3517 = vpop.permute.xlu0 %3516
        %3518 = vrot.lane.b32.xlu0 %v3500, 19
        %v3519 = vpop.permute.xlu0 %3518
        %3520 = vrot.lane.b32.xlu0 %v3503, 19
        %v3521 = vpop.permute.xlu0 %3520
        %3522 = vrot.lane.b32.xlu0 %v3506, 19
        %v3523 = vpop.permute.xlu0 %3522
        %3524 = vrot.lane.b32.xlu0 %v3498, 19
        %v3525 = vpop.permute.xlu0 %3524
        %3526 = vrot.lane.b32.xlu0 %v3501, 19
        %v3527 = vpop.permute.xlu0 %3526
        %3528 = vrot.lane.b32.xlu0 %v3504, 19
        %v3529 = vpop.permute.xlu0 %3528
        %3530 = vrot.lane.b32.xlu0 %v3507, 19
        %v3531 = vpop.permute.xlu0 %3530
        %v3532 = vsel %vm260, %v3517, %v3525
        %v3533 = vsel %vm260, %v3519, %v3527
        %v3534 = vsel %vm260, %v3521, %v3529
        %v3535 = vsel %vm260, %v3523, %v3531
        %v3536 = vsel %vm260, %v3509, %v3517
        %v3537 = vsel %vm260, %v3511, %v3519
        %v3538 = vsel %vm260, %v3513, %v3521
        %v3539 = vsel %vm260, %v3515, %v3523
        %v3540 = vsel %vm260, %v3525, %v3509
        %v3541 = vsel %vm260, %v3527, %v3511
        %v3542 = vsel %vm260, %v3529, %v3513
        %v3543 = vsel %vm260, %v3531, %v3515
        %s3544 = scalar_lea.vmem %s2, 288
        %v3545 = vld [vmem:[%s3544] sm:$0xf]
        %v3546 = vld [vmem:[%s3544 + $0x4] sm:$0xf]
        %v3547 = vld [vmem:[%s3544 + $0x8] sm:$0xf]
        %v3548 = vld [vmem:[%s3544 + $0xc] sm:$0xf]
        %v3549 = vpack.c.bf16 %v3541, %v3540
        %v3550 = vpack.c.bf16 %v3537, %v3536
        %v3551 = vpack.c.bf16 %v3533, %v3532
        %v3552 = vpack.c.bf16 %v3543, %v3542
        %v3553 = vpack.c.bf16 %v3539, %v3538
        %v3554 = vpack.c.bf16 %v3535, %v3534
        %3555 = vrot.lane.b32.xlu0 %v3496, 18
        %v3556 = vpop.permute.xlu0 %3555
        %3557 = vrot.lane.b32.xlu0 %v3499, 18
        %v3558 = vpop.permute.xlu0 %3557
        %3559 = vrot.lane.b32.xlu0 %v3502, 18
        %v3560 = vpop.permute.xlu0 %3559
        %3561 = vrot.lane.b32.xlu0 %v3505, 18
        %v3562 = vpop.permute.xlu0 %3561
        %3563 = vrot.lane.b32.xlu0 %v3497, 18
        %v3564 = vpop.permute.xlu0 %3563
        %3565 = vrot.lane.b32.xlu0 %v3500, 18
        %v3566 = vpop.permute.xlu0 %3565
        %3567 = vrot.lane.b32.xlu0 %v3503, 18
        %v3568 = vpop.permute.xlu0 %3567
        %3569 = vrot.lane.b32.xlu0 %v3506, 18
        %v3570 = vpop.permute.xlu0 %3569
        %3571 = vrot.lane.b32.xlu0 %v3498, 18
        %v3572 = vpop.permute.xlu0 %3571
        %3573 = vrot.lane.b32.xlu0 %v3501, 18
        %v3574 = vpop.permute.xlu0 %3573
        %3575 = vrot.lane.b32.xlu0 %v3504, 18
        %v3576 = vpop.permute.xlu0 %3575
        %3577 = vrot.lane.b32.xlu0 %v3507, 18
        %v3578 = vpop.permute.xlu0 %3577
        %v3579 = vsel %vm307, %v3564, %v3572
        %v3580 = vsel %vm307, %v3566, %v3574
        %v3581 = vsel %vm307, %v3568, %v3576
        %v3582 = vsel %vm307, %v3570, %v3578
        %v3583 = vsel %vm307, %v3556, %v3564
        %v3584 = vsel %vm307, %v3558, %v3566
        %v3585 = vsel %vm307, %v3560, %v3568
        %v3586 = vsel %vm307, %v3562, %v3570
        %v3587 = vsel %vm307, %v3572, %v3556
        %v3588 = vsel %vm307, %v3574, %v3558
        %v3589 = vsel %vm307, %v3576, %v3560
        %v3590 = vsel %vm307, %v3578, %v3562
        %s3591 = scalar_lea.vmem %s2, 304
        %v3592 = vld [vmem:[%s3591] sm:$0xf]
        %v3593 = vld [vmem:[%s3591 + $0x4] sm:$0xf]
        %v3594 = vld [vmem:[%s3591 + $0x8] sm:$0xf]
        %v3595 = vld [vmem:[%s3591 + $0xc] sm:$0xf]
        %v3596 = vpack.c.bf16 %v3588, %v3587
        %v3597 = vpack.c.bf16 %v3584, %v3583
        %v3598 = vpack.c.bf16 %v3580, %v3579
        %v3599 = vpack.c.bf16 %v3590, %v3589
        %v3600 = vpack.c.bf16 %v3586, %v3585
        %v3601 = vpack.c.bf16 %v3582, %v3581
        %v3606 = vunpack.c.l.b16 %v3592
        %v3607 = vunpack.c.l.b16 %v3593
        %v3608 = vunpack.c.l.b16 %v3594
        %v3609 = vunpack.c.l.b16 %v3595
        %v3610 = vpack.c.b16 %v3607, %v3606
        %v3611 = vpack.c.b16 %v3609, %v3608
        %v3613 = vsel %vm341, %v3610, 0
        %v3616 = vsel %vm341, %v3611, 0
        %3618 = vmatprep.subr.bf16.mxu0 0
        %3619 = vmatpush1.bf16.msra.mxu0 0
        %3620 = vmatprep.subr.bf16.mxu0 0
        %3621 = vmatpush1.bf16.msra.mxu0 0
        %3622 = vmatprep.subr.bf16.mxu0 0
        %3623 = vmatpush1.bf16.msra.mxu0 0
        %3624 = vmatprep.subr.bf16.mxu0 0
        %3625 = vmatpush1.bf16.msra.mxu0 0
        %3626 = vmatprep.subr.bf16.mxu0 0
        %3627 = vmatpush1.bf16.msra.mxu0 0
        %3628 = vmatprep.subr.bf16.mxu0 0
        %3629 = vmatpush1.bf16.msra.mxu0 0
        %3630 = vmatprep.subr.bf16.mxu0 %v3600
        %3631 = vmatpush1.bf16.msra.mxu0 %v3599
        %3632 = vmatprep.subr.bf16.mxu0 %v3597
        %3633 = vmatpush1.bf16.msra.mxu0 %v3596
        %3634 = vmatprep.subr.bf16.mxu0 0
        %3635 = vmatpush2.bf16.msra.mxu0 0
        %3636 = vmatprep.subr.bf16.mxu0 0
        %3637 = vmatpush2.bf16.msra.mxu0 0
        %3638 = vmatprep.subr.bf16.mxu0 0
        %3639 = vmatpush2.bf16.msra.mxu0 0
        %3640 = vmatprep.subr.bf16.mxu0 0
        %3641 = vmatpush2.bf16.msra.mxu0 0
        %3642 = vmatprep.subr.bf16.mxu0 0
        %3643 = vmatpush2.bf16.msra.mxu0 0
        %3644 = vmatprep.subr.bf16.mxu0 0
        %3645 = vmatpush2.bf16.msra.mxu0 0
        %3646 = vmatprep.subr.bf16.mxu0 0
        %3647 = vmatpush2.bf16.msra.mxu0 0
        %3648 = vmatprep.subr.bf16.mxu0 0
        %3649 = vmatpush2.bf16.msra.mxu0 0
        %3650 = vmatprep.mubr.bf16.mxu0 0
        %3651 = vmatmul.mubr.bf16.gmra.mxu0 %v3613
        %v3652 = vpop.f32.mrf.mxu0
        %v3653 = vadd.f32 0.0, %v3652
        %v3654 = vpop.f32.mrf.mxu0
        %v3655 = vadd.f32 0.0, %v3654
        %v3656 = vpop.f32.mrf.mxu0
        %v3657 = vadd.f32 0.0, %v3656
        %v3658 = vpop.f32.mrf.mxu0
        %v3659 = vadd.f32 0.0, %v3658
        %3660 = vmatprep.mubr.bf16.mxu0 0
        %3661 = vmatmul.mubr.bf16.gmra.mxu0 %v3616
        %v3662 = vpop.f32.mrf.mxu0
        %v3663 = vadd.f32 0.0, %v3662
        %v3664 = vpop.f32.mrf.mxu0
        %v3665 = vadd.f32 0.0, %v3664
        %v3666 = vpop.f32.mrf.mxu0
        %v3667 = vadd.f32 0.0, %v3666
        %v3668 = vpop.f32.mrf.mxu0
        %v3669 = vadd.f32 0.0, %v3668
        %3670 = vdwg.mxu0
        %3671 = vmatprep.subr.bf16.mxu0 0
        %3672 = vmatpush1.bf16.msra.mxu0 0
        %3673 = vmatprep.subr.bf16.mxu0 0
        %3674 = vmatpush1.bf16.msra.mxu0 0
        %3675 = vmatprep.subr.bf16.mxu0 0
        %3676 = vmatpush1.bf16.msra.mxu0 0
        %3677 = vmatprep.subr.bf16.mxu0 0
        %3678 = vmatpush1.bf16.msra.mxu0 0
        %3679 = vmatprep.subr.bf16.mxu0 0
        %3680 = vmatpush1.bf16.msra.mxu0 0
        %3681 = vmatprep.subr.bf16.mxu0 0
        %3682 = vmatpush1.bf16.msra.mxu0 0
        %3683 = vmatprep.subr.bf16.mxu0 0
        %3684 = vmatpush1.bf16.msra.mxu0 %v3601
        %3685 = vmatprep.subr.bf16.mxu0 0
        %3686 = vmatpush1.bf16.msra.mxu0 %v3598
        %3687 = vmatprep.subr.bf16.mxu0 0
        %3688 = vmatpush2.bf16.msra.mxu0 0
        %3689 = vmatprep.subr.bf16.mxu0 0
        %3690 = vmatpush2.bf16.msra.mxu0 0
        %3691 = vmatprep.subr.bf16.mxu0 0
        %3692 = vmatpush2.bf16.msra.mxu0 0
        %3693 = vmatprep.subr.bf16.mxu0 0
        %3694 = vmatpush2.bf16.msra.mxu0 0
        %3695 = vmatprep.subr.bf16.mxu0 0
        %3696 = vmatpush2.bf16.msra.mxu0 0
        %3697 = vmatprep.subr.bf16.mxu0 0
        %3698 = vmatpush2.bf16.msra.mxu0 0
        %3699 = vmatprep.subr.bf16.mxu0 0
        %3700 = vmatpush2.bf16.msra.mxu0 0
        %3701 = vmatprep.subr.bf16.mxu0 0
        %3702 = vmatpush2.bf16.msra.mxu0 0
        %3703 = vmatprep.mubr.bf16.mxu0 0
        %3704 = vmatmul.mubr.bf16.gmra.mxu0 %v3613
        %v3705 = vpop.f32.mrf.mxu0
        %v3706 = vadd.f32 0.0, %v3705
        %v3707 = vpop.f32.mrf.mxu0
        %v3708 = vpop.f32.mrf.mxu0
        %v3709 = vadd.f32 0.0, %v3708
        %v3710 = vpop.f32.mrf.mxu0
        %3711 = vmatprep.mubr.bf16.mxu0 0
        %3712 = vmatmul.mubr.bf16.gmra.mxu0 %v3616
        %v3713 = vpop.f32.mrf.mxu0
        %v3714 = vadd.f32 0.0, %v3713
        %v3715 = vpop.f32.mrf.mxu0
        %v3716 = vpop.f32.mrf.mxu0
        %v3717 = vadd.f32 0.0, %v3716
        %v3718 = vpop.f32.mrf.mxu0
        %3719 = vdwg.mxu0
        %v3724 = vunpack.c.l.b16 %v3545
        %v3725 = vunpack.c.l.b16 %v3546
        %v3726 = vunpack.c.l.b16 %v3547
        %v3727 = vunpack.c.l.b16 %v3548
        %v3728 = vpack.c.b16 %v3725, %v3724
        %v3729 = vpack.c.b16 %v3727, %v3726
        %v3731 = vsel %vm341, %v3728, 0
        %v3734 = vsel %vm341, %v3729, 0
        %3736 = vmatprep.subr.bf16.mxu0 0
        %3737 = vmatpush1.bf16.msra.mxu0 0
        %3738 = vmatprep.subr.bf16.mxu0 0
        %3739 = vmatpush1.bf16.msra.mxu0 0
        %3740 = vmatprep.subr.bf16.mxu0 0
        %3741 = vmatpush1.bf16.msra.mxu0 0
        %3742 = vmatprep.subr.bf16.mxu0 0
        %3743 = vmatpush1.bf16.msra.mxu0 0
        %3744 = vmatprep.subr.bf16.mxu0 0
        %3745 = vmatpush1.bf16.msra.mxu0 0
        %3746 = vmatprep.subr.bf16.mxu0 0
        %3747 = vmatpush1.bf16.msra.mxu0 0
        %3748 = vmatprep.subr.bf16.mxu0 %v3553
        %3749 = vmatpush1.bf16.msra.mxu0 %v3552
        %3750 = vmatprep.subr.bf16.mxu0 %v3550
        %3751 = vmatpush1.bf16.msra.mxu0 %v3549
        %3752 = vmatprep.subr.bf16.mxu0 0
        %3753 = vmatpush2.bf16.msra.mxu0 0
        %3754 = vmatprep.subr.bf16.mxu0 0
        %3755 = vmatpush2.bf16.msra.mxu0 0
        %3756 = vmatprep.subr.bf16.mxu0 0
        %3757 = vmatpush2.bf16.msra.mxu0 0
        %3758 = vmatprep.subr.bf16.mxu0 0
        %3759 = vmatpush2.bf16.msra.mxu0 0
        %3760 = vmatprep.subr.bf16.mxu0 0
        %3761 = vmatpush2.bf16.msra.mxu0 0
        %3762 = vmatprep.subr.bf16.mxu0 0
        %3763 = vmatpush2.bf16.msra.mxu0 0
        %3764 = vmatprep.subr.bf16.mxu0 0
        %3765 = vmatpush2.bf16.msra.mxu0 0
        %3766 = vmatprep.subr.bf16.mxu0 0
        %3767 = vmatpush2.bf16.msra.mxu0 0
        %3768 = vmatprep.mubr.bf16.mxu0 0
        %3769 = vmatmul.mubr.bf16.gmra.mxu0 %v3731
        %v3770 = vpop.f32.mrf.mxu0
        %v3771 = vadd.f32 %v3653, %v3770
        %v3772 = vpop.f32.mrf.mxu0
        %v3773 = vadd.f32 %v3655, %v3772
        %v3774 = vpop.f32.mrf.mxu0
        %v3775 = vadd.f32 %v3657, %v3774
        %v3776 = vpop.f32.mrf.mxu0
        %v3777 = vadd.f32 %v3659, %v3776
        %3778 = vmatprep.mubr.bf16.mxu0 0
        %3779 = vmatmul.mubr.bf16.gmra.mxu0 %v3734
        %v3780 = vpop.f32.mrf.mxu0
        %v3781 = vadd.f32 %v3663, %v3780
        %v3782 = vpop.f32.mrf.mxu0
        %v3783 = vadd.f32 %v3665, %v3782
        %v3784 = vpop.f32.mrf.mxu0
        %v3785 = vadd.f32 %v3667, %v3784
        %v3786 = vpop.f32.mrf.mxu0
        %v3787 = vadd.f32 %v3669, %v3786
        %3788 = vdwg.mxu0
        %3789 = vmatprep.subr.bf16.mxu0 0
        %3790 = vmatpush1.bf16.msra.mxu0 0
        %3791 = vmatprep.subr.bf16.mxu0 0
        %3792 = vmatpush1.bf16.msra.mxu0 0
        %3793 = vmatprep.subr.bf16.mxu0 0
        %3794 = vmatpush1.bf16.msra.mxu0 0
        %3795 = vmatprep.subr.bf16.mxu0 0
        %3796 = vmatpush1.bf16.msra.mxu0 0
        %3797 = vmatprep.subr.bf16.mxu0 0
        %3798 = vmatpush1.bf16.msra.mxu0 0
        %3799 = vmatprep.subr.bf16.mxu0 0
        %3800 = vmatpush1.bf16.msra.mxu0 0
        %3801 = vmatprep.subr.bf16.mxu0 0
        %3802 = vmatpush1.bf16.msra.mxu0 %v3554
        %3803 = vmatprep.subr.bf16.mxu0 0
        %3804 = vmatpush1.bf16.msra.mxu0 %v3551
        %3805 = vmatprep.subr.bf16.mxu0 0
        %3806 = vmatpush2.bf16.msra.mxu0 0
        %3807 = vmatprep.subr.bf16.mxu0 0
        %3808 = vmatpush2.bf16.msra.mxu0 0
        %3809 = vmatprep.subr.bf16.mxu0 0
        %3810 = vmatpush2.bf16.msra.mxu0 0
        %3811 = vmatprep.subr.bf16.mxu0 0
        %3812 = vmatpush2.bf16.msra.mxu0 0
        %3813 = vmatprep.subr.bf16.mxu0 0
        %3814 = vmatpush2.bf16.msra.mxu0 0
        %3815 = vmatprep.subr.bf16.mxu0 0
        %3816 = vmatpush2.bf16.msra.mxu0 0
        %3817 = vmatprep.subr.bf16.mxu0 0
        %3818 = vmatpush2.bf16.msra.mxu0 0
        %3819 = vmatprep.subr.bf16.mxu0 0
        %3820 = vmatpush2.bf16.msra.mxu0 0
        %3821 = vmatprep.mubr.bf16.mxu0 0
        %3822 = vmatmul.mubr.bf16.gmra.mxu0 %v3731
        %v3823 = vpop.f32.mrf.mxu0
        %v3824 = vadd.f32 %v3706, %v3823
        %v3825 = vpop.f32.mrf.mxu0
        %v3826 = vpop.f32.mrf.mxu0
        %v3827 = vadd.f32 %v3709, %v3826
        %v3828 = vpop.f32.mrf.mxu0
        %3829 = vmatprep.mubr.bf16.mxu0 0
        %3830 = vmatmul.mubr.bf16.gmra.mxu0 %v3734
        %v3831 = vpop.f32.mrf.mxu0
        %v3832 = vadd.f32 %v3714, %v3831
        %v3833 = vpop.f32.mrf.mxu0
        %v3834 = vpop.f32.mrf.mxu0
        %v3835 = vadd.f32 %v3717, %v3834
        %v3836 = vpop.f32.mrf.mxu0
        %3837 = vdwg.mxu0
        %3838 = vrot.lane.b32.xlu0 %v3496, 17
        %v3839 = vpop.permute.xlu0 %3838
        %3840 = vrot.lane.b32.xlu0 %v3499, 17
        %v3841 = vpop.permute.xlu0 %3840
        %3842 = vrot.lane.b32.xlu0 %v3502, 17
        %v3843 = vpop.permute.xlu0 %3842
        %3844 = vrot.lane.b32.xlu0 %v3505, 17
        %v3845 = vpop.permute.xlu0 %3844
        %3846 = vrot.lane.b32.xlu0 %v3497, 17
        %v3847 = vpop.permute.xlu0 %3846
        %3848 = vrot.lane.b32.xlu0 %v3500, 17
        %v3849 = vpop.permute.xlu0 %3848
        %3850 = vrot.lane.b32.xlu0 %v3503, 17
        %v3851 = vpop.permute.xlu0 %3850
        %3852 = vrot.lane.b32.xlu0 %v3506, 17
        %v3853 = vpop.permute.xlu0 %3852
        %3854 = vrot.lane.b32.xlu0 %v3498, 17
        %v3855 = vpop.permute.xlu0 %3854
        %3856 = vrot.lane.b32.xlu0 %v3501, 17
        %v3857 = vpop.permute.xlu0 %3856
        %3858 = vrot.lane.b32.xlu0 %v3504, 17
        %v3859 = vpop.permute.xlu0 %3858
        %3860 = vrot.lane.b32.xlu0 %v3507, 17
        %v3861 = vpop.permute.xlu0 %3860
        %v3862 = vsel %vm592, %v3847, %v3855
        %v3863 = vsel %vm592, %v3849, %v3857
        %v3864 = vsel %vm592, %v3851, %v3859
        %v3865 = vsel %vm592, %v3853, %v3861
        %v3866 = vsel %vm592, %v3839, %v3847
        %v3867 = vsel %vm592, %v3841, %v3849
        %v3868 = vsel %vm592, %v3843, %v3851
        %v3869 = vsel %vm592, %v3845, %v3853
        %v3870 = vsel %vm592, %v3855, %v3839
        %v3871 = vsel %vm592, %v3857, %v3841
        %v3872 = vsel %vm592, %v3859, %v3843
        %v3873 = vsel %vm592, %v3861, %v3845
        %s3874 = scalar_lea.vmem %s2, 320
        %v3875 = vld [vmem:[%s3874] sm:$0xf]
        %v3876 = vld [vmem:[%s3874 + $0x4] sm:$0xf]
        %v3877 = vld [vmem:[%s3874 + $0x8] sm:$0xf]
        %v3878 = vld [vmem:[%s3874 + $0xc] sm:$0xf]
        %v3879 = vpack.c.bf16 %v3871, %v3870
        %v3880 = vpack.c.bf16 %v3867, %v3866
        %v3881 = vpack.c.bf16 %v3863, %v3862
        %v3882 = vpack.c.bf16 %v3873, %v3872
        %v3883 = vpack.c.bf16 %v3869, %v3868
        %v3884 = vpack.c.bf16 %v3865, %v3864
        %v3889 = vunpack.c.l.b16 %v3875
        %v3890 = vunpack.c.l.b16 %v3876
        %v3891 = vunpack.c.l.b16 %v3877
        %v3892 = vunpack.c.l.b16 %v3878
        %v3893 = vpack.c.b16 %v3890, %v3889
        %v3894 = vpack.c.b16 %v3892, %v3891
        %v3896 = vsel %vm341, %v3893, 0
        %v3899 = vsel %vm341, %v3894, 0
        %3901 = vmatprep.subr.bf16.mxu0 0
        %3902 = vmatpush1.bf16.msra.mxu0 0
        %3903 = vmatprep.subr.bf16.mxu0 0
        %3904 = vmatpush1.bf16.msra.mxu0 0
        %3905 = vmatprep.subr.bf16.mxu0 0
        %3906 = vmatpush1.bf16.msra.mxu0 0
        %3907 = vmatprep.subr.bf16.mxu0 0
        %3908 = vmatpush1.bf16.msra.mxu0 0
        %3909 = vmatprep.subr.bf16.mxu0 0
        %3910 = vmatpush1.bf16.msra.mxu0 0
        %3911 = vmatprep.subr.bf16.mxu0 0
        %3912 = vmatpush1.bf16.msra.mxu0 0
        %3913 = vmatprep.subr.bf16.mxu0 %v3883
        %3914 = vmatpush1.bf16.msra.mxu0 %v3882
        %3915 = vmatprep.subr.bf16.mxu0 %v3880
        %3916 = vmatpush1.bf16.msra.mxu0 %v3879
        %3917 = vmatprep.subr.bf16.mxu0 0
        %3918 = vmatpush2.bf16.msra.mxu0 0
        %3919 = vmatprep.subr.bf16.mxu0 0
        %3920 = vmatpush2.bf16.msra.mxu0 0
        %3921 = vmatprep.subr.bf16.mxu0 0
        %3922 = vmatpush2.bf16.msra.mxu0 0
        %3923 = vmatprep.subr.bf16.mxu0 0
        %3924 = vmatpush2.bf16.msra.mxu0 0
        %3925 = vmatprep.subr.bf16.mxu0 0
        %3926 = vmatpush2.bf16.msra.mxu0 0
        %3927 = vmatprep.subr.bf16.mxu0 0
        %3928 = vmatpush2.bf16.msra.mxu0 0
        %3929 = vmatprep.subr.bf16.mxu0 0
        %3930 = vmatpush2.bf16.msra.mxu0 0
        %3931 = vmatprep.subr.bf16.mxu0 0
        %3932 = vmatpush2.bf16.msra.mxu0 0
        %3933 = vmatprep.mubr.bf16.mxu0 0
        %3934 = vmatmul.mubr.bf16.gmra.mxu0 %v3896
        %v3935 = vpop.f32.mrf.mxu0
        %v3936 = vadd.f32 0.0, %v3935
        %v3937 = vpop.f32.mrf.mxu0
        %v3938 = vadd.f32 0.0, %v3937
        %v3939 = vpop.f32.mrf.mxu0
        %v3940 = vadd.f32 0.0, %v3939
        %v3941 = vpop.f32.mrf.mxu0
        %v3942 = vadd.f32 0.0, %v3941
        %3943 = vmatprep.mubr.bf16.mxu0 0
        %3944 = vmatmul.mubr.bf16.gmra.mxu0 %v3899
        %v3945 = vpop.f32.mrf.mxu0
        %v3946 = vadd.f32 0.0, %v3945
        %v3947 = vpop.f32.mrf.mxu0
        %v3948 = vadd.f32 0.0, %v3947
        %v3949 = vpop.f32.mrf.mxu0
        %v3950 = vadd.f32 0.0, %v3949
        %v3951 = vpop.f32.mrf.mxu0
        %v3952 = vadd.f32 0.0, %v3951
        %3953 = vdwg.mxu0
        %3954 = vmatprep.subr.bf16.mxu0 0
        %3955 = vmatpush1.bf16.msra.mxu0 0
        %3956 = vmatprep.subr.bf16.mxu0 0
        %3957 = vmatpush1.bf16.msra.mxu0 0
        %3958 = vmatprep.subr.bf16.mxu0 0
        %3959 = vmatpush1.bf16.msra.mxu0 0
        %3960 = vmatprep.subr.bf16.mxu0 0
        %3961 = vmatpush1.bf16.msra.mxu0 0
        %3962 = vmatprep.subr.bf16.mxu0 0
        %3963 = vmatpush1.bf16.msra.mxu0 0
        %3964 = vmatprep.subr.bf16.mxu0 0
        %3965 = vmatpush1.bf16.msra.mxu0 0
        %3966 = vmatprep.subr.bf16.mxu0 0
        %3967 = vmatpush1.bf16.msra.mxu0 %v3884
        %3968 = vmatprep.subr.bf16.mxu0 0
        %3969 = vmatpush1.bf16.msra.mxu0 %v3881
        %3970 = vmatprep.subr.bf16.mxu0 0
        %3971 = vmatpush2.bf16.msra.mxu0 0
        %3972 = vmatprep.subr.bf16.mxu0 0
        %3973 = vmatpush2.bf16.msra.mxu0 0
        %3974 = vmatprep.subr.bf16.mxu0 0
        %3975 = vmatpush2.bf16.msra.mxu0 0
        %3976 = vmatprep.subr.bf16.mxu0 0
        %3977 = vmatpush2.bf16.msra.mxu0 0
        %3978 = vmatprep.subr.bf16.mxu0 0
        %3979 = vmatpush2.bf16.msra.mxu0 0
        %3980 = vmatprep.subr.bf16.mxu0 0
        %3981 = vmatpush2.bf16.msra.mxu0 0
        %3982 = vmatprep.subr.bf16.mxu0 0
        %3983 = vmatpush2.bf16.msra.mxu0 0
        %3984 = vmatprep.subr.bf16.mxu0 0
        %3985 = vmatpush2.bf16.msra.mxu0 0
        %3986 = vmatprep.mubr.bf16.mxu0 0
        %3987 = vmatmul.mubr.bf16.gmra.mxu0 %v3896
        %v3988 = vpop.f32.mrf.mxu0
        %v3989 = vadd.f32 0.0, %v3988
        %v3990 = vpop.f32.mrf.mxu0
        %v3991 = vpop.f32.mrf.mxu0
        %v3992 = vadd.f32 0.0, %v3991
        %v3993 = vpop.f32.mrf.mxu0
        %3994 = vmatprep.mubr.bf16.mxu0 0
        %3995 = vmatmul.mubr.bf16.gmra.mxu0 %v3899
        %v3996 = vpop.f32.mrf.mxu0
        %v3997 = vadd.f32 0.0, %v3996
        %v3998 = vpop.f32.mrf.mxu0
        %v3999 = vpop.f32.mrf.mxu0
        %v4000 = vadd.f32 0.0, %v3999
        %v4001 = vpop.f32.mrf.mxu0
        %4002 = vdwg.mxu0
        %v4003 = vadd.f32 %v3771, %v3936
        %v4004 = vadd.f32 %v3773, %v3938
        %v4005 = vadd.f32 %v3824, %v3989
        %v4006 = vadd.f32 %v3775, %v3940
        %v4007 = vadd.f32 %v3777, %v3942
        %v4008 = vadd.f32 %v3827, %v3992
        %v4009 = vadd.f32 %v3781, %v3946
        %v4010 = vadd.f32 %v3783, %v3948
        %v4011 = vadd.f32 %v3832, %v3997
        %v4012 = vadd.f32 %v3785, %v3950
        %v4013 = vadd.f32 %v3787, %v3952
        %v4014 = vadd.f32 %v3835, %v4000
        %4015 = vrot.lane.b32.xlu0 %v3496, 1
        %v4016 = vpop.permute.xlu0 %4015
        %4017 = vrot.lane.b32.xlu0 %v3499, 1
        %v4018 = vpop.permute.xlu0 %4017
        %4019 = vrot.lane.b32.xlu0 %v3502, 1
        %v4020 = vpop.permute.xlu0 %4019
        %4021 = vrot.lane.b32.xlu0 %v3505, 1
        %v4022 = vpop.permute.xlu0 %4021
        %4023 = vrot.lane.b32.xlu0 %v3497, 1
        %v4024 = vpop.permute.xlu0 %4023
        %4025 = vrot.lane.b32.xlu0 %v3500, 1
        %v4026 = vpop.permute.xlu0 %4025
        %4027 = vrot.lane.b32.xlu0 %v3503, 1
        %v4028 = vpop.permute.xlu0 %4027
        %4029 = vrot.lane.b32.xlu0 %v3506, 1
        %v4030 = vpop.permute.xlu0 %4029
        %4031 = vrot.lane.b32.xlu0 %v3498, 1
        %v4032 = vpop.permute.xlu0 %4031
        %4033 = vrot.lane.b32.xlu0 %v3501, 1
        %v4034 = vpop.permute.xlu0 %4033
        %4035 = vrot.lane.b32.xlu0 %v3504, 1
        %v4036 = vpop.permute.xlu0 %4035
        %4037 = vrot.lane.b32.xlu0 %v3507, 1
        %v4038 = vpop.permute.xlu0 %4037
        %v4039 = vsel %vm770, %v4024, %v4032
        %v4040 = vsel %vm770, %v4026, %v4034
        %v4041 = vsel %vm770, %v4028, %v4036
        %v4042 = vsel %vm770, %v4030, %v4038
        %v4043 = vsel %vm770, %v4016, %v4024
        %v4044 = vsel %vm770, %v4018, %v4026
        %v4045 = vsel %vm770, %v4020, %v4028
        %v4046 = vsel %vm770, %v4022, %v4030
        %v4047 = vsel %vm770, %v4032, %v4016
        %v4048 = vsel %vm770, %v4034, %v4018
        %v4049 = vsel %vm770, %v4036, %v4020
        %v4050 = vsel %vm770, %v4038, %v4022
        %s4051 = scalar_lea.vmem %s2, 336
        %v4052 = vld [vmem:[%s4051] sm:$0xf]
        %v4053 = vld [vmem:[%s4051 + $0x4] sm:$0xf]
        %v4054 = vld [vmem:[%s4051 + $0x8] sm:$0xf]
        %v4055 = vld [vmem:[%s4051 + $0xc] sm:$0xf]
        %v4056 = vpack.c.bf16 %v4048, %v4047
        %v4057 = vpack.c.bf16 %v4044, %v4043
        %v4058 = vpack.c.bf16 %v4040, %v4039
        %v4059 = vpack.c.bf16 %v4050, %v4049
        %v4060 = vpack.c.bf16 %v4046, %v4045
        %v4061 = vpack.c.bf16 %v4042, %v4041
        %v4066 = vunpack.c.l.b16 %v4052
        %v4067 = vunpack.c.l.b16 %v4053
        %v4068 = vunpack.c.l.b16 %v4054
        %v4069 = vunpack.c.l.b16 %v4055
        %v4070 = vpack.c.b16 %v4067, %v4066
        %v4071 = vpack.c.b16 %v4069, %v4068
        %v4073 = vsel %vm341, %v4070, 0
        %v4076 = vsel %vm341, %v4071, 0
        %4078 = vmatprep.subr.bf16.mxu0 0
        %4079 = vmatpush1.bf16.msra.mxu0 0
        %4080 = vmatprep.subr.bf16.mxu0 0
        %4081 = vmatpush1.bf16.msra.mxu0 0
        %4082 = vmatprep.subr.bf16.mxu0 0
        %4083 = vmatpush1.bf16.msra.mxu0 0
        %4084 = vmatprep.subr.bf16.mxu0 0
        %4085 = vmatpush1.bf16.msra.mxu0 0
        %4086 = vmatprep.subr.bf16.mxu0 0
        %4087 = vmatpush1.bf16.msra.mxu0 0
        %4088 = vmatprep.subr.bf16.mxu0 0
        %4089 = vmatpush1.bf16.msra.mxu0 0
        %4090 = vmatprep.subr.bf16.mxu0 %v4060
        %4091 = vmatpush1.bf16.msra.mxu0 %v4059
        %4092 = vmatprep.subr.bf16.mxu0 %v4057
        %4093 = vmatpush1.bf16.msra.mxu0 %v4056
        %4094 = vmatprep.subr.bf16.mxu0 0
        %4095 = vmatpush2.bf16.msra.mxu0 0
        %4096 = vmatprep.subr.bf16.mxu0 0
        %4097 = vmatpush2.bf16.msra.mxu0 0
        %4098 = vmatprep.subr.bf16.mxu0 0
        %4099 = vmatpush2.bf16.msra.mxu0 0
        %4100 = vmatprep.subr.bf16.mxu0 0
        %4101 = vmatpush2.bf16.msra.mxu0 0
        %4102 = vmatprep.subr.bf16.mxu0 0
        %4103 = vmatpush2.bf16.msra.mxu0 0
        %4104 = vmatprep.subr.bf16.mxu0 0
        %4105 = vmatpush2.bf16.msra.mxu0 0
        %4106 = vmatprep.subr.bf16.mxu0 0
        %4107 = vmatpush2.bf16.msra.mxu0 0
        %4108 = vmatprep.subr.bf16.mxu0 0
        %4109 = vmatpush2.bf16.msra.mxu0 0
        %4110 = vmatprep.mubr.bf16.mxu0 0
        %4111 = vmatmul.mubr.bf16.gmra.mxu0 %v4073
        %v4112 = vpop.f32.mrf.mxu0
        %v4113 = vadd.f32 0.0, %v4112
        %v4114 = vpop.f32.mrf.mxu0
        %v4115 = vadd.f32 0.0, %v4114
        %v4116 = vpop.f32.mrf.mxu0
        %v4117 = vadd.f32 0.0, %v4116
        %v4118 = vpop.f32.mrf.mxu0
        %v4119 = vadd.f32 0.0, %v4118
        %4120 = vmatprep.mubr.bf16.mxu0 0
        %4121 = vmatmul.mubr.bf16.gmra.mxu0 %v4076
        %v4122 = vpop.f32.mrf.mxu0
        %v4123 = vadd.f32 0.0, %v4122
        %v4124 = vpop.f32.mrf.mxu0
        %v4125 = vadd.f32 0.0, %v4124
        %v4126 = vpop.f32.mrf.mxu0
        %v4127 = vadd.f32 0.0, %v4126
        %v4128 = vpop.f32.mrf.mxu0
        %v4129 = vadd.f32 0.0, %v4128
        %4130 = vdwg.mxu0
        %4131 = vmatprep.subr.bf16.mxu0 0
        %4132 = vmatpush1.bf16.msra.mxu0 0
        %4133 = vmatprep.subr.bf16.mxu0 0
        %4134 = vmatpush1.bf16.msra.mxu0 0
        %4135 = vmatprep.subr.bf16.mxu0 0
        %4136 = vmatpush1.bf16.msra.mxu0 0
        %4137 = vmatprep.subr.bf16.mxu0 0
        %4138 = vmatpush1.bf16.msra.mxu0 0
        %4139 = vmatprep.subr.bf16.mxu0 0
        %4140 = vmatpush1.bf16.msra.mxu0 0
        %4141 = vmatprep.subr.bf16.mxu0 0
        %4142 = vmatpush1.bf16.msra.mxu0 0
        %4143 = vmatprep.subr.bf16.mxu0 0
        %4144 = vmatpush1.bf16.msra.mxu0 %v4061
        %4145 = vmatprep.subr.bf16.mxu0 0
        %4146 = vmatpush1.bf16.msra.mxu0 %v4058
        %4147 = vmatprep.subr.bf16.mxu0 0
        %4148 = vmatpush2.bf16.msra.mxu0 0
        %4149 = vmatprep.subr.bf16.mxu0 0
        %4150 = vmatpush2.bf16.msra.mxu0 0
        %4151 = vmatprep.subr.bf16.mxu0 0
        %4152 = vmatpush2.bf16.msra.mxu0 0
        %4153 = vmatprep.subr.bf16.mxu0 0
        %4154 = vmatpush2.bf16.msra.mxu0 0
        %4155 = vmatprep.subr.bf16.mxu0 0
        %4156 = vmatpush2.bf16.msra.mxu0 0
        %4157 = vmatprep.subr.bf16.mxu0 0
        %4158 = vmatpush2.bf16.msra.mxu0 0
        %4159 = vmatprep.subr.bf16.mxu0 0
        %4160 = vmatpush2.bf16.msra.mxu0 0
        %4161 = vmatprep.subr.bf16.mxu0 0
        %4162 = vmatpush2.bf16.msra.mxu0 0
        %4163 = vmatprep.mubr.bf16.mxu0 0
        %4164 = vmatmul.mubr.bf16.gmra.mxu0 %v4073
        %v4165 = vpop.f32.mrf.mxu0
        %v4166 = vadd.f32 0.0, %v4165
        %v4167 = vpop.f32.mrf.mxu0
        %v4168 = vpop.f32.mrf.mxu0
        %v4169 = vadd.f32 0.0, %v4168
        %v4170 = vpop.f32.mrf.mxu0
        %4171 = vmatprep.mubr.bf16.mxu0 0
        %4172 = vmatmul.mubr.bf16.gmra.mxu0 %v4076
        %v4173 = vpop.f32.mrf.mxu0
        %v4174 = vadd.f32 0.0, %v4173
        %v4175 = vpop.f32.mrf.mxu0
        %v4176 = vpop.f32.mrf.mxu0
        %v4177 = vadd.f32 0.0, %v4176
        %v4178 = vpop.f32.mrf.mxu0
        %4179 = vdwg.mxu0
        %v4180 = vadd.f32 %v4003, %v4113
        %v4181 = vadd.f32 %v4004, %v4115
        %v4182 = vadd.f32 %v4005, %v4166
        %v4183 = vadd.f32 %v4006, %v4117
        %v4184 = vadd.f32 %v4007, %v4119
        %v4185 = vadd.f32 %v4008, %v4169
        %v4186 = vadd.f32 %v4009, %v4123
        %v4187 = vadd.f32 %v4010, %v4125
        %v4188 = vadd.f32 %v4011, %v4174
        %v4189 = vadd.f32 %v4012, %v4127
        %v4190 = vadd.f32 %v4013, %v4129
        %v4191 = vadd.f32 %v4014, %v4177
        %s4192 = scalar_lea.vmem %s2, 352
        %v4193 = vld [vmem:[%s4192] sm:$0xf]
        %v4194 = vld [vmem:[%s4192 + $0x4] sm:$0xf]
        %v4195 = vld [vmem:[%s4192 + $0x8] sm:$0xf]
        %v4196 = vld [vmem:[%s4192 + $0xc] sm:$0xf]
        %v4197 = vpack.c.bf16 %v3499, %v3496
        %v4198 = vpack.c.bf16 %v3500, %v3497
        %v4199 = vpack.c.bf16 %v3501, %v3498
        %v4200 = vpack.c.bf16 %v3505, %v3502
        %v4201 = vpack.c.bf16 %v3506, %v3503
        %v4202 = vpack.c.bf16 %v3507, %v3504
        %v4207 = vunpack.c.l.b16 %v4193
        %v4208 = vunpack.c.l.b16 %v4194
        %v4209 = vunpack.c.l.b16 %v4195
        %v4210 = vunpack.c.l.b16 %v4196
        %v4211 = vpack.c.b16 %v4208, %v4207
        %v4212 = vpack.c.b16 %v4210, %v4209
        %v4214 = vsel %vm341, %v4211, 0
        %v4217 = vsel %vm341, %v4212, 0
        %4219 = vmatprep.subr.bf16.mxu0 0
        %4220 = vmatpush1.bf16.msra.mxu0 0
        %4221 = vmatprep.subr.bf16.mxu0 0
        %4222 = vmatpush1.bf16.msra.mxu0 0
        %4223 = vmatprep.subr.bf16.mxu0 0
        %4224 = vmatpush1.bf16.msra.mxu0 0
        %4225 = vmatprep.subr.bf16.mxu0 0
        %4226 = vmatpush1.bf16.msra.mxu0 0
        %4227 = vmatprep.subr.bf16.mxu0 0
        %4228 = vmatpush1.bf16.msra.mxu0 0
        %4229 = vmatprep.subr.bf16.mxu0 0
        %4230 = vmatpush1.bf16.msra.mxu0 0
        %4231 = vmatprep.subr.bf16.mxu0 %v4201
        %4232 = vmatpush1.bf16.msra.mxu0 %v4200
        %4233 = vmatprep.subr.bf16.mxu0 %v4198
        %4234 = vmatpush1.bf16.msra.mxu0 %v4197
        %4235 = vmatprep.subr.bf16.mxu0 0
        %4236 = vmatpush2.bf16.msra.mxu0 0
        %4237 = vmatprep.subr.bf16.mxu0 0
        %4238 = vmatpush2.bf16.msra.mxu0 0
        %4239 = vmatprep.subr.bf16.mxu0 0
        %4240 = vmatpush2.bf16.msra.mxu0 0
        %4241 = vmatprep.subr.bf16.mxu0 0
        %4242 = vmatpush2.bf16.msra.mxu0 0
        %4243 = vmatprep.subr.bf16.mxu0 0
        %4244 = vmatpush2.bf16.msra.mxu0 0
        %4245 = vmatprep.subr.bf16.mxu0 0
        %4246 = vmatpush2.bf16.msra.mxu0 0
        %4247 = vmatprep.subr.bf16.mxu0 0
        %4248 = vmatpush2.bf16.msra.mxu0 0
        %4249 = vmatprep.subr.bf16.mxu0 0
        %4250 = vmatpush2.bf16.msra.mxu0 0
        %4251 = vmatprep.mubr.bf16.mxu0 0
        %4252 = vmatmul.mubr.bf16.gmra.mxu0 %v4214
        %v4253 = vpop.f32.mrf.mxu0
        %v4254 = vadd.f32 0.0, %v4253
        %v4255 = vpop.f32.mrf.mxu0
        %v4256 = vadd.f32 0.0, %v4255
        %v4257 = vpop.f32.mrf.mxu0
        %v4258 = vadd.f32 0.0, %v4257
        %v4259 = vpop.f32.mrf.mxu0
        %v4260 = vadd.f32 0.0, %v4259
        %4261 = vmatprep.mubr.bf16.mxu0 0
        %4262 = vmatmul.mubr.bf16.gmra.mxu0 %v4217
        %v4263 = vpop.f32.mrf.mxu0
        %v4264 = vadd.f32 0.0, %v4263
        %v4265 = vpop.f32.mrf.mxu0
        %v4266 = vadd.f32 0.0, %v4265
        %v4267 = vpop.f32.mrf.mxu0
        %v4268 = vadd.f32 0.0, %v4267
        %v4269 = vpop.f32.mrf.mxu0
        %v4270 = vadd.f32 0.0, %v4269
        %4271 = vdwg.mxu0
        %4272 = vmatprep.subr.bf16.mxu0 0
        %4273 = vmatpush1.bf16.msra.mxu0 0
        %4274 = vmatprep.subr.bf16.mxu0 0
        %4275 = vmatpush1.bf16.msra.mxu0 0
        %4276 = vmatprep.subr.bf16.mxu0 0
        %4277 = vmatpush1.bf16.msra.mxu0 0
        %4278 = vmatprep.subr.bf16.mxu0 0
        %4279 = vmatpush1.bf16.msra.mxu0 0
        %4280 = vmatprep.subr.bf16.mxu0 0
        %4281 = vmatpush1.bf16.msra.mxu0 0
        %4282 = vmatprep.subr.bf16.mxu0 0
        %4283 = vmatpush1.bf16.msra.mxu0 0
        %4284 = vmatprep.subr.bf16.mxu0 0
        %4285 = vmatpush1.bf16.msra.mxu0 %v4202
        %4286 = vmatprep.subr.bf16.mxu0 0
        %4287 = vmatpush1.bf16.msra.mxu0 %v4199
        %4288 = vmatprep.subr.bf16.mxu0 0
        %4289 = vmatpush2.bf16.msra.mxu0 0
        %4290 = vmatprep.subr.bf16.mxu0 0
        %4291 = vmatpush2.bf16.msra.mxu0 0
        %4292 = vmatprep.subr.bf16.mxu0 0
        %4293 = vmatpush2.bf16.msra.mxu0 0
        %4294 = vmatprep.subr.bf16.mxu0 0
        %4295 = vmatpush2.bf16.msra.mxu0 0
        %4296 = vmatprep.subr.bf16.mxu0 0
        %4297 = vmatpush2.bf16.msra.mxu0 0
        %4298 = vmatprep.subr.bf16.mxu0 0
        %4299 = vmatpush2.bf16.msra.mxu0 0
        %4300 = vmatprep.subr.bf16.mxu0 0
        %4301 = vmatpush2.bf16.msra.mxu0 0
        %4302 = vmatprep.subr.bf16.mxu0 0
        %4303 = vmatpush2.bf16.msra.mxu0 0
        %4304 = vmatprep.mubr.bf16.mxu0 0
        %4305 = vmatmul.mubr.bf16.gmra.mxu0 %v4214
        %v4306 = vpop.f32.mrf.mxu0
        %v4307 = vadd.f32 0.0, %v4306
        %v4308 = vpop.f32.mrf.mxu0
        %v4309 = vpop.f32.mrf.mxu0
        %v4310 = vadd.f32 0.0, %v4309
        %v4311 = vpop.f32.mrf.mxu0
        %4312 = vmatprep.mubr.bf16.mxu0 0
        %4313 = vmatmul.mubr.bf16.gmra.mxu0 %v4217
        %v4314 = vpop.f32.mrf.mxu0
        %v4315 = vadd.f32 0.0, %v4314
        %v4316 = vpop.f32.mrf.mxu0
        %v4317 = vpop.f32.mrf.mxu0
        %v4318 = vadd.f32 0.0, %v4317
        %v4319 = vpop.f32.mrf.mxu0
        %4320 = vdwg.mxu0
        %v4321 = vadd.f32 %v4180, %v4254
        %v4322 = vadd.f32 %v4181, %v4256
        %v4323 = vadd.f32 %v4182, %v4307
        %v4324 = vadd.f32 %v4183, %v4258
        %v4325 = vadd.f32 %v4184, %v4260
        %v4326 = vadd.f32 %v4185, %v4310
        %v4327 = vadd.f32 %v4186, %v4264
        %v4328 = vadd.f32 %v4187, %v4266
        %v4329 = vadd.f32 %v4188, %v4315
        %v4330 = vadd.f32 %v4189, %v4268
        %v4331 = vadd.f32 %v4190, %v4270
        %v4332 = vadd.f32 %v4191, %v4318
        %4333 = vrot.lane.b32.xlu0 %v3496, 127
        %v4334 = vpop.permute.xlu0 %4333
        %4335 = vrot.lane.b32.xlu0 %v3499, 127
        %v4336 = vpop.permute.xlu0 %4335
        %4337 = vrot.lane.b32.xlu0 %v3502, 127
        %v4338 = vpop.permute.xlu0 %4337
        %4339 = vrot.lane.b32.xlu0 %v3505, 127
        %v4340 = vpop.permute.xlu0 %4339
        %4341 = vrot.lane.b32.xlu0 %v3497, 127
        %v4342 = vpop.permute.xlu0 %4341
        %4343 = vrot.lane.b32.xlu0 %v3500, 127
        %v4344 = vpop.permute.xlu0 %4343
        %4345 = vrot.lane.b32.xlu0 %v3503, 127
        %v4346 = vpop.permute.xlu0 %4345
        %4347 = vrot.lane.b32.xlu0 %v3506, 127
        %v4348 = vpop.permute.xlu0 %4347
        %4349 = vrot.lane.b32.xlu0 %v3498, 127
        %v4350 = vpop.permute.xlu0 %4349
        %4351 = vrot.lane.b32.xlu0 %v3501, 127
        %v4352 = vpop.permute.xlu0 %4351
        %4353 = vrot.lane.b32.xlu0 %v3504, 127
        %v4354 = vpop.permute.xlu0 %4353
        %4355 = vrot.lane.b32.xlu0 %v3507, 127
        %v4356 = vpop.permute.xlu0 %4355
        %v4357 = vsel %vm1089, %v4342, %v4350
        %v4358 = vsel %vm1089, %v4344, %v4352
        %v4359 = vsel %vm1089, %v4346, %v4354
        %v4360 = vsel %vm1089, %v4348, %v4356
        %v4361 = vsel %vm1089, %v4334, %v4342
        %v4362 = vsel %vm1089, %v4336, %v4344
        %v4363 = vsel %vm1089, %v4338, %v4346
        %v4364 = vsel %vm1089, %v4340, %v4348
        %v4365 = vsel %vm1089, %v4350, %v4334
        %v4366 = vsel %vm1089, %v4352, %v4336
        %v4367 = vsel %vm1089, %v4354, %v4338
        %v4368 = vsel %vm1089, %v4356, %v4340
        %s4369 = scalar_lea.vmem %s2, 368
        %v4370 = vld [vmem:[%s4369] sm:$0xf]
        %v4371 = vld [vmem:[%s4369 + $0x4] sm:$0xf]
        %v4372 = vld [vmem:[%s4369 + $0x8] sm:$0xf]
        %v4373 = vld [vmem:[%s4369 + $0xc] sm:$0xf]
        %v4374 = vpack.c.bf16 %v4362, %v4361
        %v4375 = vpack.c.bf16 %v4358, %v4357
        %v4376 = vpack.c.bf16 %v4366, %v4365
        %v4377 = vpack.c.bf16 %v4364, %v4363
        %v4378 = vpack.c.bf16 %v4360, %v4359
        %v4379 = vpack.c.bf16 %v4368, %v4367
        %v4384 = vunpack.c.l.b16 %v4370
        %v4385 = vunpack.c.l.b16 %v4371
        %v4386 = vunpack.c.l.b16 %v4372
        %v4387 = vunpack.c.l.b16 %v4373
        %v4388 = vpack.c.b16 %v4385, %v4384
        %v4389 = vpack.c.b16 %v4387, %v4386
        %v4391 = vsel %vm341, %v4388, 0
        %v4394 = vsel %vm341, %v4389, 0
        %4396 = vmatprep.subr.bf16.mxu0 0
        %4397 = vmatpush1.bf16.msra.mxu0 0
        %4398 = vmatprep.subr.bf16.mxu0 0
        %4399 = vmatpush1.bf16.msra.mxu0 0
        %4400 = vmatprep.subr.bf16.mxu0 0
        %4401 = vmatpush1.bf16.msra.mxu0 0
        %4402 = vmatprep.subr.bf16.mxu0 0
        %4403 = vmatpush1.bf16.msra.mxu0 0
        %4404 = vmatprep.subr.bf16.mxu0 0
        %4405 = vmatpush1.bf16.msra.mxu0 0
        %4406 = vmatprep.subr.bf16.mxu0 0
        %4407 = vmatpush1.bf16.msra.mxu0 0
        %4408 = vmatprep.subr.bf16.mxu0 %v4378
        %4409 = vmatpush1.bf16.msra.mxu0 %v4377
        %4410 = vmatprep.subr.bf16.mxu0 %v4375
        %4411 = vmatpush1.bf16.msra.mxu0 %v4374
        %4412 = vmatprep.subr.bf16.mxu0 0
        %4413 = vmatpush2.bf16.msra.mxu0 0
        %4414 = vmatprep.subr.bf16.mxu0 0
        %4415 = vmatpush2.bf16.msra.mxu0 0
        %4416 = vmatprep.subr.bf16.mxu0 0
        %4417 = vmatpush2.bf16.msra.mxu0 0
        %4418 = vmatprep.subr.bf16.mxu0 0
        %4419 = vmatpush2.bf16.msra.mxu0 0
        %4420 = vmatprep.subr.bf16.mxu0 0
        %4421 = vmatpush2.bf16.msra.mxu0 0
        %4422 = vmatprep.subr.bf16.mxu0 0
        %4423 = vmatpush2.bf16.msra.mxu0 0
        %4424 = vmatprep.subr.bf16.mxu0 0
        %4425 = vmatpush2.bf16.msra.mxu0 0
        %4426 = vmatprep.subr.bf16.mxu0 0
        %4427 = vmatpush2.bf16.msra.mxu0 0
        %4428 = vmatprep.mubr.bf16.mxu0 0
        %4429 = vmatmul.mubr.bf16.gmra.mxu0 %v4391
        %v4430 = vpop.f32.mrf.mxu0
        %v4431 = vadd.f32 0.0, %v4430
        %v4432 = vpop.f32.mrf.mxu0
        %v4433 = vadd.f32 0.0, %v4432
        %v4434 = vpop.f32.mrf.mxu0
        %v4435 = vadd.f32 0.0, %v4434
        %v4436 = vpop.f32.mrf.mxu0
        %v4437 = vadd.f32 0.0, %v4436
        %4438 = vmatprep.mubr.bf16.mxu0 0
        %4439 = vmatmul.mubr.bf16.gmra.mxu0 %v4394
        %v4440 = vpop.f32.mrf.mxu0
        %v4441 = vadd.f32 0.0, %v4440
        %v4442 = vpop.f32.mrf.mxu0
        %v4443 = vadd.f32 0.0, %v4442
        %v4444 = vpop.f32.mrf.mxu0
        %v4445 = vadd.f32 0.0, %v4444
        %v4446 = vpop.f32.mrf.mxu0
        %v4447 = vadd.f32 0.0, %v4446
        %4448 = vdwg.mxu0
        %4449 = vmatprep.subr.bf16.mxu0 0
        %4450 = vmatpush1.bf16.msra.mxu0 0
        %4451 = vmatprep.subr.bf16.mxu0 0
        %4452 = vmatpush1.bf16.msra.mxu0 0
        %4453 = vmatprep.subr.bf16.mxu0 0
        %4454 = vmatpush1.bf16.msra.mxu0 0
        %4455 = vmatprep.subr.bf16.mxu0 0
        %4456 = vmatpush1.bf16.msra.mxu0 0
        %4457 = vmatprep.subr.bf16.mxu0 0
        %4458 = vmatpush1.bf16.msra.mxu0 0
        %4459 = vmatprep.subr.bf16.mxu0 0
        %4460 = vmatpush1.bf16.msra.mxu0 0
        %4461 = vmatprep.subr.bf16.mxu0 0
        %4462 = vmatpush1.bf16.msra.mxu0 %v4379
        %4463 = vmatprep.subr.bf16.mxu0 0
        %4464 = vmatpush1.bf16.msra.mxu0 %v4376
        %4465 = vmatprep.subr.bf16.mxu0 0
        %4466 = vmatpush2.bf16.msra.mxu0 0
        %4467 = vmatprep.subr.bf16.mxu0 0
        %4468 = vmatpush2.bf16.msra.mxu0 0
        %4469 = vmatprep.subr.bf16.mxu0 0
        %4470 = vmatpush2.bf16.msra.mxu0 0
        %4471 = vmatprep.subr.bf16.mxu0 0
        %4472 = vmatpush2.bf16.msra.mxu0 0
        %4473 = vmatprep.subr.bf16.mxu0 0
        %4474 = vmatpush2.bf16.msra.mxu0 0
        %4475 = vmatprep.subr.bf16.mxu0 0
        %4476 = vmatpush2.bf16.msra.mxu0 0
        %4477 = vmatprep.subr.bf16.mxu0 0
        %4478 = vmatpush2.bf16.msra.mxu0 0
        %4479 = vmatprep.subr.bf16.mxu0 0
        %4480 = vmatpush2.bf16.msra.mxu0 0
        %4481 = vmatprep.mubr.bf16.mxu0 0
        %4482 = vmatmul.mubr.bf16.gmra.mxu0 %v4391
        %v4483 = vpop.f32.mrf.mxu0
        %v4484 = vadd.f32 0.0, %v4483
        %v4485 = vpop.f32.mrf.mxu0
        %v4486 = vpop.f32.mrf.mxu0
        %v4487 = vadd.f32 0.0, %v4486
        %v4488 = vpop.f32.mrf.mxu0
        %4489 = vmatprep.mubr.bf16.mxu0 0
        %4490 = vmatmul.mubr.bf16.gmra.mxu0 %v4394
        %v4491 = vpop.f32.mrf.mxu0
        %v4492 = vadd.f32 0.0, %v4491
        %v4493 = vpop.f32.mrf.mxu0
        %v4494 = vpop.f32.mrf.mxu0
        %v4495 = vadd.f32 0.0, %v4494
        %v4496 = vpop.f32.mrf.mxu0
        %4497 = vdwg.mxu0
        %v4498 = vadd.f32 %v4321, %v4431
        %v4499 = vadd.f32 %v4322, %v4433
        %v4500 = vadd.f32 %v4323, %v4484
        %v4501 = vadd.f32 %v4324, %v4435
        %v4502 = vadd.f32 %v4325, %v4437
        %v4503 = vadd.f32 %v4326, %v4487
        %v4504 = vadd.f32 %v4327, %v4441
        %v4505 = vadd.f32 %v4328, %v4443
        %v4506 = vadd.f32 %v4329, %v4492
        %v4507 = vadd.f32 %v4330, %v4445
        %v4508 = vadd.f32 %v4331, %v4447
        %v4509 = vadd.f32 %v4332, %v4495
        %4510 = vrot.lane.b32.xlu0 %v3496, 111
        %v4511 = vpop.permute.xlu0 %4510
        %4512 = vrot.lane.b32.xlu0 %v3499, 111
        %v4513 = vpop.permute.xlu0 %4512
        %4514 = vrot.lane.b32.xlu0 %v3502, 111
        %v4515 = vpop.permute.xlu0 %4514
        %4516 = vrot.lane.b32.xlu0 %v3505, 111
        %v4517 = vpop.permute.xlu0 %4516
        %4518 = vrot.lane.b32.xlu0 %v3497, 111
        %v4519 = vpop.permute.xlu0 %4518
        %4520 = vrot.lane.b32.xlu0 %v3500, 111
        %v4521 = vpop.permute.xlu0 %4520
        %4522 = vrot.lane.b32.xlu0 %v3503, 111
        %v4523 = vpop.permute.xlu0 %4522
        %4524 = vrot.lane.b32.xlu0 %v3506, 111
        %v4525 = vpop.permute.xlu0 %4524
        %4526 = vrot.lane.b32.xlu0 %v3498, 111
        %v4527 = vpop.permute.xlu0 %4526
        %4528 = vrot.lane.b32.xlu0 %v3501, 111
        %v4529 = vpop.permute.xlu0 %4528
        %4530 = vrot.lane.b32.xlu0 %v3504, 111
        %v4531 = vpop.permute.xlu0 %4530
        %4532 = vrot.lane.b32.xlu0 %v3507, 111
        %v4533 = vpop.permute.xlu0 %4532
        %v4534 = vsel %vm1267, %v4519, %v4527
        %v4535 = vsel %vm1267, %v4521, %v4529
        %v4536 = vsel %vm1267, %v4523, %v4531
        %v4537 = vsel %vm1267, %v4525, %v4533
        %v4538 = vsel %vm1267, %v4511, %v4519
        %v4539 = vsel %vm1267, %v4513, %v4521
        %v4540 = vsel %vm1267, %v4515, %v4523
        %v4541 = vsel %vm1267, %v4517, %v4525
        %v4542 = vsel %vm1267, %v4527, %v4511
        %v4543 = vsel %vm1267, %v4529, %v4513
        %v4544 = vsel %vm1267, %v4531, %v4515
        %v4545 = vsel %vm1267, %v4533, %v4517
        %s4546 = scalar_lea.vmem %s2, 384
        %v4547 = vld [vmem:[%s4546] sm:$0xf]
        %v4548 = vld [vmem:[%s4546 + $0x4] sm:$0xf]
        %v4549 = vld [vmem:[%s4546 + $0x8] sm:$0xf]
        %v4550 = vld [vmem:[%s4546 + $0xc] sm:$0xf]
        %v4551 = vpack.c.bf16 %v4539, %v4538
        %v4552 = vpack.c.bf16 %v4535, %v4534
        %v4553 = vpack.c.bf16 %v4543, %v4542
        %v4554 = vpack.c.bf16 %v4541, %v4540
        %v4555 = vpack.c.bf16 %v4537, %v4536
        %v4556 = vpack.c.bf16 %v4545, %v4544
        %v4561 = vunpack.c.l.b16 %v4547
        %v4562 = vunpack.c.l.b16 %v4548
        %v4563 = vunpack.c.l.b16 %v4549
        %v4564 = vunpack.c.l.b16 %v4550
        %v4565 = vpack.c.b16 %v4562, %v4561
        %v4566 = vpack.c.b16 %v4564, %v4563
        %v4568 = vsel %vm341, %v4565, 0
        %v4571 = vsel %vm341, %v4566, 0
        %4573 = vmatprep.subr.bf16.mxu0 0
        %4574 = vmatpush1.bf16.msra.mxu0 0
        %4575 = vmatprep.subr.bf16.mxu0 0
        %4576 = vmatpush1.bf16.msra.mxu0 0
        %4577 = vmatprep.subr.bf16.mxu0 0
        %4578 = vmatpush1.bf16.msra.mxu0 0
        %4579 = vmatprep.subr.bf16.mxu0 0
        %4580 = vmatpush1.bf16.msra.mxu0 0
        %4581 = vmatprep.subr.bf16.mxu0 0
        %4582 = vmatpush1.bf16.msra.mxu0 0
        %4583 = vmatprep.subr.bf16.mxu0 0
        %4584 = vmatpush1.bf16.msra.mxu0 0
        %4585 = vmatprep.subr.bf16.mxu0 %v4555
        %4586 = vmatpush1.bf16.msra.mxu0 %v4554
        %4587 = vmatprep.subr.bf16.mxu0 %v4552
        %4588 = vmatpush1.bf16.msra.mxu0 %v4551
        %4589 = vmatprep.subr.bf16.mxu0 0
        %4590 = vmatpush2.bf16.msra.mxu0 0
        %4591 = vmatprep.subr.bf16.mxu0 0
        %4592 = vmatpush2.bf16.msra.mxu0 0
        %4593 = vmatprep.subr.bf16.mxu0 0
        %4594 = vmatpush2.bf16.msra.mxu0 0
        %4595 = vmatprep.subr.bf16.mxu0 0
        %4596 = vmatpush2.bf16.msra.mxu0 0
        %4597 = vmatprep.subr.bf16.mxu0 0
        %4598 = vmatpush2.bf16.msra.mxu0 0
        %4599 = vmatprep.subr.bf16.mxu0 0
        %4600 = vmatpush2.bf16.msra.mxu0 0
        %4601 = vmatprep.subr.bf16.mxu0 0
        %4602 = vmatpush2.bf16.msra.mxu0 0
        %4603 = vmatprep.subr.bf16.mxu0 0
        %4604 = vmatpush2.bf16.msra.mxu0 0
        %4605 = vmatprep.mubr.bf16.mxu0 0
        %4606 = vmatmul.mubr.bf16.gmra.mxu0 %v4568
        %v4607 = vpop.f32.mrf.mxu0
        %v4608 = vadd.f32 0.0, %v4607
        %v4609 = vpop.f32.mrf.mxu0
        %v4610 = vadd.f32 0.0, %v4609
        %v4611 = vpop.f32.mrf.mxu0
        %v4612 = vadd.f32 0.0, %v4611
        %v4613 = vpop.f32.mrf.mxu0
        %v4614 = vadd.f32 0.0, %v4613
        %4615 = vmatprep.mubr.bf16.mxu0 0
        %4616 = vmatmul.mubr.bf16.gmra.mxu0 %v4571
        %v4617 = vpop.f32.mrf.mxu0
        %v4618 = vadd.f32 0.0, %v4617
        %v4619 = vpop.f32.mrf.mxu0
        %v4620 = vadd.f32 0.0, %v4619
        %v4621 = vpop.f32.mrf.mxu0
        %v4622 = vadd.f32 0.0, %v4621
        %v4623 = vpop.f32.mrf.mxu0
        %v4624 = vadd.f32 0.0, %v4623
        %4625 = vdwg.mxu0
        %4626 = vmatprep.subr.bf16.mxu0 0
        %4627 = vmatpush1.bf16.msra.mxu0 0
        %4628 = vmatprep.subr.bf16.mxu0 0
        %4629 = vmatpush1.bf16.msra.mxu0 0
        %4630 = vmatprep.subr.bf16.mxu0 0
        %4631 = vmatpush1.bf16.msra.mxu0 0
        %4632 = vmatprep.subr.bf16.mxu0 0
        %4633 = vmatpush1.bf16.msra.mxu0 0
        %4634 = vmatprep.subr.bf16.mxu0 0
        %4635 = vmatpush1.bf16.msra.mxu0 0
        %4636 = vmatprep.subr.bf16.mxu0 0
        %4637 = vmatpush1.bf16.msra.mxu0 0
        %4638 = vmatprep.subr.bf16.mxu0 0
        %4639 = vmatpush1.bf16.msra.mxu0 %v4556
        %4640 = vmatprep.subr.bf16.mxu0 0
        %4641 = vmatpush1.bf16.msra.mxu0 %v4553
        %4642 = vmatprep.subr.bf16.mxu0 0
        %4643 = vmatpush2.bf16.msra.mxu0 0
        %4644 = vmatprep.subr.bf16.mxu0 0
        %4645 = vmatpush2.bf16.msra.mxu0 0
        %4646 = vmatprep.subr.bf16.mxu0 0
        %4647 = vmatpush2.bf16.msra.mxu0 0
        %4648 = vmatprep.subr.bf16.mxu0 0
        %4649 = vmatpush2.bf16.msra.mxu0 0
        %4650 = vmatprep.subr.bf16.mxu0 0
        %4651 = vmatpush2.bf16.msra.mxu0 0
        %4652 = vmatprep.subr.bf16.mxu0 0
        %4653 = vmatpush2.bf16.msra.mxu0 0
        %4654 = vmatprep.subr.bf16.mxu0 0
        %4655 = vmatpush2.bf16.msra.mxu0 0
        %4656 = vmatprep.subr.bf16.mxu0 0
        %4657 = vmatpush2.bf16.msra.mxu0 0
        %4658 = vmatprep.mubr.bf16.mxu0 0
        %4659 = vmatmul.mubr.bf16.gmra.mxu0 %v4568
        %v4660 = vpop.f32.mrf.mxu0
        %v4661 = vadd.f32 0.0, %v4660
        %v4662 = vpop.f32.mrf.mxu0
        %v4663 = vpop.f32.mrf.mxu0
        %v4664 = vadd.f32 0.0, %v4663
        %v4665 = vpop.f32.mrf.mxu0
        %4666 = vmatprep.mubr.bf16.mxu0 0
        %4667 = vmatmul.mubr.bf16.gmra.mxu0 %v4571
        %v4668 = vpop.f32.mrf.mxu0
        %v4669 = vadd.f32 0.0, %v4668
        %v4670 = vpop.f32.mrf.mxu0
        %v4671 = vpop.f32.mrf.mxu0
        %v4672 = vadd.f32 0.0, %v4671
        %v4673 = vpop.f32.mrf.mxu0
        %4674 = vdwg.mxu0
        %v4675 = vadd.f32 %v4498, %v4608
        %v4676 = vadd.f32 %v4499, %v4610
        %v4677 = vadd.f32 %v4500, %v4661
        %v4678 = vadd.f32 %v4501, %v4612
        %v4679 = vadd.f32 %v4502, %v4614
        %v4680 = vadd.f32 %v4503, %v4664
        %v4681 = vadd.f32 %v4504, %v4618
        %v4682 = vadd.f32 %v4505, %v4620
        %v4683 = vadd.f32 %v4506, %v4669
        %v4684 = vadd.f32 %v4507, %v4622
        %v4685 = vadd.f32 %v4508, %v4624
        %v4686 = vadd.f32 %v4509, %v4672
        %4687 = vrot.lane.b32.xlu0 %v3496, 110
        %v4688 = vpop.permute.xlu0 %4687
        %4689 = vrot.lane.b32.xlu0 %v3499, 110
        %v4690 = vpop.permute.xlu0 %4689
        %4691 = vrot.lane.b32.xlu0 %v3502, 110
        %v4692 = vpop.permute.xlu0 %4691
        %4693 = vrot.lane.b32.xlu0 %v3505, 110
        %v4694 = vpop.permute.xlu0 %4693
        %4695 = vrot.lane.b32.xlu0 %v3497, 110
        %v4696 = vpop.permute.xlu0 %4695
        %4697 = vrot.lane.b32.xlu0 %v3500, 110
        %v4698 = vpop.permute.xlu0 %4697
        %4699 = vrot.lane.b32.xlu0 %v3503, 110
        %v4700 = vpop.permute.xlu0 %4699
        %4701 = vrot.lane.b32.xlu0 %v3506, 110
        %v4702 = vpop.permute.xlu0 %4701
        %4703 = vrot.lane.b32.xlu0 %v3498, 110
        %v4704 = vpop.permute.xlu0 %4703
        %4705 = vrot.lane.b32.xlu0 %v3501, 110
        %v4706 = vpop.permute.xlu0 %4705
        %4707 = vrot.lane.b32.xlu0 %v3504, 110
        %v4708 = vpop.permute.xlu0 %4707
        %4709 = vrot.lane.b32.xlu0 %v3507, 110
        %v4710 = vpop.permute.xlu0 %4709
        %v4711 = vsel %vm1445, %v4696, %v4704
        %v4712 = vsel %vm1445, %v4698, %v4706
        %v4713 = vsel %vm1445, %v4700, %v4708
        %v4714 = vsel %vm1445, %v4702, %v4710
        %v4715 = vsel %vm1445, %v4688, %v4696
        %v4716 = vsel %vm1445, %v4690, %v4698
        %v4717 = vsel %vm1445, %v4692, %v4700
        %v4718 = vsel %vm1445, %v4694, %v4702
        %v4719 = vsel %vm1445, %v4704, %v4688
        %v4720 = vsel %vm1445, %v4706, %v4690
        %v4721 = vsel %vm1445, %v4708, %v4692
        %v4722 = vsel %vm1445, %v4710, %v4694
        %s4723 = scalar_lea.vmem %s2, 400
        %v4724 = vld [vmem:[%s4723] sm:$0xf]
        %v4725 = vld [vmem:[%s4723 + $0x4] sm:$0xf]
        %v4726 = vld [vmem:[%s4723 + $0x8] sm:$0xf]
        %v4727 = vld [vmem:[%s4723 + $0xc] sm:$0xf]
        %v4728 = vpack.c.bf16 %v4716, %v4715
        %v4729 = vpack.c.bf16 %v4712, %v4711
        %v4730 = vpack.c.bf16 %v4720, %v4719
        %v4731 = vpack.c.bf16 %v4718, %v4717
        %v4732 = vpack.c.bf16 %v4714, %v4713
        %v4733 = vpack.c.bf16 %v4722, %v4721
        %v4738 = vunpack.c.l.b16 %v4724
        %v4739 = vunpack.c.l.b16 %v4725
        %v4740 = vunpack.c.l.b16 %v4726
        %v4741 = vunpack.c.l.b16 %v4727
        %v4742 = vpack.c.b16 %v4739, %v4738
        %v4743 = vpack.c.b16 %v4741, %v4740
        %v4745 = vsel %vm341, %v4742, 0
        %v4748 = vsel %vm341, %v4743, 0
        %4750 = vmatprep.subr.bf16.mxu0 0
        %4751 = vmatpush1.bf16.msra.mxu0 0
        %4752 = vmatprep.subr.bf16.mxu0 0
        %4753 = vmatpush1.bf16.msra.mxu0 0
        %4754 = vmatprep.subr.bf16.mxu0 0
        %4755 = vmatpush1.bf16.msra.mxu0 0
        %4756 = vmatprep.subr.bf16.mxu0 0
        %4757 = vmatpush1.bf16.msra.mxu0 0
        %4758 = vmatprep.subr.bf16.mxu0 0
        %4759 = vmatpush1.bf16.msra.mxu0 0
        %4760 = vmatprep.subr.bf16.mxu0 0
        %4761 = vmatpush1.bf16.msra.mxu0 0
        %4762 = vmatprep.subr.bf16.mxu0 %v4732
        %4763 = vmatpush1.bf16.msra.mxu0 %v4731
        %4764 = vmatprep.subr.bf16.mxu0 %v4729
        %4765 = vmatpush1.bf16.msra.mxu0 %v4728
        %4766 = vmatprep.subr.bf16.mxu0 0
        %4767 = vmatpush2.bf16.msra.mxu0 0
        %4768 = vmatprep.subr.bf16.mxu0 0
        %4769 = vmatpush2.bf16.msra.mxu0 0
        %4770 = vmatprep.subr.bf16.mxu0 0
        %4771 = vmatpush2.bf16.msra.mxu0 0
        %4772 = vmatprep.subr.bf16.mxu0 0
        %4773 = vmatpush2.bf16.msra.mxu0 0
        %4774 = vmatprep.subr.bf16.mxu0 0
        %4775 = vmatpush2.bf16.msra.mxu0 0
        %4776 = vmatprep.subr.bf16.mxu0 0
        %4777 = vmatpush2.bf16.msra.mxu0 0
        %4778 = vmatprep.subr.bf16.mxu0 0
        %4779 = vmatpush2.bf16.msra.mxu0 0
        %4780 = vmatprep.subr.bf16.mxu0 0
        %4781 = vmatpush2.bf16.msra.mxu0 0
        %4782 = vmatprep.mubr.bf16.mxu0 0
        %4783 = vmatmul.mubr.bf16.gmra.mxu0 %v4745
        %v4784 = vpop.f32.mrf.mxu0
        %v4785 = vadd.f32 0.0, %v4784
        %v4786 = vpop.f32.mrf.mxu0
        %v4787 = vadd.f32 0.0, %v4786
        %v4788 = vpop.f32.mrf.mxu0
        %v4789 = vadd.f32 0.0, %v4788
        %v4790 = vpop.f32.mrf.mxu0
        %v4791 = vadd.f32 0.0, %v4790
        %4792 = vmatprep.mubr.bf16.mxu0 0
        %4793 = vmatmul.mubr.bf16.gmra.mxu0 %v4748
        %v4794 = vpop.f32.mrf.mxu0
        %v4795 = vadd.f32 0.0, %v4794
        %v4796 = vpop.f32.mrf.mxu0
        %v4797 = vadd.f32 0.0, %v4796
        %v4798 = vpop.f32.mrf.mxu0
        %v4799 = vadd.f32 0.0, %v4798
        %v4800 = vpop.f32.mrf.mxu0
        %v4801 = vadd.f32 0.0, %v4800
        %4802 = vdwg.mxu0
        %4803 = vmatprep.subr.bf16.mxu0 0
        %4804 = vmatpush1.bf16.msra.mxu0 0
        %4805 = vmatprep.subr.bf16.mxu0 0
        %4806 = vmatpush1.bf16.msra.mxu0 0
        %4807 = vmatprep.subr.bf16.mxu0 0
        %4808 = vmatpush1.bf16.msra.mxu0 0
        %4809 = vmatprep.subr.bf16.mxu0 0
        %4810 = vmatpush1.bf16.msra.mxu0 0
        %4811 = vmatprep.subr.bf16.mxu0 0
        %4812 = vmatpush1.bf16.msra.mxu0 0
        %4813 = vmatprep.subr.bf16.mxu0 0
        %4814 = vmatpush1.bf16.msra.mxu0 0
        %4815 = vmatprep.subr.bf16.mxu0 0
        %4816 = vmatpush1.bf16.msra.mxu0 %v4733
        %4817 = vmatprep.subr.bf16.mxu0 0
        %4818 = vmatpush1.bf16.msra.mxu0 %v4730
        %4819 = vmatprep.subr.bf16.mxu0 0
        %4820 = vmatpush2.bf16.msra.mxu0 0
        %4821 = vmatprep.subr.bf16.mxu0 0
        %4822 = vmatpush2.bf16.msra.mxu0 0
        %4823 = vmatprep.subr.bf16.mxu0 0
        %4824 = vmatpush2.bf16.msra.mxu0 0
        %4825 = vmatprep.subr.bf16.mxu0 0
        %4826 = vmatpush2.bf16.msra.mxu0 0
        %4827 = vmatprep.subr.bf16.mxu0 0
        %4828 = vmatpush2.bf16.msra.mxu0 0
        %4829 = vmatprep.subr.bf16.mxu0 0
        %4830 = vmatpush2.bf16.msra.mxu0 0
        %4831 = vmatprep.subr.bf16.mxu0 0
        %4832 = vmatpush2.bf16.msra.mxu0 0
        %4833 = vmatprep.subr.bf16.mxu0 0
        %4834 = vmatpush2.bf16.msra.mxu0 0
        %4835 = vmatprep.mubr.bf16.mxu0 0
        %4836 = vmatmul.mubr.bf16.gmra.mxu0 %v4745
        %v4837 = vpop.f32.mrf.mxu0
        %v4838 = vadd.f32 0.0, %v4837
        %v4839 = vpop.f32.mrf.mxu0
        %v4840 = vpop.f32.mrf.mxu0
        %v4841 = vadd.f32 0.0, %v4840
        %v4842 = vpop.f32.mrf.mxu0
        %4843 = vmatprep.mubr.bf16.mxu0 0
        %4844 = vmatmul.mubr.bf16.gmra.mxu0 %v4748
        %v4845 = vpop.f32.mrf.mxu0
        %v4846 = vadd.f32 0.0, %v4845
        %v4847 = vpop.f32.mrf.mxu0
        %v4848 = vpop.f32.mrf.mxu0
        %v4849 = vadd.f32 0.0, %v4848
        %v4850 = vpop.f32.mrf.mxu0
        %4851 = vdwg.mxu0
        %v4852 = vadd.f32 %v4675, %v4785
        %v4853 = vadd.f32 %v4676, %v4787
        %v4854 = vadd.f32 %v4677, %v4838
        %v4855 = vadd.f32 %v4678, %v4789
        %v4856 = vadd.f32 %v4679, %v4791
        %v4857 = vadd.f32 %v4680, %v4841
        %v4858 = vadd.f32 %v4681, %v4795
        %v4859 = vadd.f32 %v4682, %v4797
        %v4860 = vadd.f32 %v4683, %v4846
        %v4861 = vadd.f32 %v4684, %v4799
        %v4862 = vadd.f32 %v4685, %v4801
        %v4863 = vadd.f32 %v4686, %v4849
        %4864 = vrot.lane.b32.xlu0 %v3496, 109
        %v4865 = vpop.permute.xlu0 %4864
        %4866 = vrot.lane.b32.xlu0 %v3499, 109
        %v4867 = vpop.permute.xlu0 %4866
        %4868 = vrot.lane.b32.xlu0 %v3502, 109
        %v4869 = vpop.permute.xlu0 %4868
        %4870 = vrot.lane.b32.xlu0 %v3505, 109
        %v4871 = vpop.permute.xlu0 %4870
        %4872 = vrot.lane.b32.xlu0 %v3497, 109
        %v4873 = vpop.permute.xlu0 %4872
        %4874 = vrot.lane.b32.xlu0 %v3500, 109
        %v4875 = vpop.permute.xlu0 %4874
        %4876 = vrot.lane.b32.xlu0 %v3503, 109
        %v4877 = vpop.permute.xlu0 %4876
        %4878 = vrot.lane.b32.xlu0 %v3506, 109
        %v4879 = vpop.permute.xlu0 %4878
        %4880 = vrot.lane.b32.xlu0 %v3498, 109
        %v4881 = vpop.permute.xlu0 %4880
        %4882 = vrot.lane.b32.xlu0 %v3501, 109
        %v4883 = vpop.permute.xlu0 %4882
        %4884 = vrot.lane.b32.xlu0 %v3504, 109
        %v4885 = vpop.permute.xlu0 %4884
        %4886 = vrot.lane.b32.xlu0 %v3507, 109
        %v4887 = vpop.permute.xlu0 %4886
        %v4888 = vsel %vm1623, %v4873, %v4881
        %v4889 = vsel %vm1623, %v4875, %v4883
        %v4890 = vsel %vm1623, %v4877, %v4885
        %v4891 = vsel %vm1623, %v4879, %v4887
        %v4892 = vsel %vm1623, %v4865, %v4873
        %v4893 = vsel %vm1623, %v4867, %v4875
        %v4894 = vsel %vm1623, %v4869, %v4877
        %v4895 = vsel %vm1623, %v4871, %v4879
        %v4896 = vsel %vm1623, %v4881, %v4865
        %v4897 = vsel %vm1623, %v4883, %v4867
        %v4898 = vsel %vm1623, %v4885, %v4869
        %v4899 = vsel %vm1623, %v4887, %v4871
        %s4900 = scalar_lea.vmem %s2, 416
        %v4901 = vld [vmem:[%s4900] sm:$0xf]
        %v4902 = vld [vmem:[%s4900 + $0x4] sm:$0xf]
        %v4903 = vld [vmem:[%s4900 + $0x8] sm:$0xf]
        %v4904 = vld [vmem:[%s4900 + $0xc] sm:$0xf]
        %v4905 = vpack.c.bf16 %v4893, %v4892
        %v4906 = vpack.c.bf16 %v4889, %v4888
        %v4907 = vpack.c.bf16 %v4897, %v4896
        %v4908 = vpack.c.bf16 %v4895, %v4894
        %v4909 = vpack.c.bf16 %v4891, %v4890
        %v4910 = vpack.c.bf16 %v4899, %v4898
        %v4915 = vunpack.c.l.b16 %v4901
        %v4916 = vunpack.c.l.b16 %v4902
        %v4917 = vunpack.c.l.b16 %v4903
        %v4918 = vunpack.c.l.b16 %v4904
        %v4919 = vpack.c.b16 %v4916, %v4915
        %v4920 = vpack.c.b16 %v4918, %v4917
        %v4922 = vsel %vm341, %v4919, 0
        %v4925 = vsel %vm341, %v4920, 0
        %4927 = vmatprep.subr.bf16.mxu0 0
        %4928 = vmatpush1.bf16.msra.mxu0 0
        %4929 = vmatprep.subr.bf16.mxu0 0
        %4930 = vmatpush1.bf16.msra.mxu0 0
        %4931 = vmatprep.subr.bf16.mxu0 0
        %4932 = vmatpush1.bf16.msra.mxu0 0
        %4933 = vmatprep.subr.bf16.mxu0 0
        %4934 = vmatpush1.bf16.msra.mxu0 0
        %4935 = vmatprep.subr.bf16.mxu0 0
        %4936 = vmatpush1.bf16.msra.mxu0 0
        %4937 = vmatprep.subr.bf16.mxu0 0
        %4938 = vmatpush1.bf16.msra.mxu0 0
        %4939 = vmatprep.subr.bf16.mxu0 %v4909
        %4940 = vmatpush1.bf16.msra.mxu0 %v4908
        %4941 = vmatprep.subr.bf16.mxu0 %v4906
        %4942 = vmatpush1.bf16.msra.mxu0 %v4905
        %4943 = vmatprep.subr.bf16.mxu0 0
        %4944 = vmatpush2.bf16.msra.mxu0 0
        %4945 = vmatprep.subr.bf16.mxu0 0
        %4946 = vmatpush2.bf16.msra.mxu0 0
        %4947 = vmatprep.subr.bf16.mxu0 0
        %4948 = vmatpush2.bf16.msra.mxu0 0
        %4949 = vmatprep.subr.bf16.mxu0 0
        %4950 = vmatpush2.bf16.msra.mxu0 0
        %4951 = vmatprep.subr.bf16.mxu0 0
        %4952 = vmatpush2.bf16.msra.mxu0 0
        %4953 = vmatprep.subr.bf16.mxu0 0
        %4954 = vmatpush2.bf16.msra.mxu0 0
        %4955 = vmatprep.subr.bf16.mxu0 0
        %4956 = vmatpush2.bf16.msra.mxu0 0
        %4957 = vmatprep.subr.bf16.mxu0 0
        %4958 = vmatpush2.bf16.msra.mxu0 0
        %4959 = vmatprep.mubr.bf16.mxu0 0
        %4960 = vmatmul.mubr.bf16.gmra.mxu0 %v4922
        %v4961 = vpop.f32.mrf.mxu0
        %v4962 = vadd.f32 0.0, %v4961
        %v4963 = vpop.f32.mrf.mxu0
        %v4964 = vadd.f32 0.0, %v4963
        %v4965 = vpop.f32.mrf.mxu0
        %v4966 = vadd.f32 0.0, %v4965
        %v4967 = vpop.f32.mrf.mxu0
        %v4968 = vadd.f32 0.0, %v4967
        %4969 = vmatprep.mubr.bf16.mxu0 0
        %4970 = vmatmul.mubr.bf16.gmra.mxu0 %v4925
        %v4971 = vpop.f32.mrf.mxu0
        %v4972 = vadd.f32 0.0, %v4971
        %v4973 = vpop.f32.mrf.mxu0
        %v4974 = vadd.f32 0.0, %v4973
        %v4975 = vpop.f32.mrf.mxu0
        %v4976 = vadd.f32 0.0, %v4975
        %v4977 = vpop.f32.mrf.mxu0
        %v4978 = vadd.f32 0.0, %v4977
        %4979 = vdwg.mxu0
        %4980 = vmatprep.subr.bf16.mxu0 0
        %4981 = vmatpush1.bf16.msra.mxu0 0
        %4982 = vmatprep.subr.bf16.mxu0 0
        %4983 = vmatpush1.bf16.msra.mxu0 0
        %4984 = vmatprep.subr.bf16.mxu0 0
        %4985 = vmatpush1.bf16.msra.mxu0 0
        %4986 = vmatprep.subr.bf16.mxu0 0
        %4987 = vmatpush1.bf16.msra.mxu0 0
        %4988 = vmatprep.subr.bf16.mxu0 0
        %4989 = vmatpush1.bf16.msra.mxu0 0
        %4990 = vmatprep.subr.bf16.mxu0 0
        %4991 = vmatpush1.bf16.msra.mxu0 0
        %4992 = vmatprep.subr.bf16.mxu0 0
        %4993 = vmatpush1.bf16.msra.mxu0 %v4910
        %4994 = vmatprep.subr.bf16.mxu0 0
        %4995 = vmatpush1.bf16.msra.mxu0 %v4907
        %4996 = vmatprep.subr.bf16.mxu0 0
        %4997 = vmatpush2.bf16.msra.mxu0 0
        %4998 = vmatprep.subr.bf16.mxu0 0
        %4999 = vmatpush2.bf16.msra.mxu0 0
        %5000 = vmatprep.subr.bf16.mxu0 0
        %5001 = vmatpush2.bf16.msra.mxu0 0
        %5002 = vmatprep.subr.bf16.mxu0 0
        %5003 = vmatpush2.bf16.msra.mxu0 0
        %5004 = vmatprep.subr.bf16.mxu0 0
        %5005 = vmatpush2.bf16.msra.mxu0 0
        %5006 = vmatprep.subr.bf16.mxu0 0
        %5007 = vmatpush2.bf16.msra.mxu0 0
        %5008 = vmatprep.subr.bf16.mxu0 0
        %5009 = vmatpush2.bf16.msra.mxu0 0
        %5010 = vmatprep.subr.bf16.mxu0 0
        %5011 = vmatpush2.bf16.msra.mxu0 0
        %5012 = vmatprep.mubr.bf16.mxu0 0
        %5013 = vmatmul.mubr.bf16.gmra.mxu0 %v4922
        %v5014 = vpop.f32.mrf.mxu0
        %v5015 = vadd.f32 0.0, %v5014
        %v5016 = vpop.f32.mrf.mxu0
        %v5017 = vpop.f32.mrf.mxu0
        %v5018 = vadd.f32 0.0, %v5017
        %v5019 = vpop.f32.mrf.mxu0
        %5020 = vmatprep.mubr.bf16.mxu0 0
        %5021 = vmatmul.mubr.bf16.gmra.mxu0 %v4925
        %v5022 = vpop.f32.mrf.mxu0
        %v5023 = vadd.f32 0.0, %v5022
        %v5024 = vpop.f32.mrf.mxu0
        %v5025 = vpop.f32.mrf.mxu0
        %v5026 = vadd.f32 0.0, %v5025
        %v5027 = vpop.f32.mrf.mxu0
        %5028 = vdwg.mxu0
        %v5029 = vadd.f32 %v4852, %v4962
        %v5030 = vadd.f32 %v4853, %v4964
        %v5031 = vadd.f32 %v4854, %v5015
        %v5032 = vadd.f32 %v4855, %v4966
        %v5033 = vadd.f32 %v4856, %v4968
        %v5034 = vadd.f32 %v4857, %v5018
        %v5035 = vadd.f32 %v4858, %v4972
        %v5036 = vadd.f32 %v4859, %v4974
        %v5037 = vadd.f32 %v4860, %v5023
        %v5038 = vadd.f32 %v4861, %v4976
        %v5039 = vadd.f32 %v4862, %v4978
        %v5040 = vadd.f32 %v4863, %v5026
        %s5041 = scalar_lea.vmem %s3, 64
        %v5042 = vld [vmem:[%s5041] sm:$0xff]
        %v5043 = vld [vmem:[%s5041 + $0x8] sm:$0xff]
        %v5044 = vld [vmem:[%s5041 + $0x10] sm:$0xff]
        %v5045 = vld [vmem:[%s5041 + $0x18] sm:$0xff]
        %5047 = vset.pattern.permute.xlu0 0
        %5048 = vperm.xlu0 %5047, %v5042
        %v5049 = vpop.permute.xlu0 %5048
        %5052 = vset.pattern.permute.xlu0 0
        %5053 = vperm.xlu0 %5052, %v5043
        %v5054 = vpop.permute.xlu0 %5053
        %5057 = vset.pattern.permute.xlu0 0
        %5058 = vperm.xlu0 %5057, %v5044
        %v5059 = vpop.permute.xlu0 %5058
        %5062 = vset.pattern.permute.xlu0 0
        %5063 = vperm.xlu0 %5062, %v5045
        %v5064 = vpop.permute.xlu0 %5063
        %v5066 = vadd.f32 %v5029, %v5049
        %v5067 = vadd.f32 %v5030, %v5049
        %v5068 = vadd.f32 %v5031, %v5049
        %v5069 = vadd.f32 %v5032, %v5054
        %v5070 = vadd.f32 %v5033, %v5054
        %v5071 = vadd.f32 %v5034, %v5054
        %v5072 = vadd.f32 %v5035, %v5059
        %v5073 = vadd.f32 %v5036, %v5059
        %v5074 = vadd.f32 %v5037, %v5059
        %v5075 = vadd.f32 %v5038, %v5064
        %v5076 = vadd.f32 %v5039, %v5064
        %v5077 = vadd.f32 %v5040, %v5064
        %v5078 = vmul.f32 %v5066, %v1829
        %v5079 = vmul.f32 %v5067, %v1833
        %v5080 = vmul.f32 %v5068, %v1837
        %v5081 = vmul.f32 %v5069, %v1829
        %v5082 = vmul.f32 %v5070, %v1833
        %v5083 = vmul.f32 %v5071, %v1837
        %v5084 = vmul.f32 %v5072, %v1829
        %v5085 = vmul.f32 %v5073, %v1833
        %v5086 = vmul.f32 %v5074, %v1837
        %v5087 = vmul.f32 %v5075, %v1829
        %v5088 = vmul.f32 %v5076, %v1833
        %v5089 = vmul.f32 %v5077, %v1837
        %v5090 = vld [vmem:[#allocation2] sm:$0xff]
        %v5091 = vld [vmem:[#allocation2 + $0x8] sm:$0xff]
        %v5092 = vld [vmem:[#allocation2 + $0x10] sm:$0xff]
        %v5093 = vld [vmem:[#allocation2 + $0x18] sm:$0xff]
        %v5094 = vld [vmem:[#allocation2 + $0x20] sm:$0xff]
        %v5095 = vld [vmem:[#allocation2 + $0x28] sm:$0xff]
        %v5096 = vld [vmem:[#allocation2 + $0x30] sm:$0xff]
        %v5097 = vld [vmem:[#allocation2 + $0x38] sm:$0xff]
        %v5098 = vld [vmem:[#allocation2 + $0x40] sm:$0xff]
        %v5099 = vld [vmem:[#allocation2 + $0x48] sm:$0xff]
        %v5100 = vld [vmem:[#allocation2 + $0x50] sm:$0xff]
        %v5101 = vld [vmem:[#allocation2 + $0x58] sm:$0xff]
        %v5102 = vadd.f32 %v5078, %v5090
        %v5103 = vadd.f32 %v5079, %v5091
        %v5104 = vadd.f32 %v5080, %v5092
        %v5105 = vadd.f32 %v5081, %v5093
        %v5106 = vadd.f32 %v5082, %v5094
        %v5107 = vadd.f32 %v5083, %v5095
        %v5108 = vadd.f32 %v5084, %v5096
        %v5109 = vadd.f32 %v5085, %v5097
        %v5110 = vadd.f32 %v5086, %v5098
        %v5111 = vadd.f32 %v5087, %v5099
        %v5112 = vadd.f32 %v5088, %v5100
        %v5113 = vadd.f32 %v5089, %v5101
        %5114 = vst [vmem:[#allocation2] sm:$0xff] %v5102
        %5115 = vst [vmem:[#allocation2 + $0x8] sm:$0xff] %v5103
        %5116 = vst [vmem:[#allocation2 + $0x10] sm:$0xff] %v5104
        %5117 = vst [vmem:[#allocation2 + $0x18] sm:$0xff] %v5105
        %5118 = vst [vmem:[#allocation2 + $0x20] sm:$0xff] %v5106
        %5119 = vst [vmem:[#allocation2 + $0x28] sm:$0xff] %v5107
        %5120 = vst [vmem:[#allocation2 + $0x30] sm:$0xff] %v5108
        %5121 = vst [vmem:[#allocation2 + $0x38] sm:$0xff] %v5109
        %5122 = vst [vmem:[#allocation2 + $0x40] sm:$0xff] %v5110
        %5123 = vst [vmem:[#allocation2 + $0x48] sm:$0xff] %v5111
        %5124 = vst [vmem:[#allocation2 + $0x50] sm:$0xff] %v5112
        %5125 = vst [vmem:[#allocation2 + $0x58] sm:$0xff] %v5113
        %v5126 = vld [vmem:[#allocation2] sm:$0xff]
        %v5127 = vld [vmem:[#allocation2 + $0x8] sm:$0xff]
        %v5128 = vld [vmem:[#allocation2 + $0x10] sm:$0xff]
        %v5129 = vld [vmem:[#allocation2 + $0x18] sm:$0xff]
        %v5130 = vld [vmem:[#allocation2 + $0x20] sm:$0xff]
        %v5131 = vld [vmem:[#allocation2 + $0x28] sm:$0xff]
        %v5132 = vld [vmem:[#allocation2 + $0x30] sm:$0xff]
        %v5133 = vld [vmem:[#allocation2 + $0x38] sm:$0xff]
        %v5134 = vld [vmem:[#allocation2 + $0x40] sm:$0xff]
        %v5135 = vld [vmem:[#allocation2 + $0x48] sm:$0xff]
        %v5136 = vld [vmem:[#allocation2 + $0x50] sm:$0xff]
        %v5137 = vld [vmem:[#allocation2 + $0x58] sm:$0xff]
        %5138 = vrot.lane.b32.xlu0 %v5126, 19
        %v5139 = vpop.permute.xlu0 %5138
        %5140 = vrot.lane.b32.xlu0 %v5129, 19
        %v5141 = vpop.permute.xlu0 %5140
        %5142 = vrot.lane.b32.xlu0 %v5132, 19
        %v5143 = vpop.permute.xlu0 %5142
        %5144 = vrot.lane.b32.xlu0 %v5135, 19
        %v5145 = vpop.permute.xlu0 %5144
        %5146 = vrot.lane.b32.xlu0 %v5127, 19
        %v5147 = vpop.permute.xlu0 %5146
        %5148 = vrot.lane.b32.xlu0 %v5130, 19
        %v5149 = vpop.permute.xlu0 %5148
        %5150 = vrot.lane.b32.xlu0 %v5133, 19
        %v5151 = vpop.permute.xlu0 %5150
        %5152 = vrot.lane.b32.xlu0 %v5136, 19
        %v5153 = vpop.permute.xlu0 %5152
        %5154 = vrot.lane.b32.xlu0 %v5128, 19
        %v5155 = vpop.permute.xlu0 %5154
        %5156 = vrot.lane.b32.xlu0 %v5131, 19
        %v5157 = vpop.permute.xlu0 %5156
        %5158 = vrot.lane.b32.xlu0 %v5134, 19
        %v5159 = vpop.permute.xlu0 %5158
        %5160 = vrot.lane.b32.xlu0 %v5137, 19
        %v5161 = vpop.permute.xlu0 %5160
        %v5162 = vsel %vm260, %v5147, %v5155
        %v5163 = vsel %vm260, %v5149, %v5157
        %v5164 = vsel %vm260, %v5151, %v5159
        %v5165 = vsel %vm260, %v5153, %v5161
        %v5166 = vsel %vm260, %v5139, %v5147
        %v5167 = vsel %vm260, %v5141, %v5149
        %v5168 = vsel %vm260, %v5143, %v5151
        %v5169 = vsel %vm260, %v5145, %v5153
        %v5170 = vsel %vm260, %v5155, %v5139
        %v5171 = vsel %vm260, %v5157, %v5141
        %v5172 = vsel %vm260, %v5159, %v5143
        %v5173 = vsel %vm260, %v5161, %v5145
        %s5174 = scalar_lea.vmem %s2, 432
        %v5175 = vld [vmem:[%s5174] sm:$0xf]
        %v5176 = vld [vmem:[%s5174 + $0x4] sm:$0xf]
        %v5177 = vld [vmem:[%s5174 + $0x8] sm:$0xf]
        %v5178 = vld [vmem:[%s5174 + $0xc] sm:$0xf]
        %v5179 = vpack.c.bf16 %v5171, %v5170
        %v5180 = vpack.c.bf16 %v5167, %v5166
        %v5181 = vpack.c.bf16 %v5163, %v5162
        %v5182 = vpack.c.bf16 %v5173, %v5172
        %v5183 = vpack.c.bf16 %v5169, %v5168
        %v5184 = vpack.c.bf16 %v5165, %v5164
        %5185 = vrot.lane.b32.xlu0 %v5126, 18
        %v5186 = vpop.permute.xlu0 %5185
        %5187 = vrot.lane.b32.xlu0 %v5129, 18
        %v5188 = vpop.permute.xlu0 %5187
        %5189 = vrot.lane.b32.xlu0 %v5132, 18
        %v5190 = vpop.permute.xlu0 %5189
        %5191 = vrot.lane.b32.xlu0 %v5135, 18
        %v5192 = vpop.permute.xlu0 %5191
        %5193 = vrot.lane.b32.xlu0 %v5127, 18
        %v5194 = vpop.permute.xlu0 %5193
        %5195 = vrot.lane.b32.xlu0 %v5130, 18
        %v5196 = vpop.permute.xlu0 %5195
        %5197 = vrot.lane.b32.xlu0 %v5133, 18
        %v5198 = vpop.permute.xlu0 %5197
        %5199 = vrot.lane.b32.xlu0 %v5136, 18
        %v5200 = vpop.permute.xlu0 %5199
        %5201 = vrot.lane.b32.xlu0 %v5128, 18
        %v5202 = vpop.permute.xlu0 %5201
        %5203 = vrot.lane.b32.xlu0 %v5131, 18
        %v5204 = vpop.permute.xlu0 %5203
        %5205 = vrot.lane.b32.xlu0 %v5134, 18
        %v5206 = vpop.permute.xlu0 %5205
        %5207 = vrot.lane.b32.xlu0 %v5137, 18
        %v5208 = vpop.permute.xlu0 %5207
        %v5209 = vsel %vm307, %v5194, %v5202
        %v5210 = vsel %vm307, %v5196, %v5204
        %v5211 = vsel %vm307, %v5198, %v5206
        %v5212 = vsel %vm307, %v5200, %v5208
        %v5213 = vsel %vm307, %v5186, %v5194
        %v5214 = vsel %vm307, %v5188, %v5196
        %v5215 = vsel %vm307, %v5190, %v5198
        %v5216 = vsel %vm307, %v5192, %v5200
        %v5217 = vsel %vm307, %v5202, %v5186
        %v5218 = vsel %vm307, %v5204, %v5188
        %v5219 = vsel %vm307, %v5206, %v5190
        %v5220 = vsel %vm307, %v5208, %v5192
        %s5221 = scalar_lea.vmem %s2, 448
        %v5222 = vld [vmem:[%s5221] sm:$0xf]
        %v5223 = vld [vmem:[%s5221 + $0x4] sm:$0xf]
        %v5224 = vld [vmem:[%s5221 + $0x8] sm:$0xf]
        %v5225 = vld [vmem:[%s5221 + $0xc] sm:$0xf]
        %v5226 = vpack.c.bf16 %v5218, %v5217
        %v5227 = vpack.c.bf16 %v5214, %v5213
        %v5228 = vpack.c.bf16 %v5210, %v5209
        %v5229 = vpack.c.bf16 %v5220, %v5219
        %v5230 = vpack.c.bf16 %v5216, %v5215
        %v5231 = vpack.c.bf16 %v5212, %v5211
        %v5236 = vunpack.c.l.b16 %v5222
        %v5237 = vunpack.c.l.b16 %v5223
        %v5238 = vunpack.c.l.b16 %v5224
        %v5239 = vunpack.c.l.b16 %v5225
        %v5240 = vpack.c.b16 %v5237, %v5236
        %v5241 = vpack.c.b16 %v5239, %v5238
        %v5243 = vsel %vm341, %v5240, 0
        %v5246 = vsel %vm341, %v5241, 0
        %5248 = vmatprep.subr.bf16.mxu0 0
        %5249 = vmatpush1.bf16.msra.mxu0 0
        %5250 = vmatprep.subr.bf16.mxu0 0
        %5251 = vmatpush1.bf16.msra.mxu0 0
        %5252 = vmatprep.subr.bf16.mxu0 0
        %5253 = vmatpush1.bf16.msra.mxu0 0
        %5254 = vmatprep.subr.bf16.mxu0 0
        %5255 = vmatpush1.bf16.msra.mxu0 0
        %5256 = vmatprep.subr.bf16.mxu0 0
        %5257 = vmatpush1.bf16.msra.mxu0 0
        %5258 = vmatprep.subr.bf16.mxu0 0
        %5259 = vmatpush1.bf16.msra.mxu0 0
        %5260 = vmatprep.subr.bf16.mxu0 %v5230
        %5261 = vmatpush1.bf16.msra.mxu0 %v5229
        %5262 = vmatprep.subr.bf16.mxu0 %v5227
        %5263 = vmatpush1.bf16.msra.mxu0 %v5226
        %5264 = vmatprep.subr.bf16.mxu0 0
        %5265 = vmatpush2.bf16.msra.mxu0 0
        %5266 = vmatprep.subr.bf16.mxu0 0
        %5267 = vmatpush2.bf16.msra.mxu0 0
        %5268 = vmatprep.subr.bf16.mxu0 0
        %5269 = vmatpush2.bf16.msra.mxu0 0
        %5270 = vmatprep.subr.bf16.mxu0 0
        %5271 = vmatpush2.bf16.msra.mxu0 0
        %5272 = vmatprep.subr.bf16.mxu0 0
        %5273 = vmatpush2.bf16.msra.mxu0 0
        %5274 = vmatprep.subr.bf16.mxu0 0
        %5275 = vmatpush2.bf16.msra.mxu0 0
        %5276 = vmatprep.subr.bf16.mxu0 0
        %5277 = vmatpush2.bf16.msra.mxu0 0
        %5278 = vmatprep.subr.bf16.mxu0 0
        %5279 = vmatpush2.bf16.msra.mxu0 0
        %5280 = vmatprep.mubr.bf16.mxu0 0
        %5281 = vmatmul.mubr.bf16.gmra.mxu0 %v5243
        %v5282 = vpop.f32.mrf.mxu0
        %v5283 = vadd.f32 0.0, %v5282
        %v5284 = vpop.f32.mrf.mxu0
        %v5285 = vadd.f32 0.0, %v5284
        %v5286 = vpop.f32.mrf.mxu0
        %v5287 = vadd.f32 0.0, %v5286
        %v5288 = vpop.f32.mrf.mxu0
        %v5289 = vadd.f32 0.0, %v5288
        %5290 = vmatprep.mubr.bf16.mxu0 0
        %5291 = vmatmul.mubr.bf16.gmra.mxu0 %v5246
        %v5292 = vpop.f32.mrf.mxu0
        %v5293 = vadd.f32 0.0, %v5292
        %v5294 = vpop.f32.mrf.mxu0
        %v5295 = vadd.f32 0.0, %v5294
        %v5296 = vpop.f32.mrf.mxu0
        %v5297 = vadd.f32 0.0, %v5296
        %v5298 = vpop.f32.mrf.mxu0
        %v5299 = vadd.f32 0.0, %v5298
        %5300 = vdwg.mxu0
        %5301 = vmatprep.subr.bf16.mxu0 0
        %5302 = vmatpush1.bf16.msra.mxu0 0
        %5303 = vmatprep.subr.bf16.mxu0 0
        %5304 = vmatpush1.bf16.msra.mxu0 0
        %5305 = vmatprep.subr.bf16.mxu0 0
        %5306 = vmatpush1.bf16.msra.mxu0 0
        %5307 = vmatprep.subr.bf16.mxu0 0
        %5308 = vmatpush1.bf16.msra.mxu0 0
        %5309 = vmatprep.subr.bf16.mxu0 0
        %5310 = vmatpush1.bf16.msra.mxu0 0
        %5311 = vmatprep.subr.bf16.mxu0 0
        %5312 = vmatpush1.bf16.msra.mxu0 0
        %5313 = vmatprep.subr.bf16.mxu0 0
        %5314 = vmatpush1.bf16.msra.mxu0 %v5231
        %5315 = vmatprep.subr.bf16.mxu0 0
        %5316 = vmatpush1.bf16.msra.mxu0 %v5228
        %5317 = vmatprep.subr.bf16.mxu0 0
        %5318 = vmatpush2.bf16.msra.mxu0 0
        %5319 = vmatprep.subr.bf16.mxu0 0
        %5320 = vmatpush2.bf16.msra.mxu0 0
        %5321 = vmatprep.subr.bf16.mxu0 0
        %5322 = vmatpush2.bf16.msra.mxu0 0
        %5323 = vmatprep.subr.bf16.mxu0 0
        %5324 = vmatpush2.bf16.msra.mxu0 0
        %5325 = vmatprep.subr.bf16.mxu0 0
        %5326 = vmatpush2.bf16.msra.mxu0 0
        %5327 = vmatprep.subr.bf16.mxu0 0
        %5328 = vmatpush2.bf16.msra.mxu0 0
        %5329 = vmatprep.subr.bf16.mxu0 0
        %5330 = vmatpush2.bf16.msra.mxu0 0
        %5331 = vmatprep.subr.bf16.mxu0 0
        %5332 = vmatpush2.bf16.msra.mxu0 0
        %5333 = vmatprep.mubr.bf16.mxu0 0
        %5334 = vmatmul.mubr.bf16.gmra.mxu0 %v5243
        %v5335 = vpop.f32.mrf.mxu0
        %v5336 = vadd.f32 0.0, %v5335
        %v5337 = vpop.f32.mrf.mxu0
        %v5338 = vpop.f32.mrf.mxu0
        %v5339 = vadd.f32 0.0, %v5338
        %v5340 = vpop.f32.mrf.mxu0
        %5341 = vmatprep.mubr.bf16.mxu0 0
        %5342 = vmatmul.mubr.bf16.gmra.mxu0 %v5246
        %v5343 = vpop.f32.mrf.mxu0
        %v5344 = vadd.f32 0.0, %v5343
        %v5345 = vpop.f32.mrf.mxu0
        %v5346 = vpop.f32.mrf.mxu0
        %v5347 = vadd.f32 0.0, %v5346
        %v5348 = vpop.f32.mrf.mxu0
        %5349 = vdwg.mxu0
        %v5354 = vunpack.c.l.b16 %v5175
        %v5355 = vunpack.c.l.b16 %v5176
        %v5356 = vunpack.c.l.b16 %v5177
        %v5357 = vunpack.c.l.b16 %v5178
        %v5358 = vpack.c.b16 %v5355, %v5354
        %v5359 = vpack.c.b16 %v5357, %v5356
        %v5361 = vsel %vm341, %v5358, 0
        %v5364 = vsel %vm341, %v5359, 0
        %5366 = vmatprep.subr.bf16.mxu0 0
        %5367 = vmatpush1.bf16.msra.mxu0 0
        %5368 = vmatprep.subr.bf16.mxu0 0
        %5369 = vmatpush1.bf16.msra.mxu0 0
        %5370 = vmatprep.subr.bf16.mxu0 0
        %5371 = vmatpush1.bf16.msra.mxu0 0
        %5372 = vmatprep.subr.bf16.mxu0 0
        %5373 = vmatpush1.bf16.msra.mxu0 0
        %5374 = vmatprep.subr.bf16.mxu0 0
        %5375 = vmatpush1.bf16.msra.mxu0 0
        %5376 = vmatprep.subr.bf16.mxu0 0
        %5377 = vmatpush1.bf16.msra.mxu0 0
        %5378 = vmatprep.subr.bf16.mxu0 %v5183
        %5379 = vmatpush1.bf16.msra.mxu0 %v5182
        %5380 = vmatprep.subr.bf16.mxu0 %v5180
        %5381 = vmatpush1.bf16.msra.mxu0 %v5179
        %5382 = vmatprep.subr.bf16.mxu0 0
        %5383 = vmatpush2.bf16.msra.mxu0 0
        %5384 = vmatprep.subr.bf16.mxu0 0
        %5385 = vmatpush2.bf16.msra.mxu0 0
        %5386 = vmatprep.subr.bf16.mxu0 0
        %5387 = vmatpush2.bf16.msra.mxu0 0
        %5388 = vmatprep.subr.bf16.mxu0 0
        %5389 = vmatpush2.bf16.msra.mxu0 0
        %5390 = vmatprep.subr.bf16.mxu0 0
        %5391 = vmatpush2.bf16.msra.mxu0 0
        %5392 = vmatprep.subr.bf16.mxu0 0
        %5393 = vmatpush2.bf16.msra.mxu0 0
        %5394 = vmatprep.subr.bf16.mxu0 0
        %5395 = vmatpush2.bf16.msra.mxu0 0
        %5396 = vmatprep.subr.bf16.mxu0 0
        %5397 = vmatpush2.bf16.msra.mxu0 0
        %5398 = vmatprep.mubr.bf16.mxu0 0
        %5399 = vmatmul.mubr.bf16.gmra.mxu0 %v5361
        %v5400 = vpop.f32.mrf.mxu0
        %v5401 = vadd.f32 %v5283, %v5400
        %v5402 = vpop.f32.mrf.mxu0
        %v5403 = vadd.f32 %v5285, %v5402
        %v5404 = vpop.f32.mrf.mxu0
        %v5405 = vadd.f32 %v5287, %v5404
        %v5406 = vpop.f32.mrf.mxu0
        %v5407 = vadd.f32 %v5289, %v5406
        %5408 = vmatprep.mubr.bf16.mxu0 0
        %5409 = vmatmul.mubr.bf16.gmra.mxu0 %v5364
        %v5410 = vpop.f32.mrf.mxu0
        %v5411 = vadd.f32 %v5293, %v5410
        %v5412 = vpop.f32.mrf.mxu0
        %v5413 = vadd.f32 %v5295, %v5412
        %v5414 = vpop.f32.mrf.mxu0
        %v5415 = vadd.f32 %v5297, %v5414
        %v5416 = vpop.f32.mrf.mxu0
        %v5417 = vadd.f32 %v5299, %v5416
        %5418 = vdwg.mxu0
        %5419 = vmatprep.subr.bf16.mxu0 0
        %5420 = vmatpush1.bf16.msra.mxu0 0
        %5421 = vmatprep.subr.bf16.mxu0 0
        %5422 = vmatpush1.bf16.msra.mxu0 0
        %5423 = vmatprep.subr.bf16.mxu0 0
        %5424 = vmatpush1.bf16.msra.mxu0 0
        %5425 = vmatprep.subr.bf16.mxu0 0
        %5426 = vmatpush1.bf16.msra.mxu0 0
        %5427 = vmatprep.subr.bf16.mxu0 0
        %5428 = vmatpush1.bf16.msra.mxu0 0
        %5429 = vmatprep.subr.bf16.mxu0 0
        %5430 = vmatpush1.bf16.msra.mxu0 0
        %5431 = vmatprep.subr.bf16.mxu0 0
        %5432 = vmatpush1.bf16.msra.mxu0 %v5184
        %5433 = vmatprep.subr.bf16.mxu0 0
        %5434 = vmatpush1.bf16.msra.mxu0 %v5181
        %5435 = vmatprep.subr.bf16.mxu0 0
        %5436 = vmatpush2.bf16.msra.mxu0 0
        %5437 = vmatprep.subr.bf16.mxu0 0
        %5438 = vmatpush2.bf16.msra.mxu0 0
        %5439 = vmatprep.subr.bf16.mxu0 0
        %5440 = vmatpush2.bf16.msra.mxu0 0
        %5441 = vmatprep.subr.bf16.mxu0 0
        %5442 = vmatpush2.bf16.msra.mxu0 0
        %5443 = vmatprep.subr.bf16.mxu0 0
        %5444 = vmatpush2.bf16.msra.mxu0 0
        %5445 = vmatprep.subr.bf16.mxu0 0
        %5446 = vmatpush2.bf16.msra.mxu0 0
        %5447 = vmatprep.subr.bf16.mxu0 0
        %5448 = vmatpush2.bf16.msra.mxu0 0
        %5449 = vmatprep.subr.bf16.mxu0 0
        %5450 = vmatpush2.bf16.msra.mxu0 0
        %5451 = vmatprep.mubr.bf16.mxu0 0
        %5452 = vmatmul.mubr.bf16.gmra.mxu0 %v5361
        %v5453 = vpop.f32.mrf.mxu0
        %v5454 = vadd.f32 %v5336, %v5453
        %v5455 = vpop.f32.mrf.mxu0
        %v5456 = vpop.f32.mrf.mxu0
        %v5457 = vadd.f32 %v5339, %v5456
        %v5458 = vpop.f32.mrf.mxu0
        %5459 = vmatprep.mubr.bf16.mxu0 0
        %5460 = vmatmul.mubr.bf16.gmra.mxu0 %v5364
        %v5461 = vpop.f32.mrf.mxu0
        %v5462 = vadd.f32 %v5344, %v5461
        %v5463 = vpop.f32.mrf.mxu0
        %v5464 = vpop.f32.mrf.mxu0
        %v5465 = vadd.f32 %v5347, %v5464
        %v5466 = vpop.f32.mrf.mxu0
        %5467 = vdwg.mxu0
        %5468 = vrot.lane.b32.xlu0 %v5126, 17
        %v5469 = vpop.permute.xlu0 %5468
        %5470 = vrot.lane.b32.xlu0 %v5129, 17
        %v5471 = vpop.permute.xlu0 %5470
        %5472 = vrot.lane.b32.xlu0 %v5132, 17
        %v5473 = vpop.permute.xlu0 %5472
        %5474 = vrot.lane.b32.xlu0 %v5135, 17
        %v5475 = vpop.permute.xlu0 %5474
        %5476 = vrot.lane.b32.xlu0 %v5127, 17
        %v5477 = vpop.permute.xlu0 %5476
        %5478 = vrot.lane.b32.xlu0 %v5130, 17
        %v5479 = vpop.permute.xlu0 %5478
        %5480 = vrot.lane.b32.xlu0 %v5133, 17
        %v5481 = vpop.permute.xlu0 %5480
        %5482 = vrot.lane.b32.xlu0 %v5136, 17
        %v5483 = vpop.permute.xlu0 %5482
        %5484 = vrot.lane.b32.xlu0 %v5128, 17
        %v5485 = vpop.permute.xlu0 %5484
        %5486 = vrot.lane.b32.xlu0 %v5131, 17
        %v5487 = vpop.permute.xlu0 %5486
        %5488 = vrot.lane.b32.xlu0 %v5134, 17
        %v5489 = vpop.permute.xlu0 %5488
        %5490 = vrot.lane.b32.xlu0 %v5137, 17
        %v5491 = vpop.permute.xlu0 %5490
        %v5492 = vsel %vm592, %v5477, %v5485
        %v5493 = vsel %vm592, %v5479, %v5487
        %v5494 = vsel %vm592, %v5481, %v5489
        %v5495 = vsel %vm592, %v5483, %v5491
        %v5496 = vsel %vm592, %v5469, %v5477
        %v5497 = vsel %vm592, %v5471, %v5479
        %v5498 = vsel %vm592, %v5473, %v5481
        %v5499 = vsel %vm592, %v5475, %v5483
        %v5500 = vsel %vm592, %v5485, %v5469
        %v5501 = vsel %vm592, %v5487, %v5471
        %v5502 = vsel %vm592, %v5489, %v5473
        %v5503 = vsel %vm592, %v5491, %v5475
        %s5504 = scalar_lea.vmem %s2, 464
        %v5505 = vld [vmem:[%s5504] sm:$0xf]
        %v5506 = vld [vmem:[%s5504 + $0x4] sm:$0xf]
        %v5507 = vld [vmem:[%s5504 + $0x8] sm:$0xf]
        %v5508 = vld [vmem:[%s5504 + $0xc] sm:$0xf]
        %v5509 = vpack.c.bf16 %v5501, %v5500
        %v5510 = vpack.c.bf16 %v5497, %v5496
        %v5511 = vpack.c.bf16 %v5493, %v5492
        %v5512 = vpack.c.bf16 %v5503, %v5502
        %v5513 = vpack.c.bf16 %v5499, %v5498
        %v5514 = vpack.c.bf16 %v5495, %v5494
        %v5519 = vunpack.c.l.b16 %v5505
        %v5520 = vunpack.c.l.b16 %v5506
        %v5521 = vunpack.c.l.b16 %v5507
        %v5522 = vunpack.c.l.b16 %v5508
        %v5523 = vpack.c.b16 %v5520, %v5519
        %v5524 = vpack.c.b16 %v5522, %v5521
        %v5526 = vsel %vm341, %v5523, 0
        %v5529 = vsel %vm341, %v5524, 0
        %5531 = vmatprep.subr.bf16.mxu0 0
        %5532 = vmatpush1.bf16.msra.mxu0 0
        %5533 = vmatprep.subr.bf16.mxu0 0
        %5534 = vmatpush1.bf16.msra.mxu0 0
        %5535 = vmatprep.subr.bf16.mxu0 0
        %5536 = vmatpush1.bf16.msra.mxu0 0
        %5537 = vmatprep.subr.bf16.mxu0 0
        %5538 = vmatpush1.bf16.msra.mxu0 0
        %5539 = vmatprep.subr.bf16.mxu0 0
        %5540 = vmatpush1.bf16.msra.mxu0 0
        %5541 = vmatprep.subr.bf16.mxu0 0
        %5542 = vmatpush1.bf16.msra.mxu0 0
        %5543 = vmatprep.subr.bf16.mxu0 %v5513
        %5544 = vmatpush1.bf16.msra.mxu0 %v5512
        %5545 = vmatprep.subr.bf16.mxu0 %v5510
        %5546 = vmatpush1.bf16.msra.mxu0 %v5509
        %5547 = vmatprep.subr.bf16.mxu0 0
        %5548 = vmatpush2.bf16.msra.mxu0 0
        %5549 = vmatprep.subr.bf16.mxu0 0
        %5550 = vmatpush2.bf16.msra.mxu0 0
        %5551 = vmatprep.subr.bf16.mxu0 0
        %5552 = vmatpush2.bf16.msra.mxu0 0
        %5553 = vmatprep.subr.bf16.mxu0 0
        %5554 = vmatpush2.bf16.msra.mxu0 0
        %5555 = vmatprep.subr.bf16.mxu0 0
        %5556 = vmatpush2.bf16.msra.mxu0 0
        %5557 = vmatprep.subr.bf16.mxu0 0
        %5558 = vmatpush2.bf16.msra.mxu0 0
        %5559 = vmatprep.subr.bf16.mxu0 0
        %5560 = vmatpush2.bf16.msra.mxu0 0
        %5561 = vmatprep.subr.bf16.mxu0 0
        %5562 = vmatpush2.bf16.msra.mxu0 0
        %5563 = vmatprep.mubr.bf16.mxu0 0
        %5564 = vmatmul.mubr.bf16.gmra.mxu0 %v5526
        %v5565 = vpop.f32.mrf.mxu0
        %v5566 = vadd.f32 0.0, %v5565
        %v5567 = vpop.f32.mrf.mxu0
        %v5568 = vadd.f32 0.0, %v5567
        %v5569 = vpop.f32.mrf.mxu0
        %v5570 = vadd.f32 0.0, %v5569
        %v5571 = vpop.f32.mrf.mxu0
        %v5572 = vadd.f32 0.0, %v5571
        %5573 = vmatprep.mubr.bf16.mxu0 0
        %5574 = vmatmul.mubr.bf16.gmra.mxu0 %v5529
        %v5575 = vpop.f32.mrf.mxu0
        %v5576 = vadd.f32 0.0, %v5575
        %v5577 = vpop.f32.mrf.mxu0
        %v5578 = vadd.f32 0.0, %v5577
        %v5579 = vpop.f32.mrf.mxu0
        %v5580 = vadd.f32 0.0, %v5579
        %v5581 = vpop.f32.mrf.mxu0
        %v5582 = vadd.f32 0.0, %v5581
        %5583 = vdwg.mxu0
        %5584 = vmatprep.subr.bf16.mxu0 0
        %5585 = vmatpush1.bf16.msra.mxu0 0
        %5586 = vmatprep.subr.bf16.mxu0 0
        %5587 = vmatpush1.bf16.msra.mxu0 0
        %5588 = vmatprep.subr.bf16.mxu0 0
        %5589 = vmatpush1.bf16.msra.mxu0 0
        %5590 = vmatprep.subr.bf16.mxu0 0
        %5591 = vmatpush1.bf16.msra.mxu0 0
        %5592 = vmatprep.subr.bf16.mxu0 0
        %5593 = vmatpush1.bf16.msra.mxu0 0
        %5594 = vmatprep.subr.bf16.mxu0 0
        %5595 = vmatpush1.bf16.msra.mxu0 0
        %5596 = vmatprep.subr.bf16.mxu0 0
        %5597 = vmatpush1.bf16.msra.mxu0 %v5514
        %5598 = vmatprep.subr.bf16.mxu0 0
        %5599 = vmatpush1.bf16.msra.mxu0 %v5511
        %5600 = vmatprep.subr.bf16.mxu0 0
        %5601 = vmatpush2.bf16.msra.mxu0 0
        %5602 = vmatprep.subr.bf16.mxu0 0
        %5603 = vmatpush2.bf16.msra.mxu0 0
        %5604 = vmatprep.subr.bf16.mxu0 0
        %5605 = vmatpush2.bf16.msra.mxu0 0
        %5606 = vmatprep.subr.bf16.mxu0 0
        %5607 = vmatpush2.bf16.msra.mxu0 0
        %5608 = vmatprep.subr.bf16.mxu0 0
        %5609 = vmatpush2.bf16.msra.mxu0 0
        %5610 = vmatprep.subr.bf16.mxu0 0
        %5611 = vmatpush2.bf16.msra.mxu0 0
        %5612 = vmatprep.subr.bf16.mxu0 0
        %5613 = vmatpush2.bf16.msra.mxu0 0
        %5614 = vmatprep.subr.bf16.mxu0 0
        %5615 = vmatpush2.bf16.msra.mxu0 0
        %5616 = vmatprep.mubr.bf16.mxu0 0
        %5617 = vmatmul.mubr.bf16.gmra.mxu0 %v5526
        %v5618 = vpop.f32.mrf.mxu0
        %v5619 = vadd.f32 0.0, %v5618
        %v5620 = vpop.f32.mrf.mxu0
        %v5621 = vpop.f32.mrf.mxu0
        %v5622 = vadd.f32 0.0, %v5621
        %v5623 = vpop.f32.mrf.mxu0
        %5624 = vmatprep.mubr.bf16.mxu0 0
        %5625 = vmatmul.mubr.bf16.gmra.mxu0 %v5529
        %v5626 = vpop.f32.mrf.mxu0
        %v5627 = vadd.f32 0.0, %v5626
        %v5628 = vpop.f32.mrf.mxu0
        %v5629 = vpop.f32.mrf.mxu0
        %v5630 = vadd.f32 0.0, %v5629
        %v5631 = vpop.f32.mrf.mxu0
        %5632 = vdwg.mxu0
        %v5633 = vadd.f32 %v5401, %v5566
        %v5634 = vadd.f32 %v5403, %v5568
        %v5635 = vadd.f32 %v5454, %v5619
        %v5636 = vadd.f32 %v5405, %v5570
        %v5637 = vadd.f32 %v5407, %v5572
        %v5638 = vadd.f32 %v5457, %v5622
        %v5639 = vadd.f32 %v5411, %v5576
        %v5640 = vadd.f32 %v5413, %v5578
        %v5641 = vadd.f32 %v5462, %v5627
        %v5642 = vadd.f32 %v5415, %v5580
        %v5643 = vadd.f32 %v5417, %v5582
        %v5644 = vadd.f32 %v5465, %v5630
        %5645 = vrot.lane.b32.xlu0 %v5126, 1
        %v5646 = vpop.permute.xlu0 %5645
        %5647 = vrot.lane.b32.xlu0 %v5129, 1
        %v5648 = vpop.permute.xlu0 %5647
        %5649 = vrot.lane.b32.xlu0 %v5132, 1
        %v5650 = vpop.permute.xlu0 %5649
        %5651 = vrot.lane.b32.xlu0 %v5135, 1
        %v5652 = vpop.permute.xlu0 %5651
        %5653 = vrot.lane.b32.xlu0 %v5127, 1
        %v5654 = vpop.permute.xlu0 %5653
        %5655 = vrot.lane.b32.xlu0 %v5130, 1
        %v5656 = vpop.permute.xlu0 %5655
        %5657 = vrot.lane.b32.xlu0 %v5133, 1
        %v5658 = vpop.permute.xlu0 %5657
        %5659 = vrot.lane.b32.xlu0 %v5136, 1
        %v5660 = vpop.permute.xlu0 %5659
        %5661 = vrot.lane.b32.xlu0 %v5128, 1
        %v5662 = vpop.permute.xlu0 %5661
        %5663 = vrot.lane.b32.xlu0 %v5131, 1
        %v5664 = vpop.permute.xlu0 %5663
        %5665 = vrot.lane.b32.xlu0 %v5134, 1
        %v5666 = vpop.permute.xlu0 %5665
        %5667 = vrot.lane.b32.xlu0 %v5137, 1
        %v5668 = vpop.permute.xlu0 %5667
        %v5669 = vsel %vm770, %v5654, %v5662
        %v5670 = vsel %vm770, %v5656, %v5664
        %v5671 = vsel %vm770, %v5658, %v5666
        %v5672 = vsel %vm770, %v5660, %v5668
        %v5673 = vsel %vm770, %v5646, %v5654
        %v5674 = vsel %vm770, %v5648, %v5656
        %v5675 = vsel %vm770, %v5650, %v5658
        %v5676 = vsel %vm770, %v5652, %v5660
        %v5677 = vsel %vm770, %v5662, %v5646
        %v5678 = vsel %vm770, %v5664, %v5648
        %v5679 = vsel %vm770, %v5666, %v5650
        %v5680 = vsel %vm770, %v5668, %v5652
        %s5681 = scalar_lea.vmem %s2, 480
        %v5682 = vld [vmem:[%s5681] sm:$0xf]
        %v5683 = vld [vmem:[%s5681 + $0x4] sm:$0xf]
        %v5684 = vld [vmem:[%s5681 + $0x8] sm:$0xf]
        %v5685 = vld [vmem:[%s5681 + $0xc] sm:$0xf]
        %v5686 = vpack.c.bf16 %v5678, %v5677
        %v5687 = vpack.c.bf16 %v5674, %v5673
        %v5688 = vpack.c.bf16 %v5670, %v5669
        %v5689 = vpack.c.bf16 %v5680, %v5679
        %v5690 = vpack.c.bf16 %v5676, %v5675
        %v5691 = vpack.c.bf16 %v5672, %v5671
        %v5696 = vunpack.c.l.b16 %v5682
        %v5697 = vunpack.c.l.b16 %v5683
        %v5698 = vunpack.c.l.b16 %v5684
        %v5699 = vunpack.c.l.b16 %v5685
        %v5700 = vpack.c.b16 %v5697, %v5696
        %v5701 = vpack.c.b16 %v5699, %v5698
        %v5703 = vsel %vm341, %v5700, 0
        %v5706 = vsel %vm341, %v5701, 0
        %5708 = vmatprep.subr.bf16.mxu0 0
        %5709 = vmatpush1.bf16.msra.mxu0 0
        %5710 = vmatprep.subr.bf16.mxu0 0
        %5711 = vmatpush1.bf16.msra.mxu0 0
        %5712 = vmatprep.subr.bf16.mxu0 0
        %5713 = vmatpush1.bf16.msra.mxu0 0
        %5714 = vmatprep.subr.bf16.mxu0 0
        %5715 = vmatpush1.bf16.msra.mxu0 0
        %5716 = vmatprep.subr.bf16.mxu0 0
        %5717 = vmatpush1.bf16.msra.mxu0 0
        %5718 = vmatprep.subr.bf16.mxu0 0
        %5719 = vmatpush1.bf16.msra.mxu0 0
        %5720 = vmatprep.subr.bf16.mxu0 %v5690
        %5721 = vmatpush1.bf16.msra.mxu0 %v5689
        %5722 = vmatprep.subr.bf16.mxu0 %v5687
        %5723 = vmatpush1.bf16.msra.mxu0 %v5686
        %5724 = vmatprep.subr.bf16.mxu0 0
        %5725 = vmatpush2.bf16.msra.mxu0 0
        %5726 = vmatprep.subr.bf16.mxu0 0
        %5727 = vmatpush2.bf16.msra.mxu0 0
        %5728 = vmatprep.subr.bf16.mxu0 0
        %5729 = vmatpush2.bf16.msra.mxu0 0
        %5730 = vmatprep.subr.bf16.mxu0 0
        %5731 = vmatpush2.bf16.msra.mxu0 0
        %5732 = vmatprep.subr.bf16.mxu0 0
        %5733 = vmatpush2.bf16.msra.mxu0 0
        %5734 = vmatprep.subr.bf16.mxu0 0
        %5735 = vmatpush2.bf16.msra.mxu0 0
        %5736 = vmatprep.subr.bf16.mxu0 0
        %5737 = vmatpush2.bf16.msra.mxu0 0
        %5738 = vmatprep.subr.bf16.mxu0 0
        %5739 = vmatpush2.bf16.msra.mxu0 0
        %5740 = vmatprep.mubr.bf16.mxu0 0
        %5741 = vmatmul.mubr.bf16.gmra.mxu0 %v5703
        %v5742 = vpop.f32.mrf.mxu0
        %v5743 = vadd.f32 0.0, %v5742
        %v5744 = vpop.f32.mrf.mxu0
        %v5745 = vadd.f32 0.0, %v5744
        %v5746 = vpop.f32.mrf.mxu0
        %v5747 = vadd.f32 0.0, %v5746
        %v5748 = vpop.f32.mrf.mxu0
        %v5749 = vadd.f32 0.0, %v5748
        %5750 = vmatprep.mubr.bf16.mxu0 0
        %5751 = vmatmul.mubr.bf16.gmra.mxu0 %v5706
        %v5752 = vpop.f32.mrf.mxu0
        %v5753 = vadd.f32 0.0, %v5752
        %v5754 = vpop.f32.mrf.mxu0
        %v5755 = vadd.f32 0.0, %v5754
        %v5756 = vpop.f32.mrf.mxu0
        %v5757 = vadd.f32 0.0, %v5756
        %v5758 = vpop.f32.mrf.mxu0
        %v5759 = vadd.f32 0.0, %v5758
        %5760 = vdwg.mxu0
        %5761 = vmatprep.subr.bf16.mxu0 0
        %5762 = vmatpush1.bf16.msra.mxu0 0
        %5763 = vmatprep.subr.bf16.mxu0 0
        %5764 = vmatpush1.bf16.msra.mxu0 0
        %5765 = vmatprep.subr.bf16.mxu0 0
        %5766 = vmatpush1.bf16.msra.mxu0 0
        %5767 = vmatprep.subr.bf16.mxu0 0
        %5768 = vmatpush1.bf16.msra.mxu0 0
        %5769 = vmatprep.subr.bf16.mxu0 0
        %5770 = vmatpush1.bf16.msra.mxu0 0
        %5771 = vmatprep.subr.bf16.mxu0 0
        %5772 = vmatpush1.bf16.msra.mxu0 0
        %5773 = vmatprep.subr.bf16.mxu0 0
        %5774 = vmatpush1.bf16.msra.mxu0 %v5691
        %5775 = vmatprep.subr.bf16.mxu0 0
        %5776 = vmatpush1.bf16.msra.mxu0 %v5688
        %5777 = vmatprep.subr.bf16.mxu0 0
        %5778 = vmatpush2.bf16.msra.mxu0 0
        %5779 = vmatprep.subr.bf16.mxu0 0
        %5780 = vmatpush2.bf16.msra.mxu0 0
        %5781 = vmatprep.subr.bf16.mxu0 0
        %5782 = vmatpush2.bf16.msra.mxu0 0
        %5783 = vmatprep.subr.bf16.mxu0 0
        %5784 = vmatpush2.bf16.msra.mxu0 0
        %5785 = vmatprep.subr.bf16.mxu0 0
        %5786 = vmatpush2.bf16.msra.mxu0 0
        %5787 = vmatprep.subr.bf16.mxu0 0
        %5788 = vmatpush2.bf16.msra.mxu0 0
        %5789 = vmatprep.subr.bf16.mxu0 0
        %5790 = vmatpush2.bf16.msra.mxu0 0
        %5791 = vmatprep.subr.bf16.mxu0 0
        %5792 = vmatpush2.bf16.msra.mxu0 0
        %5793 = vmatprep.mubr.bf16.mxu0 0
        %5794 = vmatmul.mubr.bf16.gmra.mxu0 %v5703
        %v5795 = vpop.f32.mrf.mxu0
        %v5796 = vadd.f32 0.0, %v5795
        %v5797 = vpop.f32.mrf.mxu0
        %v5798 = vpop.f32.mrf.mxu0
        %v5799 = vadd.f32 0.0, %v5798
        %v5800 = vpop.f32.mrf.mxu0
        %5801 = vmatprep.mubr.bf16.mxu0 0
        %5802 = vmatmul.mubr.bf16.gmra.mxu0 %v5706
        %v5803 = vpop.f32.mrf.mxu0
        %v5804 = vadd.f32 0.0, %v5803
        %v5805 = vpop.f32.mrf.mxu0
        %v5806 = vpop.f32.mrf.mxu0
        %v5807 = vadd.f32 0.0, %v5806
        %v5808 = vpop.f32.mrf.mxu0
        %5809 = vdwg.mxu0
        %v5810 = vadd.f32 %v5633, %v5743
        %v5811 = vadd.f32 %v5634, %v5745
        %v5812 = vadd.f32 %v5635, %v5796
        %v5813 = vadd.f32 %v5636, %v5747
        %v5814 = vadd.f32 %v5637, %v5749
        %v5815 = vadd.f32 %v5638, %v5799
        %v5816 = vadd.f32 %v5639, %v5753
        %v5817 = vadd.f32 %v5640, %v5755
        %v5818 = vadd.f32 %v5641, %v5804
        %v5819 = vadd.f32 %v5642, %v5757
        %v5820 = vadd.f32 %v5643, %v5759
        %v5821 = vadd.f32 %v5644, %v5807
        %s5822 = scalar_lea.vmem %s2, 496
        %v5823 = vld [vmem:[%s5822] sm:$0xf]
        %v5824 = vld [vmem:[%s5822 + $0x4] sm:$0xf]
        %v5825 = vld [vmem:[%s5822 + $0x8] sm:$0xf]
        %v5826 = vld [vmem:[%s5822 + $0xc] sm:$0xf]
        %v5827 = vpack.c.bf16 %v5129, %v5126
        %v5828 = vpack.c.bf16 %v5130, %v5127
        %v5829 = vpack.c.bf16 %v5131, %v5128
        %v5830 = vpack.c.bf16 %v5135, %v5132
        %v5831 = vpack.c.bf16 %v5136, %v5133
        %v5832 = vpack.c.bf16 %v5137, %v5134
        %v5837 = vunpack.c.l.b16 %v5823
        %v5838 = vunpack.c.l.b16 %v5824
        %v5839 = vunpack.c.l.b16 %v5825
        %v5840 = vunpack.c.l.b16 %v5826
        %v5841 = vpack.c.b16 %v5838, %v5837
        %v5842 = vpack.c.b16 %v5840, %v5839
        %v5844 = vsel %vm341, %v5841, 0
        %v5847 = vsel %vm341, %v5842, 0
        %5849 = vmatprep.subr.bf16.mxu0 0
        %5850 = vmatpush1.bf16.msra.mxu0 0
        %5851 = vmatprep.subr.bf16.mxu0 0
        %5852 = vmatpush1.bf16.msra.mxu0 0
        %5853 = vmatprep.subr.bf16.mxu0 0
        %5854 = vmatpush1.bf16.msra.mxu0 0
        %5855 = vmatprep.subr.bf16.mxu0 0
        %5856 = vmatpush1.bf16.msra.mxu0 0
        %5857 = vmatprep.subr.bf16.mxu0 0
        %5858 = vmatpush1.bf16.msra.mxu0 0
        %5859 = vmatprep.subr.bf16.mxu0 0
        %5860 = vmatpush1.bf16.msra.mxu0 0
        %5861 = vmatprep.subr.bf16.mxu0 %v5831
        %5862 = vmatpush1.bf16.msra.mxu0 %v5830
        %5863 = vmatprep.subr.bf16.mxu0 %v5828
        %5864 = vmatpush1.bf16.msra.mxu0 %v5827
        %5865 = vmatprep.subr.bf16.mxu0 0
        %5866 = vmatpush2.bf16.msra.mxu0 0
        %5867 = vmatprep.subr.bf16.mxu0 0
        %5868 = vmatpush2.bf16.msra.mxu0 0
        %5869 = vmatprep.subr.bf16.mxu0 0
        %5870 = vmatpush2.bf16.msra.mxu0 0
        %5871 = vmatprep.subr.bf16.mxu0 0
        %5872 = vmatpush2.bf16.msra.mxu0 0
        %5873 = vmatprep.subr.bf16.mxu0 0
        %5874 = vmatpush2.bf16.msra.mxu0 0
        %5875 = vmatprep.subr.bf16.mxu0 0
        %5876 = vmatpush2.bf16.msra.mxu0 0
        %5877 = vmatprep.subr.bf16.mxu0 0
        %5878 = vmatpush2.bf16.msra.mxu0 0
        %5879 = vmatprep.subr.bf16.mxu0 0
        %5880 = vmatpush2.bf16.msra.mxu0 0
        %5881 = vmatprep.mubr.bf16.mxu0 0
        %5882 = vmatmul.mubr.bf16.gmra.mxu0 %v5844
        %v5883 = vpop.f32.mrf.mxu0
        %v5884 = vadd.f32 0.0, %v5883
        %v5885 = vpop.f32.mrf.mxu0
        %v5886 = vadd.f32 0.0, %v5885
        %v5887 = vpop.f32.mrf.mxu0
        %v5888 = vadd.f32 0.0, %v5887
        %v5889 = vpop.f32.mrf.mxu0
        %v5890 = vadd.f32 0.0, %v5889
        %5891 = vmatprep.mubr.bf16.mxu0 0
        %5892 = vmatmul.mubr.bf16.gmra.mxu0 %v5847
        %v5893 = vpop.f32.mrf.mxu0
        %v5894 = vadd.f32 0.0, %v5893
        %v5895 = vpop.f32.mrf.mxu0
        %v5896 = vadd.f32 0.0, %v5895
        %v5897 = vpop.f32.mrf.mxu0
        %v5898 = vadd.f32 0.0, %v5897
        %v5899 = vpop.f32.mrf.mxu0
        %v5900 = vadd.f32 0.0, %v5899
        %5901 = vdwg.mxu0
        %5902 = vmatprep.subr.bf16.mxu0 0
        %5903 = vmatpush1.bf16.msra.mxu0 0
        %5904 = vmatprep.subr.bf16.mxu0 0
        %5905 = vmatpush1.bf16.msra.mxu0 0
        %5906 = vmatprep.subr.bf16.mxu0 0
        %5907 = vmatpush1.bf16.msra.mxu0 0
        %5908 = vmatprep.subr.bf16.mxu0 0
        %5909 = vmatpush1.bf16.msra.mxu0 0
        %5910 = vmatprep.subr.bf16.mxu0 0
        %5911 = vmatpush1.bf16.msra.mxu0 0
        %5912 = vmatprep.subr.bf16.mxu0 0
        %5913 = vmatpush1.bf16.msra.mxu0 0
        %5914 = vmatprep.subr.bf16.mxu0 0
        %5915 = vmatpush1.bf16.msra.mxu0 %v5832
        %5916 = vmatprep.subr.bf16.mxu0 0
        %5917 = vmatpush1.bf16.msra.mxu0 %v5829
        %5918 = vmatprep.subr.bf16.mxu0 0
        %5919 = vmatpush2.bf16.msra.mxu0 0
        %5920 = vmatprep.subr.bf16.mxu0 0
        %5921 = vmatpush2.bf16.msra.mxu0 0
        %5922 = vmatprep.subr.bf16.mxu0 0
        %5923 = vmatpush2.bf16.msra.mxu0 0
        %5924 = vmatprep.subr.bf16.mxu0 0
        %5925 = vmatpush2.bf16.msra.mxu0 0
        %5926 = vmatprep.subr.bf16.mxu0 0
        %5927 = vmatpush2.bf16.msra.mxu0 0
        %5928 = vmatprep.subr.bf16.mxu0 0
        %5929 = vmatpush2.bf16.msra.mxu0 0
        %5930 = vmatprep.subr.bf16.mxu0 0
        %5931 = vmatpush2.bf16.msra.mxu0 0
        %5932 = vmatprep.subr.bf16.mxu0 0
        %5933 = vmatpush2.bf16.msra.mxu0 0
        %5934 = vmatprep.mubr.bf16.mxu0 0
        %5935 = vmatmul.mubr.bf16.gmra.mxu0 %v5844
        %v5936 = vpop.f32.mrf.mxu0
        %v5937 = vadd.f32 0.0, %v5936
        %v5938 = vpop.f32.mrf.mxu0
        %v5939 = vpop.f32.mrf.mxu0
        %v5940 = vadd.f32 0.0, %v5939
        %v5941 = vpop.f32.mrf.mxu0
        %5942 = vmatprep.mubr.bf16.mxu0 0
        %5943 = vmatmul.mubr.bf16.gmra.mxu0 %v5847
        %v5944 = vpop.f32.mrf.mxu0
        %v5945 = vadd.f32 0.0, %v5944
        %v5946 = vpop.f32.mrf.mxu0
        %v5947 = vpop.f32.mrf.mxu0
        %v5948 = vadd.f32 0.0, %v5947
        %v5949 = vpop.f32.mrf.mxu0
        %5950 = vdwg.mxu0
        %v5951 = vadd.f32 %v5810, %v5884
        %v5952 = vadd.f32 %v5811, %v5886
        %v5953 = vadd.f32 %v5812, %v5937
        %v5954 = vadd.f32 %v5813, %v5888
        %v5955 = vadd.f32 %v5814, %v5890
        %v5956 = vadd.f32 %v5815, %v5940
        %v5957 = vadd.f32 %v5816, %v5894
        %v5958 = vadd.f32 %v5817, %v5896
        %v5959 = vadd.f32 %v5818, %v5945
        %v5960 = vadd.f32 %v5819, %v5898
        %v5961 = vadd.f32 %v5820, %v5900
        %v5962 = vadd.f32 %v5821, %v5948
        %5963 = vrot.lane.b32.xlu0 %v5126, 127
        %v5964 = vpop.permute.xlu0 %5963
        %5965 = vrot.lane.b32.xlu0 %v5129, 127
        %v5966 = vpop.permute.xlu0 %5965
        %5967 = vrot.lane.b32.xlu0 %v5132, 127
        %v5968 = vpop.permute.xlu0 %5967
        %5969 = vrot.lane.b32.xlu0 %v5135, 127
        %v5970 = vpop.permute.xlu0 %5969
        %5971 = vrot.lane.b32.xlu0 %v5127, 127
        %v5972 = vpop.permute.xlu0 %5971
        %5973 = vrot.lane.b32.xlu0 %v5130, 127
        %v5974 = vpop.permute.xlu0 %5973
        %5975 = vrot.lane.b32.xlu0 %v5133, 127
        %v5976 = vpop.permute.xlu0 %5975
        %5977 = vrot.lane.b32.xlu0 %v5136, 127
        %v5978 = vpop.permute.xlu0 %5977
        %5979 = vrot.lane.b32.xlu0 %v5128, 127
        %v5980 = vpop.permute.xlu0 %5979
        %5981 = vrot.lane.b32.xlu0 %v5131, 127
        %v5982 = vpop.permute.xlu0 %5981
        %5983 = vrot.lane.b32.xlu0 %v5134, 127
        %v5984 = vpop.permute.xlu0 %5983
        %5985 = vrot.lane.b32.xlu0 %v5137, 127
        %v5986 = vpop.permute.xlu0 %5985
        %v5987 = vsel %vm1089, %v5972, %v5980
        %v5988 = vsel %vm1089, %v5974, %v5982
        %v5989 = vsel %vm1089, %v5976, %v5984
        %v5990 = vsel %vm1089, %v5978, %v5986
        %v5991 = vsel %vm1089, %v5964, %v5972
        %v5992 = vsel %vm1089, %v5966, %v5974
        %v5993 = vsel %vm1089, %v5968, %v5976
        %v5994 = vsel %vm1089, %v5970, %v5978
        %v5995 = vsel %vm1089, %v5980, %v5964
        %v5996 = vsel %vm1089, %v5982, %v5966
        %v5997 = vsel %vm1089, %v5984, %v5968
        %v5998 = vsel %vm1089, %v5986, %v5970
        %s5999 = scalar_lea.vmem %s2, 512
        %v6000 = vld [vmem:[%s5999] sm:$0xf]
        %v6001 = vld [vmem:[%s5999 + $0x4] sm:$0xf]
        %v6002 = vld [vmem:[%s5999 + $0x8] sm:$0xf]
        %v6003 = vld [vmem:[%s5999 + $0xc] sm:$0xf]
        %v6004 = vpack.c.bf16 %v5992, %v5991
        %v6005 = vpack.c.bf16 %v5988, %v5987
        %v6006 = vpack.c.bf16 %v5996, %v5995
        %v6007 = vpack.c.bf16 %v5994, %v5993
        %v6008 = vpack.c.bf16 %v5990, %v5989
        %v6009 = vpack.c.bf16 %v5998, %v5997
        %v6014 = vunpack.c.l.b16 %v6000
        %v6015 = vunpack.c.l.b16 %v6001
        %v6016 = vunpack.c.l.b16 %v6002
        %v6017 = vunpack.c.l.b16 %v6003
        %v6018 = vpack.c.b16 %v6015, %v6014
        %v6019 = vpack.c.b16 %v6017, %v6016
        %v6021 = vsel %vm341, %v6018, 0
        %v6024 = vsel %vm341, %v6019, 0
        %6026 = vmatprep.subr.bf16.mxu0 0
        %6027 = vmatpush1.bf16.msra.mxu0 0
        %6028 = vmatprep.subr.bf16.mxu0 0
        %6029 = vmatpush1.bf16.msra.mxu0 0
        %6030 = vmatprep.subr.bf16.mxu0 0
        %6031 = vmatpush1.bf16.msra.mxu0 0
        %6032 = vmatprep.subr.bf16.mxu0 0
        %6033 = vmatpush1.bf16.msra.mxu0 0
        %6034 = vmatprep.subr.bf16.mxu0 0
        %6035 = vmatpush1.bf16.msra.mxu0 0
        %6036 = vmatprep.subr.bf16.mxu0 0
        %6037 = vmatpush1.bf16.msra.mxu0 0
        %6038 = vmatprep.subr.bf16.mxu0 %v6008
        %6039 = vmatpush1.bf16.msra.mxu0 %v6007
        %6040 = vmatprep.subr.bf16.mxu0 %v6005
        %6041 = vmatpush1.bf16.msra.mxu0 %v6004
        %6042 = vmatprep.subr.bf16.mxu0 0
        %6043 = vmatpush2.bf16.msra.mxu0 0
        %6044 = vmatprep.subr.bf16.mxu0 0
        %6045 = vmatpush2.bf16.msra.mxu0 0
        %6046 = vmatprep.subr.bf16.mxu0 0
        %6047 = vmatpush2.bf16.msra.mxu0 0
        %6048 = vmatprep.subr.bf16.mxu0 0
        %6049 = vmatpush2.bf16.msra.mxu0 0
        %6050 = vmatprep.subr.bf16.mxu0 0
        %6051 = vmatpush2.bf16.msra.mxu0 0
        %6052 = vmatprep.subr.bf16.mxu0 0
        %6053 = vmatpush2.bf16.msra.mxu0 0
        %6054 = vmatprep.subr.bf16.mxu0 0
        %6055 = vmatpush2.bf16.msra.mxu0 0
        %6056 = vmatprep.subr.bf16.mxu0 0
        %6057 = vmatpush2.bf16.msra.mxu0 0
        %6058 = vmatprep.mubr.bf16.mxu0 0
        %6059 = vmatmul.mubr.bf16.gmra.mxu0 %v6021
        %v6060 = vpop.f32.mrf.mxu0
        %v6061 = vadd.f32 0.0, %v6060
        %v6062 = vpop.f32.mrf.mxu0
        %v6063 = vadd.f32 0.0, %v6062
        %v6064 = vpop.f32.mrf.mxu0
        %v6065 = vadd.f32 0.0, %v6064
        %v6066 = vpop.f32.mrf.mxu0
        %v6067 = vadd.f32 0.0, %v6066
        %6068 = vmatprep.mubr.bf16.mxu0 0
        %6069 = vmatmul.mubr.bf16.gmra.mxu0 %v6024
        %v6070 = vpop.f32.mrf.mxu0
        %v6071 = vadd.f32 0.0, %v6070
        %v6072 = vpop.f32.mrf.mxu0
        %v6073 = vadd.f32 0.0, %v6072
        %v6074 = vpop.f32.mrf.mxu0
        %v6075 = vadd.f32 0.0, %v6074
        %v6076 = vpop.f32.mrf.mxu0
        %v6077 = vadd.f32 0.0, %v6076
        %6078 = vdwg.mxu0
        %6079 = vmatprep.subr.bf16.mxu0 0
        %6080 = vmatpush1.bf16.msra.mxu0 0
        %6081 = vmatprep.subr.bf16.mxu0 0
        %6082 = vmatpush1.bf16.msra.mxu0 0
        %6083 = vmatprep.subr.bf16.mxu0 0
        %6084 = vmatpush1.bf16.msra.mxu0 0
        %6085 = vmatprep.subr.bf16.mxu0 0
        %6086 = vmatpush1.bf16.msra.mxu0 0
        %6087 = vmatprep.subr.bf16.mxu0 0
        %6088 = vmatpush1.bf16.msra.mxu0 0
        %6089 = vmatprep.subr.bf16.mxu0 0
        %6090 = vmatpush1.bf16.msra.mxu0 0
        %6091 = vmatprep.subr.bf16.mxu0 0
        %6092 = vmatpush1.bf16.msra.mxu0 %v6009
        %6093 = vmatprep.subr.bf16.mxu0 0
        %6094 = vmatpush1.bf16.msra.mxu0 %v6006
        %6095 = vmatprep.subr.bf16.mxu0 0
        %6096 = vmatpush2.bf16.msra.mxu0 0
        %6097 = vmatprep.subr.bf16.mxu0 0
        %6098 = vmatpush2.bf16.msra.mxu0 0
        %6099 = vmatprep.subr.bf16.mxu0 0
        %6100 = vmatpush2.bf16.msra.mxu0 0
        %6101 = vmatprep.subr.bf16.mxu0 0
        %6102 = vmatpush2.bf16.msra.mxu0 0
        %6103 = vmatprep.subr.bf16.mxu0 0
        %6104 = vmatpush2.bf16.msra.mxu0 0
        %6105 = vmatprep.subr.bf16.mxu0 0
        %6106 = vmatpush2.bf16.msra.mxu0 0
        %6107 = vmatprep.subr.bf16.mxu0 0
        %6108 = vmatpush2.bf16.msra.mxu0 0
        %6109 = vmatprep.subr.bf16.mxu0 0
        %6110 = vmatpush2.bf16.msra.mxu0 0
        %6111 = vmatprep.mubr.bf16.mxu0 0
        %6112 = vmatmul.mubr.bf16.gmra.mxu0 %v6021
        %v6113 = vpop.f32.mrf.mxu0
        %v6114 = vadd.f32 0.0, %v6113
        %v6115 = vpop.f32.mrf.mxu0
        %v6116 = vpop.f32.mrf.mxu0
        %v6117 = vadd.f32 0.0, %v6116
        %v6118 = vpop.f32.mrf.mxu0
        %6119 = vmatprep.mubr.bf16.mxu0 0
        %6120 = vmatmul.mubr.bf16.gmra.mxu0 %v6024
        %v6121 = vpop.f32.mrf.mxu0
        %v6122 = vadd.f32 0.0, %v6121
        %v6123 = vpop.f32.mrf.mxu0
        %v6124 = vpop.f32.mrf.mxu0
        %v6125 = vadd.f32 0.0, %v6124
        %v6126 = vpop.f32.mrf.mxu0
        %6127 = vdwg.mxu0
        %v6128 = vadd.f32 %v5951, %v6061
        %v6129 = vadd.f32 %v5952, %v6063
        %v6130 = vadd.f32 %v5953, %v6114
        %v6131 = vadd.f32 %v5954, %v6065
        %v6132 = vadd.f32 %v5955, %v6067
        %v6133 = vadd.f32 %v5956, %v6117
        %v6134 = vadd.f32 %v5957, %v6071
        %v6135 = vadd.f32 %v5958, %v6073
        %v6136 = vadd.f32 %v5959, %v6122
        %v6137 = vadd.f32 %v5960, %v6075
        %v6138 = vadd.f32 %v5961, %v6077
        %v6139 = vadd.f32 %v5962, %v6125
        %6140 = vrot.lane.b32.xlu0 %v5126, 111
        %v6141 = vpop.permute.xlu0 %6140
        %6142 = vrot.lane.b32.xlu0 %v5129, 111
        %v6143 = vpop.permute.xlu0 %6142
        %6144 = vrot.lane.b32.xlu0 %v5132, 111
        %v6145 = vpop.permute.xlu0 %6144
        %6146 = vrot.lane.b32.xlu0 %v5135, 111
        %v6147 = vpop.permute.xlu0 %6146
        %6148 = vrot.lane.b32.xlu0 %v5127, 111
        %v6149 = vpop.permute.xlu0 %6148
        %6150 = vrot.lane.b32.xlu0 %v5130, 111
        %v6151 = vpop.permute.xlu0 %6150
        %6152 = vrot.lane.b32.xlu0 %v5133, 111
        %v6153 = vpop.permute.xlu0 %6152
        %6154 = vrot.lane.b32.xlu0 %v5136, 111
        %v6155 = vpop.permute.xlu0 %6154
        %6156 = vrot.lane.b32.xlu0 %v5128, 111
        %v6157 = vpop.permute.xlu0 %6156
        %6158 = vrot.lane.b32.xlu0 %v5131, 111
        %v6159 = vpop.permute.xlu0 %6158
        %6160 = vrot.lane.b32.xlu0 %v5134, 111
        %v6161 = vpop.permute.xlu0 %6160
        %6162 = vrot.lane.b32.xlu0 %v5137, 111
        %v6163 = vpop.permute.xlu0 %6162
        %v6164 = vsel %vm1267, %v6149, %v6157
        %v6165 = vsel %vm1267, %v6151, %v6159
        %v6166 = vsel %vm1267, %v6153, %v6161
        %v6167 = vsel %vm1267, %v6155, %v6163
        %v6168 = vsel %vm1267, %v6141, %v6149
        %v6169 = vsel %vm1267, %v6143, %v6151
        %v6170 = vsel %vm1267, %v6145, %v6153
        %v6171 = vsel %vm1267, %v6147, %v6155
        %v6172 = vsel %vm1267, %v6157, %v6141
        %v6173 = vsel %vm1267, %v6159, %v6143
        %v6174 = vsel %vm1267, %v6161, %v6145
        %v6175 = vsel %vm1267, %v6163, %v6147
        %s6176 = scalar_lea.vmem %s2, 528
        %v6177 = vld [vmem:[%s6176] sm:$0xf]
        %v6178 = vld [vmem:[%s6176 + $0x4] sm:$0xf]
        %v6179 = vld [vmem:[%s6176 + $0x8] sm:$0xf]
        %v6180 = vld [vmem:[%s6176 + $0xc] sm:$0xf]
        %v6181 = vpack.c.bf16 %v6169, %v6168
        %v6182 = vpack.c.bf16 %v6165, %v6164
        %v6183 = vpack.c.bf16 %v6173, %v6172
        %v6184 = vpack.c.bf16 %v6171, %v6170
        %v6185 = vpack.c.bf16 %v6167, %v6166
        %v6186 = vpack.c.bf16 %v6175, %v6174
        %v6191 = vunpack.c.l.b16 %v6177
        %v6192 = vunpack.c.l.b16 %v6178
        %v6193 = vunpack.c.l.b16 %v6179
        %v6194 = vunpack.c.l.b16 %v6180
        %v6195 = vpack.c.b16 %v6192, %v6191
        %v6196 = vpack.c.b16 %v6194, %v6193
        %v6198 = vsel %vm341, %v6195, 0
        %v6201 = vsel %vm341, %v6196, 0
        %6203 = vmatprep.subr.bf16.mxu0 0
        %6204 = vmatpush1.bf16.msra.mxu0 0
        %6205 = vmatprep.subr.bf16.mxu0 0
        %6206 = vmatpush1.bf16.msra.mxu0 0
        %6207 = vmatprep.subr.bf16.mxu0 0
        %6208 = vmatpush1.bf16.msra.mxu0 0
        %6209 = vmatprep.subr.bf16.mxu0 0
        %6210 = vmatpush1.bf16.msra.mxu0 0
        %6211 = vmatprep.subr.bf16.mxu0 0
        %6212 = vmatpush1.bf16.msra.mxu0 0
        %6213 = vmatprep.subr.bf16.mxu0 0
        %6214 = vmatpush1.bf16.msra.mxu0 0
        %6215 = vmatprep.subr.bf16.mxu0 %v6185
        %6216 = vmatpush1.bf16.msra.mxu0 %v6184
        %6217 = vmatprep.subr.bf16.mxu0 %v6182
        %6218 = vmatpush1.bf16.msra.mxu0 %v6181
        %6219 = vmatprep.subr.bf16.mxu0 0
        %6220 = vmatpush2.bf16.msra.mxu0 0
        %6221 = vmatprep.subr.bf16.mxu0 0
        %6222 = vmatpush2.bf16.msra.mxu0 0
        %6223 = vmatprep.subr.bf16.mxu0 0
        %6224 = vmatpush2.bf16.msra.mxu0 0
        %6225 = vmatprep.subr.bf16.mxu0 0
        %6226 = vmatpush2.bf16.msra.mxu0 0
        %6227 = vmatprep.subr.bf16.mxu0 0
        %6228 = vmatpush2.bf16.msra.mxu0 0
        %6229 = vmatprep.subr.bf16.mxu0 0
        %6230 = vmatpush2.bf16.msra.mxu0 0
        %6231 = vmatprep.subr.bf16.mxu0 0
        %6232 = vmatpush2.bf16.msra.mxu0 0
        %6233 = vmatprep.subr.bf16.mxu0 0
        %6234 = vmatpush2.bf16.msra.mxu0 0
        %6235 = vmatprep.mubr.bf16.mxu0 0
        %6236 = vmatmul.mubr.bf16.gmra.mxu0 %v6198
        %v6237 = vpop.f32.mrf.mxu0
        %v6238 = vadd.f32 0.0, %v6237
        %v6239 = vpop.f32.mrf.mxu0
        %v6240 = vadd.f32 0.0, %v6239
        %v6241 = vpop.f32.mrf.mxu0
        %v6242 = vadd.f32 0.0, %v6241
        %v6243 = vpop.f32.mrf.mxu0
        %v6244 = vadd.f32 0.0, %v6243
        %6245 = vmatprep.mubr.bf16.mxu0 0
        %6246 = vmatmul.mubr.bf16.gmra.mxu0 %v6201
        %v6247 = vpop.f32.mrf.mxu0
        %v6248 = vadd.f32 0.0, %v6247
        %v6249 = vpop.f32.mrf.mxu0
        %v6250 = vadd.f32 0.0, %v6249
        %v6251 = vpop.f32.mrf.mxu0
        %v6252 = vadd.f32 0.0, %v6251
        %v6253 = vpop.f32.mrf.mxu0
        %v6254 = vadd.f32 0.0, %v6253
        %6255 = vdwg.mxu0
        %6256 = vmatprep.subr.bf16.mxu0 0
        %6257 = vmatpush1.bf16.msra.mxu0 0
        %6258 = vmatprep.subr.bf16.mxu0 0
        %6259 = vmatpush1.bf16.msra.mxu0 0
        %6260 = vmatprep.subr.bf16.mxu0 0
        %6261 = vmatpush1.bf16.msra.mxu0 0
        %6262 = vmatprep.subr.bf16.mxu0 0
        %6263 = vmatpush1.bf16.msra.mxu0 0
        %6264 = vmatprep.subr.bf16.mxu0 0
        %6265 = vmatpush1.bf16.msra.mxu0 0
        %6266 = vmatprep.subr.bf16.mxu0 0
        %6267 = vmatpush1.bf16.msra.mxu0 0
        %6268 = vmatprep.subr.bf16.mxu0 0
        %6269 = vmatpush1.bf16.msra.mxu0 %v6186
        %6270 = vmatprep.subr.bf16.mxu0 0
        %6271 = vmatpush1.bf16.msra.mxu0 %v6183
        %6272 = vmatprep.subr.bf16.mxu0 0
        %6273 = vmatpush2.bf16.msra.mxu0 0
        %6274 = vmatprep.subr.bf16.mxu0 0
        %6275 = vmatpush2.bf16.msra.mxu0 0
        %6276 = vmatprep.subr.bf16.mxu0 0
        %6277 = vmatpush2.bf16.msra.mxu0 0
        %6278 = vmatprep.subr.bf16.mxu0 0
        %6279 = vmatpush2.bf16.msra.mxu0 0
        %6280 = vmatprep.subr.bf16.mxu0 0
        %6281 = vmatpush2.bf16.msra.mxu0 0
        %6282 = vmatprep.subr.bf16.mxu0 0
        %6283 = vmatpush2.bf16.msra.mxu0 0
        %6284 = vmatprep.subr.bf16.mxu0 0
        %6285 = vmatpush2.bf16.msra.mxu0 0
        %6286 = vmatprep.subr.bf16.mxu0 0
        %6287 = vmatpush2.bf16.msra.mxu0 0
        %6288 = vmatprep.mubr.bf16.mxu0 0
        %6289 = vmatmul.mubr.bf16.gmra.mxu0 %v6198
        %v6290 = vpop.f32.mrf.mxu0
        %v6291 = vadd.f32 0.0, %v6290
        %v6292 = vpop.f32.mrf.mxu0
        %v6293 = vpop.f32.mrf.mxu0
        %v6294 = vadd.f32 0.0, %v6293
        %v6295 = vpop.f32.mrf.mxu0
        %6296 = vmatprep.mubr.bf16.mxu0 0
        %6297 = vmatmul.mubr.bf16.gmra.mxu0 %v6201
        %v6298 = vpop.f32.mrf.mxu0
        %v6299 = vadd.f32 0.0, %v6298
        %v6300 = vpop.f32.mrf.mxu0
        %v6301 = vpop.f32.mrf.mxu0
        %v6302 = vadd.f32 0.0, %v6301
        %v6303 = vpop.f32.mrf.mxu0
        %6304 = vdwg.mxu0
        %v6305 = vadd.f32 %v6128, %v6238
        %v6306 = vadd.f32 %v6129, %v6240
        %v6307 = vadd.f32 %v6130, %v6291
        %v6308 = vadd.f32 %v6131, %v6242
        %v6309 = vadd.f32 %v6132, %v6244
        %v6310 = vadd.f32 %v6133, %v6294
        %v6311 = vadd.f32 %v6134, %v6248
        %v6312 = vadd.f32 %v6135, %v6250
        %v6313 = vadd.f32 %v6136, %v6299
        %v6314 = vadd.f32 %v6137, %v6252
        %v6315 = vadd.f32 %v6138, %v6254
        %v6316 = vadd.f32 %v6139, %v6302
        %6317 = vrot.lane.b32.xlu0 %v5126, 110
        %v6318 = vpop.permute.xlu0 %6317
        %6319 = vrot.lane.b32.xlu0 %v5129, 110
        %v6320 = vpop.permute.xlu0 %6319
        %6321 = vrot.lane.b32.xlu0 %v5132, 110
        %v6322 = vpop.permute.xlu0 %6321
        %6323 = vrot.lane.b32.xlu0 %v5135, 110
        %v6324 = vpop.permute.xlu0 %6323
        %6325 = vrot.lane.b32.xlu0 %v5127, 110
        %v6326 = vpop.permute.xlu0 %6325
        %6327 = vrot.lane.b32.xlu0 %v5130, 110
        %v6328 = vpop.permute.xlu0 %6327
        %6329 = vrot.lane.b32.xlu0 %v5133, 110
        %v6330 = vpop.permute.xlu0 %6329
        %6331 = vrot.lane.b32.xlu0 %v5136, 110
        %v6332 = vpop.permute.xlu0 %6331
        %6333 = vrot.lane.b32.xlu0 %v5128, 110
        %v6334 = vpop.permute.xlu0 %6333
        %6335 = vrot.lane.b32.xlu0 %v5131, 110
        %v6336 = vpop.permute.xlu0 %6335
        %6337 = vrot.lane.b32.xlu0 %v5134, 110
        %v6338 = vpop.permute.xlu0 %6337
        %6339 = vrot.lane.b32.xlu0 %v5137, 110
        %v6340 = vpop.permute.xlu0 %6339
        %v6341 = vsel %vm1445, %v6326, %v6334
        %v6342 = vsel %vm1445, %v6328, %v6336
        %v6343 = vsel %vm1445, %v6330, %v6338
        %v6344 = vsel %vm1445, %v6332, %v6340
        %v6345 = vsel %vm1445, %v6318, %v6326
        %v6346 = vsel %vm1445, %v6320, %v6328
        %v6347 = vsel %vm1445, %v6322, %v6330
        %v6348 = vsel %vm1445, %v6324, %v6332
        %v6349 = vsel %vm1445, %v6334, %v6318
        %v6350 = vsel %vm1445, %v6336, %v6320
        %v6351 = vsel %vm1445, %v6338, %v6322
        %v6352 = vsel %vm1445, %v6340, %v6324
        %s6353 = scalar_lea.vmem %s2, 544
        %v6354 = vld [vmem:[%s6353] sm:$0xf]
        %v6355 = vld [vmem:[%s6353 + $0x4] sm:$0xf]
        %v6356 = vld [vmem:[%s6353 + $0x8] sm:$0xf]
        %v6357 = vld [vmem:[%s6353 + $0xc] sm:$0xf]
        %v6358 = vpack.c.bf16 %v6346, %v6345
        %v6359 = vpack.c.bf16 %v6342, %v6341
        %v6360 = vpack.c.bf16 %v6350, %v6349
        %v6361 = vpack.c.bf16 %v6348, %v6347
        %v6362 = vpack.c.bf16 %v6344, %v6343
        %v6363 = vpack.c.bf16 %v6352, %v6351
        %v6368 = vunpack.c.l.b16 %v6354
        %v6369 = vunpack.c.l.b16 %v6355
        %v6370 = vunpack.c.l.b16 %v6356
        %v6371 = vunpack.c.l.b16 %v6357
        %v6372 = vpack.c.b16 %v6369, %v6368
        %v6373 = vpack.c.b16 %v6371, %v6370
        %v6375 = vsel %vm341, %v6372, 0
        %v6378 = vsel %vm341, %v6373, 0
        %6380 = vmatprep.subr.bf16.mxu0 0
        %6381 = vmatpush1.bf16.msra.mxu0 0
        %6382 = vmatprep.subr.bf16.mxu0 0
        %6383 = vmatpush1.bf16.msra.mxu0 0
        %6384 = vmatprep.subr.bf16.mxu0 0
        %6385 = vmatpush1.bf16.msra.mxu0 0
        %6386 = vmatprep.subr.bf16.mxu0 0
        %6387 = vmatpush1.bf16.msra.mxu0 0
        %6388 = vmatprep.subr.bf16.mxu0 0
        %6389 = vmatpush1.bf16.msra.mxu0 0
        %6390 = vmatprep.subr.bf16.mxu0 0
        %6391 = vmatpush1.bf16.msra.mxu0 0
        %6392 = vmatprep.subr.bf16.mxu0 %v6362
        %6393 = vmatpush1.bf16.msra.mxu0 %v6361
        %6394 = vmatprep.subr.bf16.mxu0 %v6359
        %6395 = vmatpush1.bf16.msra.mxu0 %v6358
        %6396 = vmatprep.subr.bf16.mxu0 0
        %6397 = vmatpush2.bf16.msra.mxu0 0
        %6398 = vmatprep.subr.bf16.mxu0 0
        %6399 = vmatpush2.bf16.msra.mxu0 0
        %6400 = vmatprep.subr.bf16.mxu0 0
        %6401 = vmatpush2.bf16.msra.mxu0 0
        %6402 = vmatprep.subr.bf16.mxu0 0
        %6403 = vmatpush2.bf16.msra.mxu0 0
        %6404 = vmatprep.subr.bf16.mxu0 0
        %6405 = vmatpush2.bf16.msra.mxu0 0
        %6406 = vmatprep.subr.bf16.mxu0 0
        %6407 = vmatpush2.bf16.msra.mxu0 0
        %6408 = vmatprep.subr.bf16.mxu0 0
        %6409 = vmatpush2.bf16.msra.mxu0 0
        %6410 = vmatprep.subr.bf16.mxu0 0
        %6411 = vmatpush2.bf16.msra.mxu0 0
        %6412 = vmatprep.mubr.bf16.mxu0 0
        %6413 = vmatmul.mubr.bf16.gmra.mxu0 %v6375
        %v6414 = vpop.f32.mrf.mxu0
        %v6415 = vadd.f32 0.0, %v6414
        %v6416 = vpop.f32.mrf.mxu0
        %v6417 = vadd.f32 0.0, %v6416
        %v6418 = vpop.f32.mrf.mxu0
        %v6419 = vadd.f32 0.0, %v6418
        %v6420 = vpop.f32.mrf.mxu0
        %v6421 = vadd.f32 0.0, %v6420
        %6422 = vmatprep.mubr.bf16.mxu0 0
        %6423 = vmatmul.mubr.bf16.gmra.mxu0 %v6378
        %v6424 = vpop.f32.mrf.mxu0
        %v6425 = vadd.f32 0.0, %v6424
        %v6426 = vpop.f32.mrf.mxu0
        %v6427 = vadd.f32 0.0, %v6426
        %v6428 = vpop.f32.mrf.mxu0
        %v6429 = vadd.f32 0.0, %v6428
        %v6430 = vpop.f32.mrf.mxu0
        %v6431 = vadd.f32 0.0, %v6430
        %6432 = vdwg.mxu0
        %6433 = vmatprep.subr.bf16.mxu0 0
        %6434 = vmatpush1.bf16.msra.mxu0 0
        %6435 = vmatprep.subr.bf16.mxu0 0
        %6436 = vmatpush1.bf16.msra.mxu0 0
        %6437 = vmatprep.subr.bf16.mxu0 0
        %6438 = vmatpush1.bf16.msra.mxu0 0
        %6439 = vmatprep.subr.bf16.mxu0 0
        %6440 = vmatpush1.bf16.msra.mxu0 0
        %6441 = vmatprep.subr.bf16.mxu0 0
        %6442 = vmatpush1.bf16.msra.mxu0 0
        %6443 = vmatprep.subr.bf16.mxu0 0
        %6444 = vmatpush1.bf16.msra.mxu0 0
        %6445 = vmatprep.subr.bf16.mxu0 0
        %6446 = vmatpush1.bf16.msra.mxu0 %v6363
        %6447 = vmatprep.subr.bf16.mxu0 0
        %6448 = vmatpush1.bf16.msra.mxu0 %v6360
        %6449 = vmatprep.subr.bf16.mxu0 0
        %6450 = vmatpush2.bf16.msra.mxu0 0
        %6451 = vmatprep.subr.bf16.mxu0 0
        %6452 = vmatpush2.bf16.msra.mxu0 0
        %6453 = vmatprep.subr.bf16.mxu0 0
        %6454 = vmatpush2.bf16.msra.mxu0 0
        %6455 = vmatprep.subr.bf16.mxu0 0
        %6456 = vmatpush2.bf16.msra.mxu0 0
        %6457 = vmatprep.subr.bf16.mxu0 0
        %6458 = vmatpush2.bf16.msra.mxu0 0
        %6459 = vmatprep.subr.bf16.mxu0 0
        %6460 = vmatpush2.bf16.msra.mxu0 0
        %6461 = vmatprep.subr.bf16.mxu0 0
        %6462 = vmatpush2.bf16.msra.mxu0 0
        %6463 = vmatprep.subr.bf16.mxu0 0
        %6464 = vmatpush2.bf16.msra.mxu0 0
        %6465 = vmatprep.mubr.bf16.mxu0 0
        %6466 = vmatmul.mubr.bf16.gmra.mxu0 %v6375
        %v6467 = vpop.f32.mrf.mxu0
        %v6468 = vadd.f32 0.0, %v6467
        %v6469 = vpop.f32.mrf.mxu0
        %v6470 = vpop.f32.mrf.mxu0
        %v6471 = vadd.f32 0.0, %v6470
        %v6472 = vpop.f32.mrf.mxu0
        %6473 = vmatprep.mubr.bf16.mxu0 0
        %6474 = vmatmul.mubr.bf16.gmra.mxu0 %v6378
        %v6475 = vpop.f32.mrf.mxu0
        %v6476 = vadd.f32 0.0, %v6475
        %v6477 = vpop.f32.mrf.mxu0
        %v6478 = vpop.f32.mrf.mxu0
        %v6479 = vadd.f32 0.0, %v6478
        %v6480 = vpop.f32.mrf.mxu0
        %6481 = vdwg.mxu0
        %v6482 = vadd.f32 %v6305, %v6415
        %v6483 = vadd.f32 %v6306, %v6417
        %v6484 = vadd.f32 %v6307, %v6468
        %v6485 = vadd.f32 %v6308, %v6419
        %v6486 = vadd.f32 %v6309, %v6421
        %v6487 = vadd.f32 %v6310, %v6471
        %v6488 = vadd.f32 %v6311, %v6425
        %v6489 = vadd.f32 %v6312, %v6427
        %v6490 = vadd.f32 %v6313, %v6476
        %v6491 = vadd.f32 %v6314, %v6429
        %v6492 = vadd.f32 %v6315, %v6431
        %v6493 = vadd.f32 %v6316, %v6479
        %6494 = vrot.lane.b32.xlu0 %v5126, 109
        %v6495 = vpop.permute.xlu0 %6494
        %6496 = vrot.lane.b32.xlu0 %v5129, 109
        %v6497 = vpop.permute.xlu0 %6496
        %6498 = vrot.lane.b32.xlu0 %v5132, 109
        %v6499 = vpop.permute.xlu0 %6498
        %6500 = vrot.lane.b32.xlu0 %v5135, 109
        %v6501 = vpop.permute.xlu0 %6500
        %6502 = vrot.lane.b32.xlu0 %v5127, 109
        %v6503 = vpop.permute.xlu0 %6502
        %6504 = vrot.lane.b32.xlu0 %v5130, 109
        %v6505 = vpop.permute.xlu0 %6504
        %6506 = vrot.lane.b32.xlu0 %v5133, 109
        %v6507 = vpop.permute.xlu0 %6506
        %6508 = vrot.lane.b32.xlu0 %v5136, 109
        %v6509 = vpop.permute.xlu0 %6508
        %6510 = vrot.lane.b32.xlu0 %v5128, 109
        %v6511 = vpop.permute.xlu0 %6510
        %6512 = vrot.lane.b32.xlu0 %v5131, 109
        %v6513 = vpop.permute.xlu0 %6512
        %6514 = vrot.lane.b32.xlu0 %v5134, 109
        %v6515 = vpop.permute.xlu0 %6514
        %6516 = vrot.lane.b32.xlu0 %v5137, 109
        %v6517 = vpop.permute.xlu0 %6516
        %v6518 = vsel %vm1623, %v6503, %v6511
        %v6519 = vsel %vm1623, %v6505, %v6513
        %v6520 = vsel %vm1623, %v6507, %v6515
        %v6521 = vsel %vm1623, %v6509, %v6517
        %v6522 = vsel %vm1623, %v6495, %v6503
        %v6523 = vsel %vm1623, %v6497, %v6505
        %v6524 = vsel %vm1623, %v6499, %v6507
        %v6525 = vsel %vm1623, %v6501, %v6509
        %v6526 = vsel %vm1623, %v6511, %v6495
        %v6527 = vsel %vm1623, %v6513, %v6497
        %v6528 = vsel %vm1623, %v6515, %v6499
        %v6529 = vsel %vm1623, %v6517, %v6501
        %s6530 = scalar_lea.vmem %s2, 560
        %v6531 = vld [vmem:[%s6530] sm:$0xf]
        %v6532 = vld [vmem:[%s6530 + $0x4] sm:$0xf]
        %v6533 = vld [vmem:[%s6530 + $0x8] sm:$0xf]
        %v6534 = vld [vmem:[%s6530 + $0xc] sm:$0xf]
        %v6535 = vpack.c.bf16 %v6523, %v6522
        %v6536 = vpack.c.bf16 %v6519, %v6518
        %v6537 = vpack.c.bf16 %v6527, %v6526
        %v6538 = vpack.c.bf16 %v6525, %v6524
        %v6539 = vpack.c.bf16 %v6521, %v6520
        %v6540 = vpack.c.bf16 %v6529, %v6528
        %v6545 = vunpack.c.l.b16 %v6531
        %v6546 = vunpack.c.l.b16 %v6532
        %v6547 = vunpack.c.l.b16 %v6533
        %v6548 = vunpack.c.l.b16 %v6534
        %v6549 = vpack.c.b16 %v6546, %v6545
        %v6550 = vpack.c.b16 %v6548, %v6547
        %v6552 = vsel %vm341, %v6549, 0
        %v6555 = vsel %vm341, %v6550, 0
        %6557 = vmatprep.subr.bf16.mxu0 0
        %6558 = vmatpush1.bf16.msra.mxu0 0
        %6559 = vmatprep.subr.bf16.mxu0 0
        %6560 = vmatpush1.bf16.msra.mxu0 0
        %6561 = vmatprep.subr.bf16.mxu0 0
        %6562 = vmatpush1.bf16.msra.mxu0 0
        %6563 = vmatprep.subr.bf16.mxu0 0
        %6564 = vmatpush1.bf16.msra.mxu0 0
        %6565 = vmatprep.subr.bf16.mxu0 0
        %6566 = vmatpush1.bf16.msra.mxu0 0
        %6567 = vmatprep.subr.bf16.mxu0 0
        %6568 = vmatpush1.bf16.msra.mxu0 0
        %6569 = vmatprep.subr.bf16.mxu0 %v6539
        %6570 = vmatpush1.bf16.msra.mxu0 %v6538
        %6571 = vmatprep.subr.bf16.mxu0 %v6536
        %6572 = vmatpush1.bf16.msra.mxu0 %v6535
        %6573 = vmatprep.subr.bf16.mxu0 0
        %6574 = vmatpush2.bf16.msra.mxu0 0
        %6575 = vmatprep.subr.bf16.mxu0 0
        %6576 = vmatpush2.bf16.msra.mxu0 0
        %6577 = vmatprep.subr.bf16.mxu0 0
        %6578 = vmatpush2.bf16.msra.mxu0 0
        %6579 = vmatprep.subr.bf16.mxu0 0
        %6580 = vmatpush2.bf16.msra.mxu0 0
        %6581 = vmatprep.subr.bf16.mxu0 0
        %6582 = vmatpush2.bf16.msra.mxu0 0
        %6583 = vmatprep.subr.bf16.mxu0 0
        %6584 = vmatpush2.bf16.msra.mxu0 0
        %6585 = vmatprep.subr.bf16.mxu0 0
        %6586 = vmatpush2.bf16.msra.mxu0 0
        %6587 = vmatprep.subr.bf16.mxu0 0
        %6588 = vmatpush2.bf16.msra.mxu0 0
        %6589 = vmatprep.mubr.bf16.mxu0 0
        %6590 = vmatmul.mubr.bf16.gmra.mxu0 %v6552
        %v6591 = vpop.f32.mrf.mxu0
        %v6592 = vadd.f32 0.0, %v6591
        %v6593 = vpop.f32.mrf.mxu0
        %v6594 = vadd.f32 0.0, %v6593
        %v6595 = vpop.f32.mrf.mxu0
        %v6596 = vadd.f32 0.0, %v6595
        %v6597 = vpop.f32.mrf.mxu0
        %v6598 = vadd.f32 0.0, %v6597
        %6599 = vmatprep.mubr.bf16.mxu0 0
        %6600 = vmatmul.mubr.bf16.gmra.mxu0 %v6555
        %v6601 = vpop.f32.mrf.mxu0
        %v6602 = vadd.f32 0.0, %v6601
        %v6603 = vpop.f32.mrf.mxu0
        %v6604 = vadd.f32 0.0, %v6603
        %v6605 = vpop.f32.mrf.mxu0
        %v6606 = vadd.f32 0.0, %v6605
        %v6607 = vpop.f32.mrf.mxu0
        %v6608 = vadd.f32 0.0, %v6607
        %6609 = vdwg.mxu0
        %6610 = vmatprep.subr.bf16.mxu0 0
        %6611 = vmatpush1.bf16.msra.mxu0 0
        %6612 = vmatprep.subr.bf16.mxu0 0
        %6613 = vmatpush1.bf16.msra.mxu0 0
        %6614 = vmatprep.subr.bf16.mxu0 0
        %6615 = vmatpush1.bf16.msra.mxu0 0
        %6616 = vmatprep.subr.bf16.mxu0 0
        %6617 = vmatpush1.bf16.msra.mxu0 0
        %6618 = vmatprep.subr.bf16.mxu0 0
        %6619 = vmatpush1.bf16.msra.mxu0 0
        %6620 = vmatprep.subr.bf16.mxu0 0
        %6621 = vmatpush1.bf16.msra.mxu0 0
        %6622 = vmatprep.subr.bf16.mxu0 0
        %6623 = vmatpush1.bf16.msra.mxu0 %v6540
        %6624 = vmatprep.subr.bf16.mxu0 0
        %6625 = vmatpush1.bf16.msra.mxu0 %v6537
        %6626 = vmatprep.subr.bf16.mxu0 0
        %6627 = vmatpush2.bf16.msra.mxu0 0
        %6628 = vmatprep.subr.bf16.mxu0 0
        %6629 = vmatpush2.bf16.msra.mxu0 0
        %6630 = vmatprep.subr.bf16.mxu0 0
        %6631 = vmatpush2.bf16.msra.mxu0 0
        %6632 = vmatprep.subr.bf16.mxu0 0
        %6633 = vmatpush2.bf16.msra.mxu0 0
        %6634 = vmatprep.subr.bf16.mxu0 0
        %6635 = vmatpush2.bf16.msra.mxu0 0
        %6636 = vmatprep.subr.bf16.mxu0 0
        %6637 = vmatpush2.bf16.msra.mxu0 0
        %6638 = vmatprep.subr.bf16.mxu0 0
        %6639 = vmatpush2.bf16.msra.mxu0 0
        %6640 = vmatprep.subr.bf16.mxu0 0
        %6641 = vmatpush2.bf16.msra.mxu0 0
        %6642 = vmatprep.mubr.bf16.mxu0 0
        %6643 = vmatmul.mubr.bf16.gmra.mxu0 %v6552
        %v6644 = vpop.f32.mrf.mxu0
        %v6645 = vadd.f32 0.0, %v6644
        %v6646 = vpop.f32.mrf.mxu0
        %v6647 = vpop.f32.mrf.mxu0
        %v6648 = vadd.f32 0.0, %v6647
        %v6649 = vpop.f32.mrf.mxu0
        %6650 = vmatprep.mubr.bf16.mxu0 0
        %6651 = vmatmul.mubr.bf16.gmra.mxu0 %v6555
        %v6652 = vpop.f32.mrf.mxu0
        %v6653 = vadd.f32 0.0, %v6652
        %v6654 = vpop.f32.mrf.mxu0
        %v6655 = vpop.f32.mrf.mxu0
        %v6656 = vadd.f32 0.0, %v6655
        %v6657 = vpop.f32.mrf.mxu0
        %6658 = vdwg.mxu0
        %v6659 = vadd.f32 %v6482, %v6592
        %v6660 = vadd.f32 %v6483, %v6594
        %v6661 = vadd.f32 %v6484, %v6645
        %v6662 = vadd.f32 %v6485, %v6596
        %v6663 = vadd.f32 %v6486, %v6598
        %v6664 = vadd.f32 %v6487, %v6648
        %v6665 = vadd.f32 %v6488, %v6602
        %v6666 = vadd.f32 %v6489, %v6604
        %v6667 = vadd.f32 %v6490, %v6653
        %v6668 = vadd.f32 %v6491, %v6606
        %v6669 = vadd.f32 %v6492, %v6608
        %v6670 = vadd.f32 %v6493, %v6656
        %s6671 = scalar_lea.vmem %s3, 96
        %v6672 = vld [vmem:[%s6671] sm:$0xff]
        %v6673 = vld [vmem:[%s6671 + $0x8] sm:$0xff]
        %v6674 = vld [vmem:[%s6671 + $0x10] sm:$0xff]
        %v6675 = vld [vmem:[%s6671 + $0x18] sm:$0xff]
        %6677 = vset.pattern.permute.xlu0 0
        %6678 = vperm.xlu0 %6677, %v6672
        %v6679 = vpop.permute.xlu0 %6678
        %6682 = vset.pattern.permute.xlu0 0
        %6683 = vperm.xlu0 %6682, %v6673
        %v6684 = vpop.permute.xlu0 %6683
        %6687 = vset.pattern.permute.xlu0 0
        %6688 = vperm.xlu0 %6687, %v6674
        %v6689 = vpop.permute.xlu0 %6688
        %6692 = vset.pattern.permute.xlu0 0
        %6693 = vperm.xlu0 %6692, %v6675
        %v6694 = vpop.permute.xlu0 %6693
        %v6696 = vadd.f32 %v6659, %v6679
        %v6697 = vadd.f32 %v6660, %v6679
        %v6698 = vadd.f32 %v6661, %v6679
        %v6699 = vadd.f32 %v6662, %v6684
        %v6700 = vadd.f32 %v6663, %v6684
        %v6701 = vadd.f32 %v6664, %v6684
        %v6702 = vadd.f32 %v6665, %v6689
        %v6703 = vadd.f32 %v6666, %v6689
        %v6704 = vadd.f32 %v6667, %v6689
        %v6705 = vadd.f32 %v6668, %v6694
        %v6706 = vadd.f32 %v6669, %v6694
        %v6707 = vadd.f32 %v6670, %v6694
        %v6708 = vmax.f32 %v6696, 0.0
        %v6709 = vmax.f32 %v6697, 0.0
        %v6710 = vmax.f32 %v6698, 0.0
        %v6711 = vmax.f32 %v6699, 0.0
        %v6712 = vmax.f32 %v6700, 0.0
        %v6713 = vmax.f32 %v6701, 0.0
        %v6714 = vmax.f32 %v6702, 0.0
        %v6715 = vmax.f32 %v6703, 0.0
        %v6716 = vmax.f32 %v6704, 0.0
        %v6717 = vmax.f32 %v6705, 0.0
        %v6718 = vmax.f32 %v6706, 0.0
        %v6719 = vmax.f32 %v6707, 0.0
        %v6720 = vmul.f32 %v6708, %v1829
        %v6721 = vmul.f32 %v6709, %v1833
        %v6722 = vmul.f32 %v6710, %v1837
        %v6723 = vmul.f32 %v6711, %v1829
        %v6724 = vmul.f32 %v6712, %v1833
        %v6725 = vmul.f32 %v6713, %v1837
        %v6726 = vmul.f32 %v6714, %v1829
        %v6727 = vmul.f32 %v6715, %v1833
        %v6728 = vmul.f32 %v6716, %v1837
        %v6729 = vmul.f32 %v6717, %v1829
        %v6730 = vmul.f32 %v6718, %v1833
        %v6731 = vmul.f32 %v6719, %v1837
        %6732 = vst [vmem:[%s3483] sm:$0xff] %v6720
        %6733 = vst [vmem:[%s3483 + $0x8] sm:$0xff] %v6721
        %6734 = vst [vmem:[%s3483 + $0x10] sm:$0xff] %v6722
        %6735 = vst [vmem:[%s3483 + $0x18] sm:$0xff] %v6723
        %6736 = vst [vmem:[%s3483 + $0x20] sm:$0xff] %v6724
        %6737 = vst [vmem:[%s3483 + $0x28] sm:$0xff] %v6725
        %6738 = vst [vmem:[%s3483 + $0x30] sm:$0xff] %v6726
        %6739 = vst [vmem:[%s3483 + $0x38] sm:$0xff] %v6727
        %6740 = vst [vmem:[%s3483 + $0x40] sm:$0xff] %v6728
        %6741 = vst [vmem:[%s3483 + $0x48] sm:$0xff] %v6729
        %6742 = vst [vmem:[%s3483 + $0x50] sm:$0xff] %v6730
        %6743 = vst [vmem:[%s3483 + $0x58] sm:$0xff] %v6731
        %v6744 = vld [vmem:[%s3483] sm:$0xff]
        %v6745 = vld [vmem:[%s3483 + $0x8] sm:$0xff]
        %v6746 = vld [vmem:[%s3483 + $0x10] sm:$0xff]
        %v6747 = vld [vmem:[%s3483 + $0x18] sm:$0xff]
        %v6748 = vld [vmem:[%s3483 + $0x20] sm:$0xff]
        %v6749 = vld [vmem:[%s3483 + $0x28] sm:$0xff]
        %v6750 = vld [vmem:[%s3483 + $0x30] sm:$0xff]
        %v6751 = vld [vmem:[%s3483 + $0x38] sm:$0xff]
        %v6752 = vld [vmem:[%s3483 + $0x40] sm:$0xff]
        %v6753 = vld [vmem:[%s3483 + $0x48] sm:$0xff]
        %v6754 = vld [vmem:[%s3483 + $0x50] sm:$0xff]
        %v6755 = vld [vmem:[%s3483 + $0x58] sm:$0xff]
        %6756 = vrot.lane.b32.xlu0 %v6744, 19
        %v6757 = vpop.permute.xlu0 %6756
        %6758 = vrot.lane.b32.xlu0 %v6747, 19
        %v6759 = vpop.permute.xlu0 %6758
        %6760 = vrot.lane.b32.xlu0 %v6750, 19
        %v6761 = vpop.permute.xlu0 %6760
        %6762 = vrot.lane.b32.xlu0 %v6753, 19
        %v6763 = vpop.permute.xlu0 %6762
        %6764 = vrot.lane.b32.xlu0 %v6745, 19
        %v6765 = vpop.permute.xlu0 %6764
        %6766 = vrot.lane.b32.xlu0 %v6748, 19
        %v6767 = vpop.permute.xlu0 %6766
        %6768 = vrot.lane.b32.xlu0 %v6751, 19
        %v6769 = vpop.permute.xlu0 %6768
        %6770 = vrot.lane.b32.xlu0 %v6754, 19
        %v6771 = vpop.permute.xlu0 %6770
        %6772 = vrot.lane.b32.xlu0 %v6746, 19
        %v6773 = vpop.permute.xlu0 %6772
        %6774 = vrot.lane.b32.xlu0 %v6749, 19
        %v6775 = vpop.permute.xlu0 %6774
        %6776 = vrot.lane.b32.xlu0 %v6752, 19
        %v6777 = vpop.permute.xlu0 %6776
        %6778 = vrot.lane.b32.xlu0 %v6755, 19
        %v6779 = vpop.permute.xlu0 %6778
        %v6780 = vsel %vm260, %v6765, %v6773
        %v6781 = vsel %vm260, %v6767, %v6775
        %v6782 = vsel %vm260, %v6769, %v6777
        %v6783 = vsel %vm260, %v6771, %v6779
        %v6784 = vsel %vm260, %v6757, %v6765
        %v6785 = vsel %vm260, %v6759, %v6767
        %v6786 = vsel %vm260, %v6761, %v6769
        %v6787 = vsel %vm260, %v6763, %v6771
        %v6788 = vsel %vm260, %v6773, %v6757
        %v6789 = vsel %vm260, %v6775, %v6759
        %v6790 = vsel %vm260, %v6777, %v6761
        %v6791 = vsel %vm260, %v6779, %v6763
        %s6792 = scalar_lea.vmem %s2, 576
        %v6793 = vld [vmem:[%s6792] sm:$0xf]
        %v6794 = vld [vmem:[%s6792 + $0x4] sm:$0xf]
        %v6795 = vld [vmem:[%s6792 + $0x8] sm:$0xf]
        %v6796 = vld [vmem:[%s6792 + $0xc] sm:$0xf]
        %v6797 = vpack.c.bf16 %v6789, %v6788
        %v6798 = vpack.c.bf16 %v6785, %v6784
        %v6799 = vpack.c.bf16 %v6781, %v6780
        %v6800 = vpack.c.bf16 %v6791, %v6790
        %v6801 = vpack.c.bf16 %v6787, %v6786
        %v6802 = vpack.c.bf16 %v6783, %v6782
        %6803 = vrot.lane.b32.xlu0 %v6744, 18
        %v6804 = vpop.permute.xlu0 %6803
        %6805 = vrot.lane.b32.xlu0 %v6747, 18
        %v6806 = vpop.permute.xlu0 %6805
        %6807 = vrot.lane.b32.xlu0 %v6750, 18
        %v6808 = vpop.permute.xlu0 %6807
        %6809 = vrot.lane.b32.xlu0 %v6753, 18
        %v6810 = vpop.permute.xlu0 %6809
        %6811 = vrot.lane.b32.xlu0 %v6745, 18
        %v6812 = vpop.permute.xlu0 %6811
        %6813 = vrot.lane.b32.xlu0 %v6748, 18
        %v6814 = vpop.permute.xlu0 %6813
        %6815 = vrot.lane.b32.xlu0 %v6751, 18
        %v6816 = vpop.permute.xlu0 %6815
        %6817 = vrot.lane.b32.xlu0 %v6754, 18
        %v6818 = vpop.permute.xlu0 %6817
        %6819 = vrot.lane.b32.xlu0 %v6746, 18
        %v6820 = vpop.permute.xlu0 %6819
        %6821 = vrot.lane.b32.xlu0 %v6749, 18
        %v6822 = vpop.permute.xlu0 %6821
        %6823 = vrot.lane.b32.xlu0 %v6752, 18
        %v6824 = vpop.permute.xlu0 %6823
        %6825 = vrot.lane.b32.xlu0 %v6755, 18
        %v6826 = vpop.permute.xlu0 %6825
        %v6827 = vsel %vm307, %v6812, %v6820
        %v6828 = vsel %vm307, %v6814, %v6822
        %v6829 = vsel %vm307, %v6816, %v6824
        %v6830 = vsel %vm307, %v6818, %v6826
        %v6831 = vsel %vm307, %v6804, %v6812
        %v6832 = vsel %vm307, %v6806, %v6814
        %v6833 = vsel %vm307, %v6808, %v6816
        %v6834 = vsel %vm307, %v6810, %v6818
        %v6835 = vsel %vm307, %v6820, %v6804
        %v6836 = vsel %vm307, %v6822, %v6806
        %v6837 = vsel %vm307, %v6824, %v6808
        %v6838 = vsel %vm307, %v6826, %v6810
        %s6839 = scalar_lea.vmem %s2, 592
        %v6840 = vld [vmem:[%s6839] sm:$0xf]
        %v6841 = vld [vmem:[%s6839 + $0x4] sm:$0xf]
        %v6842 = vld [vmem:[%s6839 + $0x8] sm:$0xf]
        %v6843 = vld [vmem:[%s6839 + $0xc] sm:$0xf]
        %v6844 = vpack.c.bf16 %v6836, %v6835
        %v6845 = vpack.c.bf16 %v6832, %v6831
        %v6846 = vpack.c.bf16 %v6828, %v6827
        %v6847 = vpack.c.bf16 %v6838, %v6837
        %v6848 = vpack.c.bf16 %v6834, %v6833
        %v6849 = vpack.c.bf16 %v6830, %v6829
        %v6854 = vunpack.c.l.b16 %v6840
        %v6855 = vunpack.c.l.b16 %v6841
        %v6856 = vunpack.c.l.b16 %v6842
        %v6857 = vunpack.c.l.b16 %v6843
        %v6858 = vpack.c.b16 %v6855, %v6854
        %v6859 = vpack.c.b16 %v6857, %v6856
        %v6861 = vsel %vm341, %v6858, 0
        %v6864 = vsel %vm341, %v6859, 0
        %6866 = vmatprep.subr.bf16.mxu0 0
        %6867 = vmatpush1.bf16.msra.mxu0 0
        %6868 = vmatprep.subr.bf16.mxu0 0
        %6869 = vmatpush1.bf16.msra.mxu0 0
        %6870 = vmatprep.subr.bf16.mxu0 0
        %6871 = vmatpush1.bf16.msra.mxu0 0
        %6872 = vmatprep.subr.bf16.mxu0 0
        %6873 = vmatpush1.bf16.msra.mxu0 0
        %6874 = vmatprep.subr.bf16.mxu0 0
        %6875 = vmatpush1.bf16.msra.mxu0 0
        %6876 = vmatprep.subr.bf16.mxu0 0
        %6877 = vmatpush1.bf16.msra.mxu0 0
        %6878 = vmatprep.subr.bf16.mxu0 %v6848
        %6879 = vmatpush1.bf16.msra.mxu0 %v6847
        %6880 = vmatprep.subr.bf16.mxu0 %v6845
        %6881 = vmatpush1.bf16.msra.mxu0 %v6844
        %6882 = vmatprep.subr.bf16.mxu0 0
        %6883 = vmatpush2.bf16.msra.mxu0 0
        %6884 = vmatprep.subr.bf16.mxu0 0
        %6885 = vmatpush2.bf16.msra.mxu0 0
        %6886 = vmatprep.subr.bf16.mxu0 0
        %6887 = vmatpush2.bf16.msra.mxu0 0
        %6888 = vmatprep.subr.bf16.mxu0 0
        %6889 = vmatpush2.bf16.msra.mxu0 0
        %6890 = vmatprep.subr.bf16.mxu0 0
        %6891 = vmatpush2.bf16.msra.mxu0 0
        %6892 = vmatprep.subr.bf16.mxu0 0
        %6893 = vmatpush2.bf16.msra.mxu0 0
        %6894 = vmatprep.subr.bf16.mxu0 0
        %6895 = vmatpush2.bf16.msra.mxu0 0
        %6896 = vmatprep.subr.bf16.mxu0 0
        %6897 = vmatpush2.bf16.msra.mxu0 0
        %6898 = vmatprep.mubr.bf16.mxu0 0
        %6899 = vmatmul.mubr.bf16.gmra.mxu0 %v6861
        %v6900 = vpop.f32.mrf.mxu0
        %v6901 = vadd.f32 0.0, %v6900
        %v6902 = vpop.f32.mrf.mxu0
        %v6903 = vadd.f32 0.0, %v6902
        %v6904 = vpop.f32.mrf.mxu0
        %v6905 = vadd.f32 0.0, %v6904
        %v6906 = vpop.f32.mrf.mxu0
        %v6907 = vadd.f32 0.0, %v6906
        %6908 = vmatprep.mubr.bf16.mxu0 0
        %6909 = vmatmul.mubr.bf16.gmra.mxu0 %v6864
        %v6910 = vpop.f32.mrf.mxu0
        %v6911 = vadd.f32 0.0, %v6910
        %v6912 = vpop.f32.mrf.mxu0
        %v6913 = vadd.f32 0.0, %v6912
        %v6914 = vpop.f32.mrf.mxu0
        %v6915 = vadd.f32 0.0, %v6914
        %v6916 = vpop.f32.mrf.mxu0
        %v6917 = vadd.f32 0.0, %v6916
        %6918 = vdwg.mxu0
        %6919 = vmatprep.subr.bf16.mxu0 0
        %6920 = vmatpush1.bf16.msra.mxu0 0
        %6921 = vmatprep.subr.bf16.mxu0 0
        %6922 = vmatpush1.bf16.msra.mxu0 0
        %6923 = vmatprep.subr.bf16.mxu0 0
        %6924 = vmatpush1.bf16.msra.mxu0 0
        %6925 = vmatprep.subr.bf16.mxu0 0
        %6926 = vmatpush1.bf16.msra.mxu0 0
        %6927 = vmatprep.subr.bf16.mxu0 0
        %6928 = vmatpush1.bf16.msra.mxu0 0
        %6929 = vmatprep.subr.bf16.mxu0 0
        %6930 = vmatpush1.bf16.msra.mxu0 0
        %6931 = vmatprep.subr.bf16.mxu0 0
        %6932 = vmatpush1.bf16.msra.mxu0 %v6849
        %6933 = vmatprep.subr.bf16.mxu0 0
        %6934 = vmatpush1.bf16.msra.mxu0 %v6846
        %6935 = vmatprep.subr.bf16.mxu0 0
        %6936 = vmatpush2.bf16.msra.mxu0 0
        %6937 = vmatprep.subr.bf16.mxu0 0
        %6938 = vmatpush2.bf16.msra.mxu0 0
        %6939 = vmatprep.subr.bf16.mxu0 0
        %6940 = vmatpush2.bf16.msra.mxu0 0
        %6941 = vmatprep.subr.bf16.mxu0 0
        %6942 = vmatpush2.bf16.msra.mxu0 0
        %6943 = vmatprep.subr.bf16.mxu0 0
        %6944 = vmatpush2.bf16.msra.mxu0 0
        %6945 = vmatprep.subr.bf16.mxu0 0
        %6946 = vmatpush2.bf16.msra.mxu0 0
        %6947 = vmatprep.subr.bf16.mxu0 0
        %6948 = vmatpush2.bf16.msra.mxu0 0
        %6949 = vmatprep.subr.bf16.mxu0 0
        %6950 = vmatpush2.bf16.msra.mxu0 0
        %6951 = vmatprep.mubr.bf16.mxu0 0
        %6952 = vmatmul.mubr.bf16.gmra.mxu0 %v6861
        %v6953 = vpop.f32.mrf.mxu0
        %v6954 = vadd.f32 0.0, %v6953
        %v6955 = vpop.f32.mrf.mxu0
        %v6956 = vpop.f32.mrf.mxu0
        %v6957 = vadd.f32 0.0, %v6956
        %v6958 = vpop.f32.mrf.mxu0
        %6959 = vmatprep.mubr.bf16.mxu0 0
        %6960 = vmatmul.mubr.bf16.gmra.mxu0 %v6864
        %v6961 = vpop.f32.mrf.mxu0
        %v6962 = vadd.f32 0.0, %v6961
        %v6963 = vpop.f32.mrf.mxu0
        %v6964 = vpop.f32.mrf.mxu0
        %v6965 = vadd.f32 0.0, %v6964
        %v6966 = vpop.f32.mrf.mxu0
        %6967 = vdwg.mxu0
        %v6972 = vunpack.c.l.b16 %v6793
        %v6973 = vunpack.c.l.b16 %v6794
        %v6974 = vunpack.c.l.b16 %v6795
        %v6975 = vunpack.c.l.b16 %v6796
        %v6976 = vpack.c.b16 %v6973, %v6972
        %v6977 = vpack.c.b16 %v6975, %v6974
        %v6979 = vsel %vm341, %v6976, 0
        %v6982 = vsel %vm341, %v6977, 0
        %6984 = vmatprep.subr.bf16.mxu0 0
        %6985 = vmatpush1.bf16.msra.mxu0 0
        %6986 = vmatprep.subr.bf16.mxu0 0
        %6987 = vmatpush1.bf16.msra.mxu0 0
        %6988 = vmatprep.subr.bf16.mxu0 0
        %6989 = vmatpush1.bf16.msra.mxu0 0
        %6990 = vmatprep.subr.bf16.mxu0 0
        %6991 = vmatpush1.bf16.msra.mxu0 0
        %6992 = vmatprep.subr.bf16.mxu0 0
        %6993 = vmatpush1.bf16.msra.mxu0 0
        %6994 = vmatprep.subr.bf16.mxu0 0
        %6995 = vmatpush1.bf16.msra.mxu0 0
        %6996 = vmatprep.subr.bf16.mxu0 %v6801
        %6997 = vmatpush1.bf16.msra.mxu0 %v6800
        %6998 = vmatprep.subr.bf16.mxu0 %v6798
        %6999 = vmatpush1.bf16.msra.mxu0 %v6797
        %7000 = vmatprep.subr.bf16.mxu0 0
        %7001 = vmatpush2.bf16.msra.mxu0 0
        %7002 = vmatprep.subr.bf16.mxu0 0
        %7003 = vmatpush2.bf16.msra.mxu0 0
        %7004 = vmatprep.subr.bf16.mxu0 0
        %7005 = vmatpush2.bf16.msra.mxu0 0
        %7006 = vmatprep.subr.bf16.mxu0 0
        %7007 = vmatpush2.bf16.msra.mxu0 0
        %7008 = vmatprep.subr.bf16.mxu0 0
        %7009 = vmatpush2.bf16.msra.mxu0 0
        %7010 = vmatprep.subr.bf16.mxu0 0
        %7011 = vmatpush2.bf16.msra.mxu0 0
        %7012 = vmatprep.subr.bf16.mxu0 0
        %7013 = vmatpush2.bf16.msra.mxu0 0
        %7014 = vmatprep.subr.bf16.mxu0 0
        %7015 = vmatpush2.bf16.msra.mxu0 0
        %7016 = vmatprep.mubr.bf16.mxu0 0
        %7017 = vmatmul.mubr.bf16.gmra.mxu0 %v6979
        %v7018 = vpop.f32.mrf.mxu0
        %v7019 = vadd.f32 %v6901, %v7018
        %v7020 = vpop.f32.mrf.mxu0
        %v7021 = vadd.f32 %v6903, %v7020
        %v7022 = vpop.f32.mrf.mxu0
        %v7023 = vadd.f32 %v6905, %v7022
        %v7024 = vpop.f32.mrf.mxu0
        %v7025 = vadd.f32 %v6907, %v7024
        %7026 = vmatprep.mubr.bf16.mxu0 0
        %7027 = vmatmul.mubr.bf16.gmra.mxu0 %v6982
        %v7028 = vpop.f32.mrf.mxu0
        %v7029 = vadd.f32 %v6911, %v7028
        %v7030 = vpop.f32.mrf.mxu0
        %v7031 = vadd.f32 %v6913, %v7030
        %v7032 = vpop.f32.mrf.mxu0
        %v7033 = vadd.f32 %v6915, %v7032
        %v7034 = vpop.f32.mrf.mxu0
        %v7035 = vadd.f32 %v6917, %v7034
        %7036 = vdwg.mxu0
        %7037 = vmatprep.subr.bf16.mxu0 0
        %7038 = vmatpush1.bf16.msra.mxu0 0
        %7039 = vmatprep.subr.bf16.mxu0 0
        %7040 = vmatpush1.bf16.msra.mxu0 0
        %7041 = vmatprep.subr.bf16.mxu0 0
        %7042 = vmatpush1.bf16.msra.mxu0 0
        %7043 = vmatprep.subr.bf16.mxu0 0
        %7044 = vmatpush1.bf16.msra.mxu0 0
        %7045 = vmatprep.subr.bf16.mxu0 0
        %7046 = vmatpush1.bf16.msra.mxu0 0
        %7047 = vmatprep.subr.bf16.mxu0 0
        %7048 = vmatpush1.bf16.msra.mxu0 0
        %7049 = vmatprep.subr.bf16.mxu0 0
        %7050 = vmatpush1.bf16.msra.mxu0 %v6802
        %7051 = vmatprep.subr.bf16.mxu0 0
        %7052 = vmatpush1.bf16.msra.mxu0 %v6799
        %7053 = vmatprep.subr.bf16.mxu0 0
        %7054 = vmatpush2.bf16.msra.mxu0 0
        %7055 = vmatprep.subr.bf16.mxu0 0
        %7056 = vmatpush2.bf16.msra.mxu0 0
        %7057 = vmatprep.subr.bf16.mxu0 0
        %7058 = vmatpush2.bf16.msra.mxu0 0
        %7059 = vmatprep.subr.bf16.mxu0 0
        %7060 = vmatpush2.bf16.msra.mxu0 0
        %7061 = vmatprep.subr.bf16.mxu0 0
        %7062 = vmatpush2.bf16.msra.mxu0 0
        %7063 = vmatprep.subr.bf16.mxu0 0
        %7064 = vmatpush2.bf16.msra.mxu0 0
        %7065 = vmatprep.subr.bf16.mxu0 0
        %7066 = vmatpush2.bf16.msra.mxu0 0
        %7067 = vmatprep.subr.bf16.mxu0 0
        %7068 = vmatpush2.bf16.msra.mxu0 0
        %7069 = vmatprep.mubr.bf16.mxu0 0
        %7070 = vmatmul.mubr.bf16.gmra.mxu0 %v6979
        %v7071 = vpop.f32.mrf.mxu0
        %v7072 = vadd.f32 %v6954, %v7071
        %v7073 = vpop.f32.mrf.mxu0
        %v7074 = vpop.f32.mrf.mxu0
        %v7075 = vadd.f32 %v6957, %v7074
        %v7076 = vpop.f32.mrf.mxu0
        %7077 = vmatprep.mubr.bf16.mxu0 0
        %7078 = vmatmul.mubr.bf16.gmra.mxu0 %v6982
        %v7079 = vpop.f32.mrf.mxu0
        %v7080 = vadd.f32 %v6962, %v7079
        %v7081 = vpop.f32.mrf.mxu0
        %v7082 = vpop.f32.mrf.mxu0
        %v7083 = vadd.f32 %v6965, %v7082
        %v7084 = vpop.f32.mrf.mxu0
        %7085 = vdwg.mxu0
        %7086 = vrot.lane.b32.xlu0 %v6744, 17
        %v7087 = vpop.permute.xlu0 %7086
        %7088 = vrot.lane.b32.xlu0 %v6747, 17
        %v7089 = vpop.permute.xlu0 %7088
        %7090 = vrot.lane.b32.xlu0 %v6750, 17
        %v7091 = vpop.permute.xlu0 %7090
        %7092 = vrot.lane.b32.xlu0 %v6753, 17
        %v7093 = vpop.permute.xlu0 %7092
        %7094 = vrot.lane.b32.xlu0 %v6745, 17
        %v7095 = vpop.permute.xlu0 %7094
        %7096 = vrot.lane.b32.xlu0 %v6748, 17
        %v7097 = vpop.permute.xlu0 %7096
        %7098 = vrot.lane.b32.xlu0 %v6751, 17
        %v7099 = vpop.permute.xlu0 %7098
        %7100 = vrot.lane.b32.xlu0 %v6754, 17
        %v7101 = vpop.permute.xlu0 %7100
        %7102 = vrot.lane.b32.xlu0 %v6746, 17
        %v7103 = vpop.permute.xlu0 %7102
        %7104 = vrot.lane.b32.xlu0 %v6749, 17
        %v7105 = vpop.permute.xlu0 %7104
        %7106 = vrot.lane.b32.xlu0 %v6752, 17
        %v7107 = vpop.permute.xlu0 %7106
        %7108 = vrot.lane.b32.xlu0 %v6755, 17
        %v7109 = vpop.permute.xlu0 %7108
        %v7110 = vsel %vm592, %v7095, %v7103
        %v7111 = vsel %vm592, %v7097, %v7105
        %v7112 = vsel %vm592, %v7099, %v7107
        %v7113 = vsel %vm592, %v7101, %v7109
        %v7114 = vsel %vm592, %v7087, %v7095
        %v7115 = vsel %vm592, %v7089, %v7097
        %v7116 = vsel %vm592, %v7091, %v7099
        %v7117 = vsel %vm592, %v7093, %v7101
        %v7118 = vsel %vm592, %v7103, %v7087
        %v7119 = vsel %vm592, %v7105, %v7089
        %v7120 = vsel %vm592, %v7107, %v7091
        %v7121 = vsel %vm592, %v7109, %v7093
        %s7122 = scalar_lea.vmem %s2, 608
        %v7123 = vld [vmem:[%s7122] sm:$0xf]
        %v7124 = vld [vmem:[%s7122 + $0x4] sm:$0xf]
        %v7125 = vld [vmem:[%s7122 + $0x8] sm:$0xf]
        %v7126 = vld [vmem:[%s7122 + $0xc] sm:$0xf]
        %v7127 = vpack.c.bf16 %v7119, %v7118
        %v7128 = vpack.c.bf16 %v7115, %v7114
        %v7129 = vpack.c.bf16 %v7111, %v7110
        %v7130 = vpack.c.bf16 %v7121, %v7120
        %v7131 = vpack.c.bf16 %v7117, %v7116
        %v7132 = vpack.c.bf16 %v7113, %v7112
        %v7137 = vunpack.c.l.b16 %v7123
        %v7138 = vunpack.c.l.b16 %v7124
        %v7139 = vunpack.c.l.b16 %v7125
        %v7140 = vunpack.c.l.b16 %v7126
        %v7141 = vpack.c.b16 %v7138, %v7137
        %v7142 = vpack.c.b16 %v7140, %v7139
        %v7144 = vsel %vm341, %v7141, 0
        %v7147 = vsel %vm341, %v7142, 0
        %7149 = vmatprep.subr.bf16.mxu0 0
        %7150 = vmatpush1.bf16.msra.mxu0 0
        %7151 = vmatprep.subr.bf16.mxu0 0
        %7152 = vmatpush1.bf16.msra.mxu0 0
        %7153 = vmatprep.subr.bf16.mxu0 0
        %7154 = vmatpush1.bf16.msra.mxu0 0
        %7155 = vmatprep.subr.bf16.mxu0 0
        %7156 = vmatpush1.bf16.msra.mxu0 0
        %7157 = vmatprep.subr.bf16.mxu0 0
        %7158 = vmatpush1.bf16.msra.mxu0 0
        %7159 = vmatprep.subr.bf16.mxu0 0
        %7160 = vmatpush1.bf16.msra.mxu0 0
        %7161 = vmatprep.subr.bf16.mxu0 %v7131
        %7162 = vmatpush1.bf16.msra.mxu0 %v7130
        %7163 = vmatprep.subr.bf16.mxu0 %v7128
        %7164 = vmatpush1.bf16.msra.mxu0 %v7127
        %7165 = vmatprep.subr.bf16.mxu0 0
        %7166 = vmatpush2.bf16.msra.mxu0 0
        %7167 = vmatprep.subr.bf16.mxu0 0
        %7168 = vmatpush2.bf16.msra.mxu0 0
        %7169 = vmatprep.subr.bf16.mxu0 0
        %7170 = vmatpush2.bf16.msra.mxu0 0
        %7171 = vmatprep.subr.bf16.mxu0 0
        %7172 = vmatpush2.bf16.msra.mxu0 0
        %7173 = vmatprep.subr.bf16.mxu0 0
        %7174 = vmatpush2.bf16.msra.mxu0 0
        %7175 = vmatprep.subr.bf16.mxu0 0
        %7176 = vmatpush2.bf16.msra.mxu0 0
        %7177 = vmatprep.subr.bf16.mxu0 0
        %7178 = vmatpush2.bf16.msra.mxu0 0
        %7179 = vmatprep.subr.bf16.mxu0 0
        %7180 = vmatpush2.bf16.msra.mxu0 0
        %7181 = vmatprep.mubr.bf16.mxu0 0
        %7182 = vmatmul.mubr.bf16.gmra.mxu0 %v7144
        %v7183 = vpop.f32.mrf.mxu0
        %v7184 = vadd.f32 0.0, %v7183
        %v7185 = vpop.f32.mrf.mxu0
        %v7186 = vadd.f32 0.0, %v7185
        %v7187 = vpop.f32.mrf.mxu0
        %v7188 = vadd.f32 0.0, %v7187
        %v7189 = vpop.f32.mrf.mxu0
        %v7190 = vadd.f32 0.0, %v7189
        %7191 = vmatprep.mubr.bf16.mxu0 0
        %7192 = vmatmul.mubr.bf16.gmra.mxu0 %v7147
        %v7193 = vpop.f32.mrf.mxu0
        %v7194 = vadd.f32 0.0, %v7193
        %v7195 = vpop.f32.mrf.mxu0
        %v7196 = vadd.f32 0.0, %v7195
        %v7197 = vpop.f32.mrf.mxu0
        %v7198 = vadd.f32 0.0, %v7197
        %v7199 = vpop.f32.mrf.mxu0
        %v7200 = vadd.f32 0.0, %v7199
        %7201 = vdwg.mxu0
        %7202 = vmatprep.subr.bf16.mxu0 0
        %7203 = vmatpush1.bf16.msra.mxu0 0
        %7204 = vmatprep.subr.bf16.mxu0 0
        %7205 = vmatpush1.bf16.msra.mxu0 0
        %7206 = vmatprep.subr.bf16.mxu0 0
        %7207 = vmatpush1.bf16.msra.mxu0 0
        %7208 = vmatprep.subr.bf16.mxu0 0
        %7209 = vmatpush1.bf16.msra.mxu0 0
        %7210 = vmatprep.subr.bf16.mxu0 0
        %7211 = vmatpush1.bf16.msra.mxu0 0
        %7212 = vmatprep.subr.bf16.mxu0 0
        %7213 = vmatpush1.bf16.msra.mxu0 0
        %7214 = vmatprep.subr.bf16.mxu0 0
        %7215 = vmatpush1.bf16.msra.mxu0 %v7132
        %7216 = vmatprep.subr.bf16.mxu0 0
        %7217 = vmatpush1.bf16.msra.mxu0 %v7129
        %7218 = vmatprep.subr.bf16.mxu0 0
        %7219 = vmatpush2.bf16.msra.mxu0 0
        %7220 = vmatprep.subr.bf16.mxu0 0
        %7221 = vmatpush2.bf16.msra.mxu0 0
        %7222 = vmatprep.subr.bf16.mxu0 0
        %7223 = vmatpush2.bf16.msra.mxu0 0
        %7224 = vmatprep.subr.bf16.mxu0 0
        %7225 = vmatpush2.bf16.msra.mxu0 0
        %7226 = vmatprep.subr.bf16.mxu0 0
        %7227 = vmatpush2.bf16.msra.mxu0 0
        %7228 = vmatprep.subr.bf16.mxu0 0
        %7229 = vmatpush2.bf16.msra.mxu0 0
        %7230 = vmatprep.subr.bf16.mxu0 0
        %7231 = vmatpush2.bf16.msra.mxu0 0
        %7232 = vmatprep.subr.bf16.mxu0 0
        %7233 = vmatpush2.bf16.msra.mxu0 0
        %7234 = vmatprep.mubr.bf16.mxu0 0
        %7235 = vmatmul.mubr.bf16.gmra.mxu0 %v7144
        %v7236 = vpop.f32.mrf.mxu0
        %v7237 = vadd.f32 0.0, %v7236
        %v7238 = vpop.f32.mrf.mxu0
        %v7239 = vpop.f32.mrf.mxu0
        %v7240 = vadd.f32 0.0, %v7239
        %v7241 = vpop.f32.mrf.mxu0
        %7242 = vmatprep.mubr.bf16.mxu0 0
        %7243 = vmatmul.mubr.bf16.gmra.mxu0 %v7147
        %v7244 = vpop.f32.mrf.mxu0
        %v7245 = vadd.f32 0.0, %v7244
        %v7246 = vpop.f32.mrf.mxu0
        %v7247 = vpop.f32.mrf.mxu0
        %v7248 = vadd.f32 0.0, %v7247
        %v7249 = vpop.f32.mrf.mxu0
        %7250 = vdwg.mxu0
        %v7251 = vadd.f32 %v7019, %v7184
        %v7252 = vadd.f32 %v7021, %v7186
        %v7253 = vadd.f32 %v7072, %v7237
        %v7254 = vadd.f32 %v7023, %v7188
        %v7255 = vadd.f32 %v7025, %v7190
        %v7256 = vadd.f32 %v7075, %v7240
        %v7257 = vadd.f32 %v7029, %v7194
        %v7258 = vadd.f32 %v7031, %v7196
        %v7259 = vadd.f32 %v7080, %v7245
        %v7260 = vadd.f32 %v7033, %v7198
        %v7261 = vadd.f32 %v7035, %v7200
        %v7262 = vadd.f32 %v7083, %v7248
        %7263 = vrot.lane.b32.xlu0 %v6744, 1
        %v7264 = vpop.permute.xlu0 %7263
        %7265 = vrot.lane.b32.xlu0 %v6747, 1
        %v7266 = vpop.permute.xlu0 %7265
        %7267 = vrot.lane.b32.xlu0 %v6750, 1
        %v7268 = vpop.permute.xlu0 %7267
        %7269 = vrot.lane.b32.xlu0 %v6753, 1
        %v7270 = vpop.permute.xlu0 %7269
        %7271 = vrot.lane.b32.xlu0 %v6745, 1
        %v7272 = vpop.permute.xlu0 %7271
        %7273 = vrot.lane.b32.xlu0 %v6748, 1
        %v7274 = vpop.permute.xlu0 %7273
        %7275 = vrot.lane.b32.xlu0 %v6751, 1
        %v7276 = vpop.permute.xlu0 %7275
        %7277 = vrot.lane.b32.xlu0 %v6754, 1
        %v7278 = vpop.permute.xlu0 %7277
        %7279 = vrot.lane.b32.xlu0 %v6746, 1
        %v7280 = vpop.permute.xlu0 %7279
        %7281 = vrot.lane.b32.xlu0 %v6749, 1
        %v7282 = vpop.permute.xlu0 %7281
        %7283 = vrot.lane.b32.xlu0 %v6752, 1
        %v7284 = vpop.permute.xlu0 %7283
        %7285 = vrot.lane.b32.xlu0 %v6755, 1
        %v7286 = vpop.permute.xlu0 %7285
        %v7287 = vsel %vm770, %v7272, %v7280
        %v7288 = vsel %vm770, %v7274, %v7282
        %v7289 = vsel %vm770, %v7276, %v7284
        %v7290 = vsel %vm770, %v7278, %v7286
        %v7291 = vsel %vm770, %v7264, %v7272
        %v7292 = vsel %vm770, %v7266, %v7274
        %v7293 = vsel %vm770, %v7268, %v7276
        %v7294 = vsel %vm770, %v7270, %v7278
        %v7295 = vsel %vm770, %v7280, %v7264
        %v7296 = vsel %vm770, %v7282, %v7266
        %v7297 = vsel %vm770, %v7284, %v7268
        %v7298 = vsel %vm770, %v7286, %v7270
        %s7299 = scalar_lea.vmem %s2, 624
        %v7300 = vld [vmem:[%s7299] sm:$0xf]
        %v7301 = vld [vmem:[%s7299 + $0x4] sm:$0xf]
        %v7302 = vld [vmem:[%s7299 + $0x8] sm:$0xf]
        %v7303 = vld [vmem:[%s7299 + $0xc] sm:$0xf]
        %v7304 = vpack.c.bf16 %v7296, %v7295
        %v7305 = vpack.c.bf16 %v7292, %v7291
        %v7306 = vpack.c.bf16 %v7288, %v7287
        %v7307 = vpack.c.bf16 %v7298, %v7297
        %v7308 = vpack.c.bf16 %v7294, %v7293
        %v7309 = vpack.c.bf16 %v7290, %v7289
        %v7314 = vunpack.c.l.b16 %v7300
        %v7315 = vunpack.c.l.b16 %v7301
        %v7316 = vunpack.c.l.b16 %v7302
        %v7317 = vunpack.c.l.b16 %v7303
        %v7318 = vpack.c.b16 %v7315, %v7314
        %v7319 = vpack.c.b16 %v7317, %v7316
        %v7321 = vsel %vm341, %v7318, 0
        %v7324 = vsel %vm341, %v7319, 0
        %7326 = vmatprep.subr.bf16.mxu0 0
        %7327 = vmatpush1.bf16.msra.mxu0 0
        %7328 = vmatprep.subr.bf16.mxu0 0
        %7329 = vmatpush1.bf16.msra.mxu0 0
        %7330 = vmatprep.subr.bf16.mxu0 0
        %7331 = vmatpush1.bf16.msra.mxu0 0
        %7332 = vmatprep.subr.bf16.mxu0 0
        %7333 = vmatpush1.bf16.msra.mxu0 0
        %7334 = vmatprep.subr.bf16.mxu0 0
        %7335 = vmatpush1.bf16.msra.mxu0 0
        %7336 = vmatprep.subr.bf16.mxu0 0
        %7337 = vmatpush1.bf16.msra.mxu0 0
        %7338 = vmatprep.subr.bf16.mxu0 %v7308
        %7339 = vmatpush1.bf16.msra.mxu0 %v7307
        %7340 = vmatprep.subr.bf16.mxu0 %v7305
        %7341 = vmatpush1.bf16.msra.mxu0 %v7304
        %7342 = vmatprep.subr.bf16.mxu0 0
        %7343 = vmatpush2.bf16.msra.mxu0 0
        %7344 = vmatprep.subr.bf16.mxu0 0
        %7345 = vmatpush2.bf16.msra.mxu0 0
        %7346 = vmatprep.subr.bf16.mxu0 0
        %7347 = vmatpush2.bf16.msra.mxu0 0
        %7348 = vmatprep.subr.bf16.mxu0 0
        %7349 = vmatpush2.bf16.msra.mxu0 0
        %7350 = vmatprep.subr.bf16.mxu0 0
        %7351 = vmatpush2.bf16.msra.mxu0 0
        %7352 = vmatprep.subr.bf16.mxu0 0
        %7353 = vmatpush2.bf16.msra.mxu0 0
        %7354 = vmatprep.subr.bf16.mxu0 0
        %7355 = vmatpush2.bf16.msra.mxu0 0
        %7356 = vmatprep.subr.bf16.mxu0 0
        %7357 = vmatpush2.bf16.msra.mxu0 0
        %7358 = vmatprep.mubr.bf16.mxu0 0
        %7359 = vmatmul.mubr.bf16.gmra.mxu0 %v7321
        %v7360 = vpop.f32.mrf.mxu0
        %v7361 = vadd.f32 0.0, %v7360
        %v7362 = vpop.f32.mrf.mxu0
        %v7363 = vadd.f32 0.0, %v7362
        %v7364 = vpop.f32.mrf.mxu0
        %v7365 = vadd.f32 0.0, %v7364
        %v7366 = vpop.f32.mrf.mxu0
        %v7367 = vadd.f32 0.0, %v7366
        %7368 = vmatprep.mubr.bf16.mxu0 0
        %7369 = vmatmul.mubr.bf16.gmra.mxu0 %v7324
        %v7370 = vpop.f32.mrf.mxu0
        %v7371 = vadd.f32 0.0, %v7370
        %v7372 = vpop.f32.mrf.mxu0
        %v7373 = vadd.f32 0.0, %v7372
        %v7374 = vpop.f32.mrf.mxu0
        %v7375 = vadd.f32 0.0, %v7374
        %v7376 = vpop.f32.mrf.mxu0
        %v7377 = vadd.f32 0.0, %v7376
        %7378 = vdwg.mxu0
        %7379 = vmatprep.subr.bf16.mxu0 0
        %7380 = vmatpush1.bf16.msra.mxu0 0
        %7381 = vmatprep.subr.bf16.mxu0 0
        %7382 = vmatpush1.bf16.msra.mxu0 0
        %7383 = vmatprep.subr.bf16.mxu0 0
        %7384 = vmatpush1.bf16.msra.mxu0 0
        %7385 = vmatprep.subr.bf16.mxu0 0
        %7386 = vmatpush1.bf16.msra.mxu0 0
        %7387 = vmatprep.subr.bf16.mxu0 0
        %7388 = vmatpush1.bf16.msra.mxu0 0
        %7389 = vmatprep.subr.bf16.mxu0 0
        %7390 = vmatpush1.bf16.msra.mxu0 0
        %7391 = vmatprep.subr.bf16.mxu0 0
        %7392 = vmatpush1.bf16.msra.mxu0 %v7309
        %7393 = vmatprep.subr.bf16.mxu0 0
        %7394 = vmatpush1.bf16.msra.mxu0 %v7306
        %7395 = vmatprep.subr.bf16.mxu0 0
        %7396 = vmatpush2.bf16.msra.mxu0 0
        %7397 = vmatprep.subr.bf16.mxu0 0
        %7398 = vmatpush2.bf16.msra.mxu0 0
        %7399 = vmatprep.subr.bf16.mxu0 0
        %7400 = vmatpush2.bf16.msra.mxu0 0
        %7401 = vmatprep.subr.bf16.mxu0 0
        %7402 = vmatpush2.bf16.msra.mxu0 0
        %7403 = vmatprep.subr.bf16.mxu0 0
        %7404 = vmatpush2.bf16.msra.mxu0 0
        %7405 = vmatprep.subr.bf16.mxu0 0
        %7406 = vmatpush2.bf16.msra.mxu0 0
        %7407 = vmatprep.subr.bf16.mxu0 0
        %7408 = vmatpush2.bf16.msra.mxu0 0
        %7409 = vmatprep.subr.bf16.mxu0 0
        %7410 = vmatpush2.bf16.msra.mxu0 0
        %7411 = vmatprep.mubr.bf16.mxu0 0
        %7412 = vmatmul.mubr.bf16.gmra.mxu0 %v7321
        %v7413 = vpop.f32.mrf.mxu0
        %v7414 = vadd.f32 0.0, %v7413
        %v7415 = vpop.f32.mrf.mxu0
        %v7416 = vpop.f32.mrf.mxu0
        %v7417 = vadd.f32 0.0, %v7416
        %v7418 = vpop.f32.mrf.mxu0
        %7419 = vmatprep.mubr.bf16.mxu0 0
        %7420 = vmatmul.mubr.bf16.gmra.mxu0 %v7324
        %v7421 = vpop.f32.mrf.mxu0
        %v7422 = vadd.f32 0.0, %v7421
        %v7423 = vpop.f32.mrf.mxu0
        %v7424 = vpop.f32.mrf.mxu0
        %v7425 = vadd.f32 0.0, %v7424
        %v7426 = vpop.f32.mrf.mxu0
        %7427 = vdwg.mxu0
        %v7428 = vadd.f32 %v7251, %v7361
        %v7429 = vadd.f32 %v7252, %v7363
        %v7430 = vadd.f32 %v7253, %v7414
        %v7431 = vadd.f32 %v7254, %v7365
        %v7432 = vadd.f32 %v7255, %v7367
        %v7433 = vadd.f32 %v7256, %v7417
        %v7434 = vadd.f32 %v7257, %v7371
        %v7435 = vadd.f32 %v7258, %v7373
        %v7436 = vadd.f32 %v7259, %v7422
        %v7437 = vadd.f32 %v7260, %v7375
        %v7438 = vadd.f32 %v7261, %v7377
        %v7439 = vadd.f32 %v7262, %v7425
        %s7440 = scalar_lea.vmem %s2, 640
        %v7441 = vld [vmem:[%s7440] sm:$0xf]
        %v7442 = vld [vmem:[%s7440 + $0x4] sm:$0xf]
        %v7443 = vld [vmem:[%s7440 + $0x8] sm:$0xf]
        %v7444 = vld [vmem:[%s7440 + $0xc] sm:$0xf]
        %v7445 = vpack.c.bf16 %v6747, %v6744
        %v7446 = vpack.c.bf16 %v6748, %v6745
        %v7447 = vpack.c.bf16 %v6749, %v6746
        %v7448 = vpack.c.bf16 %v6753, %v6750
        %v7449 = vpack.c.bf16 %v6754, %v6751
        %v7450 = vpack.c.bf16 %v6755, %v6752
        %v7455 = vunpack.c.l.b16 %v7441
        %v7456 = vunpack.c.l.b16 %v7442
        %v7457 = vunpack.c.l.b16 %v7443
        %v7458 = vunpack.c.l.b16 %v7444
        %v7459 = vpack.c.b16 %v7456, %v7455
        %v7460 = vpack.c.b16 %v7458, %v7457
        %v7462 = vsel %vm341, %v7459, 0
        %v7465 = vsel %vm341, %v7460, 0
        %7467 = vmatprep.subr.bf16.mxu0 0
        %7468 = vmatpush1.bf16.msra.mxu0 0
        %7469 = vmatprep.subr.bf16.mxu0 0
        %7470 = vmatpush1.bf16.msra.mxu0 0
        %7471 = vmatprep.subr.bf16.mxu0 0
        %7472 = vmatpush1.bf16.msra.mxu0 0
        %7473 = vmatprep.subr.bf16.mxu0 0
        %7474 = vmatpush1.bf16.msra.mxu0 0
        %7475 = vmatprep.subr.bf16.mxu0 0
        %7476 = vmatpush1.bf16.msra.mxu0 0
        %7477 = vmatprep.subr.bf16.mxu0 0
        %7478 = vmatpush1.bf16.msra.mxu0 0
        %7479 = vmatprep.subr.bf16.mxu0 %v7449
        %7480 = vmatpush1.bf16.msra.mxu0 %v7448
        %7481 = vmatprep.subr.bf16.mxu0 %v7446
        %7482 = vmatpush1.bf16.msra.mxu0 %v7445
        %7483 = vmatprep.subr.bf16.mxu0 0
        %7484 = vmatpush2.bf16.msra.mxu0 0
        %7485 = vmatprep.subr.bf16.mxu0 0
        %7486 = vmatpush2.bf16.msra.mxu0 0
        %7487 = vmatprep.subr.bf16.mxu0 0
        %7488 = vmatpush2.bf16.msra.mxu0 0
        %7489 = vmatprep.subr.bf16.mxu0 0
        %7490 = vmatpush2.bf16.msra.mxu0 0
        %7491 = vmatprep.subr.bf16.mxu0 0
        %7492 = vmatpush2.bf16.msra.mxu0 0
        %7493 = vmatprep.subr.bf16.mxu0 0
        %7494 = vmatpush2.bf16.msra.mxu0 0
        %7495 = vmatprep.subr.bf16.mxu0 0
        %7496 = vmatpush2.bf16.msra.mxu0 0
        %7497 = vmatprep.subr.bf16.mxu0 0
        %7498 = vmatpush2.bf16.msra.mxu0 0
        %7499 = vmatprep.mubr.bf16.mxu0 0
        %7500 = vmatmul.mubr.bf16.gmra.mxu0 %v7462
        %v7501 = vpop.f32.mrf.mxu0
        %v7502 = vadd.f32 0.0, %v7501
        %v7503 = vpop.f32.mrf.mxu0
        %v7504 = vadd.f32 0.0, %v7503
        %v7505 = vpop.f32.mrf.mxu0
        %v7506 = vadd.f32 0.0, %v7505
        %v7507 = vpop.f32.mrf.mxu0
        %v7508 = vadd.f32 0.0, %v7507
        %7509 = vmatprep.mubr.bf16.mxu0 0
        %7510 = vmatmul.mubr.bf16.gmra.mxu0 %v7465
        %v7511 = vpop.f32.mrf.mxu0
        %v7512 = vadd.f32 0.0, %v7511
        %v7513 = vpop.f32.mrf.mxu0
        %v7514 = vadd.f32 0.0, %v7513
        %v7515 = vpop.f32.mrf.mxu0
        %v7516 = vadd.f32 0.0, %v7515
        %v7517 = vpop.f32.mrf.mxu0
        %v7518 = vadd.f32 0.0, %v7517
        %7519 = vdwg.mxu0
        %7520 = vmatprep.subr.bf16.mxu0 0
        %7521 = vmatpush1.bf16.msra.mxu0 0
        %7522 = vmatprep.subr.bf16.mxu0 0
        %7523 = vmatpush1.bf16.msra.mxu0 0
        %7524 = vmatprep.subr.bf16.mxu0 0
        %7525 = vmatpush1.bf16.msra.mxu0 0
        %7526 = vmatprep.subr.bf16.mxu0 0
        %7527 = vmatpush1.bf16.msra.mxu0 0
        %7528 = vmatprep.subr.bf16.mxu0 0
        %7529 = vmatpush1.bf16.msra.mxu0 0
        %7530 = vmatprep.subr.bf16.mxu0 0
        %7531 = vmatpush1.bf16.msra.mxu0 0
        %7532 = vmatprep.subr.bf16.mxu0 0
        %7533 = vmatpush1.bf16.msra.mxu0 %v7450
        %7534 = vmatprep.subr.bf16.mxu0 0
        %7535 = vmatpush1.bf16.msra.mxu0 %v7447
        %7536 = vmatprep.subr.bf16.mxu0 0
        %7537 = vmatpush2.bf16.msra.mxu0 0
        %7538 = vmatprep.subr.bf16.mxu0 0
        %7539 = vmatpush2.bf16.msra.mxu0 0
        %7540 = vmatprep.subr.bf16.mxu0 0
        %7541 = vmatpush2.bf16.msra.mxu0 0
        %7542 = vmatprep.subr.bf16.mxu0 0
        %7543 = vmatpush2.bf16.msra.mxu0 0
        %7544 = vmatprep.subr.bf16.mxu0 0
        %7545 = vmatpush2.bf16.msra.mxu0 0
        %7546 = vmatprep.subr.bf16.mxu0 0
        %7547 = vmatpush2.bf16.msra.mxu0 0
        %7548 = vmatprep.subr.bf16.mxu0 0
        %7549 = vmatpush2.bf16.msra.mxu0 0
        %7550 = vmatprep.subr.bf16.mxu0 0
        %7551 = vmatpush2.bf16.msra.mxu0 0
        %7552 = vmatprep.mubr.bf16.mxu0 0
        %7553 = vmatmul.mubr.bf16.gmra.mxu0 %v7462
        %v7554 = vpop.f32.mrf.mxu0
        %v7555 = vadd.f32 0.0, %v7554
        %v7556 = vpop.f32.mrf.mxu0
        %v7557 = vpop.f32.mrf.mxu0
        %v7558 = vadd.f32 0.0, %v7557
        %v7559 = vpop.f32.mrf.mxu0
        %7560 = vmatprep.mubr.bf16.mxu0 0
        %7561 = vmatmul.mubr.bf16.gmra.mxu0 %v7465
        %v7562 = vpop.f32.mrf.mxu0
        %v7563 = vadd.f32 0.0, %v7562
        %v7564 = vpop.f32.mrf.mxu0
        %v7565 = vpop.f32.mrf.mxu0
        %v7566 = vadd.f32 0.0, %v7565
        %v7567 = vpop.f32.mrf.mxu0
        %7568 = vdwg.mxu0
        %v7569 = vadd.f32 %v7428, %v7502
        %v7570 = vadd.f32 %v7429, %v7504
        %v7571 = vadd.f32 %v7430, %v7555
        %v7572 = vadd.f32 %v7431, %v7506
        %v7573 = vadd.f32 %v7432, %v7508
        %v7574 = vadd.f32 %v7433, %v7558
        %v7575 = vadd.f32 %v7434, %v7512
        %v7576 = vadd.f32 %v7435, %v7514
        %v7577 = vadd.f32 %v7436, %v7563
        %v7578 = vadd.f32 %v7437, %v7516
        %v7579 = vadd.f32 %v7438, %v7518
        %v7580 = vadd.f32 %v7439, %v7566
        %7581 = vrot.lane.b32.xlu0 %v6744, 127
        %v7582 = vpop.permute.xlu0 %7581
        %7583 = vrot.lane.b32.xlu0 %v6747, 127
        %v7584 = vpop.permute.xlu0 %7583
        %7585 = vrot.lane.b32.xlu0 %v6750, 127
        %v7586 = vpop.permute.xlu0 %7585
        %7587 = vrot.lane.b32.xlu0 %v6753, 127
        %v7588 = vpop.permute.xlu0 %7587
        %7589 = vrot.lane.b32.xlu0 %v6745, 127
        %v7590 = vpop.permute.xlu0 %7589
        %7591 = vrot.lane.b32.xlu0 %v6748, 127
        %v7592 = vpop.permute.xlu0 %7591
        %7593 = vrot.lane.b32.xlu0 %v6751, 127
        %v7594 = vpop.permute.xlu0 %7593
        %7595 = vrot.lane.b32.xlu0 %v6754, 127
        %v7596 = vpop.permute.xlu0 %7595
        %7597 = vrot.lane.b32.xlu0 %v6746, 127
        %v7598 = vpop.permute.xlu0 %7597
        %7599 = vrot.lane.b32.xlu0 %v6749, 127
        %v7600 = vpop.permute.xlu0 %7599
        %7601 = vrot.lane.b32.xlu0 %v6752, 127
        %v7602 = vpop.permute.xlu0 %7601
        %7603 = vrot.lane.b32.xlu0 %v6755, 127
        %v7604 = vpop.permute.xlu0 %7603
        %v7605 = vsel %vm1089, %v7590, %v7598
        %v7606 = vsel %vm1089, %v7592, %v7600
        %v7607 = vsel %vm1089, %v7594, %v7602
        %v7608 = vsel %vm1089, %v7596, %v7604
        %v7609 = vsel %vm1089, %v7582, %v7590
        %v7610 = vsel %vm1089, %v7584, %v7592
        %v7611 = vsel %vm1089, %v7586, %v7594
        %v7612 = vsel %vm1089, %v7588, %v7596
        %v7613 = vsel %vm1089, %v7598, %v7582
        %v7614 = vsel %vm1089, %v7600, %v7584
        %v7615 = vsel %vm1089, %v7602, %v7586
        %v7616 = vsel %vm1089, %v7604, %v7588
        %s7617 = scalar_lea.vmem %s2, 656
        %v7618 = vld [vmem:[%s7617] sm:$0xf]
        %v7619 = vld [vmem:[%s7617 + $0x4] sm:$0xf]
        %v7620 = vld [vmem:[%s7617 + $0x8] sm:$0xf]
        %v7621 = vld [vmem:[%s7617 + $0xc] sm:$0xf]
        %v7622 = vpack.c.bf16 %v7610, %v7609
        %v7623 = vpack.c.bf16 %v7606, %v7605
        %v7624 = vpack.c.bf16 %v7614, %v7613
        %v7625 = vpack.c.bf16 %v7612, %v7611
        %v7626 = vpack.c.bf16 %v7608, %v7607
        %v7627 = vpack.c.bf16 %v7616, %v7615
        %v7632 = vunpack.c.l.b16 %v7618
        %v7633 = vunpack.c.l.b16 %v7619
        %v7634 = vunpack.c.l.b16 %v7620
        %v7635 = vunpack.c.l.b16 %v7621
        %v7636 = vpack.c.b16 %v7633, %v7632
        %v7637 = vpack.c.b16 %v7635, %v7634
        %v7639 = vsel %vm341, %v7636, 0
        %v7642 = vsel %vm341, %v7637, 0
        %7644 = vmatprep.subr.bf16.mxu0 0
        %7645 = vmatpush1.bf16.msra.mxu0 0
        %7646 = vmatprep.subr.bf16.mxu0 0
        %7647 = vmatpush1.bf16.msra.mxu0 0
        %7648 = vmatprep.subr.bf16.mxu0 0
        %7649 = vmatpush1.bf16.msra.mxu0 0
        %7650 = vmatprep.subr.bf16.mxu0 0
        %7651 = vmatpush1.bf16.msra.mxu0 0
        %7652 = vmatprep.subr.bf16.mxu0 0
        %7653 = vmatpush1.bf16.msra.mxu0 0
        %7654 = vmatprep.subr.bf16.mxu0 0
        %7655 = vmatpush1.bf16.msra.mxu0 0
        %7656 = vmatprep.subr.bf16.mxu0 %v7626
        %7657 = vmatpush1.bf16.msra.mxu0 %v7625
        %7658 = vmatprep.subr.bf16.mxu0 %v7623
        %7659 = vmatpush1.bf16.msra.mxu0 %v7622
        %7660 = vmatprep.subr.bf16.mxu0 0
        %7661 = vmatpush2.bf16.msra.mxu0 0
        %7662 = vmatprep.subr.bf16.mxu0 0
        %7663 = vmatpush2.bf16.msra.mxu0 0
        %7664 = vmatprep.subr.bf16.mxu0 0
        %7665 = vmatpush2.bf16.msra.mxu0 0
        %7666 = vmatprep.subr.bf16.mxu0 0
        %7667 = vmatpush2.bf16.msra.mxu0 0
        %7668 = vmatprep.subr.bf16.mxu0 0
        %7669 = vmatpush2.bf16.msra.mxu0 0
        %7670 = vmatprep.subr.bf16.mxu0 0
        %7671 = vmatpush2.bf16.msra.mxu0 0
        %7672 = vmatprep.subr.bf16.mxu0 0
        %7673 = vmatpush2.bf16.msra.mxu0 0
        %7674 = vmatprep.subr.bf16.mxu0 0
        %7675 = vmatpush2.bf16.msra.mxu0 0
        %7676 = vmatprep.mubr.bf16.mxu0 0
        %7677 = vmatmul.mubr.bf16.gmra.mxu0 %v7639
        %v7678 = vpop.f32.mrf.mxu0
        %v7679 = vadd.f32 0.0, %v7678
        %v7680 = vpop.f32.mrf.mxu0
        %v7681 = vadd.f32 0.0, %v7680
        %v7682 = vpop.f32.mrf.mxu0
        %v7683 = vadd.f32 0.0, %v7682
        %v7684 = vpop.f32.mrf.mxu0
        %v7685 = vadd.f32 0.0, %v7684
        %7686 = vmatprep.mubr.bf16.mxu0 0
        %7687 = vmatmul.mubr.bf16.gmra.mxu0 %v7642
        %v7688 = vpop.f32.mrf.mxu0
        %v7689 = vadd.f32 0.0, %v7688
        %v7690 = vpop.f32.mrf.mxu0
        %v7691 = vadd.f32 0.0, %v7690
        %v7692 = vpop.f32.mrf.mxu0
        %v7693 = vadd.f32 0.0, %v7692
        %v7694 = vpop.f32.mrf.mxu0
        %v7695 = vadd.f32 0.0, %v7694
        %7696 = vdwg.mxu0
        %7697 = vmatprep.subr.bf16.mxu0 0
        %7698 = vmatpush1.bf16.msra.mxu0 0
        %7699 = vmatprep.subr.bf16.mxu0 0
        %7700 = vmatpush1.bf16.msra.mxu0 0
        %7701 = vmatprep.subr.bf16.mxu0 0
        %7702 = vmatpush1.bf16.msra.mxu0 0
        %7703 = vmatprep.subr.bf16.mxu0 0
        %7704 = vmatpush1.bf16.msra.mxu0 0
        %7705 = vmatprep.subr.bf16.mxu0 0
        %7706 = vmatpush1.bf16.msra.mxu0 0
        %7707 = vmatprep.subr.bf16.mxu0 0
        %7708 = vmatpush1.bf16.msra.mxu0 0
        %7709 = vmatprep.subr.bf16.mxu0 0
        %7710 = vmatpush1.bf16.msra.mxu0 %v7627
        %7711 = vmatprep.subr.bf16.mxu0 0
        %7712 = vmatpush1.bf16.msra.mxu0 %v7624
        %7713 = vmatprep.subr.bf16.mxu0 0
        %7714 = vmatpush2.bf16.msra.mxu0 0
        %7715 = vmatprep.subr.bf16.mxu0 0
        %7716 = vmatpush2.bf16.msra.mxu0 0
        %7717 = vmatprep.subr.bf16.mxu0 0
        %7718 = vmatpush2.bf16.msra.mxu0 0
        %7719 = vmatprep.subr.bf16.mxu0 0
        %7720 = vmatpush2.bf16.msra.mxu0 0
        %7721 = vmatprep.subr.bf16.mxu0 0
        %7722 = vmatpush2.bf16.msra.mxu0 0
        %7723 = vmatprep.subr.bf16.mxu0 0
        %7724 = vmatpush2.bf16.msra.mxu0 0
        %7725 = vmatprep.subr.bf16.mxu0 0
        %7726 = vmatpush2.bf16.msra.mxu0 0
        %7727 = vmatprep.subr.bf16.mxu0 0
        %7728 = vmatpush2.bf16.msra.mxu0 0
        %7729 = vmatprep.mubr.bf16.mxu0 0
        %7730 = vmatmul.mubr.bf16.gmra.mxu0 %v7639
        %v7731 = vpop.f32.mrf.mxu0
        %v7732 = vadd.f32 0.0, %v7731
        %v7733 = vpop.f32.mrf.mxu0
        %v7734 = vpop.f32.mrf.mxu0
        %v7735 = vadd.f32 0.0, %v7734
        %v7736 = vpop.f32.mrf.mxu0
        %7737 = vmatprep.mubr.bf16.mxu0 0
        %7738 = vmatmul.mubr.bf16.gmra.mxu0 %v7642
        %v7739 = vpop.f32.mrf.mxu0
        %v7740 = vadd.f32 0.0, %v7739
        %v7741 = vpop.f32.mrf.mxu0
        %v7742 = vpop.f32.mrf.mxu0
        %v7743 = vadd.f32 0.0, %v7742
        %v7744 = vpop.f32.mrf.mxu0
        %7745 = vdwg.mxu0
        %v7746 = vadd.f32 %v7569, %v7679
        %v7747 = vadd.f32 %v7570, %v7681
        %v7748 = vadd.f32 %v7571, %v7732
        %v7749 = vadd.f32 %v7572, %v7683
        %v7750 = vadd.f32 %v7573, %v7685
        %v7751 = vadd.f32 %v7574, %v7735
        %v7752 = vadd.f32 %v7575, %v7689
        %v7753 = vadd.f32 %v7576, %v7691
        %v7754 = vadd.f32 %v7577, %v7740
        %v7755 = vadd.f32 %v7578, %v7693
        %v7756 = vadd.f32 %v7579, %v7695
        %v7757 = vadd.f32 %v7580, %v7743
        %7758 = vrot.lane.b32.xlu0 %v6744, 111
        %v7759 = vpop.permute.xlu0 %7758
        %7760 = vrot.lane.b32.xlu0 %v6747, 111
        %v7761 = vpop.permute.xlu0 %7760
        %7762 = vrot.lane.b32.xlu0 %v6750, 111
        %v7763 = vpop.permute.xlu0 %7762
        %7764 = vrot.lane.b32.xlu0 %v6753, 111
        %v7765 = vpop.permute.xlu0 %7764
        %7766 = vrot.lane.b32.xlu0 %v6745, 111
        %v7767 = vpop.permute.xlu0 %7766
        %7768 = vrot.lane.b32.xlu0 %v6748, 111
        %v7769 = vpop.permute.xlu0 %7768
        %7770 = vrot.lane.b32.xlu0 %v6751, 111
        %v7771 = vpop.permute.xlu0 %7770
        %7772 = vrot.lane.b32.xlu0 %v6754, 111
        %v7773 = vpop.permute.xlu0 %7772
        %7774 = vrot.lane.b32.xlu0 %v6746, 111
        %v7775 = vpop.permute.xlu0 %7774
        %7776 = vrot.lane.b32.xlu0 %v6749, 111
        %v7777 = vpop.permute.xlu0 %7776
        %7778 = vrot.lane.b32.xlu0 %v6752, 111
        %v7779 = vpop.permute.xlu0 %7778
        %7780 = vrot.lane.b32.xlu0 %v6755, 111
        %v7781 = vpop.permute.xlu0 %7780
        %v7782 = vsel %vm1267, %v7767, %v7775
        %v7783 = vsel %vm1267, %v7769, %v7777
        %v7784 = vsel %vm1267, %v7771, %v7779
        %v7785 = vsel %vm1267, %v7773, %v7781
        %v7786 = vsel %vm1267, %v7759, %v7767
        %v7787 = vsel %vm1267, %v7761, %v7769
        %v7788 = vsel %vm1267, %v7763, %v7771
        %v7789 = vsel %vm1267, %v7765, %v7773
        %v7790 = vsel %vm1267, %v7775, %v7759
        %v7791 = vsel %vm1267, %v7777, %v7761
        %v7792 = vsel %vm1267, %v7779, %v7763
        %v7793 = vsel %vm1267, %v7781, %v7765
        %s7794 = scalar_lea.vmem %s2, 672
        %v7795 = vld [vmem:[%s7794] sm:$0xf]
        %v7796 = vld [vmem:[%s7794 + $0x4] sm:$0xf]
        %v7797 = vld [vmem:[%s7794 + $0x8] sm:$0xf]
        %v7798 = vld [vmem:[%s7794 + $0xc] sm:$0xf]
        %v7799 = vpack.c.bf16 %v7787, %v7786
        %v7800 = vpack.c.bf16 %v7783, %v7782
        %v7801 = vpack.c.bf16 %v7791, %v7790
        %v7802 = vpack.c.bf16 %v7789, %v7788
        %v7803 = vpack.c.bf16 %v7785, %v7784
        %v7804 = vpack.c.bf16 %v7793, %v7792
        %v7809 = vunpack.c.l.b16 %v7795
        %v7810 = vunpack.c.l.b16 %v7796
        %v7811 = vunpack.c.l.b16 %v7797
        %v7812 = vunpack.c.l.b16 %v7798
        %v7813 = vpack.c.b16 %v7810, %v7809
        %v7814 = vpack.c.b16 %v7812, %v7811
        %v7816 = vsel %vm341, %v7813, 0
        %v7819 = vsel %vm341, %v7814, 0
        %7821 = vmatprep.subr.bf16.mxu0 0
        %7822 = vmatpush1.bf16.msra.mxu0 0
        %7823 = vmatprep.subr.bf16.mxu0 0
        %7824 = vmatpush1.bf16.msra.mxu0 0
        %7825 = vmatprep.subr.bf16.mxu0 0
        %7826 = vmatpush1.bf16.msra.mxu0 0
        %7827 = vmatprep.subr.bf16.mxu0 0
        %7828 = vmatpush1.bf16.msra.mxu0 0
        %7829 = vmatprep.subr.bf16.mxu0 0
        %7830 = vmatpush1.bf16.msra.mxu0 0
        %7831 = vmatprep.subr.bf16.mxu0 0
        %7832 = vmatpush1.bf16.msra.mxu0 0
        %7833 = vmatprep.subr.bf16.mxu0 %v7803
        %7834 = vmatpush1.bf16.msra.mxu0 %v7802
        %7835 = vmatprep.subr.bf16.mxu0 %v7800
        %7836 = vmatpush1.bf16.msra.mxu0 %v7799
        %7837 = vmatprep.subr.bf16.mxu0 0
        %7838 = vmatpush2.bf16.msra.mxu0 0
        %7839 = vmatprep.subr.bf16.mxu0 0
        %7840 = vmatpush2.bf16.msra.mxu0 0
        %7841 = vmatprep.subr.bf16.mxu0 0
        %7842 = vmatpush2.bf16.msra.mxu0 0
        %7843 = vmatprep.subr.bf16.mxu0 0
        %7844 = vmatpush2.bf16.msra.mxu0 0
        %7845 = vmatprep.subr.bf16.mxu0 0
        %7846 = vmatpush2.bf16.msra.mxu0 0
        %7847 = vmatprep.subr.bf16.mxu0 0
        %7848 = vmatpush2.bf16.msra.mxu0 0
        %7849 = vmatprep.subr.bf16.mxu0 0
        %7850 = vmatpush2.bf16.msra.mxu0 0
        %7851 = vmatprep.subr.bf16.mxu0 0
        %7852 = vmatpush2.bf16.msra.mxu0 0
        %7853 = vmatprep.mubr.bf16.mxu0 0
        %7854 = vmatmul.mubr.bf16.gmra.mxu0 %v7816
        %v7855 = vpop.f32.mrf.mxu0
        %v7856 = vadd.f32 0.0, %v7855
        %v7857 = vpop.f32.mrf.mxu0
        %v7858 = vadd.f32 0.0, %v7857
        %v7859 = vpop.f32.mrf.mxu0
        %v7860 = vadd.f32 0.0, %v7859
        %v7861 = vpop.f32.mrf.mxu0
        %v7862 = vadd.f32 0.0, %v7861
        %7863 = vmatprep.mubr.bf16.mxu0 0
        %7864 = vmatmul.mubr.bf16.gmra.mxu0 %v7819
        %v7865 = vpop.f32.mrf.mxu0
        %v7866 = vadd.f32 0.0, %v7865
        %v7867 = vpop.f32.mrf.mxu0
        %v7868 = vadd.f32 0.0, %v7867
        %v7869 = vpop.f32.mrf.mxu0
        %v7870 = vadd.f32 0.0, %v7869
        %v7871 = vpop.f32.mrf.mxu0
        %v7872 = vadd.f32 0.0, %v7871
        %7873 = vdwg.mxu0
        %7874 = vmatprep.subr.bf16.mxu0 0
        %7875 = vmatpush1.bf16.msra.mxu0 0
        %7876 = vmatprep.subr.bf16.mxu0 0
        %7877 = vmatpush1.bf16.msra.mxu0 0
        %7878 = vmatprep.subr.bf16.mxu0 0
        %7879 = vmatpush1.bf16.msra.mxu0 0
        %7880 = vmatprep.subr.bf16.mxu0 0
        %7881 = vmatpush1.bf16.msra.mxu0 0
        %7882 = vmatprep.subr.bf16.mxu0 0
        %7883 = vmatpush1.bf16.msra.mxu0 0
        %7884 = vmatprep.subr.bf16.mxu0 0
        %7885 = vmatpush1.bf16.msra.mxu0 0
        %7886 = vmatprep.subr.bf16.mxu0 0
        %7887 = vmatpush1.bf16.msra.mxu0 %v7804
        %7888 = vmatprep.subr.bf16.mxu0 0
        %7889 = vmatpush1.bf16.msra.mxu0 %v7801
        %7890 = vmatprep.subr.bf16.mxu0 0
        %7891 = vmatpush2.bf16.msra.mxu0 0
        %7892 = vmatprep.subr.bf16.mxu0 0
        %7893 = vmatpush2.bf16.msra.mxu0 0
        %7894 = vmatprep.subr.bf16.mxu0 0
        %7895 = vmatpush2.bf16.msra.mxu0 0
        %7896 = vmatprep.subr.bf16.mxu0 0
        %7897 = vmatpush2.bf16.msra.mxu0 0
        %7898 = vmatprep.subr.bf16.mxu0 0
        %7899 = vmatpush2.bf16.msra.mxu0 0
        %7900 = vmatprep.subr.bf16.mxu0 0
        %7901 = vmatpush2.bf16.msra.mxu0 0
        %7902 = vmatprep.subr.bf16.mxu0 0
        %7903 = vmatpush2.bf16.msra.mxu0 0
        %7904 = vmatprep.subr.bf16.mxu0 0
        %7905 = vmatpush2.bf16.msra.mxu0 0
        %7906 = vmatprep.mubr.bf16.mxu0 0
        %7907 = vmatmul.mubr.bf16.gmra.mxu0 %v7816
        %v7908 = vpop.f32.mrf.mxu0
        %v7909 = vadd.f32 0.0, %v7908
        %v7910 = vpop.f32.mrf.mxu0
        %v7911 = vpop.f32.mrf.mxu0
        %v7912 = vadd.f32 0.0, %v7911
        %v7913 = vpop.f32.mrf.mxu0
        %7914 = vmatprep.mubr.bf16.mxu0 0
        %7915 = vmatmul.mubr.bf16.gmra.mxu0 %v7819
        %v7916 = vpop.f32.mrf.mxu0
        %v7917 = vadd.f32 0.0, %v7916
        %v7918 = vpop.f32.mrf.mxu0
        %v7919 = vpop.f32.mrf.mxu0
        %v7920 = vadd.f32 0.0, %v7919
        %v7921 = vpop.f32.mrf.mxu0
        %7922 = vdwg.mxu0
        %v7923 = vadd.f32 %v7746, %v7856
        %v7924 = vadd.f32 %v7747, %v7858
        %v7925 = vadd.f32 %v7748, %v7909
        %v7926 = vadd.f32 %v7749, %v7860
        %v7927 = vadd.f32 %v7750, %v7862
        %v7928 = vadd.f32 %v7751, %v7912
        %v7929 = vadd.f32 %v7752, %v7866
        %v7930 = vadd.f32 %v7753, %v7868
        %v7931 = vadd.f32 %v7754, %v7917
        %v7932 = vadd.f32 %v7755, %v7870
        %v7933 = vadd.f32 %v7756, %v7872
        %v7934 = vadd.f32 %v7757, %v7920
        %7935 = vrot.lane.b32.xlu0 %v6744, 110
        %v7936 = vpop.permute.xlu0 %7935
        %7937 = vrot.lane.b32.xlu0 %v6747, 110
        %v7938 = vpop.permute.xlu0 %7937
        %7939 = vrot.lane.b32.xlu0 %v6750, 110
        %v7940 = vpop.permute.xlu0 %7939
        %7941 = vrot.lane.b32.xlu0 %v6753, 110
        %v7942 = vpop.permute.xlu0 %7941
        %7943 = vrot.lane.b32.xlu0 %v6745, 110
        %v7944 = vpop.permute.xlu0 %7943
        %7945 = vrot.lane.b32.xlu0 %v6748, 110
        %v7946 = vpop.permute.xlu0 %7945
        %7947 = vrot.lane.b32.xlu0 %v6751, 110
        %v7948 = vpop.permute.xlu0 %7947
        %7949 = vrot.lane.b32.xlu0 %v6754, 110
        %v7950 = vpop.permute.xlu0 %7949
        %7951 = vrot.lane.b32.xlu0 %v6746, 110
        %v7952 = vpop.permute.xlu0 %7951
        %7953 = vrot.lane.b32.xlu0 %v6749, 110
        %v7954 = vpop.permute.xlu0 %7953
        %7955 = vrot.lane.b32.xlu0 %v6752, 110
        %v7956 = vpop.permute.xlu0 %7955
        %7957 = vrot.lane.b32.xlu0 %v6755, 110
        %v7958 = vpop.permute.xlu0 %7957
        %v7959 = vsel %vm1445, %v7944, %v7952
        %v7960 = vsel %vm1445, %v7946, %v7954
        %v7961 = vsel %vm1445, %v7948, %v7956
        %v7962 = vsel %vm1445, %v7950, %v7958
        %v7963 = vsel %vm1445, %v7936, %v7944
        %v7964 = vsel %vm1445, %v7938, %v7946
        %v7965 = vsel %vm1445, %v7940, %v7948
        %v7966 = vsel %vm1445, %v7942, %v7950
        %v7967 = vsel %vm1445, %v7952, %v7936
        %v7968 = vsel %vm1445, %v7954, %v7938
        %v7969 = vsel %vm1445, %v7956, %v7940
        %v7970 = vsel %vm1445, %v7958, %v7942
        %s7971 = scalar_lea.vmem %s2, 688
        %v7972 = vld [vmem:[%s7971] sm:$0xf]
        %v7973 = vld [vmem:[%s7971 + $0x4] sm:$0xf]
        %v7974 = vld [vmem:[%s7971 + $0x8] sm:$0xf]
        %v7975 = vld [vmem:[%s7971 + $0xc] sm:$0xf]
        %v7976 = vpack.c.bf16 %v7964, %v7963
        %v7977 = vpack.c.bf16 %v7960, %v7959
        %v7978 = vpack.c.bf16 %v7968, %v7967
        %v7979 = vpack.c.bf16 %v7966, %v7965
        %v7980 = vpack.c.bf16 %v7962, %v7961
        %v7981 = vpack.c.bf16 %v7970, %v7969
        %v7986 = vunpack.c.l.b16 %v7972
        %v7987 = vunpack.c.l.b16 %v7973
        %v7988 = vunpack.c.l.b16 %v7974
        %v7989 = vunpack.c.l.b16 %v7975
        %v7990 = vpack.c.b16 %v7987, %v7986
        %v7991 = vpack.c.b16 %v7989, %v7988
        %v7993 = vsel %vm341, %v7990, 0
        %v7996 = vsel %vm341, %v7991, 0
        %7998 = vmatprep.subr.bf16.mxu0 0
        %7999 = vmatpush1.bf16.msra.mxu0 0
        %8000 = vmatprep.subr.bf16.mxu0 0
        %8001 = vmatpush1.bf16.msra.mxu0 0
        %8002 = vmatprep.subr.bf16.mxu0 0
        %8003 = vmatpush1.bf16.msra.mxu0 0
        %8004 = vmatprep.subr.bf16.mxu0 0
        %8005 = vmatpush1.bf16.msra.mxu0 0
        %8006 = vmatprep.subr.bf16.mxu0 0
        %8007 = vmatpush1.bf16.msra.mxu0 0
        %8008 = vmatprep.subr.bf16.mxu0 0
        %8009 = vmatpush1.bf16.msra.mxu0 0
        %8010 = vmatprep.subr.bf16.mxu0 %v7980
        %8011 = vmatpush1.bf16.msra.mxu0 %v7979
        %8012 = vmatprep.subr.bf16.mxu0 %v7977
        %8013 = vmatpush1.bf16.msra.mxu0 %v7976
        %8014 = vmatprep.subr.bf16.mxu0 0
        %8015 = vmatpush2.bf16.msra.mxu0 0
        %8016 = vmatprep.subr.bf16.mxu0 0
        %8017 = vmatpush2.bf16.msra.mxu0 0
        %8018 = vmatprep.subr.bf16.mxu0 0
        %8019 = vmatpush2.bf16.msra.mxu0 0
        %8020 = vmatprep.subr.bf16.mxu0 0
        %8021 = vmatpush2.bf16.msra.mxu0 0
        %8022 = vmatprep.subr.bf16.mxu0 0
        %8023 = vmatpush2.bf16.msra.mxu0 0
        %8024 = vmatprep.subr.bf16.mxu0 0
        %8025 = vmatpush2.bf16.msra.mxu0 0
        %8026 = vmatprep.subr.bf16.mxu0 0
        %8027 = vmatpush2.bf16.msra.mxu0 0
        %8028 = vmatprep.subr.bf16.mxu0 0
        %8029 = vmatpush2.bf16.msra.mxu0 0
        %8030 = vmatprep.mubr.bf16.mxu0 0
        %8031 = vmatmul.mubr.bf16.gmra.mxu0 %v7993
        %v8032 = vpop.f32.mrf.mxu0
        %v8033 = vadd.f32 0.0, %v8032
        %v8034 = vpop.f32.mrf.mxu0
        %v8035 = vadd.f32 0.0, %v8034
        %v8036 = vpop.f32.mrf.mxu0
        %v8037 = vadd.f32 0.0, %v8036
        %v8038 = vpop.f32.mrf.mxu0
        %v8039 = vadd.f32 0.0, %v8038
        %8040 = vmatprep.mubr.bf16.mxu0 0
        %8041 = vmatmul.mubr.bf16.gmra.mxu0 %v7996
        %v8042 = vpop.f32.mrf.mxu0
        %v8043 = vadd.f32 0.0, %v8042
        %v8044 = vpop.f32.mrf.mxu0
        %v8045 = vadd.f32 0.0, %v8044
        %v8046 = vpop.f32.mrf.mxu0
        %v8047 = vadd.f32 0.0, %v8046
        %v8048 = vpop.f32.mrf.mxu0
        %v8049 = vadd.f32 0.0, %v8048
        %8050 = vdwg.mxu0
        %8051 = vmatprep.subr.bf16.mxu0 0
        %8052 = vmatpush1.bf16.msra.mxu0 0
        %8053 = vmatprep.subr.bf16.mxu0 0
        %8054 = vmatpush1.bf16.msra.mxu0 0
        %8055 = vmatprep.subr.bf16.mxu0 0
        %8056 = vmatpush1.bf16.msra.mxu0 0
        %8057 = vmatprep.subr.bf16.mxu0 0
        %8058 = vmatpush1.bf16.msra.mxu0 0
        %8059 = vmatprep.subr.bf16.mxu0 0
        %8060 = vmatpush1.bf16.msra.mxu0 0
        %8061 = vmatprep.subr.bf16.mxu0 0
        %8062 = vmatpush1.bf16.msra.mxu0 0
        %8063 = vmatprep.subr.bf16.mxu0 0
        %8064 = vmatpush1.bf16.msra.mxu0 %v7981
        %8065 = vmatprep.subr.bf16.mxu0 0
        %8066 = vmatpush1.bf16.msra.mxu0 %v7978
        %8067 = vmatprep.subr.bf16.mxu0 0
        %8068 = vmatpush2.bf16.msra.mxu0 0
        %8069 = vmatprep.subr.bf16.mxu0 0
        %8070 = vmatpush2.bf16.msra.mxu0 0
        %8071 = vmatprep.subr.bf16.mxu0 0
        %8072 = vmatpush2.bf16.msra.mxu0 0
        %8073 = vmatprep.subr.bf16.mxu0 0
        %8074 = vmatpush2.bf16.msra.mxu0 0
        %8075 = vmatprep.subr.bf16.mxu0 0
        %8076 = vmatpush2.bf16.msra.mxu0 0
        %8077 = vmatprep.subr.bf16.mxu0 0
        %8078 = vmatpush2.bf16.msra.mxu0 0
        %8079 = vmatprep.subr.bf16.mxu0 0
        %8080 = vmatpush2.bf16.msra.mxu0 0
        %8081 = vmatprep.subr.bf16.mxu0 0
        %8082 = vmatpush2.bf16.msra.mxu0 0
        %8083 = vmatprep.mubr.bf16.mxu0 0
        %8084 = vmatmul.mubr.bf16.gmra.mxu0 %v7993
        %v8085 = vpop.f32.mrf.mxu0
        %v8086 = vadd.f32 0.0, %v8085
        %v8087 = vpop.f32.mrf.mxu0
        %v8088 = vpop.f32.mrf.mxu0
        %v8089 = vadd.f32 0.0, %v8088
        %v8090 = vpop.f32.mrf.mxu0
        %8091 = vmatprep.mubr.bf16.mxu0 0
        %8092 = vmatmul.mubr.bf16.gmra.mxu0 %v7996
        %v8093 = vpop.f32.mrf.mxu0
        %v8094 = vadd.f32 0.0, %v8093
        %v8095 = vpop.f32.mrf.mxu0
        %v8096 = vpop.f32.mrf.mxu0
        %v8097 = vadd.f32 0.0, %v8096
        %v8098 = vpop.f32.mrf.mxu0
        %8099 = vdwg.mxu0
        %v8100 = vadd.f32 %v7923, %v8033
        %v8101 = vadd.f32 %v7924, %v8035
        %v8102 = vadd.f32 %v7925, %v8086
        %v8103 = vadd.f32 %v7926, %v8037
        %v8104 = vadd.f32 %v7927, %v8039
        %v8105 = vadd.f32 %v7928, %v8089
        %v8106 = vadd.f32 %v7929, %v8043
        %v8107 = vadd.f32 %v7930, %v8045
        %v8108 = vadd.f32 %v7931, %v8094
        %v8109 = vadd.f32 %v7932, %v8047
        %v8110 = vadd.f32 %v7933, %v8049
        %v8111 = vadd.f32 %v7934, %v8097
        %8112 = vrot.lane.b32.xlu0 %v6744, 109
        %v8113 = vpop.permute.xlu0 %8112
        %8114 = vrot.lane.b32.xlu0 %v6747, 109
        %v8115 = vpop.permute.xlu0 %8114
        %8116 = vrot.lane.b32.xlu0 %v6750, 109
        %v8117 = vpop.permute.xlu0 %8116
        %8118 = vrot.lane.b32.xlu0 %v6753, 109
        %v8119 = vpop.permute.xlu0 %8118
        %8120 = vrot.lane.b32.xlu0 %v6745, 109
        %v8121 = vpop.permute.xlu0 %8120
        %8122 = vrot.lane.b32.xlu0 %v6748, 109
        %v8123 = vpop.permute.xlu0 %8122
        %8124 = vrot.lane.b32.xlu0 %v6751, 109
        %v8125 = vpop.permute.xlu0 %8124
        %8126 = vrot.lane.b32.xlu0 %v6754, 109
        %v8127 = vpop.permute.xlu0 %8126
        %8128 = vrot.lane.b32.xlu0 %v6746, 109
        %v8129 = vpop.permute.xlu0 %8128
        %8130 = vrot.lane.b32.xlu0 %v6749, 109
        %v8131 = vpop.permute.xlu0 %8130
        %8132 = vrot.lane.b32.xlu0 %v6752, 109
        %v8133 = vpop.permute.xlu0 %8132
        %8134 = vrot.lane.b32.xlu0 %v6755, 109
        %v8135 = vpop.permute.xlu0 %8134
        %v8136 = vsel %vm1623, %v8121, %v8129
        %v8137 = vsel %vm1623, %v8123, %v8131
        %v8138 = vsel %vm1623, %v8125, %v8133
        %v8139 = vsel %vm1623, %v8127, %v8135
        %v8140 = vsel %vm1623, %v8113, %v8121
        %v8141 = vsel %vm1623, %v8115, %v8123
        %v8142 = vsel %vm1623, %v8117, %v8125
        %v8143 = vsel %vm1623, %v8119, %v8127
        %v8144 = vsel %vm1623, %v8129, %v8113
        %v8145 = vsel %vm1623, %v8131, %v8115
        %v8146 = vsel %vm1623, %v8133, %v8117
        %v8147 = vsel %vm1623, %v8135, %v8119
        %s8148 = scalar_lea.vmem %s2, 704
        %v8149 = vld [vmem:[%s8148] sm:$0xf]
        %v8150 = vld [vmem:[%s8148 + $0x4] sm:$0xf]
        %v8151 = vld [vmem:[%s8148 + $0x8] sm:$0xf]
        %v8152 = vld [vmem:[%s8148 + $0xc] sm:$0xf]
        %v8153 = vpack.c.bf16 %v8141, %v8140
        %v8154 = vpack.c.bf16 %v8137, %v8136
        %v8155 = vpack.c.bf16 %v8145, %v8144
        %v8156 = vpack.c.bf16 %v8143, %v8142
        %v8157 = vpack.c.bf16 %v8139, %v8138
        %v8158 = vpack.c.bf16 %v8147, %v8146
        %v8163 = vunpack.c.l.b16 %v8149
        %v8164 = vunpack.c.l.b16 %v8150
        %v8165 = vunpack.c.l.b16 %v8151
        %v8166 = vunpack.c.l.b16 %v8152
        %v8167 = vpack.c.b16 %v8164, %v8163
        %v8168 = vpack.c.b16 %v8166, %v8165
        %v8170 = vsel %vm341, %v8167, 0
        %v8173 = vsel %vm341, %v8168, 0
        %8175 = vmatprep.subr.bf16.mxu0 0
        %8176 = vmatpush1.bf16.msra.mxu0 0
        %8177 = vmatprep.subr.bf16.mxu0 0
        %8178 = vmatpush1.bf16.msra.mxu0 0
        %8179 = vmatprep.subr.bf16.mxu0 0
        %8180 = vmatpush1.bf16.msra.mxu0 0
        %8181 = vmatprep.subr.bf16.mxu0 0
        %8182 = vmatpush1.bf16.msra.mxu0 0
        %8183 = vmatprep.subr.bf16.mxu0 0
        %8184 = vmatpush1.bf16.msra.mxu0 0
        %8185 = vmatprep.subr.bf16.mxu0 0
        %8186 = vmatpush1.bf16.msra.mxu0 0
        %8187 = vmatprep.subr.bf16.mxu0 %v8157
        %8188 = vmatpush1.bf16.msra.mxu0 %v8156
        %8189 = vmatprep.subr.bf16.mxu0 %v8154
        %8190 = vmatpush1.bf16.msra.mxu0 %v8153
        %8191 = vmatprep.subr.bf16.mxu0 0
        %8192 = vmatpush2.bf16.msra.mxu0 0
        %8193 = vmatprep.subr.bf16.mxu0 0
        %8194 = vmatpush2.bf16.msra.mxu0 0
        %8195 = vmatprep.subr.bf16.mxu0 0
        %8196 = vmatpush2.bf16.msra.mxu0 0
        %8197 = vmatprep.subr.bf16.mxu0 0
        %8198 = vmatpush2.bf16.msra.mxu0 0
        %8199 = vmatprep.subr.bf16.mxu0 0
        %8200 = vmatpush2.bf16.msra.mxu0 0
        %8201 = vmatprep.subr.bf16.mxu0 0
        %8202 = vmatpush2.bf16.msra.mxu0 0
        %8203 = vmatprep.subr.bf16.mxu0 0
        %8204 = vmatpush2.bf16.msra.mxu0 0
        %8205 = vmatprep.subr.bf16.mxu0 0
        %8206 = vmatpush2.bf16.msra.mxu0 0
        %8207 = vmatprep.mubr.bf16.mxu0 0
        %8208 = vmatmul.mubr.bf16.gmra.mxu0 %v8170
        %v8209 = vpop.f32.mrf.mxu0
        %v8210 = vadd.f32 0.0, %v8209
        %v8211 = vpop.f32.mrf.mxu0
        %v8212 = vadd.f32 0.0, %v8211
        %v8213 = vpop.f32.mrf.mxu0
        %v8214 = vadd.f32 0.0, %v8213
        %v8215 = vpop.f32.mrf.mxu0
        %v8216 = vadd.f32 0.0, %v8215
        %8217 = vmatprep.mubr.bf16.mxu0 0
        %8218 = vmatmul.mubr.bf16.gmra.mxu0 %v8173
        %v8219 = vpop.f32.mrf.mxu0
        %v8220 = vadd.f32 0.0, %v8219
        %v8221 = vpop.f32.mrf.mxu0
        %v8222 = vadd.f32 0.0, %v8221
        %v8223 = vpop.f32.mrf.mxu0
        %v8224 = vadd.f32 0.0, %v8223
        %v8225 = vpop.f32.mrf.mxu0
        %v8226 = vadd.f32 0.0, %v8225
        %8227 = vdwg.mxu0
        %8228 = vmatprep.subr.bf16.mxu0 0
        %8229 = vmatpush1.bf16.msra.mxu0 0
        %8230 = vmatprep.subr.bf16.mxu0 0
        %8231 = vmatpush1.bf16.msra.mxu0 0
        %8232 = vmatprep.subr.bf16.mxu0 0
        %8233 = vmatpush1.bf16.msra.mxu0 0
        %8234 = vmatprep.subr.bf16.mxu0 0
        %8235 = vmatpush1.bf16.msra.mxu0 0
        %8236 = vmatprep.subr.bf16.mxu0 0
        %8237 = vmatpush1.bf16.msra.mxu0 0
        %8238 = vmatprep.subr.bf16.mxu0 0
        %8239 = vmatpush1.bf16.msra.mxu0 0
        %8240 = vmatprep.subr.bf16.mxu0 0
        %8241 = vmatpush1.bf16.msra.mxu0 %v8158
        %8242 = vmatprep.subr.bf16.mxu0 0
        %8243 = vmatpush1.bf16.msra.mxu0 %v8155
        %8244 = vmatprep.subr.bf16.mxu0 0
        %8245 = vmatpush2.bf16.msra.mxu0 0
        %8246 = vmatprep.subr.bf16.mxu0 0
        %8247 = vmatpush2.bf16.msra.mxu0 0
        %8248 = vmatprep.subr.bf16.mxu0 0
        %8249 = vmatpush2.bf16.msra.mxu0 0
        %8250 = vmatprep.subr.bf16.mxu0 0
        %8251 = vmatpush2.bf16.msra.mxu0 0
        %8252 = vmatprep.subr.bf16.mxu0 0
        %8253 = vmatpush2.bf16.msra.mxu0 0
        %8254 = vmatprep.subr.bf16.mxu0 0
        %8255 = vmatpush2.bf16.msra.mxu0 0
        %8256 = vmatprep.subr.bf16.mxu0 0
        %8257 = vmatpush2.bf16.msra.mxu0 0
        %8258 = vmatprep.subr.bf16.mxu0 0
        %8259 = vmatpush2.bf16.msra.mxu0 0
        %8260 = vmatprep.mubr.bf16.mxu0 0
        %8261 = vmatmul.mubr.bf16.gmra.mxu0 %v8170
        %v8262 = vpop.f32.mrf.mxu0
        %v8263 = vadd.f32 0.0, %v8262
        %v8264 = vpop.f32.mrf.mxu0
        %v8265 = vpop.f32.mrf.mxu0
        %v8266 = vadd.f32 0.0, %v8265
        %v8267 = vpop.f32.mrf.mxu0
        %8268 = vmatprep.mubr.bf16.mxu0 0
        %8269 = vmatmul.mubr.bf16.gmra.mxu0 %v8173
        %v8270 = vpop.f32.mrf.mxu0
        %v8271 = vadd.f32 0.0, %v8270
        %v8272 = vpop.f32.mrf.mxu0
        %v8273 = vpop.f32.mrf.mxu0
        %v8274 = vadd.f32 0.0, %v8273
        %v8275 = vpop.f32.mrf.mxu0
        %8276 = vdwg.mxu0
        %v8277 = vadd.f32 %v8100, %v8210
        %v8278 = vadd.f32 %v8101, %v8212
        %v8279 = vadd.f32 %v8102, %v8263
        %v8280 = vadd.f32 %v8103, %v8214
        %v8281 = vadd.f32 %v8104, %v8216
        %v8282 = vadd.f32 %v8105, %v8266
        %v8283 = vadd.f32 %v8106, %v8220
        %v8284 = vadd.f32 %v8107, %v8222
        %v8285 = vadd.f32 %v8108, %v8271
        %v8286 = vadd.f32 %v8109, %v8224
        %v8287 = vadd.f32 %v8110, %v8226
        %v8288 = vadd.f32 %v8111, %v8274
        %s8289 = scalar_lea.vmem %s3, 128
        %v8290 = vld [vmem:[%s8289] sm:$0xff]
        %v8291 = vld [vmem:[%s8289 + $0x8] sm:$0xff]
        %v8292 = vld [vmem:[%s8289 + $0x10] sm:$0xff]
        %v8293 = vld [vmem:[%s8289 + $0x18] sm:$0xff]
        %8295 = vset.pattern.permute.xlu0 0
        %8296 = vperm.xlu0 %8295, %v8290
        %v8297 = vpop.permute.xlu0 %8296
        %8300 = vset.pattern.permute.xlu0 0
        %8301 = vperm.xlu0 %8300, %v8291
        %v8302 = vpop.permute.xlu0 %8301
        %8305 = vset.pattern.permute.xlu0 0
        %8306 = vperm.xlu0 %8305, %v8292
        %v8307 = vpop.permute.xlu0 %8306
        %8310 = vset.pattern.permute.xlu0 0
        %8311 = vperm.xlu0 %8310, %v8293
        %v8312 = vpop.permute.xlu0 %8311
        %v8314 = vadd.f32 %v8277, %v8297
        %v8315 = vadd.f32 %v8278, %v8297
        %v8316 = vadd.f32 %v8279, %v8297
        %v8317 = vadd.f32 %v8280, %v8302
        %v8318 = vadd.f32 %v8281, %v8302
        %v8319 = vadd.f32 %v8282, %v8302
        %v8320 = vadd.f32 %v8283, %v8307
        %v8321 = vadd.f32 %v8284, %v8307
        %v8322 = vadd.f32 %v8285, %v8307
        %v8323 = vadd.f32 %v8286, %v8312
        %v8324 = vadd.f32 %v8287, %v8312
        %v8325 = vadd.f32 %v8288, %v8312
        %v8326 = vmul.f32 %v8314, %v1829
        %v8327 = vmul.f32 %v8315, %v1833
        %v8328 = vmul.f32 %v8316, %v1837
        %v8329 = vmul.f32 %v8317, %v1829
        %v8330 = vmul.f32 %v8318, %v1833
        %v8331 = vmul.f32 %v8319, %v1837
        %v8332 = vmul.f32 %v8320, %v1829
        %v8333 = vmul.f32 %v8321, %v1833
        %v8334 = vmul.f32 %v8322, %v1837
        %v8335 = vmul.f32 %v8323, %v1829
        %v8336 = vmul.f32 %v8324, %v1833
        %v8337 = vmul.f32 %v8325, %v1837
        %v8338 = vld [vmem:[#allocation2] sm:$0xff]
        %v8339 = vld [vmem:[#allocation2 + $0x8] sm:$0xff]
        %v8340 = vld [vmem:[#allocation2 + $0x10] sm:$0xff]
        %v8341 = vld [vmem:[#allocation2 + $0x18] sm:$0xff]
        %v8342 = vld [vmem:[#allocation2 + $0x20] sm:$0xff]
        %v8343 = vld [vmem:[#allocation2 + $0x28] sm:$0xff]
        %v8344 = vld [vmem:[#allocation2 + $0x30] sm:$0xff]
        %v8345 = vld [vmem:[#allocation2 + $0x38] sm:$0xff]
        %v8346 = vld [vmem:[#allocation2 + $0x40] sm:$0xff]
        %v8347 = vld [vmem:[#allocation2 + $0x48] sm:$0xff]
        %v8348 = vld [vmem:[#allocation2 + $0x50] sm:$0xff]
        %v8349 = vld [vmem:[#allocation2 + $0x58] sm:$0xff]
        %v8350 = vadd.f32 %v8326, %v8338
        %v8351 = vadd.f32 %v8327, %v8339
        %v8352 = vadd.f32 %v8328, %v8340
        %v8353 = vadd.f32 %v8329, %v8341
        %v8354 = vadd.f32 %v8330, %v8342
        %v8355 = vadd.f32 %v8331, %v8343
        %v8356 = vadd.f32 %v8332, %v8344
        %v8357 = vadd.f32 %v8333, %v8345
        %v8358 = vadd.f32 %v8334, %v8346
        %v8359 = vadd.f32 %v8335, %v8347
        %v8360 = vadd.f32 %v8336, %v8348
        %v8361 = vadd.f32 %v8337, %v8349
        %8362 = vst [vmem:[#allocation2] sm:$0xff] %v8350
        %8363 = vst [vmem:[#allocation2 + $0x8] sm:$0xff] %v8351
        %8364 = vst [vmem:[#allocation2 + $0x10] sm:$0xff] %v8352
        %8365 = vst [vmem:[#allocation2 + $0x18] sm:$0xff] %v8353
        %8366 = vst [vmem:[#allocation2 + $0x20] sm:$0xff] %v8354
        %8367 = vst [vmem:[#allocation2 + $0x28] sm:$0xff] %v8355
        %8368 = vst [vmem:[#allocation2 + $0x30] sm:$0xff] %v8356
        %8369 = vst [vmem:[#allocation2 + $0x38] sm:$0xff] %v8357
        %8370 = vst [vmem:[#allocation2 + $0x40] sm:$0xff] %v8358
        %8371 = vst [vmem:[#allocation2 + $0x48] sm:$0xff] %v8359
        %8372 = vst [vmem:[#allocation2 + $0x50] sm:$0xff] %v8360
        %8373 = vst [vmem:[#allocation2 + $0x58] sm:$0xff] %v8361
        %v8374 = vld [vmem:[#allocation2] sm:$0xff]
        %v8375 = vld [vmem:[#allocation2 + $0x8] sm:$0xff]
        %v8376 = vld [vmem:[#allocation2 + $0x10] sm:$0xff]
        %v8377 = vld [vmem:[#allocation2 + $0x18] sm:$0xff]
        %v8378 = vld [vmem:[#allocation2 + $0x20] sm:$0xff]
        %v8379 = vld [vmem:[#allocation2 + $0x28] sm:$0xff]
        %v8380 = vld [vmem:[#allocation2 + $0x30] sm:$0xff]
        %v8381 = vld [vmem:[#allocation2 + $0x38] sm:$0xff]
        %v8382 = vld [vmem:[#allocation2 + $0x40] sm:$0xff]
        %v8383 = vld [vmem:[#allocation2 + $0x48] sm:$0xff]
        %v8384 = vld [vmem:[#allocation2 + $0x50] sm:$0xff]
        %v8385 = vld [vmem:[#allocation2 + $0x58] sm:$0xff]
        %8386 = vrot.lane.b32.xlu0 %v8374, 19
        %v8387 = vpop.permute.xlu0 %8386
        %8388 = vrot.lane.b32.xlu0 %v8377, 19
        %v8389 = vpop.permute.xlu0 %8388
        %8390 = vrot.lane.b32.xlu0 %v8380, 19
        %v8391 = vpop.permute.xlu0 %8390
        %8392 = vrot.lane.b32.xlu0 %v8383, 19
        %v8393 = vpop.permute.xlu0 %8392
        %8394 = vrot.lane.b32.xlu0 %v8375, 19
        %v8395 = vpop.permute.xlu0 %8394
        %8396 = vrot.lane.b32.xlu0 %v8378, 19
        %v8397 = vpop.permute.xlu0 %8396
        %8398 = vrot.lane.b32.xlu0 %v8381, 19
        %v8399 = vpop.permute.xlu0 %8398
        %8400 = vrot.lane.b32.xlu0 %v8384, 19
        %v8401 = vpop.permute.xlu0 %8400
        %8402 = vrot.lane.b32.xlu0 %v8376, 19
        %v8403 = vpop.permute.xlu0 %8402
        %8404 = vrot.lane.b32.xlu0 %v8379, 19
        %v8405 = vpop.permute.xlu0 %8404
        %8406 = vrot.lane.b32.xlu0 %v8382, 19
        %v8407 = vpop.permute.xlu0 %8406
        %8408 = vrot.lane.b32.xlu0 %v8385, 19
        %v8409 = vpop.permute.xlu0 %8408
        %v8410 = vsel %vm260, %v8395, %v8403
        %v8411 = vsel %vm260, %v8397, %v8405
        %v8412 = vsel %vm260, %v8399, %v8407
        %v8413 = vsel %vm260, %v8401, %v8409
        %v8414 = vsel %vm260, %v8387, %v8395
        %v8415 = vsel %vm260, %v8389, %v8397
        %v8416 = vsel %vm260, %v8391, %v8399
        %v8417 = vsel %vm260, %v8393, %v8401
        %v8418 = vsel %vm260, %v8403, %v8387
        %v8419 = vsel %vm260, %v8405, %v8389
        %v8420 = vsel %vm260, %v8407, %v8391
        %v8421 = vsel %vm260, %v8409, %v8393
        %s8422 = scalar_lea.vmem %s2, 720
        %v8423 = vld [vmem:[%s8422] sm:$0xf]
        %v8424 = vld [vmem:[%s8422 + $0x4] sm:$0xf]
        %v8425 = vld [vmem:[%s8422 + $0x8] sm:$0xf]
        %v8426 = vld [vmem:[%s8422 + $0xc] sm:$0xf]
        %v8427 = vpack.c.bf16 %v8419, %v8418
        %v8428 = vpack.c.bf16 %v8415, %v8414
        %v8429 = vpack.c.bf16 %v8411, %v8410
        %v8430 = vpack.c.bf16 %v8421, %v8420
        %v8431 = vpack.c.bf16 %v8417, %v8416
        %v8432 = vpack.c.bf16 %v8413, %v8412
        %8433 = vrot.lane.b32.xlu0 %v8374, 18
        %v8434 = vpop.permute.xlu0 %8433
        %8435 = vrot.lane.b32.xlu0 %v8377, 18
        %v8436 = vpop.permute.xlu0 %8435
        %8437 = vrot.lane.b32.xlu0 %v8380, 18
        %v8438 = vpop.permute.xlu0 %8437
        %8439 = vrot.lane.b32.xlu0 %v8383, 18
        %v8440 = vpop.permute.xlu0 %8439
        %8441 = vrot.lane.b32.xlu0 %v8375, 18
        %v8442 = vpop.permute.xlu0 %8441
        %8443 = vrot.lane.b32.xlu0 %v8378, 18
        %v8444 = vpop.permute.xlu0 %8443
        %8445 = vrot.lane.b32.xlu0 %v8381, 18
        %v8446 = vpop.permute.xlu0 %8445
        %8447 = vrot.lane.b32.xlu0 %v8384, 18
        %v8448 = vpop.permute.xlu0 %8447
        %8449 = vrot.lane.b32.xlu0 %v8376, 18
        %v8450 = vpop.permute.xlu0 %8449
        %8451 = vrot.lane.b32.xlu0 %v8379, 18
        %v8452 = vpop.permute.xlu0 %8451
        %8453 = vrot.lane.b32.xlu0 %v8382, 18
        %v8454 = vpop.permute.xlu0 %8453
        %8455 = vrot.lane.b32.xlu0 %v8385, 18
        %v8456 = vpop.permute.xlu0 %8455
        %v8457 = vsel %vm307, %v8442, %v8450
        %v8458 = vsel %vm307, %v8444, %v8452
        %v8459 = vsel %vm307, %v8446, %v8454
        %v8460 = vsel %vm307, %v8448, %v8456
        %v8461 = vsel %vm307, %v8434, %v8442
        %v8462 = vsel %vm307, %v8436, %v8444
        %v8463 = vsel %vm307, %v8438, %v8446
        %v8464 = vsel %vm307, %v8440, %v8448
        %v8465 = vsel %vm307, %v8450, %v8434
        %v8466 = vsel %vm307, %v8452, %v8436
        %v8467 = vsel %vm307, %v8454, %v8438
        %v8468 = vsel %vm307, %v8456, %v8440
        %s8469 = scalar_lea.vmem %s2, 736
        %v8470 = vld [vmem:[%s8469] sm:$0xf]
        %v8471 = vld [vmem:[%s8469 + $0x4] sm:$0xf]
        %v8472 = vld [vmem:[%s8469 + $0x8] sm:$0xf]
        %v8473 = vld [vmem:[%s8469 + $0xc] sm:$0xf]
        %v8474 = vpack.c.bf16 %v8466, %v8465
        %v8475 = vpack.c.bf16 %v8462, %v8461
        %v8476 = vpack.c.bf16 %v8458, %v8457
        %v8477 = vpack.c.bf16 %v8468, %v8467
        %v8478 = vpack.c.bf16 %v8464, %v8463
        %v8479 = vpack.c.bf16 %v8460, %v8459
        %v8484 = vunpack.c.l.b16 %v8470
        %v8485 = vunpack.c.l.b16 %v8471
        %v8486 = vunpack.c.l.b16 %v8472
        %v8487 = vunpack.c.l.b16 %v8473
        %v8488 = vpack.c.b16 %v8485, %v8484
        %v8489 = vpack.c.b16 %v8487, %v8486
        %v8491 = vsel %vm341, %v8488, 0
        %v8494 = vsel %vm341, %v8489, 0
        %8496 = vmatprep.subr.bf16.mxu0 0
        %8497 = vmatpush1.bf16.msra.mxu0 0
        %8498 = vmatprep.subr.bf16.mxu0 0
        %8499 = vmatpush1.bf16.msra.mxu0 0
        %8500 = vmatprep.subr.bf16.mxu0 0
        %8501 = vmatpush1.bf16.msra.mxu0 0
        %8502 = vmatprep.subr.bf16.mxu0 0
        %8503 = vmatpush1.bf16.msra.mxu0 0
        %8504 = vmatprep.subr.bf16.mxu0 0
        %8505 = vmatpush1.bf16.msra.mxu0 0
        %8506 = vmatprep.subr.bf16.mxu0 0
        %8507 = vmatpush1.bf16.msra.mxu0 0
        %8508 = vmatprep.subr.bf16.mxu0 %v8478
        %8509 = vmatpush1.bf16.msra.mxu0 %v8477
        %8510 = vmatprep.subr.bf16.mxu0 %v8475
        %8511 = vmatpush1.bf16.msra.mxu0 %v8474
        %8512 = vmatprep.subr.bf16.mxu0 0
        %8513 = vmatpush2.bf16.msra.mxu0 0
        %8514 = vmatprep.subr.bf16.mxu0 0
        %8515 = vmatpush2.bf16.msra.mxu0 0
        %8516 = vmatprep.subr.bf16.mxu0 0
        %8517 = vmatpush2.bf16.msra.mxu0 0
        %8518 = vmatprep.subr.bf16.mxu0 0
        %8519 = vmatpush2.bf16.msra.mxu0 0
        %8520 = vmatprep.subr.bf16.mxu0 0
        %8521 = vmatpush2.bf16.msra.mxu0 0
        %8522 = vmatprep.subr.bf16.mxu0 0
        %8523 = vmatpush2.bf16.msra.mxu0 0
        %8524 = vmatprep.subr.bf16.mxu0 0
        %8525 = vmatpush2.bf16.msra.mxu0 0
        %8526 = vmatprep.subr.bf16.mxu0 0
        %8527 = vmatpush2.bf16.msra.mxu0 0
        %8528 = vmatprep.mubr.bf16.mxu0 0
        %8529 = vmatmul.mubr.bf16.gmra.mxu0 %v8491
        %v8530 = vpop.f32.mrf.mxu0
        %v8531 = vadd.f32 0.0, %v8530
        %v8532 = vpop.f32.mrf.mxu0
        %v8533 = vadd.f32 0.0, %v8532
        %v8534 = vpop.f32.mrf.mxu0
        %v8535 = vadd.f32 0.0, %v8534
        %v8536 = vpop.f32.mrf.mxu0
        %v8537 = vadd.f32 0.0, %v8536
        %8538 = vmatprep.mubr.bf16.mxu0 0
        %8539 = vmatmul.mubr.bf16.gmra.mxu0 %v8494
        %v8540 = vpop.f32.mrf.mxu0
        %v8541 = vadd.f32 0.0, %v8540
        %v8542 = vpop.f32.mrf.mxu0
        %v8543 = vadd.f32 0.0, %v8542
        %v8544 = vpop.f32.mrf.mxu0
        %v8545 = vadd.f32 0.0, %v8544
        %v8546 = vpop.f32.mrf.mxu0
        %v8547 = vadd.f32 0.0, %v8546
        %8548 = vdwg.mxu0
        %8549 = vmatprep.subr.bf16.mxu0 0
        %8550 = vmatpush1.bf16.msra.mxu0 0
        %8551 = vmatprep.subr.bf16.mxu0 0
        %8552 = vmatpush1.bf16.msra.mxu0 0
        %8553 = vmatprep.subr.bf16.mxu0 0
        %8554 = vmatpush1.bf16.msra.mxu0 0
        %8555 = vmatprep.subr.bf16.mxu0 0
        %8556 = vmatpush1.bf16.msra.mxu0 0
        %8557 = vmatprep.subr.bf16.mxu0 0
        %8558 = vmatpush1.bf16.msra.mxu0 0
        %8559 = vmatprep.subr.bf16.mxu0 0
        %8560 = vmatpush1.bf16.msra.mxu0 0
        %8561 = vmatprep.subr.bf16.mxu0 0
        %8562 = vmatpush1.bf16.msra.mxu0 %v8479
        %8563 = vmatprep.subr.bf16.mxu0 0
        %8564 = vmatpush1.bf16.msra.mxu0 %v8476
        %8565 = vmatprep.subr.bf16.mxu0 0
        %8566 = vmatpush2.bf16.msra.mxu0 0
        %8567 = vmatprep.subr.bf16.mxu0 0
        %8568 = vmatpush2.bf16.msra.mxu0 0
        %8569 = vmatprep.subr.bf16.mxu0 0
        %8570 = vmatpush2.bf16.msra.mxu0 0
        %8571 = vmatprep.subr.bf16.mxu0 0
        %8572 = vmatpush2.bf16.msra.mxu0 0
        %8573 = vmatprep.subr.bf16.mxu0 0
        %8574 = vmatpush2.bf16.msra.mxu0 0
        %8575 = vmatprep.subr.bf16.mxu0 0
        %8576 = vmatpush2.bf16.msra.mxu0 0
        %8577 = vmatprep.subr.bf16.mxu0 0
        %8578 = vmatpush2.bf16.msra.mxu0 0
        %8579 = vmatprep.subr.bf16.mxu0 0
        %8580 = vmatpush2.bf16.msra.mxu0 0
        %8581 = vmatprep.mubr.bf16.mxu0 0
        %8582 = vmatmul.mubr.bf16.gmra.mxu0 %v8491
        %v8583 = vpop.f32.mrf.mxu0
        %v8584 = vadd.f32 0.0, %v8583
        %v8585 = vpop.f32.mrf.mxu0
        %v8586 = vpop.f32.mrf.mxu0
        %v8587 = vadd.f32 0.0, %v8586
        %v8588 = vpop.f32.mrf.mxu0
        %8589 = vmatprep.mubr.bf16.mxu0 0
        %8590 = vmatmul.mubr.bf16.gmra.mxu0 %v8494
        %v8591 = vpop.f32.mrf.mxu0
        %v8592 = vadd.f32 0.0, %v8591
        %v8593 = vpop.f32.mrf.mxu0
        %v8594 = vpop.f32.mrf.mxu0
        %v8595 = vadd.f32 0.0, %v8594
        %v8596 = vpop.f32.mrf.mxu0
        %8597 = vdwg.mxu0
        %v8602 = vunpack.c.l.b16 %v8423
        %v8603 = vunpack.c.l.b16 %v8424
        %v8604 = vunpack.c.l.b16 %v8425
        %v8605 = vunpack.c.l.b16 %v8426
        %v8606 = vpack.c.b16 %v8603, %v8602
        %v8607 = vpack.c.b16 %v8605, %v8604
        %v8609 = vsel %vm341, %v8606, 0
        %v8612 = vsel %vm341, %v8607, 0
        %8614 = vmatprep.subr.bf16.mxu0 0
        %8615 = vmatpush1.bf16.msra.mxu0 0
        %8616 = vmatprep.subr.bf16.mxu0 0
        %8617 = vmatpush1.bf16.msra.mxu0 0
        %8618 = vmatprep.subr.bf16.mxu0 0
        %8619 = vmatpush1.bf16.msra.mxu0 0
        %8620 = vmatprep.subr.bf16.mxu0 0
        %8621 = vmatpush1.bf16.msra.mxu0 0
        %8622 = vmatprep.subr.bf16.mxu0 0
        %8623 = vmatpush1.bf16.msra.mxu0 0
        %8624 = vmatprep.subr.bf16.mxu0 0
        %8625 = vmatpush1.bf16.msra.mxu0 0
        %8626 = vmatprep.subr.bf16.mxu0 %v8431
        %8627 = vmatpush1.bf16.msra.mxu0 %v8430
        %8628 = vmatprep.subr.bf16.mxu0 %v8428
        %8629 = vmatpush1.bf16.msra.mxu0 %v8427
        %8630 = vmatprep.subr.bf16.mxu0 0
        %8631 = vmatpush2.bf16.msra.mxu0 0
        %8632 = vmatprep.subr.bf16.mxu0 0
        %8633 = vmatpush2.bf16.msra.mxu0 0
        %8634 = vmatprep.subr.bf16.mxu0 0
        %8635 = vmatpush2.bf16.msra.mxu0 0
        %8636 = vmatprep.subr.bf16.mxu0 0
        %8637 = vmatpush2.bf16.msra.mxu0 0
        %8638 = vmatprep.subr.bf16.mxu0 0
        %8639 = vmatpush2.bf16.msra.mxu0 0
        %8640 = vmatprep.subr.bf16.mxu0 0
        %8641 = vmatpush2.bf16.msra.mxu0 0
        %8642 = vmatprep.subr.bf16.mxu0 0
        %8643 = vmatpush2.bf16.msra.mxu0 0
        %8644 = vmatprep.subr.bf16.mxu0 0
        %8645 = vmatpush2.bf16.msra.mxu0 0
        %8646 = vmatprep.mubr.bf16.mxu0 0
        %8647 = vmatmul.mubr.bf16.gmra.mxu0 %v8609
        %v8648 = vpop.f32.mrf.mxu0
        %v8649 = vadd.f32 %v8531, %v8648
        %v8650 = vpop.f32.mrf.mxu0
        %v8651 = vadd.f32 %v8533, %v8650
        %v8652 = vpop.f32.mrf.mxu0
        %v8653 = vadd.f32 %v8535, %v8652
        %v8654 = vpop.f32.mrf.mxu0
        %v8655 = vadd.f32 %v8537, %v8654
        %8656 = vmatprep.mubr.bf16.mxu0 0
        %8657 = vmatmul.mubr.bf16.gmra.mxu0 %v8612
        %v8658 = vpop.f32.mrf.mxu0
        %v8659 = vadd.f32 %v8541, %v8658
        %v8660 = vpop.f32.mrf.mxu0
        %v8661 = vadd.f32 %v8543, %v8660
        %v8662 = vpop.f32.mrf.mxu0
        %v8663 = vadd.f32 %v8545, %v8662
        %v8664 = vpop.f32.mrf.mxu0
        %v8665 = vadd.f32 %v8547, %v8664
        %8666 = vdwg.mxu0
        %8667 = vmatprep.subr.bf16.mxu0 0
        %8668 = vmatpush1.bf16.msra.mxu0 0
        %8669 = vmatprep.subr.bf16.mxu0 0
        %8670 = vmatpush1.bf16.msra.mxu0 0
        %8671 = vmatprep.subr.bf16.mxu0 0
        %8672 = vmatpush1.bf16.msra.mxu0 0
        %8673 = vmatprep.subr.bf16.mxu0 0
        %8674 = vmatpush1.bf16.msra.mxu0 0
        %8675 = vmatprep.subr.bf16.mxu0 0
        %8676 = vmatpush1.bf16.msra.mxu0 0
        %8677 = vmatprep.subr.bf16.mxu0 0
        %8678 = vmatpush1.bf16.msra.mxu0 0
        %8679 = vmatprep.subr.bf16.mxu0 0
        %8680 = vmatpush1.bf16.msra.mxu0 %v8432
        %8681 = vmatprep.subr.bf16.mxu0 0
        %8682 = vmatpush1.bf16.msra.mxu0 %v8429
        %8683 = vmatprep.subr.bf16.mxu0 0
        %8684 = vmatpush2.bf16.msra.mxu0 0
        %8685 = vmatprep.subr.bf16.mxu0 0
        %8686 = vmatpush2.bf16.msra.mxu0 0
        %8687 = vmatprep.subr.bf16.mxu0 0
        %8688 = vmatpush2.bf16.msra.mxu0 0
        %8689 = vmatprep.subr.bf16.mxu0 0
        %8690 = vmatpush2.bf16.msra.mxu0 0
        %8691 = vmatprep.subr.bf16.mxu0 0
        %8692 = vmatpush2.bf16.msra.mxu0 0
        %8693 = vmatprep.subr.bf16.mxu0 0
        %8694 = vmatpush2.bf16.msra.mxu0 0
        %8695 = vmatprep.subr.bf16.mxu0 0
        %8696 = vmatpush2.bf16.msra.mxu0 0
        %8697 = vmatprep.subr.bf16.mxu0 0
        %8698 = vmatpush2.bf16.msra.mxu0 0
        %8699 = vmatprep.mubr.bf16.mxu0 0
        %8700 = vmatmul.mubr.bf16.gmra.mxu0 %v8609
        %v8701 = vpop.f32.mrf.mxu0
        %v8702 = vadd.f32 %v8584, %v8701
        %v8703 = vpop.f32.mrf.mxu0
        %v8704 = vpop.f32.mrf.mxu0
        %v8705 = vadd.f32 %v8587, %v8704
        %v8706 = vpop.f32.mrf.mxu0
        %8707 = vmatprep.mubr.bf16.mxu0 0
        %8708 = vmatmul.mubr.bf16.gmra.mxu0 %v8612
        %v8709 = vpop.f32.mrf.mxu0
        %v8710 = vadd.f32 %v8592, %v8709
        %v8711 = vpop.f32.mrf.mxu0
        %v8712 = vpop.f32.mrf.mxu0
        %v8713 = vadd.f32 %v8595, %v8712
        %v8714 = vpop.f32.mrf.mxu0
        %8715 = vdwg.mxu0
        %8716 = vrot.lane.b32.xlu0 %v8374, 17
        %v8717 = vpop.permute.xlu0 %8716
        %8718 = vrot.lane.b32.xlu0 %v8377, 17
        %v8719 = vpop.permute.xlu0 %8718
        %8720 = vrot.lane.b32.xlu0 %v8380, 17
        %v8721 = vpop.permute.xlu0 %8720
        %8722 = vrot.lane.b32.xlu0 %v8383, 17
        %v8723 = vpop.permute.xlu0 %8722
        %8724 = vrot.lane.b32.xlu0 %v8375, 17
        %v8725 = vpop.permute.xlu0 %8724
        %8726 = vrot.lane.b32.xlu0 %v8378, 17
        %v8727 = vpop.permute.xlu0 %8726
        %8728 = vrot.lane.b32.xlu0 %v8381, 17
        %v8729 = vpop.permute.xlu0 %8728
        %8730 = vrot.lane.b32.xlu0 %v8384, 17
        %v8731 = vpop.permute.xlu0 %8730
        %8732 = vrot.lane.b32.xlu0 %v8376, 17
        %v8733 = vpop.permute.xlu0 %8732
        %8734 = vrot.lane.b32.xlu0 %v8379, 17
        %v8735 = vpop.permute.xlu0 %8734
        %8736 = vrot.lane.b32.xlu0 %v8382, 17
        %v8737 = vpop.permute.xlu0 %8736
        %8738 = vrot.lane.b32.xlu0 %v8385, 17
        %v8739 = vpop.permute.xlu0 %8738
        %v8740 = vsel %vm592, %v8725, %v8733
        %v8741 = vsel %vm592, %v8727, %v8735
        %v8742 = vsel %vm592, %v8729, %v8737
        %v8743 = vsel %vm592, %v8731, %v8739
        %v8744 = vsel %vm592, %v8717, %v8725
        %v8745 = vsel %vm592, %v8719, %v8727
        %v8746 = vsel %vm592, %v8721, %v8729
        %v8747 = vsel %vm592, %v8723, %v8731
        %v8748 = vsel %vm592, %v8733, %v8717
        %v8749 = vsel %vm592, %v8735, %v8719
        %v8750 = vsel %vm592, %v8737, %v8721
        %v8751 = vsel %vm592, %v8739, %v8723
        %s8752 = scalar_lea.vmem %s2, 752
        %v8753 = vld [vmem:[%s8752] sm:$0xf]
        %v8754 = vld [vmem:[%s8752 + $0x4] sm:$0xf]
        %v8755 = vld [vmem:[%s8752 + $0x8] sm:$0xf]
        %v8756 = vld [vmem:[%s8752 + $0xc] sm:$0xf]
        %v8757 = vpack.c.bf16 %v8749, %v8748
        %v8758 = vpack.c.bf16 %v8745, %v8744
        %v8759 = vpack.c.bf16 %v8741, %v8740
        %v8760 = vpack.c.bf16 %v8751, %v8750
        %v8761 = vpack.c.bf16 %v8747, %v8746
        %v8762 = vpack.c.bf16 %v8743, %v8742
        %v8767 = vunpack.c.l.b16 %v8753
        %v8768 = vunpack.c.l.b16 %v8754
        %v8769 = vunpack.c.l.b16 %v8755
        %v8770 = vunpack.c.l.b16 %v8756
        %v8771 = vpack.c.b16 %v8768, %v8767
        %v8772 = vpack.c.b16 %v8770, %v8769
        %v8774 = vsel %vm341, %v8771, 0
        %v8777 = vsel %vm341, %v8772, 0
        %8779 = vmatprep.subr.bf16.mxu0 0
        %8780 = vmatpush1.bf16.msra.mxu0 0
        %8781 = vmatprep.subr.bf16.mxu0 0
        %8782 = vmatpush1.bf16.msra.mxu0 0
        %8783 = vmatprep.subr.bf16.mxu0 0
        %8784 = vmatpush1.bf16.msra.mxu0 0
        %8785 = vmatprep.subr.bf16.mxu0 0
        %8786 = vmatpush1.bf16.msra.mxu0 0
        %8787 = vmatprep.subr.bf16.mxu0 0
        %8788 = vmatpush1.bf16.msra.mxu0 0
        %8789 = vmatprep.subr.bf16.mxu0 0
        %8790 = vmatpush1.bf16.msra.mxu0 0
        %8791 = vmatprep.subr.bf16.mxu0 %v8761
        %8792 = vmatpush1.bf16.msra.mxu0 %v8760
        %8793 = vmatprep.subr.bf16.mxu0 %v8758
        %8794 = vmatpush1.bf16.msra.mxu0 %v8757
        %8795 = vmatprep.subr.bf16.mxu0 0
        %8796 = vmatpush2.bf16.msra.mxu0 0
        %8797 = vmatprep.subr.bf16.mxu0 0
        %8798 = vmatpush2.bf16.msra.mxu0 0
        %8799 = vmatprep.subr.bf16.mxu0 0
        %8800 = vmatpush2.bf16.msra.mxu0 0
        %8801 = vmatprep.subr.bf16.mxu0 0
        %8802 = vmatpush2.bf16.msra.mxu0 0
        %8803 = vmatprep.subr.bf16.mxu0 0
        %8804 = vmatpush2.bf16.msra.mxu0 0
        %8805 = vmatprep.subr.bf16.mxu0 0
        %8806 = vmatpush2.bf16.msra.mxu0 0
        %8807 = vmatprep.subr.bf16.mxu0 0
        %8808 = vmatpush2.bf16.msra.mxu0 0
        %8809 = vmatprep.subr.bf16.mxu0 0
        %8810 = vmatpush2.bf16.msra.mxu0 0
        %8811 = vmatprep.mubr.bf16.mxu0 0
        %8812 = vmatmul.mubr.bf16.gmra.mxu0 %v8774
        %v8813 = vpop.f32.mrf.mxu0
        %v8814 = vadd.f32 0.0, %v8813
        %v8815 = vpop.f32.mrf.mxu0
        %v8816 = vadd.f32 0.0, %v8815
        %v8817 = vpop.f32.mrf.mxu0
        %v8818 = vadd.f32 0.0, %v8817
        %v8819 = vpop.f32.mrf.mxu0
        %v8820 = vadd.f32 0.0, %v8819
        %8821 = vmatprep.mubr.bf16.mxu0 0
        %8822 = vmatmul.mubr.bf16.gmra.mxu0 %v8777
        %v8823 = vpop.f32.mrf.mxu0
        %v8824 = vadd.f32 0.0, %v8823
        %v8825 = vpop.f32.mrf.mxu0
        %v8826 = vadd.f32 0.0, %v8825
        %v8827 = vpop.f32.mrf.mxu0
        %v8828 = vadd.f32 0.0, %v8827
        %v8829 = vpop.f32.mrf.mxu0
        %v8830 = vadd.f32 0.0, %v8829
        %8831 = vdwg.mxu0
        %8832 = vmatprep.subr.bf16.mxu0 0
        %8833 = vmatpush1.bf16.msra.mxu0 0
        %8834 = vmatprep.subr.bf16.mxu0 0
        %8835 = vmatpush1.bf16.msra.mxu0 0
        %8836 = vmatprep.subr.bf16.mxu0 0
        %8837 = vmatpush1.bf16.msra.mxu0 0
        %8838 = vmatprep.subr.bf16.mxu0 0
        %8839 = vmatpush1.bf16.msra.mxu0 0
        %8840 = vmatprep.subr.bf16.mxu0 0
        %8841 = vmatpush1.bf16.msra.mxu0 0
        %8842 = vmatprep.subr.bf16.mxu0 0
        %8843 = vmatpush1.bf16.msra.mxu0 0
        %8844 = vmatprep.subr.bf16.mxu0 0
        %8845 = vmatpush1.bf16.msra.mxu0 %v8762
        %8846 = vmatprep.subr.bf16.mxu0 0
        %8847 = vmatpush1.bf16.msra.mxu0 %v8759
        %8848 = vmatprep.subr.bf16.mxu0 0
        %8849 = vmatpush2.bf16.msra.mxu0 0
        %8850 = vmatprep.subr.bf16.mxu0 0
        %8851 = vmatpush2.bf16.msra.mxu0 0
        %8852 = vmatprep.subr.bf16.mxu0 0
        %8853 = vmatpush2.bf16.msra.mxu0 0
        %8854 = vmatprep.subr.bf16.mxu0 0
        %8855 = vmatpush2.bf16.msra.mxu0 0
        %8856 = vmatprep.subr.bf16.mxu0 0
        %8857 = vmatpush2.bf16.msra.mxu0 0
        %8858 = vmatprep.subr.bf16.mxu0 0
        %8859 = vmatpush2.bf16.msra.mxu0 0
        %8860 = vmatprep.subr.bf16.mxu0 0
        %8861 = vmatpush2.bf16.msra.mxu0 0
        %8862 = vmatprep.subr.bf16.mxu0 0
        %8863 = vmatpush2.bf16.msra.mxu0 0
        %8864 = vmatprep.mubr.bf16.mxu0 0
        %8865 = vmatmul.mubr.bf16.gmra.mxu0 %v8774
        %v8866 = vpop.f32.mrf.mxu0
        %v8867 = vadd.f32 0.0, %v8866
        %v8868 = vpop.f32.mrf.mxu0
        %v8869 = vpop.f32.mrf.mxu0
        %v8870 = vadd.f32 0.0, %v8869
        %v8871 = vpop.f32.mrf.mxu0
        %8872 = vmatprep.mubr.bf16.mxu0 0
        %8873 = vmatmul.mubr.bf16.gmra.mxu0 %v8777
        %v8874 = vpop.f32.mrf.mxu0
        %v8875 = vadd.f32 0.0, %v8874
        %v8876 = vpop.f32.mrf.mxu0
        %v8877 = vpop.f32.mrf.mxu0
        %v8878 = vadd.f32 0.0, %v8877
        %v8879 = vpop.f32.mrf.mxu0
        %8880 = vdwg.mxu0
        %v8881 = vadd.f32 %v8649, %v8814
        %v8882 = vadd.f32 %v8651, %v8816
        %v8883 = vadd.f32 %v8702, %v8867
        %v8884 = vadd.f32 %v8653, %v8818
        %v8885 = vadd.f32 %v8655, %v8820
        %v8886 = vadd.f32 %v8705, %v8870
        %v8887 = vadd.f32 %v8659, %v8824
        %v8888 = vadd.f32 %v8661, %v8826
        %v8889 = vadd.f32 %v8710, %v8875
        %v8890 = vadd.f32 %v8663, %v8828
        %v8891 = vadd.f32 %v8665, %v8830
        %v8892 = vadd.f32 %v8713, %v8878
        %8893 = vrot.lane.b32.xlu0 %v8374, 1
        %v8894 = vpop.permute.xlu0 %8893
        %8895 = vrot.lane.b32.xlu0 %v8377, 1
        %v8896 = vpop.permute.xlu0 %8895
        %8897 = vrot.lane.b32.xlu0 %v8380, 1
        %v8898 = vpop.permute.xlu0 %8897
        %8899 = vrot.lane.b32.xlu0 %v8383, 1
        %v8900 = vpop.permute.xlu0 %8899
        %8901 = vrot.lane.b32.xlu0 %v8375, 1
        %v8902 = vpop.permute.xlu0 %8901
        %8903 = vrot.lane.b32.xlu0 %v8378, 1
        %v8904 = vpop.permute.xlu0 %8903
        %8905 = vrot.lane.b32.xlu0 %v8381, 1
        %v8906 = vpop.permute.xlu0 %8905
        %8907 = vrot.lane.b32.xlu0 %v8384, 1
        %v8908 = vpop.permute.xlu0 %8907
        %8909 = vrot.lane.b32.xlu0 %v8376, 1
        %v8910 = vpop.permute.xlu0 %8909
        %8911 = vrot.lane.b32.xlu0 %v8379, 1
        %v8912 = vpop.permute.xlu0 %8911
        %8913 = vrot.lane.b32.xlu0 %v8382, 1
        %v8914 = vpop.permute.xlu0 %8913
        %8915 = vrot.lane.b32.xlu0 %v8385, 1
        %v8916 = vpop.permute.xlu0 %8915
        %v8917 = vsel %vm770, %v8902, %v8910
        %v8918 = vsel %vm770, %v8904, %v8912
        %v8919 = vsel %vm770, %v8906, %v8914
        %v8920 = vsel %vm770, %v8908, %v8916
        %v8921 = vsel %vm770, %v8894, %v8902
        %v8922 = vsel %vm770, %v8896, %v8904
        %v8923 = vsel %vm770, %v8898, %v8906
        %v8924 = vsel %vm770, %v8900, %v8908
        %v8925 = vsel %vm770, %v8910, %v8894
        %v8926 = vsel %vm770, %v8912, %v8896
        %v8927 = vsel %vm770, %v8914, %v8898
        %v8928 = vsel %vm770, %v8916, %v8900
        %s8929 = scalar_lea.vmem %s2, 768
        %v8930 = vld [vmem:[%s8929] sm:$0xf]
        %v8931 = vld [vmem:[%s8929 + $0x4] sm:$0xf]
        %v8932 = vld [vmem:[%s8929 + $0x8] sm:$0xf]
        %v8933 = vld [vmem:[%s8929 + $0xc] sm:$0xf]
        %v8934 = vpack.c.bf16 %v8926, %v8925
        %v8935 = vpack.c.bf16 %v8922, %v8921
        %v8936 = vpack.c.bf16 %v8918, %v8917
        %v8937 = vpack.c.bf16 %v8928, %v8927
        %v8938 = vpack.c.bf16 %v8924, %v8923
        %v8939 = vpack.c.bf16 %v8920, %v8919
        %v8944 = vunpack.c.l.b16 %v8930
        %v8945 = vunpack.c.l.b16 %v8931
        %v8946 = vunpack.c.l.b16 %v8932
        %v8947 = vunpack.c.l.b16 %v8933
        %v8948 = vpack.c.b16 %v8945, %v8944
        %v8949 = vpack.c.b16 %v8947, %v8946
        %v8951 = vsel %vm341, %v8948, 0
        %v8954 = vsel %vm341, %v8949, 0
        %8956 = vmatprep.subr.bf16.mxu0 0
        %8957 = vmatpush1.bf16.msra.mxu0 0
        %8958 = vmatprep.subr.bf16.mxu0 0
        %8959 = vmatpush1.bf16.msra.mxu0 0
        %8960 = vmatprep.subr.bf16.mxu0 0
        %8961 = vmatpush1.bf16.msra.mxu0 0
        %8962 = vmatprep.subr.bf16.mxu0 0
        %8963 = vmatpush1.bf16.msra.mxu0 0
        %8964 = vmatprep.subr.bf16.mxu0 0
        %8965 = vmatpush1.bf16.msra.mxu0 0
        %8966 = vmatprep.subr.bf16.mxu0 0
        %8967 = vmatpush1.bf16.msra.mxu0 0
        %8968 = vmatprep.subr.bf16.mxu0 %v8938
        %8969 = vmatpush1.bf16.msra.mxu0 %v8937
        %8970 = vmatprep.subr.bf16.mxu0 %v8935
        %8971 = vmatpush1.bf16.msra.mxu0 %v8934
        %8972 = vmatprep.subr.bf16.mxu0 0
        %8973 = vmatpush2.bf16.msra.mxu0 0
        %8974 = vmatprep.subr.bf16.mxu0 0
        %8975 = vmatpush2.bf16.msra.mxu0 0
        %8976 = vmatprep.subr.bf16.mxu0 0
        %8977 = vmatpush2.bf16.msra.mxu0 0
        %8978 = vmatprep.subr.bf16.mxu0 0
        %8979 = vmatpush2.bf16.msra.mxu0 0
        %8980 = vmatprep.subr.bf16.mxu0 0
        %8981 = vmatpush2.bf16.msra.mxu0 0
        %8982 = vmatprep.subr.bf16.mxu0 0
        %8983 = vmatpush2.bf16.msra.mxu0 0
        %8984 = vmatprep.subr.bf16.mxu0 0
        %8985 = vmatpush2.bf16.msra.mxu0 0
        %8986 = vmatprep.subr.bf16.mxu0 0
        %8987 = vmatpush2.bf16.msra.mxu0 0
        %8988 = vmatprep.mubr.bf16.mxu0 0
        %8989 = vmatmul.mubr.bf16.gmra.mxu0 %v8951
        %v8990 = vpop.f32.mrf.mxu0
        %v8991 = vadd.f32 0.0, %v8990
        %v8992 = vpop.f32.mrf.mxu0
        %v8993 = vadd.f32 0.0, %v8992
        %v8994 = vpop.f32.mrf.mxu0
        %v8995 = vadd.f32 0.0, %v8994
        %v8996 = vpop.f32.mrf.mxu0
        %v8997 = vadd.f32 0.0, %v8996
        %8998 = vmatprep.mubr.bf16.mxu0 0
        %8999 = vmatmul.mubr.bf16.gmra.mxu0 %v8954
        %v9000 = vpop.f32.mrf.mxu0
        %v9001 = vadd.f32 0.0, %v9000
        %v9002 = vpop.f32.mrf.mxu0
        %v9003 = vadd.f32 0.0, %v9002
        %v9004 = vpop.f32.mrf.mxu0
        %v9005 = vadd.f32 0.0, %v9004
        %v9006 = vpop.f32.mrf.mxu0
        %v9007 = vadd.f32 0.0, %v9006
        %9008 = vdwg.mxu0
        %9009 = vmatprep.subr.bf16.mxu0 0
        %9010 = vmatpush1.bf16.msra.mxu0 0
        %9011 = vmatprep.subr.bf16.mxu0 0
        %9012 = vmatpush1.bf16.msra.mxu0 0
        %9013 = vmatprep.subr.bf16.mxu0 0
        %9014 = vmatpush1.bf16.msra.mxu0 0
        %9015 = vmatprep.subr.bf16.mxu0 0
        %9016 = vmatpush1.bf16.msra.mxu0 0
        %9017 = vmatprep.subr.bf16.mxu0 0
        %9018 = vmatpush1.bf16.msra.mxu0 0
        %9019 = vmatprep.subr.bf16.mxu0 0
        %9020 = vmatpush1.bf16.msra.mxu0 0
        %9021 = vmatprep.subr.bf16.mxu0 0
        %9022 = vmatpush1.bf16.msra.mxu0 %v8939
        %9023 = vmatprep.subr.bf16.mxu0 0
        %9024 = vmatpush1.bf16.msra.mxu0 %v8936
        %9025 = vmatprep.subr.bf16.mxu0 0
        %9026 = vmatpush2.bf16.msra.mxu0 0
        %9027 = vmatprep.subr.bf16.mxu0 0
        %9028 = vmatpush2.bf16.msra.mxu0 0
        %9029 = vmatprep.subr.bf16.mxu0 0
        %9030 = vmatpush2.bf16.msra.mxu0 0
        %9031 = vmatprep.subr.bf16.mxu0 0
        %9032 = vmatpush2.bf16.msra.mxu0 0
        %9033 = vmatprep.subr.bf16.mxu0 0
        %9034 = vmatpush2.bf16.msra.mxu0 0
        %9035 = vmatprep.subr.bf16.mxu0 0
        %9036 = vmatpush2.bf16.msra.mxu0 0
        %9037 = vmatprep.subr.bf16.mxu0 0
        %9038 = vmatpush2.bf16.msra.mxu0 0
        %9039 = vmatprep.subr.bf16.mxu0 0
        %9040 = vmatpush2.bf16.msra.mxu0 0
        %9041 = vmatprep.mubr.bf16.mxu0 0
        %9042 = vmatmul.mubr.bf16.gmra.mxu0 %v8951
        %v9043 = vpop.f32.mrf.mxu0
        %v9044 = vadd.f32 0.0, %v9043
        %v9045 = vpop.f32.mrf.mxu0
        %v9046 = vpop.f32.mrf.mxu0
        %v9047 = vadd.f32 0.0, %v9046
        %v9048 = vpop.f32.mrf.mxu0
        %9049 = vmatprep.mubr.bf16.mxu0 0
        %9050 = vmatmul.mubr.bf16.gmra.mxu0 %v8954
        %v9051 = vpop.f32.mrf.mxu0
        %v9052 = vadd.f32 0.0, %v9051
        %v9053 = vpop.f32.mrf.mxu0
        %v9054 = vpop.f32.mrf.mxu0
        %v9055 = vadd.f32 0.0, %v9054
        %v9056 = vpop.f32.mrf.mxu0
        %9057 = vdwg.mxu0
        %v9058 = vadd.f32 %v8881, %v8991
        %v9059 = vadd.f32 %v8882, %v8993
        %v9060 = vadd.f32 %v8883, %v9044
        %v9061 = vadd.f32 %v8884, %v8995
        %v9062 = vadd.f32 %v8885, %v8997
        %v9063 = vadd.f32 %v8886, %v9047
        %v9064 = vadd.f32 %v8887, %v9001
        %v9065 = vadd.f32 %v8888, %v9003
        %v9066 = vadd.f32 %v8889, %v9052
        %v9067 = vadd.f32 %v8890, %v9005
        %v9068 = vadd.f32 %v8891, %v9007
        %v9069 = vadd.f32 %v8892, %v9055
        %s9070 = scalar_lea.vmem %s2, 784
        %v9071 = vld [vmem:[%s9070] sm:$0xf]
        %v9072 = vld [vmem:[%s9070 + $0x4] sm:$0xf]
        %v9073 = vld [vmem:[%s9070 + $0x8] sm:$0xf]
        %v9074 = vld [vmem:[%s9070 + $0xc] sm:$0xf]
        %v9075 = vpack.c.bf16 %v8377, %v8374
        %v9076 = vpack.c.bf16 %v8378, %v8375
        %v9077 = vpack.c.bf16 %v8379, %v8376
        %v9078 = vpack.c.bf16 %v8383, %v8380
        %v9079 = vpack.c.bf16 %v8384, %v8381
        %v9080 = vpack.c.bf16 %v8385, %v8382
        %v9085 = vunpack.c.l.b16 %v9071
        %v9086 = vunpack.c.l.b16 %v9072
        %v9087 = vunpack.c.l.b16 %v9073
        %v9088 = vunpack.c.l.b16 %v9074
        %v9089 = vpack.c.b16 %v9086, %v9085
        %v9090 = vpack.c.b16 %v9088, %v9087
        %v9092 = vsel %vm341, %v9089, 0
        %v9095 = vsel %vm341, %v9090, 0
        %9097 = vmatprep.subr.bf16.mxu0 0
        %9098 = vmatpush1.bf16.msra.mxu0 0
        %9099 = vmatprep.subr.bf16.mxu0 0
        %9100 = vmatpush1.bf16.msra.mxu0 0
        %9101 = vmatprep.subr.bf16.mxu0 0
        %9102 = vmatpush1.bf16.msra.mxu0 0
        %9103 = vmatprep.subr.bf16.mxu0 0
        %9104 = vmatpush1.bf16.msra.mxu0 0
        %9105 = vmatprep.subr.bf16.mxu0 0
        %9106 = vmatpush1.bf16.msra.mxu0 0
        %9107 = vmatprep.subr.bf16.mxu0 0
        %9108 = vmatpush1.bf16.msra.mxu0 0
        %9109 = vmatprep.subr.bf16.mxu0 %v9079
        %9110 = vmatpush1.bf16.msra.mxu0 %v9078
        %9111 = vmatprep.subr.bf16.mxu0 %v9076
        %9112 = vmatpush1.bf16.msra.mxu0 %v9075
        %9113 = vmatprep.subr.bf16.mxu0 0
        %9114 = vmatpush2.bf16.msra.mxu0 0
        %9115 = vmatprep.subr.bf16.mxu0 0
        %9116 = vmatpush2.bf16.msra.mxu0 0
        %9117 = vmatprep.subr.bf16.mxu0 0
        %9118 = vmatpush2.bf16.msra.mxu0 0
        %9119 = vmatprep.subr.bf16.mxu0 0
        %9120 = vmatpush2.bf16.msra.mxu0 0
        %9121 = vmatprep.subr.bf16.mxu0 0
        %9122 = vmatpush2.bf16.msra.mxu0 0
        %9123 = vmatprep.subr.bf16.mxu0 0
        %9124 = vmatpush2.bf16.msra.mxu0 0
        %9125 = vmatprep.subr.bf16.mxu0 0
        %9126 = vmatpush2.bf16.msra.mxu0 0
        %9127 = vmatprep.subr.bf16.mxu0 0
        %9128 = vmatpush2.bf16.msra.mxu0 0
        %9129 = vmatprep.mubr.bf16.mxu0 0
        %9130 = vmatmul.mubr.bf16.gmra.mxu0 %v9092
        %v9131 = vpop.f32.mrf.mxu0
        %v9132 = vadd.f32 0.0, %v9131
        %v9133 = vpop.f32.mrf.mxu0
        %v9134 = vadd.f32 0.0, %v9133
        %v9135 = vpop.f32.mrf.mxu0
        %v9136 = vadd.f32 0.0, %v9135
        %v9137 = vpop.f32.mrf.mxu0
        %v9138 = vadd.f32 0.0, %v9137
        %9139 = vmatprep.mubr.bf16.mxu0 0
        %9140 = vmatmul.mubr.bf16.gmra.mxu0 %v9095
        %v9141 = vpop.f32.mrf.mxu0
        %v9142 = vadd.f32 0.0, %v9141
        %v9143 = vpop.f32.mrf.mxu0
        %v9144 = vadd.f32 0.0, %v9143
        %v9145 = vpop.f32.mrf.mxu0
        %v9146 = vadd.f32 0.0, %v9145
        %v9147 = vpop.f32.mrf.mxu0
        %v9148 = vadd.f32 0.0, %v9147
        %9149 = vdwg.mxu0
        %9150 = vmatprep.subr.bf16.mxu0 0
        %9151 = vmatpush1.bf16.msra.mxu0 0
        %9152 = vmatprep.subr.bf16.mxu0 0
        %9153 = vmatpush1.bf16.msra.mxu0 0
        %9154 = vmatprep.subr.bf16.mxu0 0
        %9155 = vmatpush1.bf16.msra.mxu0 0
        %9156 = vmatprep.subr.bf16.mxu0 0
        %9157 = vmatpush1.bf16.msra.mxu0 0
        %9158 = vmatprep.subr.bf16.mxu0 0
        %9159 = vmatpush1.bf16.msra.mxu0 0
        %9160 = vmatprep.subr.bf16.mxu0 0
        %9161 = vmatpush1.bf16.msra.mxu0 0
        %9162 = vmatprep.subr.bf16.mxu0 0
        %9163 = vmatpush1.bf16.msra.mxu0 %v9080
        %9164 = vmatprep.subr.bf16.mxu0 0
        %9165 = vmatpush1.bf16.msra.mxu0 %v9077
        %9166 = vmatprep.subr.bf16.mxu0 0
        %9167 = vmatpush2.bf16.msra.mxu0 0
        %9168 = vmatprep.subr.bf16.mxu0 0
        %9169 = vmatpush2.bf16.msra.mxu0 0
        %9170 = vmatprep.subr.bf16.mxu0 0
        %9171 = vmatpush2.bf16.msra.mxu0 0
        %9172 = vmatprep.subr.bf16.mxu0 0
        %9173 = vmatpush2.bf16.msra.mxu0 0
        %9174 = vmatprep.subr.bf16.mxu0 0
        %9175 = vmatpush2.bf16.msra.mxu0 0
        %9176 = vmatprep.subr.bf16.mxu0 0
        %9177 = vmatpush2.bf16.msra.mxu0 0
        %9178 = vmatprep.subr.bf16.mxu0 0
        %9179 = vmatpush2.bf16.msra.mxu0 0
        %9180 = vmatprep.subr.bf16.mxu0 0
        %9181 = vmatpush2.bf16.msra.mxu0 0
        %9182 = vmatprep.mubr.bf16.mxu0 0
        %9183 = vmatmul.mubr.bf16.gmra.mxu0 %v9092
        %v9184 = vpop.f32.mrf.mxu0
        %v9185 = vadd.f32 0.0, %v9184
        %v9186 = vpop.f32.mrf.mxu0
        %v9187 = vpop.f32.mrf.mxu0
        %v9188 = vadd.f32 0.0, %v9187
        %v9189 = vpop.f32.mrf.mxu0
        %9190 = vmatprep.mubr.bf16.mxu0 0
        %9191 = vmatmul.mubr.bf16.gmra.mxu0 %v9095
        %v9192 = vpop.f32.mrf.mxu0
        %v9193 = vadd.f32 0.0, %v9192
        %v9194 = vpop.f32.mrf.mxu0
        %v9195 = vpop.f32.mrf.mxu0
        %v9196 = vadd.f32 0.0, %v9195
        %v9197 = vpop.f32.mrf.mxu0
        %9198 = vdwg.mxu0
        %v9199 = vadd.f32 %v9058, %v9132
        %v9200 = vadd.f32 %v9059, %v9134
        %v9201 = vadd.f32 %v9060, %v9185
        %v9202 = vadd.f32 %v9061, %v9136
        %v9203 = vadd.f32 %v9062, %v9138
        %v9204 = vadd.f32 %v9063, %v9188
        %v9205 = vadd.f32 %v9064, %v9142
        %v9206 = vadd.f32 %v9065, %v9144
        %v9207 = vadd.f32 %v9066, %v9193
        %v9208 = vadd.f32 %v9067, %v9146
        %v9209 = vadd.f32 %v9068, %v9148
        %v9210 = vadd.f32 %v9069, %v9196
        %9211 = vrot.lane.b32.xlu0 %v8374, 127
        %v9212 = vpop.permute.xlu0 %9211
        %9213 = vrot.lane.b32.xlu0 %v8377, 127
        %v9214 = vpop.permute.xlu0 %9213
        %9215 = vrot.lane.b32.xlu0 %v8380, 127
        %v9216 = vpop.permute.xlu0 %9215
        %9217 = vrot.lane.b32.xlu0 %v8383, 127
        %v9218 = vpop.permute.xlu0 %9217
        %9219 = vrot.lane.b32.xlu0 %v8375, 127
        %v9220 = vpop.permute.xlu0 %9219
        %9221 = vrot.lane.b32.xlu0 %v8378, 127
        %v9222 = vpop.permute.xlu0 %9221
        %9223 = vrot.lane.b32.xlu0 %v8381, 127
        %v9224 = vpop.permute.xlu0 %9223
        %9225 = vrot.lane.b32.xlu0 %v8384, 127
        %v9226 = vpop.permute.xlu0 %9225
        %9227 = vrot.lane.b32.xlu0 %v8376, 127
        %v9228 = vpop.permute.xlu0 %9227
        %9229 = vrot.lane.b32.xlu0 %v8379, 127
        %v9230 = vpop.permute.xlu0 %9229
        %9231 = vrot.lane.b32.xlu0 %v8382, 127
        %v9232 = vpop.permute.xlu0 %9231
        %9233 = vrot.lane.b32.xlu0 %v8385, 127
        %v9234 = vpop.permute.xlu0 %9233
        %v9235 = vsel %vm1089, %v9220, %v9228
        %v9236 = vsel %vm1089, %v9222, %v9230
        %v9237 = vsel %vm1089, %v9224, %v9232
        %v9238 = vsel %vm1089, %v9226, %v9234
        %v9239 = vsel %vm1089, %v9212, %v9220
        %v9240 = vsel %vm1089, %v9214, %v9222
        %v9241 = vsel %vm1089, %v9216, %v9224
        %v9242 = vsel %vm1089, %v9218, %v9226
        %v9243 = vsel %vm1089, %v9228, %v9212
        %v9244 = vsel %vm1089, %v9230, %v9214
        %v9245 = vsel %vm1089, %v9232, %v9216
        %v9246 = vsel %vm1089, %v9234, %v9218
        %s9247 = scalar_lea.vmem %s2, 800
        %v9248 = vld [vmem:[%s9247] sm:$0xf]
        %v9249 = vld [vmem:[%s9247 + $0x4] sm:$0xf]
        %v9250 = vld [vmem:[%s9247 + $0x8] sm:$0xf]
        %v9251 = vld [vmem:[%s9247 + $0xc] sm:$0xf]
        %v9252 = vpack.c.bf16 %v9240, %v9239
        %v9253 = vpack.c.bf16 %v9236, %v9235
        %v9254 = vpack.c.bf16 %v9244, %v9243
        %v9255 = vpack.c.bf16 %v9242, %v9241
        %v9256 = vpack.c.bf16 %v9238, %v9237
        %v9257 = vpack.c.bf16 %v9246, %v9245
        %v9262 = vunpack.c.l.b16 %v9248
        %v9263 = vunpack.c.l.b16 %v9249
        %v9264 = vunpack.c.l.b16 %v9250
        %v9265 = vunpack.c.l.b16 %v9251
        %v9266 = vpack.c.b16 %v9263, %v9262
        %v9267 = vpack.c.b16 %v9265, %v9264
        %v9269 = vsel %vm341, %v9266, 0
        %v9272 = vsel %vm341, %v9267, 0
        %9274 = vmatprep.subr.bf16.mxu0 0
        %9275 = vmatpush1.bf16.msra.mxu0 0
        %9276 = vmatprep.subr.bf16.mxu0 0
        %9277 = vmatpush1.bf16.msra.mxu0 0
        %9278 = vmatprep.subr.bf16.mxu0 0
        %9279 = vmatpush1.bf16.msra.mxu0 0
        %9280 = vmatprep.subr.bf16.mxu0 0
        %9281 = vmatpush1.bf16.msra.mxu0 0
        %9282 = vmatprep.subr.bf16.mxu0 0
        %9283 = vmatpush1.bf16.msra.mxu0 0
        %9284 = vmatprep.subr.bf16.mxu0 0
        %9285 = vmatpush1.bf16.msra.mxu0 0
        %9286 = vmatprep.subr.bf16.mxu0 %v9256
        %9287 = vmatpush1.bf16.msra.mxu0 %v9255
        %9288 = vmatprep.subr.bf16.mxu0 %v9253
        %9289 = vmatpush1.bf16.msra.mxu0 %v9252
        %9290 = vmatprep.subr.bf16.mxu0 0
        %9291 = vmatpush2.bf16.msra.mxu0 0
        %9292 = vmatprep.subr.bf16.mxu0 0
        %9293 = vmatpush2.bf16.msra.mxu0 0
        %9294 = vmatprep.subr.bf16.mxu0 0
        %9295 = vmatpush2.bf16.msra.mxu0 0
        %9296 = vmatprep.subr.bf16.mxu0 0
        %9297 = vmatpush2.bf16.msra.mxu0 0
        %9298 = vmatprep.subr.bf16.mxu0 0
        %9299 = vmatpush2.bf16.msra.mxu0 0
        %9300 = vmatprep.subr.bf16.mxu0 0
        %9301 = vmatpush2.bf16.msra.mxu0 0
        %9302 = vmatprep.subr.bf16.mxu0 0
        %9303 = vmatpush2.bf16.msra.mxu0 0
        %9304 = vmatprep.subr.bf16.mxu0 0
        %9305 = vmatpush2.bf16.msra.mxu0 0
        %9306 = vmatprep.mubr.bf16.mxu0 0
        %9307 = vmatmul.mubr.bf16.gmra.mxu0 %v9269
        %v9308 = vpop.f32.mrf.mxu0
        %v9309 = vadd.f32 0.0, %v9308
        %v9310 = vpop.f32.mrf.mxu0
        %v9311 = vadd.f32 0.0, %v9310
        %v9312 = vpop.f32.mrf.mxu0
        %v9313 = vadd.f32 0.0, %v9312
        %v9314 = vpop.f32.mrf.mxu0
        %v9315 = vadd.f32 0.0, %v9314
        %9316 = vmatprep.mubr.bf16.mxu0 0
        %9317 = vmatmul.mubr.bf16.gmra.mxu0 %v9272
        %v9318 = vpop.f32.mrf.mxu0
        %v9319 = vadd.f32 0.0, %v9318
        %v9320 = vpop.f32.mrf.mxu0
        %v9321 = vadd.f32 0.0, %v9320
        %v9322 = vpop.f32.mrf.mxu0
        %v9323 = vadd.f32 0.0, %v9322
        %v9324 = vpop.f32.mrf.mxu0
        %v9325 = vadd.f32 0.0, %v9324
        %9326 = vdwg.mxu0
        %9327 = vmatprep.subr.bf16.mxu0 0
        %9328 = vmatpush1.bf16.msra.mxu0 0
        %9329 = vmatprep.subr.bf16.mxu0 0
        %9330 = vmatpush1.bf16.msra.mxu0 0
        %9331 = vmatprep.subr.bf16.mxu0 0
        %9332 = vmatpush1.bf16.msra.mxu0 0
        %9333 = vmatprep.subr.bf16.mxu0 0
        %9334 = vmatpush1.bf16.msra.mxu0 0
        %9335 = vmatprep.subr.bf16.mxu0 0
        %9336 = vmatpush1.bf16.msra.mxu0 0
        %9337 = vmatprep.subr.bf16.mxu0 0
        %9338 = vmatpush1.bf16.msra.mxu0 0
        %9339 = vmatprep.subr.bf16.mxu0 0
        %9340 = vmatpush1.bf16.msra.mxu0 %v9257
        %9341 = vmatprep.subr.bf16.mxu0 0
        %9342 = vmatpush1.bf16.msra.mxu0 %v9254
        %9343 = vmatprep.subr.bf16.mxu0 0
        %9344 = vmatpush2.bf16.msra.mxu0 0
        %9345 = vmatprep.subr.bf16.mxu0 0
        %9346 = vmatpush2.bf16.msra.mxu0 0
        %9347 = vmatprep.subr.bf16.mxu0 0
        %9348 = vmatpush2.bf16.msra.mxu0 0
        %9349 = vmatprep.subr.bf16.mxu0 0
        %9350 = vmatpush2.bf16.msra.mxu0 0
        %9351 = vmatprep.subr.bf16.mxu0 0
        %9352 = vmatpush2.bf16.msra.mxu0 0
        %9353 = vmatprep.subr.bf16.mxu0 0
        %9354 = vmatpush2.bf16.msra.mxu0 0
        %9355 = vmatprep.subr.bf16.mxu0 0
        %9356 = vmatpush2.bf16.msra.mxu0 0
        %9357 = vmatprep.subr.bf16.mxu0 0
        %9358 = vmatpush2.bf16.msra.mxu0 0
        %9359 = vmatprep.mubr.bf16.mxu0 0
        %9360 = vmatmul.mubr.bf16.gmra.mxu0 %v9269
        %v9361 = vpop.f32.mrf.mxu0
        %v9362 = vadd.f32 0.0, %v9361
        %v9363 = vpop.f32.mrf.mxu0
        %v9364 = vpop.f32.mrf.mxu0
        %v9365 = vadd.f32 0.0, %v9364
        %v9366 = vpop.f32.mrf.mxu0
        %9367 = vmatprep.mubr.bf16.mxu0 0
        %9368 = vmatmul.mubr.bf16.gmra.mxu0 %v9272
        %v9369 = vpop.f32.mrf.mxu0
        %v9370 = vadd.f32 0.0, %v9369
        %v9371 = vpop.f32.mrf.mxu0
        %v9372 = vpop.f32.mrf.mxu0
        %v9373 = vadd.f32 0.0, %v9372
        %v9374 = vpop.f32.mrf.mxu0
        %9375 = vdwg.mxu0
        %v9376 = vadd.f32 %v9199, %v9309
        %v9377 = vadd.f32 %v9200, %v9311
        %v9378 = vadd.f32 %v9201, %v9362
        %v9379 = vadd.f32 %v9202, %v9313
        %v9380 = vadd.f32 %v9203, %v9315
        %v9381 = vadd.f32 %v9204, %v9365
        %v9382 = vadd.f32 %v9205, %v9319
        %v9383 = vadd.f32 %v9206, %v9321
        %v9384 = vadd.f32 %v9207, %v9370
        %v9385 = vadd.f32 %v9208, %v9323
        %v9386 = vadd.f32 %v9209, %v9325
        %v9387 = vadd.f32 %v9210, %v9373
        %9388 = vrot.lane.b32.xlu0 %v8374, 111
        %v9389 = vpop.permute.xlu0 %9388
        %9390 = vrot.lane.b32.xlu0 %v8377, 111
        %v9391 = vpop.permute.xlu0 %9390
        %9392 = vrot.lane.b32.xlu0 %v8380, 111
        %v9393 = vpop.permute.xlu0 %9392
        %9394 = vrot.lane.b32.xlu0 %v8383, 111
        %v9395 = vpop.permute.xlu0 %9394
        %9396 = vrot.lane.b32.xlu0 %v8375, 111
        %v9397 = vpop.permute.xlu0 %9396
        %9398 = vrot.lane.b32.xlu0 %v8378, 111
        %v9399 = vpop.permute.xlu0 %9398
        %9400 = vrot.lane.b32.xlu0 %v8381, 111
        %v9401 = vpop.permute.xlu0 %9400
        %9402 = vrot.lane.b32.xlu0 %v8384, 111
        %v9403 = vpop.permute.xlu0 %9402
        %9404 = vrot.lane.b32.xlu0 %v8376, 111
        %v9405 = vpop.permute.xlu0 %9404
        %9406 = vrot.lane.b32.xlu0 %v8379, 111
        %v9407 = vpop.permute.xlu0 %9406
        %9408 = vrot.lane.b32.xlu0 %v8382, 111
        %v9409 = vpop.permute.xlu0 %9408
        %9410 = vrot.lane.b32.xlu0 %v8385, 111
        %v9411 = vpop.permute.xlu0 %9410
        %v9412 = vsel %vm1267, %v9397, %v9405
        %v9413 = vsel %vm1267, %v9399, %v9407
        %v9414 = vsel %vm1267, %v9401, %v9409
        %v9415 = vsel %vm1267, %v9403, %v9411
        %v9416 = vsel %vm1267, %v9389, %v9397
        %v9417 = vsel %vm1267, %v9391, %v9399
        %v9418 = vsel %vm1267, %v9393, %v9401
        %v9419 = vsel %vm1267, %v9395, %v9403
        %v9420 = vsel %vm1267, %v9405, %v9389
        %v9421 = vsel %vm1267, %v9407, %v9391
        %v9422 = vsel %vm1267, %v9409, %v9393
        %v9423 = vsel %vm1267, %v9411, %v9395
        %s9424 = scalar_lea.vmem %s2, 816
        %v9425 = vld [vmem:[%s9424] sm:$0xf]
        %v9426 = vld [vmem:[%s9424 + $0x4] sm:$0xf]
        %v9427 = vld [vmem:[%s9424 + $0x8] sm:$0xf]
        %v9428 = vld [vmem:[%s9424 + $0xc] sm:$0xf]
        %v9429 = vpack.c.bf16 %v9417, %v9416
        %v9430 = vpack.c.bf16 %v9413, %v9412
        %v9431 = vpack.c.bf16 %v9421, %v9420
        %v9432 = vpack.c.bf16 %v9419, %v9418
        %v9433 = vpack.c.bf16 %v9415, %v9414
        %v9434 = vpack.c.bf16 %v9423, %v9422
        %v9439 = vunpack.c.l.b16 %v9425
        %v9440 = vunpack.c.l.b16 %v9426
        %v9441 = vunpack.c.l.b16 %v9427
        %v9442 = vunpack.c.l.b16 %v9428
        %v9443 = vpack.c.b16 %v9440, %v9439
        %v9444 = vpack.c.b16 %v9442, %v9441
        %v9446 = vsel %vm341, %v9443, 0
        %v9449 = vsel %vm341, %v9444, 0
        %9451 = vmatprep.subr.bf16.mxu0 0
        %9452 = vmatpush1.bf16.msra.mxu0 0
        %9453 = vmatprep.subr.bf16.mxu0 0
        %9454 = vmatpush1.bf16.msra.mxu0 0
        %9455 = vmatprep.subr.bf16.mxu0 0
        %9456 = vmatpush1.bf16.msra.mxu0 0
        %9457 = vmatprep.subr.bf16.mxu0 0
        %9458 = vmatpush1.bf16.msra.mxu0 0
        %9459 = vmatprep.subr.bf16.mxu0 0
        %9460 = vmatpush1.bf16.msra.mxu0 0
        %9461 = vmatprep.subr.bf16.mxu0 0
        %9462 = vmatpush1.bf16.msra.mxu0 0
        %9463 = vmatprep.subr.bf16.mxu0 %v9433
        %9464 = vmatpush1.bf16.msra.mxu0 %v9432
        %9465 = vmatprep.subr.bf16.mxu0 %v9430
        %9466 = vmatpush1.bf16.msra.mxu0 %v9429
        %9467 = vmatprep.subr.bf16.mxu0 0
        %9468 = vmatpush2.bf16.msra.mxu0 0
        %9469 = vmatprep.subr.bf16.mxu0 0
        %9470 = vmatpush2.bf16.msra.mxu0 0
        %9471 = vmatprep.subr.bf16.mxu0 0
        %9472 = vmatpush2.bf16.msra.mxu0 0
        %9473 = vmatprep.subr.bf16.mxu0 0
        %9474 = vmatpush2.bf16.msra.mxu0 0
        %9475 = vmatprep.subr.bf16.mxu0 0
        %9476 = vmatpush2.bf16.msra.mxu0 0
        %9477 = vmatprep.subr.bf16.mxu0 0
        %9478 = vmatpush2.bf16.msra.mxu0 0
        %9479 = vmatprep.subr.bf16.mxu0 0
        %9480 = vmatpush2.bf16.msra.mxu0 0
        %9481 = vmatprep.subr.bf16.mxu0 0
        %9482 = vmatpush2.bf16.msra.mxu0 0
        %9483 = vmatprep.mubr.bf16.mxu0 0
        %9484 = vmatmul.mubr.bf16.gmra.mxu0 %v9446
        %v9485 = vpop.f32.mrf.mxu0
        %v9486 = vadd.f32 0.0, %v9485
        %v9487 = vpop.f32.mrf.mxu0
        %v9488 = vadd.f32 0.0, %v9487
        %v9489 = vpop.f32.mrf.mxu0
        %v9490 = vadd.f32 0.0, %v9489
        %v9491 = vpop.f32.mrf.mxu0
        %v9492 = vadd.f32 0.0, %v9491
        %9493 = vmatprep.mubr.bf16.mxu0 0
        %9494 = vmatmul.mubr.bf16.gmra.mxu0 %v9449
        %v9495 = vpop.f32.mrf.mxu0
        %v9496 = vadd.f32 0.0, %v9495
        %v9497 = vpop.f32.mrf.mxu0
        %v9498 = vadd.f32 0.0, %v9497
        %v9499 = vpop.f32.mrf.mxu0
        %v9500 = vadd.f32 0.0, %v9499
        %v9501 = vpop.f32.mrf.mxu0
        %v9502 = vadd.f32 0.0, %v9501
        %9503 = vdwg.mxu0
        %9504 = vmatprep.subr.bf16.mxu0 0
        %9505 = vmatpush1.bf16.msra.mxu0 0
        %9506 = vmatprep.subr.bf16.mxu0 0
        %9507 = vmatpush1.bf16.msra.mxu0 0
        %9508 = vmatprep.subr.bf16.mxu0 0
        %9509 = vmatpush1.bf16.msra.mxu0 0
        %9510 = vmatprep.subr.bf16.mxu0 0
        %9511 = vmatpush1.bf16.msra.mxu0 0
        %9512 = vmatprep.subr.bf16.mxu0 0
        %9513 = vmatpush1.bf16.msra.mxu0 0
        %9514 = vmatprep.subr.bf16.mxu0 0
        %9515 = vmatpush1.bf16.msra.mxu0 0
        %9516 = vmatprep.subr.bf16.mxu0 0
        %9517 = vmatpush1.bf16.msra.mxu0 %v9434
        %9518 = vmatprep.subr.bf16.mxu0 0
        %9519 = vmatpush1.bf16.msra.mxu0 %v9431
        %9520 = vmatprep.subr.bf16.mxu0 0
        %9521 = vmatpush2.bf16.msra.mxu0 0
        %9522 = vmatprep.subr.bf16.mxu0 0
        %9523 = vmatpush2.bf16.msra.mxu0 0
        %9524 = vmatprep.subr.bf16.mxu0 0
        %9525 = vmatpush2.bf16.msra.mxu0 0
        %9526 = vmatprep.subr.bf16.mxu0 0
        %9527 = vmatpush2.bf16.msra.mxu0 0
        %9528 = vmatprep.subr.bf16.mxu0 0
        %9529 = vmatpush2.bf16.msra.mxu0 0
        %9530 = vmatprep.subr.bf16.mxu0 0
        %9531 = vmatpush2.bf16.msra.mxu0 0
        %9532 = vmatprep.subr.bf16.mxu0 0
        %9533 = vmatpush2.bf16.msra.mxu0 0
        %9534 = vmatprep.subr.bf16.mxu0 0
        %9535 = vmatpush2.bf16.msra.mxu0 0
        %9536 = vmatprep.mubr.bf16.mxu0 0
        %9537 = vmatmul.mubr.bf16.gmra.mxu0 %v9446
        %v9538 = vpop.f32.mrf.mxu0
        %v9539 = vadd.f32 0.0, %v9538
        %v9540 = vpop.f32.mrf.mxu0
        %v9541 = vpop.f32.mrf.mxu0
        %v9542 = vadd.f32 0.0, %v9541
        %v9543 = vpop.f32.mrf.mxu0
        %9544 = vmatprep.mubr.bf16.mxu0 0
        %9545 = vmatmul.mubr.bf16.gmra.mxu0 %v9449
        %v9546 = vpop.f32.mrf.mxu0
        %v9547 = vadd.f32 0.0, %v9546
        %v9548 = vpop.f32.mrf.mxu0
        %v9549 = vpop.f32.mrf.mxu0
        %v9550 = vadd.f32 0.0, %v9549
        %v9551 = vpop.f32.mrf.mxu0
        %9552 = vdwg.mxu0
        %v9553 = vadd.f32 %v9376, %v9486
        %v9554 = vadd.f32 %v9377, %v9488
        %v9555 = vadd.f32 %v9378, %v9539
        %v9556 = vadd.f32 %v9379, %v9490
        %v9557 = vadd.f32 %v9380, %v9492
        %v9558 = vadd.f32 %v9381, %v9542
        %v9559 = vadd.f32 %v9382, %v9496
        %v9560 = vadd.f32 %v9383, %v9498
        %v9561 = vadd.f32 %v9384, %v9547
        %v9562 = vadd.f32 %v9385, %v9500
        %v9563 = vadd.f32 %v9386, %v9502
        %v9564 = vadd.f32 %v9387, %v9550
        %9565 = vrot.lane.b32.xlu0 %v8374, 110
        %v9566 = vpop.permute.xlu0 %9565
        %9567 = vrot.lane.b32.xlu0 %v8377, 110
        %v9568 = vpop.permute.xlu0 %9567
        %9569 = vrot.lane.b32.xlu0 %v8380, 110
        %v9570 = vpop.permute.xlu0 %9569
        %9571 = vrot.lane.b32.xlu0 %v8383, 110
        %v9572 = vpop.permute.xlu0 %9571
        %9573 = vrot.lane.b32.xlu0 %v8375, 110
        %v9574 = vpop.permute.xlu0 %9573
        %9575 = vrot.lane.b32.xlu0 %v8378, 110
        %v9576 = vpop.permute.xlu0 %9575
        %9577 = vrot.lane.b32.xlu0 %v8381, 110
        %v9578 = vpop.permute.xlu0 %9577
        %9579 = vrot.lane.b32.xlu0 %v8384, 110
        %v9580 = vpop.permute.xlu0 %9579
        %9581 = vrot.lane.b32.xlu0 %v8376, 110
        %v9582 = vpop.permute.xlu0 %9581
        %9583 = vrot.lane.b32.xlu0 %v8379, 110
        %v9584 = vpop.permute.xlu0 %9583
        %9585 = vrot.lane.b32.xlu0 %v8382, 110
        %v9586 = vpop.permute.xlu0 %9585
        %9587 = vrot.lane.b32.xlu0 %v8385, 110
        %v9588 = vpop.permute.xlu0 %9587
        %v9589 = vsel %vm1445, %v9574, %v9582
        %v9590 = vsel %vm1445, %v9576, %v9584
        %v9591 = vsel %vm1445, %v9578, %v9586
        %v9592 = vsel %vm1445, %v9580, %v9588
        %v9593 = vsel %vm1445, %v9566, %v9574
        %v9594 = vsel %vm1445, %v9568, %v9576
        %v9595 = vsel %vm1445, %v9570, %v9578
        %v9596 = vsel %vm1445, %v9572, %v9580
        %v9597 = vsel %vm1445, %v9582, %v9566
        %v9598 = vsel %vm1445, %v9584, %v9568
        %v9599 = vsel %vm1445, %v9586, %v9570
        %v9600 = vsel %vm1445, %v9588, %v9572
        %s9601 = scalar_lea.vmem %s2, 832
        %v9602 = vld [vmem:[%s9601] sm:$0xf]
        %v9603 = vld [vmem:[%s9601 + $0x4] sm:$0xf]
        %v9604 = vld [vmem:[%s9601 + $0x8] sm:$0xf]
        %v9605 = vld [vmem:[%s9601 + $0xc] sm:$0xf]
        %v9606 = vpack.c.bf16 %v9594, %v9593
        %v9607 = vpack.c.bf16 %v9590, %v9589
        %v9608 = vpack.c.bf16 %v9598, %v9597
        %v9609 = vpack.c.bf16 %v9596, %v9595
        %v9610 = vpack.c.bf16 %v9592, %v9591
        %v9611 = vpack.c.bf16 %v9600, %v9599
        %v9616 = vunpack.c.l.b16 %v9602
        %v9617 = vunpack.c.l.b16 %v9603
        %v9618 = vunpack.c.l.b16 %v9604
        %v9619 = vunpack.c.l.b16 %v9605
        %v9620 = vpack.c.b16 %v9617, %v9616
        %v9621 = vpack.c.b16 %v9619, %v9618
        %v9623 = vsel %vm341, %v9620, 0
        %v9626 = vsel %vm341, %v9621, 0
        %9628 = vmatprep.subr.bf16.mxu0 0
        %9629 = vmatpush1.bf16.msra.mxu0 0
        %9630 = vmatprep.subr.bf16.mxu0 0
        %9631 = vmatpush1.bf16.msra.mxu0 0
        %9632 = vmatprep.subr.bf16.mxu0 0
        %9633 = vmatpush1.bf16.msra.mxu0 0
        %9634 = vmatprep.subr.bf16.mxu0 0
        %9635 = vmatpush1.bf16.msra.mxu0 0
        %9636 = vmatprep.subr.bf16.mxu0 0
        %9637 = vmatpush1.bf16.msra.mxu0 0
        %9638 = vmatprep.subr.bf16.mxu0 0
        %9639 = vmatpush1.bf16.msra.mxu0 0
        %9640 = vmatprep.subr.bf16.mxu0 %v9610
        %9641 = vmatpush1.bf16.msra.mxu0 %v9609
        %9642 = vmatprep.subr.bf16.mxu0 %v9607
        %9643 = vmatpush1.bf16.msra.mxu0 %v9606
        %9644 = vmatprep.subr.bf16.mxu0 0
        %9645 = vmatpush2.bf16.msra.mxu0 0
        %9646 = vmatprep.subr.bf16.mxu0 0
        %9647 = vmatpush2.bf16.msra.mxu0 0
        %9648 = vmatprep.subr.bf16.mxu0 0
        %9649 = vmatpush2.bf16.msra.mxu0 0
        %9650 = vmatprep.subr.bf16.mxu0 0
        %9651 = vmatpush2.bf16.msra.mxu0 0
        %9652 = vmatprep.subr.bf16.mxu0 0
        %9653 = vmatpush2.bf16.msra.mxu0 0
        %9654 = vmatprep.subr.bf16.mxu0 0
        %9655 = vmatpush2.bf16.msra.mxu0 0
        %9656 = vmatprep.subr.bf16.mxu0 0
        %9657 = vmatpush2.bf16.msra.mxu0 0
        %9658 = vmatprep.subr.bf16.mxu0 0
        %9659 = vmatpush2.bf16.msra.mxu0 0
        %9660 = vmatprep.mubr.bf16.mxu0 0
        %9661 = vmatmul.mubr.bf16.gmra.mxu0 %v9623
        %v9662 = vpop.f32.mrf.mxu0
        %v9663 = vadd.f32 0.0, %v9662
        %v9664 = vpop.f32.mrf.mxu0
        %v9665 = vadd.f32 0.0, %v9664
        %v9666 = vpop.f32.mrf.mxu0
        %v9667 = vadd.f32 0.0, %v9666
        %v9668 = vpop.f32.mrf.mxu0
        %v9669 = vadd.f32 0.0, %v9668
        %9670 = vmatprep.mubr.bf16.mxu0 0
        %9671 = vmatmul.mubr.bf16.gmra.mxu0 %v9626
        %v9672 = vpop.f32.mrf.mxu0
        %v9673 = vadd.f32 0.0, %v9672
        %v9674 = vpop.f32.mrf.mxu0
        %v9675 = vadd.f32 0.0, %v9674
        %v9676 = vpop.f32.mrf.mxu0
        %v9677 = vadd.f32 0.0, %v9676
        %v9678 = vpop.f32.mrf.mxu0
        %v9679 = vadd.f32 0.0, %v9678
        %9680 = vdwg.mxu0
        %9681 = vmatprep.subr.bf16.mxu0 0
        %9682 = vmatpush1.bf16.msra.mxu0 0
        %9683 = vmatprep.subr.bf16.mxu0 0
        %9684 = vmatpush1.bf16.msra.mxu0 0
        %9685 = vmatprep.subr.bf16.mxu0 0
        %9686 = vmatpush1.bf16.msra.mxu0 0
        %9687 = vmatprep.subr.bf16.mxu0 0
        %9688 = vmatpush1.bf16.msra.mxu0 0
        %9689 = vmatprep.subr.bf16.mxu0 0
        %9690 = vmatpush1.bf16.msra.mxu0 0
        %9691 = vmatprep.subr.bf16.mxu0 0
        %9692 = vmatpush1.bf16.msra.mxu0 0
        %9693 = vmatprep.subr.bf16.mxu0 0
        %9694 = vmatpush1.bf16.msra.mxu0 %v9611
        %9695 = vmatprep.subr.bf16.mxu0 0
        %9696 = vmatpush1.bf16.msra.mxu0 %v9608
        %9697 = vmatprep.subr.bf16.mxu0 0
        %9698 = vmatpush2.bf16.msra.mxu0 0
        %9699 = vmatprep.subr.bf16.mxu0 0
        %9700 = vmatpush2.bf16.msra.mxu0 0
        %9701 = vmatprep.subr.bf16.mxu0 0
        %9702 = vmatpush2.bf16.msra.mxu0 0
        %9703 = vmatprep.subr.bf16.mxu0 0
        %9704 = vmatpush2.bf16.msra.mxu0 0
        %9705 = vmatprep.subr.bf16.mxu0 0
        %9706 = vmatpush2.bf16.msra.mxu0 0
        %9707 = vmatprep.subr.bf16.mxu0 0
        %9708 = vmatpush2.bf16.msra.mxu0 0
        %9709 = vmatprep.subr.bf16.mxu0 0
        %9710 = vmatpush2.bf16.msra.mxu0 0
        %9711 = vmatprep.subr.bf16.mxu0 0
        %9712 = vmatpush2.bf16.msra.mxu0 0
        %9713 = vmatprep.mubr.bf16.mxu0 0
        %9714 = vmatmul.mubr.bf16.gmra.mxu0 %v9623
        %v9715 = vpop.f32.mrf.mxu0
        %v9716 = vadd.f32 0.0, %v9715
        %v9717 = vpop.f32.mrf.mxu0
        %v9718 = vpop.f32.mrf.mxu0
        %v9719 = vadd.f32 0.0, %v9718
        %v9720 = vpop.f32.mrf.mxu0
        %9721 = vmatprep.mubr.bf16.mxu0 0
        %9722 = vmatmul.mubr.bf16.gmra.mxu0 %v9626
        %v9723 = vpop.f32.mrf.mxu0
        %v9724 = vadd.f32 0.0, %v9723
        %v9725 = vpop.f32.mrf.mxu0
        %v9726 = vpop.f32.mrf.mxu0
        %v9727 = vadd.f32 0.0, %v9726
        %v9728 = vpop.f32.mrf.mxu0
        %9729 = vdwg.mxu0
        %v9730 = vadd.f32 %v9553, %v9663
        %v9731 = vadd.f32 %v9554, %v9665
        %v9732 = vadd.f32 %v9555, %v9716
        %v9733 = vadd.f32 %v9556, %v9667
        %v9734 = vadd.f32 %v9557, %v9669
        %v9735 = vadd.f32 %v9558, %v9719
        %v9736 = vadd.f32 %v9559, %v9673
        %v9737 = vadd.f32 %v9560, %v9675
        %v9738 = vadd.f32 %v9561, %v9724
        %v9739 = vadd.f32 %v9562, %v9677
        %v9740 = vadd.f32 %v9563, %v9679
        %v9741 = vadd.f32 %v9564, %v9727
        %9742 = vrot.lane.b32.xlu0 %v8374, 109
        %v9743 = vpop.permute.xlu0 %9742
        %9744 = vrot.lane.b32.xlu0 %v8377, 109
        %v9745 = vpop.permute.xlu0 %9744
        %9746 = vrot.lane.b32.xlu0 %v8380, 109
        %v9747 = vpop.permute.xlu0 %9746
        %9748 = vrot.lane.b32.xlu0 %v8383, 109
        %v9749 = vpop.permute.xlu0 %9748
        %9750 = vrot.lane.b32.xlu0 %v8375, 109
        %v9751 = vpop.permute.xlu0 %9750
        %9752 = vrot.lane.b32.xlu0 %v8378, 109
        %v9753 = vpop.permute.xlu0 %9752
        %9754 = vrot.lane.b32.xlu0 %v8381, 109
        %v9755 = vpop.permute.xlu0 %9754
        %9756 = vrot.lane.b32.xlu0 %v8384, 109
        %v9757 = vpop.permute.xlu0 %9756
        %9758 = vrot.lane.b32.xlu0 %v8376, 109
        %v9759 = vpop.permute.xlu0 %9758
        %9760 = vrot.lane.b32.xlu0 %v8379, 109
        %v9761 = vpop.permute.xlu0 %9760
        %9762 = vrot.lane.b32.xlu0 %v8382, 109
        %v9763 = vpop.permute.xlu0 %9762
        %9764 = vrot.lane.b32.xlu0 %v8385, 109
        %v9765 = vpop.permute.xlu0 %9764
        %v9766 = vsel %vm1623, %v9751, %v9759
        %v9767 = vsel %vm1623, %v9753, %v9761
        %v9768 = vsel %vm1623, %v9755, %v9763
        %v9769 = vsel %vm1623, %v9757, %v9765
        %v9770 = vsel %vm1623, %v9743, %v9751
        %v9771 = vsel %vm1623, %v9745, %v9753
        %v9772 = vsel %vm1623, %v9747, %v9755
        %v9773 = vsel %vm1623, %v9749, %v9757
        %v9774 = vsel %vm1623, %v9759, %v9743
        %v9775 = vsel %vm1623, %v9761, %v9745
        %v9776 = vsel %vm1623, %v9763, %v9747
        %v9777 = vsel %vm1623, %v9765, %v9749
        %s9778 = scalar_lea.vmem %s2, 848
        %v9779 = vld [vmem:[%s9778] sm:$0xf]
        %v9780 = vld [vmem:[%s9778 + $0x4] sm:$0xf]
        %v9781 = vld [vmem:[%s9778 + $0x8] sm:$0xf]
        %v9782 = vld [vmem:[%s9778 + $0xc] sm:$0xf]
        %v9783 = vpack.c.bf16 %v9771, %v9770
        %v9784 = vpack.c.bf16 %v9767, %v9766
        %v9785 = vpack.c.bf16 %v9775, %v9774
        %v9786 = vpack.c.bf16 %v9773, %v9772
        %v9787 = vpack.c.bf16 %v9769, %v9768
        %v9788 = vpack.c.bf16 %v9777, %v9776
        %v9793 = vunpack.c.l.b16 %v9779
        %v9794 = vunpack.c.l.b16 %v9780
        %v9795 = vunpack.c.l.b16 %v9781
        %v9796 = vunpack.c.l.b16 %v9782
        %v9797 = vpack.c.b16 %v9794, %v9793
        %v9798 = vpack.c.b16 %v9796, %v9795
        %v9800 = vsel %vm341, %v9797, 0
        %v9803 = vsel %vm341, %v9798, 0
        %9805 = vmatprep.subr.bf16.mxu0 0
        %9806 = vmatpush1.bf16.msra.mxu0 0
        %9807 = vmatprep.subr.bf16.mxu0 0
        %9808 = vmatpush1.bf16.msra.mxu0 0
        %9809 = vmatprep.subr.bf16.mxu0 0
        %9810 = vmatpush1.bf16.msra.mxu0 0
        %9811 = vmatprep.subr.bf16.mxu0 0
        %9812 = vmatpush1.bf16.msra.mxu0 0
        %9813 = vmatprep.subr.bf16.mxu0 0
        %9814 = vmatpush1.bf16.msra.mxu0 0
        %9815 = vmatprep.subr.bf16.mxu0 0
        %9816 = vmatpush1.bf16.msra.mxu0 0
        %9817 = vmatprep.subr.bf16.mxu0 %v9787
        %9818 = vmatpush1.bf16.msra.mxu0 %v9786
        %9819 = vmatprep.subr.bf16.mxu0 %v9784
        %9820 = vmatpush1.bf16.msra.mxu0 %v9783
        %9821 = vmatprep.subr.bf16.mxu0 0
        %9822 = vmatpush2.bf16.msra.mxu0 0
        %9823 = vmatprep.subr.bf16.mxu0 0
        %9824 = vmatpush2.bf16.msra.mxu0 0
        %9825 = vmatprep.subr.bf16.mxu0 0
        %9826 = vmatpush2.bf16.msra.mxu0 0
        %9827 = vmatprep.subr.bf16.mxu0 0
        %9828 = vmatpush2.bf16.msra.mxu0 0
        %9829 = vmatprep.subr.bf16.mxu0 0
        %9830 = vmatpush2.bf16.msra.mxu0 0
        %9831 = vmatprep.subr.bf16.mxu0 0
        %9832 = vmatpush2.bf16.msra.mxu0 0
        %9833 = vmatprep.subr.bf16.mxu0 0
        %9834 = vmatpush2.bf16.msra.mxu0 0
        %9835 = vmatprep.subr.bf16.mxu0 0
        %9836 = vmatpush2.bf16.msra.mxu0 0
        %9837 = vmatprep.mubr.bf16.mxu0 0
        %9838 = vmatmul.mubr.bf16.gmra.mxu0 %v9800
        %v9839 = vpop.f32.mrf.mxu0
        %v9840 = vadd.f32 0.0, %v9839
        %v9841 = vpop.f32.mrf.mxu0
        %v9842 = vadd.f32 0.0, %v9841
        %v9843 = vpop.f32.mrf.mxu0
        %v9844 = vadd.f32 0.0, %v9843
        %v9845 = vpop.f32.mrf.mxu0
        %v9846 = vadd.f32 0.0, %v9845
        %9847 = vmatprep.mubr.bf16.mxu0 0
        %9848 = vmatmul.mubr.bf16.gmra.mxu0 %v9803
        %v9849 = vpop.f32.mrf.mxu0
        %v9850 = vadd.f32 0.0, %v9849
        %v9851 = vpop.f32.mrf.mxu0
        %v9852 = vadd.f32 0.0, %v9851
        %v9853 = vpop.f32.mrf.mxu0
        %v9854 = vadd.f32 0.0, %v9853
        %v9855 = vpop.f32.mrf.mxu0
        %v9856 = vadd.f32 0.0, %v9855
        %9857 = vdwg.mxu0
        %9858 = vmatprep.subr.bf16.mxu0 0
        %9859 = vmatpush1.bf16.msra.mxu0 0
        %9860 = vmatprep.subr.bf16.mxu0 0
        %9861 = vmatpush1.bf16.msra.mxu0 0
        %9862 = vmatprep.subr.bf16.mxu0 0
        %9863 = vmatpush1.bf16.msra.mxu0 0
        %9864 = vmatprep.subr.bf16.mxu0 0
        %9865 = vmatpush1.bf16.msra.mxu0 0
        %9866 = vmatprep.subr.bf16.mxu0 0
        %9867 = vmatpush1.bf16.msra.mxu0 0
        %9868 = vmatprep.subr.bf16.mxu0 0
        %9869 = vmatpush1.bf16.msra.mxu0 0
        %9870 = vmatprep.subr.bf16.mxu0 0
        %9871 = vmatpush1.bf16.msra.mxu0 %v9788
        %9872 = vmatprep.subr.bf16.mxu0 0
        %9873 = vmatpush1.bf16.msra.mxu0 %v9785
        %9874 = vmatprep.subr.bf16.mxu0 0
        %9875 = vmatpush2.bf16.msra.mxu0 0
        %9876 = vmatprep.subr.bf16.mxu0 0
        %9877 = vmatpush2.bf16.msra.mxu0 0
        %9878 = vmatprep.subr.bf16.mxu0 0
        %9879 = vmatpush2.bf16.msra.mxu0 0
        %9880 = vmatprep.subr.bf16.mxu0 0
        %9881 = vmatpush2.bf16.msra.mxu0 0
        %9882 = vmatprep.subr.bf16.mxu0 0
        %9883 = vmatpush2.bf16.msra.mxu0 0
        %9884 = vmatprep.subr.bf16.mxu0 0
        %9885 = vmatpush2.bf16.msra.mxu0 0
        %9886 = vmatprep.subr.bf16.mxu0 0
        %9887 = vmatpush2.bf16.msra.mxu0 0
        %9888 = vmatprep.subr.bf16.mxu0 0
        %9889 = vmatpush2.bf16.msra.mxu0 0
        %9890 = vmatprep.mubr.bf16.mxu0 0
        %9891 = vmatmul.mubr.bf16.gmra.mxu0 %v9800
        %v9892 = vpop.f32.mrf.mxu0
        %v9893 = vadd.f32 0.0, %v9892
        %v9894 = vpop.f32.mrf.mxu0
        %v9895 = vpop.f32.mrf.mxu0
        %v9896 = vadd.f32 0.0, %v9895
        %v9897 = vpop.f32.mrf.mxu0
        %9898 = vmatprep.mubr.bf16.mxu0 0
        %9899 = vmatmul.mubr.bf16.gmra.mxu0 %v9803
        %v9900 = vpop.f32.mrf.mxu0
        %v9901 = vadd.f32 0.0, %v9900
        %v9902 = vpop.f32.mrf.mxu0
        %v9903 = vpop.f32.mrf.mxu0
        %v9904 = vadd.f32 0.0, %v9903
        %v9905 = vpop.f32.mrf.mxu0
        %9906 = vdwg.mxu0
        %v9907 = vadd.f32 %v9730, %v9840
        %v9908 = vadd.f32 %v9731, %v9842
        %v9909 = vadd.f32 %v9732, %v9893
        %v9910 = vadd.f32 %v9733, %v9844
        %v9911 = vadd.f32 %v9734, %v9846
        %v9912 = vadd.f32 %v9735, %v9896
        %v9913 = vadd.f32 %v9736, %v9850
        %v9914 = vadd.f32 %v9737, %v9852
        %v9915 = vadd.f32 %v9738, %v9901
        %v9916 = vadd.f32 %v9739, %v9854
        %v9917 = vadd.f32 %v9740, %v9856
        %v9918 = vadd.f32 %v9741, %v9904
        %s9919 = scalar_lea.vmem %s3, 160
        %v9920 = vld [vmem:[%s9919] sm:$0xff]
        %v9921 = vld [vmem:[%s9919 + $0x8] sm:$0xff]
        %v9922 = vld [vmem:[%s9919 + $0x10] sm:$0xff]
        %v9923 = vld [vmem:[%s9919 + $0x18] sm:$0xff]
        %9925 = vset.pattern.permute.xlu0 0
        %9926 = vperm.xlu0 %9925, %v9920
        %v9927 = vpop.permute.xlu0 %9926
        %9930 = vset.pattern.permute.xlu0 0
        %9931 = vperm.xlu0 %9930, %v9921
        %v9932 = vpop.permute.xlu0 %9931
        %9935 = vset.pattern.permute.xlu0 0
        %9936 = vperm.xlu0 %9935, %v9922
        %v9937 = vpop.permute.xlu0 %9936
        %9940 = vset.pattern.permute.xlu0 0
        %9941 = vperm.xlu0 %9940, %v9923
        %v9942 = vpop.permute.xlu0 %9941
        %v9944 = vadd.f32 %v9907, %v9927
        %v9945 = vadd.f32 %v9908, %v9927
        %v9946 = vadd.f32 %v9909, %v9927
        %v9947 = vadd.f32 %v9910, %v9932
        %v9948 = vadd.f32 %v9911, %v9932
        %v9949 = vadd.f32 %v9912, %v9932
        %v9950 = vadd.f32 %v9913, %v9937
        %v9951 = vadd.f32 %v9914, %v9937
        %v9952 = vadd.f32 %v9915, %v9937
        %v9953 = vadd.f32 %v9916, %v9942
        %v9954 = vadd.f32 %v9917, %v9942
        %v9955 = vadd.f32 %v9918, %v9942
        %v9956 = vmul.f32 %v9944, %v1829
        %v9957 = vmul.f32 %v9945, %v1833
        %v9958 = vmul.f32 %v9946, %v1837
        %v9959 = vmul.f32 %v9947, %v1829
        %v9960 = vmul.f32 %v9948, %v1833
        %v9961 = vmul.f32 %v9949, %v1837
        %v9962 = vmul.f32 %v9950, %v1829
        %v9963 = vmul.f32 %v9951, %v1833
        %v9964 = vmul.f32 %v9952, %v1837
        %v9965 = vmul.f32 %v9953, %v1829
        %v9966 = vmul.f32 %v9954, %v1833
        %v9967 = vmul.f32 %v9955, %v1837
        %v9968 = vld [vmem:[%s190] sm:$0xff]
        %v9969 = vld [vmem:[%s190 + $0x8] sm:$0xff]
        %v9970 = vld [vmem:[%s190 + $0x10] sm:$0xff]
        %v9971 = vld [vmem:[%s190 + $0x18] sm:$0xff]
        %v9972 = vld [vmem:[%s190 + $0x20] sm:$0xff]
        %v9973 = vld [vmem:[%s190 + $0x28] sm:$0xff]
        %v9974 = vld [vmem:[%s190 + $0x30] sm:$0xff]
        %v9975 = vld [vmem:[%s190 + $0x38] sm:$0xff]
        %v9976 = vld [vmem:[%s190 + $0x40] sm:$0xff]
        %v9977 = vld [vmem:[%s190 + $0x48] sm:$0xff]
        %v9978 = vld [vmem:[%s190 + $0x50] sm:$0xff]
        %v9979 = vld [vmem:[%s190 + $0x58] sm:$0xff]
        %v9980 = vadd.f32 %v9956, %v9968
        %v9981 = vadd.f32 %v9957, %v9969
        %v9982 = vadd.f32 %v9958, %v9970
        %v9983 = vadd.f32 %v9959, %v9971
        %v9984 = vadd.f32 %v9960, %v9972
        %v9985 = vadd.f32 %v9961, %v9973
        %v9986 = vadd.f32 %v9962, %v9974
        %v9987 = vadd.f32 %v9963, %v9975
        %v9988 = vadd.f32 %v9964, %v9976
        %v9989 = vadd.f32 %v9965, %v9977
        %v9990 = vadd.f32 %v9966, %v9978
        %v9991 = vadd.f32 %v9967, %v9979
        %9992 = vst [vmem:[%s190] sm:$0xff] %v9980
        %9993 = vst [vmem:[%s190 + $0x8] sm:$0xff] %v9981
        %9994 = vst [vmem:[%s190 + $0x10] sm:$0xff] %v9982
        %9995 = vst [vmem:[%s190 + $0x18] sm:$0xff] %v9983
        %9996 = vst [vmem:[%s190 + $0x20] sm:$0xff] %v9984
        %9997 = vst [vmem:[%s190 + $0x28] sm:$0xff] %v9985
        %9998 = vst [vmem:[%s190 + $0x30] sm:$0xff] %v9986
        %9999 = vst [vmem:[%s190 + $0x38] sm:$0xff] %v9987
        %10000 = vst [vmem:[%s190 + $0x40] sm:$0xff] %v9988
        %10001 = vst [vmem:[%s190 + $0x48] sm:$0xff] %v9989
        %10002 = vst [vmem:[%s190 + $0x50] sm:$0xff] %v9990
        %10003 = vst [vmem:[%s190 + $0x58] sm:$0xff] %v9991
        %s10004 = sand.u32 %s115, 1
        %s10005 = scalar_lea.sflag [#allocation4], %s10004
        %s10006 = sand.u32 %s115, 1
        %s10007 = smul.addr %s10006, 96
        %s10008 = scalar_lea.vmem [#allocation3], %s10007
        // Predicated region
        $region37: #{tpu_custom_call.1} parent=35 // pred_check
          %p10009 = pneg %p125
        $region38: #{tpu_custom_call.1} parent=35 // pred_check_branch
          %10011 = sbr.rel (%p10009) target = $region40
        $region39: #{tpu_custom_call.1} parent=35 // pred_region
          %s10013 = ssub.s32 1536, 1536
          %10014 = vsyncadd %s10005, %s10013
          %s10015 = smul.addr %s18, 12
          %s10016 = smul.addr %s10015, 128
          %s10017 = scalar_lea.hbm %s4, %s10016
          %s10018 = sshll.u32 %s10008, 4
          %s10019 = int_to_ptr.vmem [resolvable:$true] %s10018
          %10024 = dma.vmem_to_hbm [thread:$0]  %s10019, 1536, %s10017, %s10005, 384, 384, 24
        $region40: #{tpu_custom_call.1} parent=35 // pred_fallthru
          _
      $region36: #{tpu_custom_call.1} parent=5 // pred_fallthru
        _
      %p10025 = scmp.le.s32.totalorder 2, %s13
      // Predicated region
      $region41: #{tpu_custom_call.1} parent=5 // pred_check
        %p10026 = pneg %p10025
      $region42: #{tpu_custom_call.1} parent=5 // pred_check_branch
        %10028 = sbr.rel (%p10026) target = $region44
      $region43: #{tpu_custom_call.1} parent=5 // pred_region
        %s10029 = ssub.s32 %s13, 2
        // Predicated region
        $region45: #{tpu_custom_call.1} parent=43 // pred_check
          %p10030 = pneg %p131
        $region46: #{tpu_custom_call.1} parent=43 // pred_check_branch
          %10032 = sbr.rel (%p10030) target = $region48
        $region47: #{tpu_custom_call.1} parent=43 // pred_region
          %s10033 = sand.u32 %s116, 1
          %s10034 = scalar_lea.sflag [#allocation4], %s10033
          %s10035 = sand.u32 %s116, 1
          %s10036 = smul.addr %s10035, 96
          %s10037 = scalar_lea.vmem [#allocation3], %s10036
          %10038 = dma.done %s10034, 1536
        $region48: #{tpu_custom_call.1} parent=43 // pred_fallthru
          _
      $region44: #{tpu_custom_call.1} parent=5 // pred_fallthru
        _
    $region6: #{tpu_custom_call.1} parent=1 // loop_footer
      %s17 = sadd.s32 1, %s13
    $region7: #{tpu_custom_call.1} parent=1 // loop_footer_branch
      %12 = sbr.rel target = $region3
    $region8: #{tpu_custom_call.1} parent=1 // loop_exit
      _
    %10039 = vsyncpa [#allocation4], 1
    %s10040 = scalar_lea.sflag [#allocation4], 1
    %10041 = vsyncpa %s10040, 1

</llo_original>
